<compile_context>
chip_gen: v7x
topology: tpu7x:2x2x1
jax: 0.10.0
libtpu: 0.0.40
codegen_flags: <defaults>
</compile_context>

<pallas_src>
import numpy as np
import jax
import jax.numpy as jnp
from jax.experimental import pallas as pl
from jax.experimental.pallas import tpu as pltpu

NB = 8            # images per grid step
K = 5             # conv kernel size
H1, W1, C1 = 28, 28, 16     # conv1 output spatial / channels
H2, W2, C2 = 14, 14, 32     # conv2 output spatial / channels
H3 = 7                      # pooled conv2 spatial
HP1, WP1 = 32, 32           # height/width padded conv1 input (28+2+2, 28+4 lane pad)
HP2 = 18                    # height padded conv2 input rows (14+2+2)
LP1 = 256                   # pooled1 lane width: (w2, c1) = 14*16 = 224 valid, padded to 256
LP2 = 256                   # pooled2 lane width: (w3, c2) = 7*32  = 224 valid, padded to 256
N1 = 512                    # conv1 matmul N: two width-parity halves of 256
N2 = 512                    # conv2 matmul N
NOUT = 128                  # padded logits lanes (10 valid)


# ---------------------------------------------------------------------------
# The fused kernel (one batch tile of NB images per grid step)
# ---------------------------------------------------------------------------
def _cnn_kernel(x_ref, m1_ref, b1_ref, m2_ref, b2_ref, w3_ref, b3_ref, o_ref,
                c1_s, p1_s, c2_s, lin_s):
    # Zero only the 2-row top / bottom height-padding of the conv2 input scratch.  Every other
    # scratch row is fully rewritten below each step -> no cross-step state, "parallel" is safe.
    p1_s[0:2 * NB, :] = jnp.zeros((2 * NB, LP1), jnp.float32)
    p1_s[16 * NB:18 * NB, :] = jnp.zeros((2 * NB, LP1), jnp.float32)

    # ---- conv1: 5 banded MXU matmuls over all NB images at once (rows = h*NB + n) -------------
    for kh in range(K):
        lhs = x_ref[0, pl.ds(kh * NB, H1 * NB), :]                      # (224, 32), aligned slice
        part = jnp.dot(lhs, m1_ref[kh], preferred_element_type=jnp.float32)   # (224, 512)
        if kh == 0:
            c1_s[...] = part
        else:
            c1_s[...] += part

    # ---- pool1 (2x2) + bias + ReLU -> height-padded conv2 input scratch ------------------------
    b1v = b1_ref[...]                                                   # (1, 256)
    for h in range(H2):                                                 # 14
        top = c1_s[pl.ds((2 * h) * NB, NB), :]                          # (8, 512) aligned tile
        bot = c1_s[pl.ds((2 * h + 1) * NB, NB), :]
        hp = jnp.maximum(top, bot)                                      # height pool
        wp = jnp.maximum(hp[:, 0:256], hp[:, 256:512])                  # width pool (parity halves)
        p1_s[pl.ds((2 + h) * NB, NB), :] = jnp.maximum(wp + b1v, 0.0)   # bias + ReLU (post-pool)

    # ---- conv2: 5 banded MXU matmuls, contraction = 256 (no channel padding waste) -------------
    for kh in range(K):
        lhs = p1_s[pl.ds(kh * NB, H2 * NB), :]                          # (112, 256), aligned slice
        part = jnp.dot(lhs, m2_ref[kh], preferred_element_type=jnp.float32)   # (112, 512)
        if kh == 0:
            c2_s[...] = part
        else:
            c2_s[...] += part

    # ---- pool2 (2x2) + bias + ReLU -> linear-input scratch (rows = h3*NB + n) -------------------
    b2v = b2_ref[...]
    for h in range(H3):                                                 # 7
        top = c2_s[pl.ds((2 * h) * NB, NB), :]
        bot = c2_s[pl.ds((2 * h + 1) * NB, NB), :]
        hp = jnp.maximum(top, bot)
        wp = jnp.maximum(hp[:, 0:256], hp[:, 256:512])
        lin_s[pl.ds(h * NB, NB), :] = jnp.maximum(wp + b2v, 0.0)

    # ---- linear: 7 MXU matmuls, register accumulation, single lane-dense (NB,128) store --------
    acc = None
    for h in range(H3):
        part = jnp.dot(lin_s[pl.ds(h * NB, NB), :], w3_ref[h],
                       preferred_element_type=jnp.float32)              # (NB, 128)
        acc = part if acc is None else acc + part
    o_ref[...] = acc + b3_ref[...]


# ---------------------------------------------------------------------------
# Wrapper: input layout prep + pallas_call
# ---------------------------------------------------------------------------
def cnn_forward(x_nchw, prepared):
    m1, b1row, m2, b2row, w3p, b3row = prepared
    B = x_nchw.shape[0]
    b_pad = ((B + NB - 1) // NB) * NB
    nt = b_pad // NB

    # (B,1,28,28) -> height pad 2+2, width right-pad to 32, batch pad to NB multiple,
    # then interleave to rows = hp*NB + n  (tiny XLA reshuffle, ~4 KB/img).
    x = x_nchw.reshape(B, 28, 28)
    x = jnp.pad(x, ((0, b_pad - B), (2, 2), (0, WP1 - 28)))
    x = x.reshape(nt, NB, HP1, WP1).transpose(0, 2, 1, 3).reshape(nt, HP1 * NB, WP1)

    macs = 2 * b_pad * (H1 * WP1 * N1 * K + H2 * LP1 * N2 * K + LP2 * NOUT * H3)
    bytes_accessed = 4 * (x.size + m1.size + m2.size + w3p.size
                          + b1row.size + b2row.size + b3row.size + b_pad * NOUT)

    logits = pl.pallas_call(
        _cnn_kernel,
        out_shape=jax.ShapeDtypeStruct((b_pad, NOUT), jnp.float32),
        grid_spec=pltpu.PrefetchScalarGridSpec(
            num_scalar_prefetch=0,
            grid=(nt,),
            in_specs=[
                pl.BlockSpec((1, HP1 * NB, WP1), lambda i: (i, 0, 0)),   # padded input tile
                pl.BlockSpec((K, WP1, N1), lambda i: (0, 0, 0)),         # conv1 band matrices
                pl.BlockSpec((1, LP1), lambda i: (0, 0)),
                pl.BlockSpec((K, LP1, N2), lambda i: (0, 0, 0)),         # conv2 band matrices
                pl.BlockSpec((1, LP2), lambda i: (0, 0)),
                pl.BlockSpec((H3, LP2, NOUT), lambda i: (0, 0, 0)),      # packed linear weight
                pl.BlockSpec((1, NOUT), lambda i: (0, 0)),
            ],
            out_specs=pl.BlockSpec((NB, NOUT), lambda i: (i, 0)),
            scratch_shapes=[
                pltpu.VMEM((H1 * NB, N1), jnp.float32),    # conv1 accumulator  (224, 512)
                pltpu.VMEM((HP2 * NB, LP1), jnp.float32),  # padded pooled1     (144, 256)
                pltpu.VMEM((H2 * NB, N2), jnp.float32),    # conv2 accumulator  (112, 512)
                pltpu.VMEM((H3 * NB, LP2), jnp.float32),   # pooled2 / linear in (56, 256)
            ],
        ),
        compiler_params=pltpu.CompilerParams(
            dimension_semantics=("parallel",),             # batch tiles across TCs on v7x
            vmem_limit_bytes=32 * 1024 * 1024,
        ),
        cost_estimate=pl.CostEstimate(flops=int(macs), transcendentals=0,
                                      bytes_accessed=int(bytes_accessed)),
    )(x, m1, b1row, m2, b2row, w3p, b3row)
    return logits[:B, :10]


# ---------------------------------------------------------------------------
# Host-side, one-time weight preprocessing (PyTorch layouts -> banded kernel layouts)
# ---------------------------------------------------------------------------
def prepare_params(params):
    w1, b1, w2, b2, w3, b3 = [np.asarray(p, dtype=np.float32) for p in params]

    # conv1 band matrices: M1[kh][w_in, par*256 + w2*16 + c] = w1[c,0,kh, w_in - (2*w2+par) + 2]
    m1 = np.zeros((K, WP1, N1), np.float32)
    for kh in range(K):
        for wo in range(H2):          # output-width pair index
            for par in range(2):
                w = 2 * wo + par
                for kw in range(K):
                    w_in = w + kw - 2
                    if 0 <= w_in < W1:
                        base = par * 256 + wo * C1
                        m1[kh, w_in, base:base + C1] = w1[:, 0, kh, kw]
    b1row = np.zeros((1, LP1), np.float32)
    for wo in range(H2):
        b1row[0, wo * C1:(wo + 1) * C1] = b1

    # conv2 band matrices: M2[kh][w_in*16+ci, par*256 + w3*32 + co] = w2[co,ci,kh, w_in-(2*w3+par)+2]
    m2 = np.zeros((K, LP1, N2), np.float32)
    for kh in range(K):
        for wo in range(H3):
            for par in range(2):
                w = 2 * wo + par
                for kw in range(K):
                    w_in = w + kw - 2
                    if 0 <= w_in < W2:
                        base = par * 256 + wo * C2
                        m2[kh, w_in * C1:(w_in + 1) * C1, base:base + C2] = w2[:, :, kh, kw].T
    b2row = np.zeros((1, LP2), np.float32)
    for wo in range(H3):
        b2row[0, wo * C2:(wo + 1) * C2] = b2

    # linear: packed so the kernel contracts pooled2's (w3, co) lanes per output row h3.
    # PyTorch flatten order (NCHW) is flat = co*49 + h3*7 + w3.
    w3r = w3.reshape(10, C2, H3, H3)
    w3p = np.zeros((H3, LP2, NOUT), np.float32)
    for h in range(H3):
        for wo in range(H3):
            for co in range(C2):
                w3p[h, wo * C2 + co, 0:10] = w3r[:, co, h, wo]
    b3row = np.zeros((1, NOUT), np.float32)
    b3row[0, :10] = b3

    return tuple(jnp.asarray(a) for a in (m1, b1row, m2, b2row, w3p, b3row))


# ---------------------------------------------------------------------------
# Pure-JAX (XLA) reference for correctness checking
# ---------------------------------------------------------------------------
def cnn_reference(x_nchw, params):
    w1, b1, w2, b2, w3, b3 = params

    def conv(x, w, b):
        y = jax.lax.conv_general_dilated(
            x, w, window_strides=(1, 1), padding=((2, 2), (2, 2)),
            dimension_numbers=("NCHW", "OIHW", "NCHW"))
        return y + b.reshape(1, -1, 1, 1)

    def pool(x):
        return jax.lax.reduce_window(
            x, -jnp.inf, jax.lax.max, (1, 1, 2, 2), (1, 1, 2, 2), "VALID")

    h = pool(jnp.maximum(conv(x_nchw, w1, b1), 0.0))
    h = pool(jnp.maximum(conv(h, w2, b2), 0.0))
    return h.reshape(h.shape[0], -1) @ w3.T + b3


if __name__ == "__main__":
    key = jax.random.PRNGKey(0)
    ks = jax.random.split(key, 7)
    B = 2

    # Input implied by the module: 28x28 single-channel images (32*7*7 flatten).
    x = jax.random.normal(ks[0], (B, 1, 28, 28), dtype=jnp.float32)

    # Deterministic synthetic parameters in PyTorch layouts (OIHW conv, (out,in) linear).
    w1 = 0.10 * jax.random.normal(ks[1], (16, 1, 5, 5), dtype=jnp.float32)
    b1 = 0.10 * jax.random.normal(ks[2], (16,), dtype=jnp.float32)
    w2 = 0.05 * jax.random.normal(ks[3], (32, 16, 5, 5), dtype=jnp.float32)
    b2 = 0.10 * jax.random.normal(ks[4], (32,), dtype=jnp.float32)
    w3 = 0.02 * jax.random.normal(ks[5], (10, 32 * 7 * 7), dtype=jnp.float32)
    b3 = 0.10 * jax.random.normal(ks[6], (10,), dtype=jnp.float32)
    params = (w1, b1, w2, b2, w3, b3)

    prepared = prepare_params(params)     # host-side, one-time weight layout prep
    fwd = jax.jit(cnn_forward)

    out = jax.block_until_ready(fwd(x, prepared))
    assert out.shape == (B, 10), out.shape

    ref = cnn_reference(x, params)
    if not bool(jnp.allclose(out, ref, rtol=1e-3, atol=2e-3)):
        raise AssertionError(
            f"Pallas output mismatch vs reference: max abs err "
            f"{float(jnp.max(jnp.abs(out - ref)))}")

    print("KERNEL_OK")
</pallas_src>

<mosaic_0001>
module attributes {stable_mosaic.version = 11 : i64} {
  func.func @_cnn_kernel(%arg0: i32, %arg1: memref<1x256x32xf32, #tpu.memory_space<vmem>>, %arg2: memref<5x32x512xf32, #tpu.memory_space<vmem>>, %arg3: memref<1x256xf32, #tpu.memory_space<vmem>>, %arg4: memref<5x256x512xf32, #tpu.memory_space<vmem>>, %arg5: memref<1x256xf32, #tpu.memory_space<vmem>>, %arg6: memref<7x256x128xf32, #tpu.memory_space<vmem>>, %arg7: memref<1x128xf32, #tpu.memory_space<vmem>>, %arg8: memref<8x128xf32, #tpu.memory_space<vmem>>, %arg9: memref<224x512xf32, #tpu.memory_space<vmem>>, %arg10: memref<144x256xf32, #tpu.memory_space<vmem>>, %arg11: memref<112x512xf32, #tpu.memory_space<vmem>>, %arg12: memref<56x256xf32, #tpu.memory_space<vmem>>) attributes {dimension_semantics = [#tpu.dimension_semantics<parallel>], iteration_bounds = array<i64: 1>, scalar_prefetch = 0 : i64, scratch_operands = 4 : i64, tpu.core_type = #tpu.core_type<tc>, window_params = [{transform_indices = @transform_0, window_bounds = array<i64: 1, 256, 32>}, {pipeline_mode = #tpu.pipeline_mode<synchronous>, transform_indices = @transform_1, window_bounds = array<i64: 5, 32, 512>}, {pipeline_mode = #tpu.pipeline_mode<synchronous>, transform_indices = @transform_2, window_bounds = array<i64: 1, 256>}, {pipeline_mode = #tpu.pipeline_mode<synchronous>, transform_indices = @transform_3, window_bounds = array<i64: 5, 256, 512>}, {pipeline_mode = #tpu.pipeline_mode<synchronous>, transform_indices = @transform_4, window_bounds = array<i64: 1, 256>}, {pipeline_mode = #tpu.pipeline_mode<synchronous>, transform_indices = @transform_5, window_bounds = array<i64: 7, 256, 128>}, {pipeline_mode = #tpu.pipeline_mode<synchronous>, transform_indices = @transform_6, window_bounds = array<i64: 1, 128>}, {transform_indices = @transform_7, window_bounds = array<i64: 8, 128>}]} {
    %cst = arith.constant 0.000000e+00 : f32
    %0 = vector.broadcast %cst : f32 to vector<16x256xf32>
    %c0 = arith.constant 0 : index
    %c0_0 = arith.constant 0 : index
    %1 = vector.load %arg10[%c0, %c0_0] : memref<144x256xf32, #tpu.memory_space<vmem>>, vector<16x256xf32>
    tpu.vector_store %arg10[%c0, %c0_0], %0 {strides = array<i32>} : memref<144x256xf32, #tpu.memory_space<vmem>>, vector<16x256xf32>,
    %cst_1 = arith.constant 0.000000e+00 : f32
    %2 = vector.broadcast %cst_1 : f32 to vector<16x256xf32>
    %c128 = arith.constant 128 : index
    %c0_2 = arith.constant 0 : index
    %3 = vector.load %arg10[%c128, %c0_2] : memref<144x256xf32, #tpu.memory_space<vmem>>, vector<16x256xf32>
    tpu.vector_store %arg10[%c128, %c0_2], %2 {strides = array<i32>} : memref<144x256xf32, #tpu.memory_space<vmem>>, vector<16x256xf32>,
    %c0_3 = arith.constant 0 : index
    %c0_4 = arith.constant 0 : index
    %c0_5 = arith.constant 0 : index
    %4 = vector.load %arg1[%c0_3, %c0_4, %c0_5] : memref<1x256x32xf32, #tpu.memory_space<vmem>>, vector<1x224x32xf32>
    %5 = vector.shape_cast %4 : vector<1x224x32xf32> to vector<224x32xf32>
    %c0_6 = arith.constant 0 : index
    %c0_7 = arith.constant 0 : index
    %c0_8 = arith.constant 0 : index
    %6 = vector.load %arg2[%c0_6, %c0_7, %c0_8] : memref<5x32x512xf32, #tpu.memory_space<vmem>>, vector<1x32x512xf32>
    %7 = vector.shape_cast %6 : vector<1x32x512xf32> to vector<32x512xf32>
    %cst_9 = arith.constant dense<0.000000e+00> : vector<224x512xf32>
    %8 = tpu.matmul %5, %7, %cst_9 {dimension_numbers = #tpu.dot_dimension_numbers<[1], [0], [0], [1], [0, 0, 1, 1], [], []>} : vector<224x32xf32>, vector<32x512xf32>, vector<224x512xf32> -> vector<224x512xf32>
    %c0_10 = arith.constant 0 : index
    %c0_11 = arith.constant 0 : index
    %9 = vector.load %arg9[%c0_10, %c0_11] : memref<224x512xf32, #tpu.memory_space<vmem>>, vector<224x512xf32>
    tpu.vector_store %arg9[%c0_10, %c0_11], %8 {strides = array<i32>} : memref<224x512xf32, #tpu.memory_space<vmem>>, vector<224x512xf32>,
    %c0_12 = arith.constant 0 : index
    %c8 = arith.constant 8 : index
    %c0_13 = arith.constant 0 : index
    %10 = vector.load %arg1[%c0_12, %c8, %c0_13] : memref<1x256x32xf32, #tpu.memory_space<vmem>>, vector<1x224x32xf32>
    %11 = vector.shape_cast %10 : vector<1x224x32xf32> to vector<224x32xf32>
    %c1 = arith.constant 1 : index
    %c0_14 = arith.constant 0 : index
    %c0_15 = arith.constant 0 : index
    %12 = vector.load %arg2[%c1, %c0_14, %c0_15] : memref<5x32x512xf32, #tpu.memory_space<vmem>>, vector<1x32x512xf32>
    %13 = vector.shape_cast %12 : vector<1x32x512xf32> to vector<32x512xf32>
    %cst_16 = arith.constant dense<0.000000e+00> : vector<224x512xf32>
    %14 = tpu.matmul %11, %13, %cst_16 {dimension_numbers = #tpu.dot_dimension_numbers<[1], [0], [0], [1], [0, 0, 1, 1], [], []>} : vector<224x32xf32>, vector<32x512xf32>, vector<224x512xf32> -> vector<224x512xf32>
    %c0_17 = arith.constant 0 : index
    %c0_18 = arith.constant 0 : index
    %15 = vector.load %arg9[%c0_17, %c0_18] : memref<224x512xf32, #tpu.memory_space<vmem>>, vector<224x512xf32>
    %16 = arith.addf %15, %14 : vector<224x512xf32>
    %c0_19 = arith.constant 0 : index
    %c0_20 = arith.constant 0 : index
    %17 = vector.load %arg9[%c0_19, %c0_20] : memref<224x512xf32, #tpu.memory_space<vmem>>, vector<224x512xf32>
    tpu.vector_store %arg9[%c0_19, %c0_20], %16 {strides = array<i32>} : memref<224x512xf32, #tpu.memory_space<vmem>>, vector<224x512xf32>,
    %c0_21 = arith.constant 0 : index
    %c16 = arith.constant 16 : index
    %c0_22 = arith.constant 0 : index
    %18 = vector.load %arg1[%c0_21, %c16, %c0_22] : memref<1x256x32xf32, #tpu.memory_space<vmem>>, vector<1x224x32xf32>
    %19 = vector.shape_cast %18 : vector<1x224x32xf32> to vector<224x32xf32>
    %c2 = arith.constant 2 : index
    %c0_23 = arith.constant 0 : index
    %c0_24 = arith.constant 0 : index
    %20 = vector.load %arg2[%c2, %c0_23, %c0_24] : memref<5x32x512xf32, #tpu.memory_space<vmem>>, vector<1x32x512xf32>
    %21 = vector.shape_cast %20 : vector<1x32x512xf32> to vector<32x512xf32>
    %cst_25 = arith.constant dense<0.000000e+00> : vector<224x512xf32>
    %22 = tpu.matmul %19, %21, %cst_25 {dimension_numbers = #tpu.dot_dimension_numbers<[1], [0], [0], [1], [0, 0, 1, 1], [], []>} : vector<224x32xf32>, vector<32x512xf32>, vector<224x512xf32> -> vector<224x512xf32>
    %c0_26 = arith.constant 0 : index
    %c0_27 = arith.constant 0 : index
    %23 = vector.load %arg9[%c0_26, %c0_27] : memref<224x512xf32, #tpu.memory_space<vmem>>, vector<224x512xf32>
    %24 = arith.addf %23, %22 : vector<224x512xf32>
    %c0_28 = arith.constant 0 : index
    %c0_29 = arith.constant 0 : index
    %25 = vector.load %arg9[%c0_28, %c0_29] : memref<224x512xf32, #tpu.memory_space<vmem>>, vector<224x512xf32>
    tpu.vector_store %arg9[%c0_28, %c0_29], %24 {strides = array<i32>} : memref<224x512xf32, #tpu.memory_space<vmem>>, vector<224x512xf32>,
    %c0_30 = arith.constant 0 : index
    %c24 = arith.constant 24 : index
    %c0_31 = arith.constant 0 : index
    %26 = vector.load %arg1[%c0_30, %c24, %c0_31] : memref<1x256x32xf32, #tpu.memory_space<vmem>>, vector<1x224x32xf32>
    %27 = vector.shape_cast %26 : vector<1x224x32xf32> to vector<224x32xf32>
    %c3 = arith.constant 3 : index
    %c0_32 = arith.constant 0 : index
    %c0_33 = arith.constant 0 : index
    %28 = vector.load %arg2[%c3, %c0_32, %c0_33] : memref<5x32x512xf32, #tpu.memory_space<vmem>>, vector<1x32x512xf32>
    %29 = vector.shape_cast %28 : vector<1x32x512xf32> to vector<32x512xf32>
    %cst_34 = arith.constant dense<0.000000e+00> : vector<224x512xf32>
    %30 = tpu.matmul %27, %29, %cst_34 {dimension_numbers = #tpu.dot_dimension_numbers<[1], [0], [0], [1], [0, 0, 1, 1], [], []>} : vector<224x32xf32>, vector<32x512xf32>, vector<224x512xf32> -> vector<224x512xf32>
    %c0_35 = arith.constant 0 : index
    %c0_36 = arith.constant 0 : index
    %31 = vector.load %arg9[%c0_35, %c0_36] : memref<224x512xf32, #tpu.memory_space<vmem>>, vector<224x512xf32>
    %32 = arith.addf %31, %30 : vector<224x512xf32>
    %c0_37 = arith.constant 0 : index
    %c0_38 = arith.constant 0 : index
    %33 = vector.load %arg9[%c0_37, %c0_38] : memref<224x512xf32, #tpu.memory_space<vmem>>, vector<224x512xf32>
    tpu.vector_store %arg9[%c0_37, %c0_38], %32 {strides = array<i32>} : memref<224x512xf32, #tpu.memory_space<vmem>>, vector<224x512xf32>,
    %c0_39 = arith.constant 0 : index
    %c32 = arith.constant 32 : index
    %c0_40 = arith.constant 0 : index
    %34 = vector.load %arg1[%c0_39, %c32, %c0_40] : memref<1x256x32xf32, #tpu.memory_space<vmem>>, vector<1x224x32xf32>
    %35 = vector.shape_cast %34 : vector<1x224x32xf32> to vector<224x32xf32>
    %c4 = arith.constant 4 : index
    %c0_41 = arith.constant 0 : index
    %c0_42 = arith.constant 0 : index
    %36 = vector.load %arg2[%c4, %c0_41, %c0_42] : memref<5x32x512xf32, #tpu.memory_space<vmem>>, vector<1x32x512xf32>
    %37 = vector.shape_cast %36 : vector<1x32x512xf32> to vector<32x512xf32>
    %cst_43 = arith.constant dense<0.000000e+00> : vector<224x512xf32>
    %38 = tpu.matmul %35, %37, %cst_43 {dimension_numbers = #tpu.dot_dimension_numbers<[1], [0], [0], [1], [0, 0, 1, 1], [], []>} : vector<224x32xf32>, vector<32x512xf32>, vector<224x512xf32> -> vector<224x512xf32>
    %c0_44 = arith.constant 0 : index
    %c0_45 = arith.constant 0 : index
    %39 = vector.load %arg9[%c0_44, %c0_45] : memref<224x512xf32, #tpu.memory_space<vmem>>, vector<224x512xf32>
    %40 = arith.addf %39, %38 : vector<224x512xf32>
    %c0_46 = arith.constant 0 : index
    %c0_47 = arith.constant 0 : index
    %41 = vector.load %arg9[%c0_46, %c0_47] : memref<224x512xf32, #tpu.memory_space<vmem>>, vector<224x512xf32>
    tpu.vector_store %arg9[%c0_46, %c0_47], %40 {strides = array<i32>} : memref<224x512xf32, #tpu.memory_space<vmem>>, vector<224x512xf32>,
    %c0_48 = arith.constant 0 : index
    %c0_49 = arith.constant 0 : index
    %42 = vector.load %arg3[%c0_48, %c0_49] : memref<1x256xf32, #tpu.memory_space<vmem>>, vector<1x256xf32>
    %c0_50 = arith.constant 0 : index
    %c0_51 = arith.constant 0 : index
    %43 = vector.load %arg9[%c0_50, %c0_51] : memref<224x512xf32, #tpu.memory_space<vmem>>, vector<8x512xf32>
    %c8_52 = arith.constant 8 : index
    %c0_53 = arith.constant 0 : index
    %44 = vector.load %arg9[%c8_52, %c0_53] : memref<224x512xf32, #tpu.memory_space<vmem>>, vector<8x512xf32>
    %45 = arith.maximumf %43, %44 : vector<8x512xf32>
    %46 = vector.extract_strided_slice %45 {offsets = [0, 0], sizes = [8, 256], strides = [1, 1]} : vector<8x512xf32> to vector<8x256xf32>
    %47 = vector.extract_strided_slice %45 {offsets = [0, 256], sizes = [8, 256], strides = [1, 1]} : vector<8x512xf32> to vector<8x256xf32>
    %48 = arith.maximumf %46, %47 : vector<8x256xf32>
    %49 = vector.broadcast %42 : vector<1x256xf32> to vector<8x256xf32>
    %50 = arith.addf %48, %49 : vector<8x256xf32>
    %cst_54 = arith.constant 0.000000e+00 : f32
    %51 = vector.broadcast %cst_54 : f32 to vector<8x256xf32>
    %52 = arith.maximumf %50, %51 : vector<8x256xf32>
    %c16_55 = arith.constant 16 : index
    %c0_56 = arith.constant 0 : index
    %53 = vector.load %arg10[%c16_55, %c0_56] : memref<144x256xf32, #tpu.memory_space<vmem>>, vector<8x256xf32>
    tpu.vector_store %arg10[%c16_55, %c0_56], %52 {strides = array<i32>} : memref<144x256xf32, #tpu.memory_space<vmem>>, vector<8x256xf32>,
    %c16_57 = arith.constant 16 : index
    %c0_58 = arith.constant 0 : index
    %54 = vector.load %arg9[%c16_57, %c0_58] : memref<224x512xf32, #tpu.memory_space<vmem>>, vector<8x512xf32>
    %c24_59 = arith.constant 24 : index
    %c0_60 = arith.constant 0 : index
    %55 = vector.load %arg9[%c24_59, %c0_60] : memref<224x512xf32, #tpu.memory_space<vmem>>, vector<8x512xf32>
    %56 = arith.maximumf %54, %55 : vector<8x512xf32>
    %57 = vector.extract_strided_slice %56 {offsets = [0, 0], sizes = [8, 256], strides = [1, 1]} : vector<8x512xf32> to vector<8x256xf32>
    %58 = vector.extract_strided_slice %56 {offsets = [0, 256], sizes = [8, 256], strides = [1, 1]} : vector<8x512xf32> to vector<8x256xf32>
    %59 = arith.maximumf %57, %58 : vector<8x256xf32>
    %60 = vector.broadcast %42 : vector<1x256xf32> to vector<8x256xf32>
    %61 = arith.addf %59, %60 : vector<8x256xf32>
    %cst_61 = arith.constant 0.000000e+00 : f32
    %62 = vector.broadcast %cst_61 : f32 to vector<8x256xf32>
    %63 = arith.maximumf %61, %62 : vector<8x256xf32>
    %c24_62 = arith.constant 24 : index
    %c0_63 = arith.constant 0 : index
    %64 = vector.load %arg10[%c24_62, %c0_63] : memref<144x256xf32, #tpu.memory_space<vmem>>, vector<8x256xf32>
    tpu.vector_store %arg10[%c24_62, %c0_63], %63 {strides = array<i32>} : memref<144x256xf32, #tpu.memory_space<vmem>>, vector<8x256xf32>,
    %c32_64 = arith.constant 32 : index
    %c0_65 = arith.constant 0 : index
    %65 = vector.load %arg9[%c32_64, %c0_65] : memref<224x512xf32, #tpu.memory_space<vmem>>, vector<8x512xf32>
    %c40 = arith.constant 40 : index
    %c0_66 = arith.constant 0 : index
    %66 = vector.load %arg9[%c40, %c0_66] : memref<224x512xf32, #tpu.memory_space<vmem>>, vector<8x512xf32>
    %67 = arith.maximumf %65, %66 : vector<8x512xf32>
    %68 = vector.extract_strided_slice %67 {offsets = [0, 0], sizes = [8, 256], strides = [1, 1]} : vector<8x512xf32> to vector<8x256xf32>
    %69 = vector.extract_strided_slice %67 {offsets = [0, 256], sizes = [8, 256], strides = [1, 1]} : vector<8x512xf32> to vector<8x256xf32>
    %70 = arith.maximumf %68, %69 : vector<8x256xf32>
    %71 = vector.broadcast %42 : vector<1x256xf32> to vector<8x256xf32>
    %72 = arith.addf %70, %71 : vector<8x256xf32>
    %cst_67 = arith.constant 0.000000e+00 : f32
    %73 = vector.broadcast %cst_67 : f32 to vector<8x256xf32>
    %74 = arith.maximumf %72, %73 : vector<8x256xf32>
    %c32_68 = arith.constant 32 : index
    %c0_69 = arith.constant 0 : index
    %75 = vector.load %arg10[%c32_68, %c0_69] : memref<144x256xf32, #tpu.memory_space<vmem>>, vector<8x256xf32>
    tpu.vector_store %arg10[%c32_68, %c0_69], %74 {strides = array<i32>} : memref<144x256xf32, #tpu.memory_space<vmem>>, vector<8x256xf32>,
    %c48 = arith.constant 48 : index
    %c0_70 = arith.constant 0 : index
    %76 = vector.load %arg9[%c48, %c0_70] : memref<224x512xf32, #tpu.memory_space<vmem>>, vector<8x512xf32>
    %c56 = arith.constant 56 : index
    %c0_71 = arith.constant 0 : index
    %77 = vector.load %arg9[%c56, %c0_71] : memref<224x512xf32, #tpu.memory_space<vmem>>, vector<8x512xf32>
    %78 = arith.maximumf %76, %77 : vector<8x512xf32>
    %79 = vector.extract_strided_slice %78 {offsets = [0, 0], sizes = [8, 256], strides = [1, 1]} : vector<8x512xf32> to vector<8x256xf32>
    %80 = vector.extract_strided_slice %78 {offsets = [0, 256], sizes = [8, 256], strides = [1, 1]} : vector<8x512xf32> to vector<8x256xf32>
    %81 = arith.maximumf %79, %80 : vector<8x256xf32>
    %82 = vector.broadcast %42 : vector<1x256xf32> to vector<8x256xf32>
    %83 = arith.addf %81, %82 : vector<8x256xf32>
    %cst_72 = arith.constant 0.000000e+00 : f32
    %84 = vector.broadcast %cst_72 : f32 to vector<8x256xf32>
    %85 = arith.maximumf %83, %84 : vector<8x256xf32>
    %c40_73 = arith.constant 40 : index
    %c0_74 = arith.constant 0 : index
    %86 = vector.load %arg10[%c40_73, %c0_74] : memref<144x256xf32, #tpu.memory_space<vmem>>, vector<8x256xf32>
    tpu.vector_store %arg10[%c40_73, %c0_74], %85 {strides = array<i32>} : memref<144x256xf32, #tpu.memory_space<vmem>>, vector<8x256xf32>,
    %c64 = arith.constant 64 : index
    %c0_75 = arith.constant 0 : index
    %87 = vector.load %arg9[%c64, %c0_75] : memref<224x512xf32, #tpu.memory_space<vmem>>, vector<8x512xf32>
    %c72 = arith.constant 72 : index
    %c0_76 = arith.constant 0 : index
    %88 = vector.load %arg9[%c72, %c0_76] : memref<224x512xf32, #tpu.memory_space<vmem>>, vector<8x512xf32>
    %89 = arith.maximumf %87, %88 : vector<8x512xf32>
    %90 = vector.extract_strided_slice %89 {offsets = [0, 0], sizes = [8, 256], strides = [1, 1]} : vector<8x512xf32> to vector<8x256xf32>
    %91 = vector.extract_strided_slice %89 {offsets = [0, 256], sizes = [8, 256], strides = [1, 1]} : vector<8x512xf32> to vector<8x256xf32>
    %92 = arith.maximumf %90, %91 : vector<8x256xf32>
    %93 = vector.broadcast %42 : vector<1x256xf32> to vector<8x256xf32>
    %94 = arith.addf %92, %93 : vector<8x256xf32>
    %cst_77 = arith.constant 0.000000e+00 : f32
    %95 = vector.broadcast %cst_77 : f32 to vector<8x256xf32>
    %96 = arith.maximumf %94, %95 : vector<8x256xf32>
    %c48_78 = arith.constant 48 : index
    %c0_79 = arith.constant 0 : index
    %97 = vector.load %arg10[%c48_78, %c0_79] : memref<144x256xf32, #tpu.memory_space<vmem>>, vector<8x256xf32>
    tpu.vector_store %arg10[%c48_78, %c0_79], %96 {strides = array<i32>} : memref<144x256xf32, #tpu.memory_space<vmem>>, vector<8x256xf32>,
    %c80 = arith.constant 80 : index
    %c0_80 = arith.constant 0 : index
    %98 = vector.load %arg9[%c80, %c0_80] : memref<224x512xf32, #tpu.memory_space<vmem>>, vector<8x512xf32>
    %c88 = arith.constant 88 : index
    %c0_81 = arith.constant 0 : index
    %99 = vector.load %arg9[%c88, %c0_81] : memref<224x512xf32, #tpu.memory_space<vmem>>, vector<8x512xf32>
    %100 = arith.maximumf %98, %99 : vector<8x512xf32>
    %101 = vector.extract_strided_slice %100 {offsets = [0, 0], sizes = [8, 256], strides = [1, 1]} : vector<8x512xf32> to vector<8x256xf32>
    %102 = vector.extract_strided_slice %100 {offsets = [0, 256], sizes = [8, 256], strides = [1, 1]} : vector<8x512xf32> to vector<8x256xf32>
    %103 = arith.maximumf %101, %102 : vector<8x256xf32>
    %104 = vector.broadcast %42 : vector<1x256xf32> to vector<8x256xf32>
    %105 = arith.addf %103, %104 : vector<8x256xf32>
    %cst_82 = arith.constant 0.000000e+00 : f32
    %106 = vector.broadcast %cst_82 : f32 to vector<8x256xf32>
    %107 = arith.maximumf %105, %106 : vector<8x256xf32>
    %c56_83 = arith.constant 56 : index
    %c0_84 = arith.constant 0 : index
    %108 = vector.load %arg10[%c56_83, %c0_84] : memref<144x256xf32, #tpu.memory_space<vmem>>, vector<8x256xf32>
    tpu.vector_store %arg10[%c56_83, %c0_84], %107 {strides = array<i32>} : memref<144x256xf32, #tpu.memory_space<vmem>>, vector<8x256xf32>,
    %c96 = arith.constant 96 : index
    %c0_85 = arith.constant 0 : index
    %109 = vector.load %arg9[%c96, %c0_85] : memref<224x512xf32, #tpu.memory_space<vmem>>, vector<8x512xf32>
    %c104 = arith.constant 104 : index
    %c0_86 = arith.constant 0 : index
    %110 = vector.load %arg9[%c104, %c0_86] : memref<224x512xf32, #tpu.memory_space<vmem>>, vector<8x512xf32>
    %111 = arith.maximumf %109, %110 : vector<8x512xf32>
    %112 = vector.extract_strided_slice %111 {offsets = [0, 0], sizes = [8, 256], strides = [1, 1]} : vector<8x512xf32> to vector<8x256xf32>
    %113 = vector.extract_strided_slice %111 {offsets = [0, 256], sizes = [8, 256], strides = [1, 1]} : vector<8x512xf32> to vector<8x256xf32>
    %114 = arith.maximumf %112, %113 : vector<8x256xf32>
    %115 = vector.broadcast %42 : vector<1x256xf32> to vector<8x256xf32>
    %116 = arith.addf %114, %115 : vector<8x256xf32>
    %cst_87 = arith.constant 0.000000e+00 : f32
    %117 = vector.broadcast %cst_87 : f32 to vector<8x256xf32>
    %118 = arith.maximumf %116, %117 : vector<8x256xf32>
    %c64_88 = arith.constant 64 : index
    %c0_89 = arith.constant 0 : index
    %119 = vector.load %arg10[%c64_88, %c0_89] : memref<144x256xf32, #tpu.memory_space<vmem>>, vector<8x256xf32>
    tpu.vector_store %arg10[%c64_88, %c0_89], %118 {strides = array<i32>} : memref<144x256xf32, #tpu.memory_space<vmem>>, vector<8x256xf32>,
    %c112 = arith.constant 112 : index
    %c0_90 = arith.constant 0 : index
    %120 = vector.load %arg9[%c112, %c0_90] : memref<224x512xf32, #tpu.memory_space<vmem>>, vector<8x512xf32>
    %c120 = arith.constant 120 : index
    %c0_91 = arith.constant 0 : index
    %121 = vector.load %arg9[%c120, %c0_91] : memref<224x512xf32, #tpu.memory_space<vmem>>, vector<8x512xf32>
    %122 = arith.maximumf %120, %121 : vector<8x512xf32>
    %123 = vector.extract_strided_slice %122 {offsets = [0, 0], sizes = [8, 256], strides = [1, 1]} : vector<8x512xf32> to vector<8x256xf32>
    %124 = vector.extract_strided_slice %122 {offsets = [0, 256], sizes = [8, 256], strides = [1, 1]} : vector<8x512xf32> to vector<8x256xf32>
    %125 = arith.maximumf %123, %124 : vector<8x256xf32>
    %126 = vector.broadcast %42 : vector<1x256xf32> to vector<8x256xf32>
    %127 = arith.addf %125, %126 : vector<8x256xf32>
    %cst_92 = arith.constant 0.000000e+00 : f32
    %128 = vector.broadcast %cst_92 : f32 to vector<8x256xf32>
    %129 = arith.maximumf %127, %128 : vector<8x256xf32>
    %c72_93 = arith.constant 72 : index
    %c0_94 = arith.constant 0 : index
    %130 = vector.load %arg10[%c72_93, %c0_94] : memref<144x256xf32, #tpu.memory_space<vmem>>, vector<8x256xf32>
    tpu.vector_store %arg10[%c72_93, %c0_94], %129 {strides = array<i32>} : memref<144x256xf32, #tpu.memory_space<vmem>>, vector<8x256xf32>,
    %c128_95 = arith.constant 128 : index
    %c0_96 = arith.constant 0 : index
    %131 = vector.load %arg9[%c128_95, %c0_96] : memref<224x512xf32, #tpu.memory_space<vmem>>, vector<8x512xf32>
    %c136 = arith.constant 136 : index
    %c0_97 = arith.constant 0 : index
    %132 = vector.load %arg9[%c136, %c0_97] : memref<224x512xf32, #tpu.memory_space<vmem>>, vector<8x512xf32>
    %133 = arith.maximumf %131, %132 : vector<8x512xf32>
    %134 = vector.extract_strided_slice %133 {offsets = [0, 0], sizes = [8, 256], strides = [1, 1]} : vector<8x512xf32> to vector<8x256xf32>
    %135 = vector.extract_strided_slice %133 {offsets = [0, 256], sizes = [8, 256], strides = [1, 1]} : vector<8x512xf32> to vector<8x256xf32>
    %136 = arith.maximumf %134, %135 : vector<8x256xf32>
    %137 = vector.broadcast %42 : vector<1x256xf32> to vector<8x256xf32>
    %138 = arith.addf %136, %137 : vector<8x256xf32>
    %cst_98 = arith.constant 0.000000e+00 : f32
    %139 = vector.broadcast %cst_98 : f32 to vector<8x256xf32>
    %140 = arith.maximumf %138, %139 : vector<8x256xf32>
    %c80_99 = arith.constant 80 : index
    %c0_100 = arith.constant 0 : index
    %141 = vector.load %arg10[%c80_99, %c0_100] : memref<144x256xf32, #tpu.memory_space<vmem>>, vector<8x256xf32>
    tpu.vector_store %arg10[%c80_99, %c0_100], %140 {strides = array<i32>} : memref<144x256xf32, #tpu.memory_space<vmem>>, vector<8x256xf32>,
    %c144 = arith.constant 144 : index
    %c0_101 = arith.constant 0 : index
    %142 = vector.load %arg9[%c144, %c0_101] : memref<224x512xf32, #tpu.memory_space<vmem>>, vector<8x512xf32>
    %c152 = arith.constant 152 : index
    %c0_102 = arith.constant 0 : index
    %143 = vector.load %arg9[%c152, %c0_102] : memref<224x512xf32, #tpu.memory_space<vmem>>, vector<8x512xf32>
    %144 = arith.maximumf %142, %143 : vector<8x512xf32>
    %145 = vector.extract_strided_slice %144 {offsets = [0, 0], sizes = [8, 256], strides = [1, 1]} : vector<8x512xf32> to vector<8x256xf32>
    %146 = vector.extract_strided_slice %144 {offsets = [0, 256], sizes = [8, 256], strides = [1, 1]} : vector<8x512xf32> to vector<8x256xf32>
    %147 = arith.maximumf %145, %146 : vector<8x256xf32>
    %148 = vector.broadcast %42 : vector<1x256xf32> to vector<8x256xf32>
    %149 = arith.addf %147, %148 : vector<8x256xf32>
    %cst_103 = arith.constant 0.000000e+00 : f32
    %150 = vector.broadcast %cst_103 : f32 to vector<8x256xf32>
    %151 = arith.maximumf %149, %150 : vector<8x256xf32>
    %c88_104 = arith.constant 88 : index
    %c0_105 = arith.constant 0 : index
    %152 = vector.load %arg10[%c88_104, %c0_105] : memref<144x256xf32, #tpu.memory_space<vmem>>, vector<8x256xf32>
    tpu.vector_store %arg10[%c88_104, %c0_105], %151 {strides = array<i32>} : memref<144x256xf32, #tpu.memory_space<vmem>>, vector<8x256xf32>,
    %c160 = arith.constant 160 : index
    %c0_106 = arith.constant 0 : index
    %153 = vector.load %arg9[%c160, %c0_106] : memref<224x512xf32, #tpu.memory_space<vmem>>, vector<8x512xf32>
    %c168 = arith.constant 168 : index
    %c0_107 = arith.constant 0 : index
    %154 = vector.load %arg9[%c168, %c0_107] : memref<224x512xf32, #tpu.memory_space<vmem>>, vector<8x512xf32>
    %155 = arith.maximumf %153, %154 : vector<8x512xf32>
    %156 = vector.extract_strided_slice %155 {offsets = [0, 0], sizes = [8, 256], strides = [1, 1]} : vector<8x512xf32> to vector<8x256xf32>
    %157 = vector.extract_strided_slice %155 {offsets = [0, 256], sizes = [8, 256], strides = [1, 1]} : vector<8x512xf32> to vector<8x256xf32>
    %158 = arith.maximumf %156, %157 : vector<8x256xf32>
    %159 = vector.broadcast %42 : vector<1x256xf32> to vector<8x256xf32>
    %160 = arith.addf %158, %159 : vector<8x256xf32>
    %cst_108 = arith.constant 0.000000e+00 : f32
    %161 = vector.broadcast %cst_108 : f32 to vector<8x256xf32>
    %162 = arith.maximumf %160, %161 : vector<8x256xf32>
    %c96_109 = arith.constant 96 : index
    %c0_110 = arith.constant 0 : index
    %163 = vector.load %arg10[%c96_109, %c0_110] : memref<144x256xf32, #tpu.memory_space<vmem>>, vector<8x256xf32>
    tpu.vector_store %arg10[%c96_109, %c0_110], %162 {strides = array<i32>} : memref<144x256xf32, #tpu.memory_space<vmem>>, vector<8x256xf32>,
    %c176 = arith.constant 176 : index
    %c0_111 = arith.constant 0 : index
    %164 = vector.load %arg9[%c176, %c0_111] : memref<224x512xf32, #tpu.memory_space<vmem>>, vector<8x512xf32>
    %c184 = arith.constant 184 : index
    %c0_112 = arith.constant 0 : index
    %165 = vector.load %arg9[%c184, %c0_112] : memref<224x512xf32, #tpu.memory_space<vmem>>, vector<8x512xf32>
    %166 = arith.maximumf %164, %165 : vector<8x512xf32>
    %167 = vector.extract_strided_slice %166 {offsets = [0, 0], sizes = [8, 256], strides = [1, 1]} : vector<8x512xf32> to vector<8x256xf32>
    %168 = vector.extract_strided_slice %166 {offsets = [0, 256], sizes = [8, 256], strides = [1, 1]} : vector<8x512xf32> to vector<8x256xf32>
    %169 = arith.maximumf %167, %168 : vector<8x256xf32>
    %170 = vector.broadcast %42 : vector<1x256xf32> to vector<8x256xf32>
    %171 = arith.addf %169, %170 : vector<8x256xf32>
    %cst_113 = arith.constant 0.000000e+00 : f32
    %172 = vector.broadcast %cst_113 : f32 to vector<8x256xf32>
    %173 = arith.maximumf %171, %172 : vector<8x256xf32>
    %c104_114 = arith.constant 104 : index
    %c0_115 = arith.constant 0 : index
    %174 = vector.load %arg10[%c104_114, %c0_115] : memref<144x256xf32, #tpu.memory_space<vmem>>, vector<8x256xf32>
    tpu.vector_store %arg10[%c104_114, %c0_115], %173 {strides = array<i32>} : memref<144x256xf32, #tpu.memory_space<vmem>>, vector<8x256xf32>,
    %c192 = arith.constant 192 : index
    %c0_116 = arith.constant 0 : index
    %175 = vector.load %arg9[%c192, %c0_116] : memref<224x512xf32, #tpu.memory_space<vmem>>, vector<8x512xf32>
    %c200 = arith.constant 200 : index
    %c0_117 = arith.constant 0 : index
    %176 = vector.load %arg9[%c200, %c0_117] : memref<224x512xf32, #tpu.memory_space<vmem>>, vector<8x512xf32>
    %177 = arith.maximumf %175, %176 : vector<8x512xf32>
    %178 = vector.extract_strided_slice %177 {offsets = [0, 0], sizes = [8, 256], strides = [1, 1]} : vector<8x512xf32> to vector<8x256xf32>
    %179 = vector.extract_strided_slice %177 {offsets = [0, 256], sizes = [8, 256], strides = [1, 1]} : vector<8x512xf32> to vector<8x256xf32>
    %180 = arith.maximumf %178, %179 : vector<8x256xf32>
    %181 = vector.broadcast %42 : vector<1x256xf32> to vector<8x256xf32>
    %182 = arith.addf %180, %181 : vector<8x256xf32>
    %cst_118 = arith.constant 0.000000e+00 : f32
    %183 = vector.broadcast %cst_118 : f32 to vector<8x256xf32>
    %184 = arith.maximumf %182, %183 : vector<8x256xf32>
    %c112_119 = arith.constant 112 : index
    %c0_120 = arith.constant 0 : index
    %185 = vector.load %arg10[%c112_119, %c0_120] : memref<144x256xf32, #tpu.memory_space<vmem>>, vector<8x256xf32>
    tpu.vector_store %arg10[%c112_119, %c0_120], %184 {strides = array<i32>} : memref<144x256xf32, #tpu.memory_space<vmem>>, vector<8x256xf32>,
    %c208 = arith.constant 208 : index
    %c0_121 = arith.constant 0 : index
    %186 = vector.load %arg9[%c208, %c0_121] : memref<224x512xf32, #tpu.memory_space<vmem>>, vector<8x512xf32>
    %c216 = arith.constant 216 : index
    %c0_122 = arith.constant 0 : index
    %187 = vector.load %arg9[%c216, %c0_122] : memref<224x512xf32, #tpu.memory_space<vmem>>, vector<8x512xf32>
    %188 = arith.maximumf %186, %187 : vector<8x512xf32>
    %189 = vector.extract_strided_slice %188 {offsets = [0, 0], sizes = [8, 256], strides = [1, 1]} : vector<8x512xf32> to vector<8x256xf32>
    %190 = vector.extract_strided_slice %188 {offsets = [0, 256], sizes = [8, 256], strides = [1, 1]} : vector<8x512xf32> to vector<8x256xf32>
    %191 = arith.maximumf %189, %190 : vector<8x256xf32>
    %192 = vector.broadcast %42 : vector<1x256xf32> to vector<8x256xf32>
    %193 = arith.addf %191, %192 : vector<8x256xf32>
    %cst_123 = arith.constant 0.000000e+00 : f32
    %194 = vector.broadcast %cst_123 : f32 to vector<8x256xf32>
    %195 = arith.maximumf %193, %194 : vector<8x256xf32>
    %c120_124 = arith.constant 120 : index
    %c0_125 = arith.constant 0 : index
    %196 = vector.load %arg10[%c120_124, %c0_125] : memref<144x256xf32, #tpu.memory_space<vmem>>, vector<8x256xf32>
    tpu.vector_store %arg10[%c120_124, %c0_125], %195 {strides = array<i32>} : memref<144x256xf32, #tpu.memory_space<vmem>>, vector<8x256xf32>,
    %c0_126 = arith.constant 0 : index
    %c0_127 = arith.constant 0 : index
    %197 = vector.load %arg10[%c0_126, %c0_127] : memref<144x256xf32, #tpu.memory_space<vmem>>, vector<112x256xf32>
    %c0_128 = arith.constant 0 : index
    %c0_129 = arith.constant 0 : index
    %c0_130 = arith.constant 0 : index
    %198 = vector.load %arg4[%c0_128, %c0_129, %c0_130] : memref<5x256x512xf32, #tpu.memory_space<vmem>>, vector<1x256x512xf32>
    %199 = vector.shape_cast %198 : vector<1x256x512xf32> to vector<256x512xf32>
    %cst_131 = arith.constant dense<0.000000e+00> : vector<112x512xf32>
    %200 = tpu.matmul %197, %199, %cst_131 {dimension_numbers = #tpu.dot_dimension_numbers<[1], [0], [0], [1], [0, 0, 1, 1], [], []>} : vector<112x256xf32>, vector<256x512xf32>, vector<112x512xf32> -> vector<112x512xf32>
    %c0_132 = arith.constant 0 : index
    %c0_133 = arith.constant 0 : index
    %201 = vector.load %arg11[%c0_132, %c0_133] : memref<112x512xf32, #tpu.memory_space<vmem>>, vector<112x512xf32>
    tpu.vector_store %arg11[%c0_132, %c0_133], %200 {strides = array<i32>} : memref<112x512xf32, #tpu.memory_space<vmem>>, vector<112x512xf32>,
    %c8_134 = arith.constant 8 : index
    %c0_135 = arith.constant 0 : index
    %202 = vector.load %arg10[%c8_134, %c0_135] : memref<144x256xf32, #tpu.memory_space<vmem>>, vector<112x256xf32>
    %c1_136 = arith.constant 1 : index
    %c0_137 = arith.constant 0 : index
    %c0_138 = arith.constant 0 : index
    %203 = vector.load %arg4[%c1_136, %c0_137, %c0_138] : memref<5x256x512xf32, #tpu.memory_space<vmem>>, vector<1x256x512xf32>
    %204 = vector.shape_cast %203 : vector<1x256x512xf32> to vector<256x512xf32>
    %cst_139 = arith.constant dense<0.000000e+00> : vector<112x512xf32>
    %205 = tpu.matmul %202, %204, %cst_139 {dimension_numbers = #tpu.dot_dimension_numbers<[1], [0], [0], [1], [0, 0, 1, 1], [], []>} : vector<112x256xf32>, vector<256x512xf32>, vector<112x512xf32> -> vector<112x512xf32>
    %c0_140 = arith.constant 0 : index
    %c0_141 = arith.constant 0 : index
    %206 = vector.load %arg11[%c0_140, %c0_141] : memref<112x512xf32, #tpu.memory_space<vmem>>, vector<112x512xf32>
    %207 = arith.addf %206, %205 : vector<112x512xf32>
    %c0_142 = arith.constant 0 : index
    %c0_143 = arith.constant 0 : index
    %208 = vector.load %arg11[%c0_142, %c0_143] : memref<112x512xf32, #tpu.memory_space<vmem>>, vector<112x512xf32>
    tpu.vector_store %arg11[%c0_142, %c0_143], %207 {strides = array<i32>} : memref<112x512xf32, #tpu.memory_space<vmem>>, vector<112x512xf32>,
    %c16_144 = arith.constant 16 : index
    %c0_145 = arith.constant 0 : index
    %209 = vector.load %arg10[%c16_144, %c0_145] : memref<144x256xf32, #tpu.memory_space<vmem>>, vector<112x256xf32>
    %c2_146 = arith.constant 2 : index
    %c0_147 = arith.constant 0 : index
    %c0_148 = arith.constant 0 : index
    %210 = vector.load %arg4[%c2_146, %c0_147, %c0_148] : memref<5x256x512xf32, #tpu.memory_space<vmem>>, vector<1x256x512xf32>
    %211 = vector.shape_cast %210 : vector<1x256x512xf32> to vector<256x512xf32>
    %cst_149 = arith.constant dense<0.000000e+00> : vector<112x512xf32>
    %212 = tpu.matmul %209, %211, %cst_149 {dimension_numbers = #tpu.dot_dimension_numbers<[1], [0], [0], [1], [0, 0, 1, 1], [], []>} : vector<112x256xf32>, vector<256x512xf32>, vector<112x512xf32> -> vector<112x512xf32>
    %c0_150 = arith.constant 0 : index
    %c0_151 = arith.constant 0 : index
    %213 = vector.load %arg11[%c0_150, %c0_151] : memref<112x512xf32, #tpu.memory_space<vmem>>, vector<112x512xf32>
    %214 = arith.addf %213, %212 : vector<112x512xf32>
    %c0_152 = arith.constant 0 : index
    %c0_153 = arith.constant 0 : index
    %215 = vector.load %arg11[%c0_152, %c0_153] : memref<112x512xf32, #tpu.memory_space<vmem>>, vector<112x512xf32>
    tpu.vector_store %arg11[%c0_152, %c0_153], %214 {strides = array<i32>} : memref<112x512xf32, #tpu.memory_space<vmem>>, vector<112x512xf32>,
    %c24_154 = arith.constant 24 : index
    %c0_155 = arith.constant 0 : index
    %216 = vector.load %arg10[%c24_154, %c0_155] : memref<144x256xf32, #tpu.memory_space<vmem>>, vector<112x256xf32>
    %c3_156 = arith.constant 3 : index
    %c0_157 = arith.constant 0 : index
    %c0_158 = arith.constant 0 : index
    %217 = vector.load %arg4[%c3_156, %c0_157, %c0_158] : memref<5x256x512xf32, #tpu.memory_space<vmem>>, vector<1x256x512xf32>
    %218 = vector.shape_cast %217 : vector<1x256x512xf32> to vector<256x512xf32>
    %cst_159 = arith.constant dense<0.000000e+00> : vector<112x512xf32>
    %219 = tpu.matmul %216, %218, %cst_159 {dimension_numbers = #tpu.dot_dimension_numbers<[1], [0], [0], [1], [0, 0, 1, 1], [], []>} : vector<112x256xf32>, vector<256x512xf32>, vector<112x512xf32> -> vector<112x512xf32>
    %c0_160 = arith.constant 0 : index
    %c0_161 = arith.constant 0 : index
    %220 = vector.load %arg11[%c0_160, %c0_161] : memref<112x512xf32, #tpu.memory_space<vmem>>, vector<112x512xf32>
    %221 = arith.addf %220, %219 : vector<112x512xf32>
    %c0_162 = arith.constant 0 : index
    %c0_163 = arith.constant 0 : index
    %222 = vector.load %arg11[%c0_162, %c0_163] : memref<112x512xf32, #tpu.memory_space<vmem>>, vector<112x512xf32>
    tpu.vector_store %arg11[%c0_162, %c0_163], %221 {strides = array<i32>} : memref<112x512xf32, #tpu.memory_space<vmem>>, vector<112x512xf32>,
    %c32_164 = arith.constant 32 : index
    %c0_165 = arith.constant 0 : index
    %223 = vector.load %arg10[%c32_164, %c0_165] : memref<144x256xf32, #tpu.memory_space<vmem>>, vector<112x256xf32>
    %c4_166 = arith.constant 4 : index
    %c0_167 = arith.constant 0 : index
    %c0_168 = arith.constant 0 : index
    %224 = vector.load %arg4[%c4_166, %c0_167, %c0_168] : memref<5x256x512xf32, #tpu.memory_space<vmem>>, vector<1x256x512xf32>
    %225 = vector.shape_cast %224 : vector<1x256x512xf32> to vector<256x512xf32>
    %cst_169 = arith.constant dense<0.000000e+00> : vector<112x512xf32>
    %226 = tpu.matmul %223, %225, %cst_169 {dimension_numbers = #tpu.dot_dimension_numbers<[1], [0], [0], [1], [0, 0, 1, 1], [], []>} : vector<112x256xf32>, vector<256x512xf32>, vector<112x512xf32> -> vector<112x512xf32>
    %c0_170 = arith.constant 0 : index
    %c0_171 = arith.constant 0 : index
    %227 = vector.load %arg11[%c0_170, %c0_171] : memref<112x512xf32, #tpu.memory_space<vmem>>, vector<112x512xf32>
    %228 = arith.addf %227, %226 : vector<112x512xf32>
    %c0_172 = arith.constant 0 : index
    %c0_173 = arith.constant 0 : index
    %229 = vector.load %arg11[%c0_172, %c0_173] : memref<112x512xf32, #tpu.memory_space<vmem>>, vector<112x512xf32>
    tpu.vector_store %arg11[%c0_172, %c0_173], %228 {strides = array<i32>} : memref<112x512xf32, #tpu.memory_space<vmem>>, vector<112x512xf32>,
    %c0_174 = arith.constant 0 : index
    %c0_175 = arith.constant 0 : index
    %230 = vector.load %arg5[%c0_174, %c0_175] : memref<1x256xf32, #tpu.memory_space<vmem>>, vector<1x256xf32>
    %c0_176 = arith.constant 0 : index
    %c0_177 = arith.constant 0 : index
    %231 = vector.load %arg11[%c0_176, %c0_177] : memref<112x512xf32, #tpu.memory_space<vmem>>, vector<8x512xf32>
    %c8_178 = arith.constant 8 : index
    %c0_179 = arith.constant 0 : index
    %232 = vector.load %arg11[%c8_178, %c0_179] : memref<112x512xf32, #tpu.memory_space<vmem>>, vector<8x512xf32>
    %233 = arith.maximumf %231, %232 : vector<8x512xf32>
    %234 = vector.extract_strided_slice %233 {offsets = [0, 0], sizes = [8, 256], strides = [1, 1]} : vector<8x512xf32> to vector<8x256xf32>
    %235 = vector.extract_strided_slice %233 {offsets = [0, 256], sizes = [8, 256], strides = [1, 1]} : vector<8x512xf32> to vector<8x256xf32>
    %236 = arith.maximumf %234, %235 : vector<8x256xf32>
    %237 = vector.broadcast %230 : vector<1x256xf32> to vector<8x256xf32>
    %238 = arith.addf %236, %237 : vector<8x256xf32>
    %cst_180 = arith.constant 0.000000e+00 : f32
    %239 = vector.broadcast %cst_180 : f32 to vector<8x256xf32>
    %240 = arith.maximumf %238, %239 : vector<8x256xf32>
    %c0_181 = arith.constant 0 : index
    %c0_182 = arith.constant 0 : index
    %241 = vector.load %arg12[%c0_181, %c0_182] : memref<56x256xf32, #tpu.memory_space<vmem>>, vector<8x256xf32>
    tpu.vector_store %arg12[%c0_181, %c0_182], %240 {strides = array<i32>} : memref<56x256xf32, #tpu.memory_space<vmem>>, vector<8x256xf32>,
    %c16_183 = arith.constant 16 : index
    %c0_184 = arith.constant 0 : index
    %242 = vector.load %arg11[%c16_183, %c0_184] : memref<112x512xf32, #tpu.memory_space<vmem>>, vector<8x512xf32>
    %c24_185 = arith.constant 24 : index
    %c0_186 = arith.constant 0 : index
    %243 = vector.load %arg11[%c24_185, %c0_186] : memref<112x512xf32, #tpu.memory_space<vmem>>, vector<8x512xf32>
    %244 = arith.maximumf %242, %243 : vector<8x512xf32>
    %245 = vector.extract_strided_slice %244 {offsets = [0, 0], sizes = [8, 256], strides = [1, 1]} : vector<8x512xf32> to vector<8x256xf32>
    %246 = vector.extract_strided_slice %244 {offsets = [0, 256], sizes = [8, 256], strides = [1, 1]} : vector<8x512xf32> to vector<8x256xf32>
    %247 = arith.maximumf %245, %246 : vector<8x256xf32>
    %248 = vector.broadcast %230 : vector<1x256xf32> to vector<8x256xf32>
    %249 = arith.addf %247, %248 : vector<8x256xf32>
    %cst_187 = arith.constant 0.000000e+00 : f32
    %250 = vector.broadcast %cst_187 : f32 to vector<8x256xf32>
    %251 = arith.maximumf %249, %250 : vector<8x256xf32>
    %c8_188 = arith.constant 8 : index
    %c0_189 = arith.constant 0 : index
    %252 = vector.load %arg12[%c8_188, %c0_189] : memref<56x256xf32, #tpu.memory_space<vmem>>, vector<8x256xf32>
    tpu.vector_store %arg12[%c8_188, %c0_189], %251 {strides = array<i32>} : memref<56x256xf32, #tpu.memory_space<vmem>>, vector<8x256xf32>,
    %c32_190 = arith.constant 32 : index
    %c0_191 = arith.constant 0 : index
    %253 = vector.load %arg11[%c32_190, %c0_191] : memref<112x512xf32, #tpu.memory_space<vmem>>, vector<8x512xf32>
    %c40_192 = arith.constant 40 : index
    %c0_193 = arith.constant 0 : index
    %254 = vector.load %arg11[%c40_192, %c0_193] : memref<112x512xf32, #tpu.memory_space<vmem>>, vector<8x512xf32>
    %255 = arith.maximumf %253, %254 : vector<8x512xf32>
    %256 = vector.extract_strided_slice %255 {offsets = [0, 0], sizes = [8, 256], strides = [1, 1]} : vector<8x512xf32> to vector<8x256xf32>
    %257 = vector.extract_strided_slice %255 {offsets = [0, 256], sizes = [8, 256], strides = [1, 1]} : vector<8x512xf32> to vector<8x256xf32>
    %258 = arith.maximumf %256, %257 : vector<8x256xf32>
    %259 = vector.broadcast %230 : vector<1x256xf32> to vector<8x256xf32>
    %260 = arith.addf %258, %259 : vector<8x256xf32>
    %cst_194 = arith.constant 0.000000e+00 : f32
    %261 = vector.broadcast %cst_194 : f32 to vector<8x256xf32>
    %262 = arith.maximumf %260, %261 : vector<8x256xf32>
    %c16_195 = arith.constant 16 : index
    %c0_196 = arith.constant 0 : index
    %263 = vector.load %arg12[%c16_195, %c0_196] : memref<56x256xf32, #tpu.memory_space<vmem>>, vector<8x256xf32>
    tpu.vector_store %arg12[%c16_195, %c0_196], %262 {strides = array<i32>} : memref<56x256xf32, #tpu.memory_space<vmem>>, vector<8x256xf32>,
    %c48_197 = arith.constant 48 : index
    %c0_198 = arith.constant 0 : index
    %264 = vector.load %arg11[%c48_197, %c0_198] : memref<112x512xf32, #tpu.memory_space<vmem>>, vector<8x512xf32>
    %c56_199 = arith.constant 56 : index
    %c0_200 = arith.constant 0 : index
    %265 = vector.load %arg11[%c56_199, %c0_200] : memref<112x512xf32, #tpu.memory_space<vmem>>, vector<8x512xf32>
    %266 = arith.maximumf %264, %265 : vector<8x512xf32>
    %267 = vector.extract_strided_slice %266 {offsets = [0, 0], sizes = [8, 256], strides = [1, 1]} : vector<8x512xf32> to vector<8x256xf32>
    %268 = vector.extract_strided_slice %266 {offsets = [0, 256], sizes = [8, 256], strides = [1, 1]} : vector<8x512xf32> to vector<8x256xf32>
    %269 = arith.maximumf %267, %268 : vector<8x256xf32>
    %270 = vector.broadcast %230 : vector<1x256xf32> to vector<8x256xf32>
    %271 = arith.addf %269, %270 : vector<8x256xf32>
    %cst_201 = arith.constant 0.000000e+00 : f32
    %272 = vector.broadcast %cst_201 : f32 to vector<8x256xf32>
    %273 = arith.maximumf %271, %272 : vector<8x256xf32>
    %c24_202 = arith.constant 24 : index
    %c0_203 = arith.constant 0 : index
    %274 = vector.load %arg12[%c24_202, %c0_203] : memref<56x256xf32, #tpu.memory_space<vmem>>, vector<8x256xf32>
    tpu.vector_store %arg12[%c24_202, %c0_203], %273 {strides = array<i32>} : memref<56x256xf32, #tpu.memory_space<vmem>>, vector<8x256xf32>,
    %c64_204 = arith.constant 64 : index
    %c0_205 = arith.constant 0 : index
    %275 = vector.load %arg11[%c64_204, %c0_205] : memref<112x512xf32, #tpu.memory_space<vmem>>, vector<8x512xf32>
    %c72_206 = arith.constant 72 : index
    %c0_207 = arith.constant 0 : index
    %276 = vector.load %arg11[%c72_206, %c0_207] : memref<112x512xf32, #tpu.memory_space<vmem>>, vector<8x512xf32>
    %277 = arith.maximumf %275, %276 : vector<8x512xf32>
    %278 = vector.extract_strided_slice %277 {offsets = [0, 0], sizes = [8, 256], strides = [1, 1]} : vector<8x512xf32> to vector<8x256xf32>
    %279 = vector.extract_strided_slice %277 {offsets = [0, 256], sizes = [8, 256], strides = [1, 1]} : vector<8x512xf32> to vector<8x256xf32>
    %280 = arith.maximumf %278, %279 : vector<8x256xf32>
    %281 = vector.broadcast %230 : vector<1x256xf32> to vector<8x256xf32>
    %282 = arith.addf %280, %281 : vector<8x256xf32>
    %cst_208 = arith.constant 0.000000e+00 : f32
    %283 = vector.broadcast %cst_208 : f32 to vector<8x256xf32>
    %284 = arith.maximumf %282, %283 : vector<8x256xf32>
    %c32_209 = arith.constant 32 : index
    %c0_210 = arith.constant 0 : index
    %285 = vector.load %arg12[%c32_209, %c0_210] : memref<56x256xf32, #tpu.memory_space<vmem>>, vector<8x256xf32>
    tpu.vector_store %arg12[%c32_209, %c0_210], %284 {strides = array<i32>} : memref<56x256xf32, #tpu.memory_space<vmem>>, vector<8x256xf32>,
    %c80_211 = arith.constant 80 : index
    %c0_212 = arith.constant 0 : index
    %286 = vector.load %arg11[%c80_211, %c0_212] : memref<112x512xf32, #tpu.memory_space<vmem>>, vector<8x512xf32>
    %c88_213 = arith.constant 88 : index
    %c0_214 = arith.constant 0 : index
    %287 = vector.load %arg11[%c88_213, %c0_214] : memref<112x512xf32, #tpu.memory_space<vmem>>, vector<8x512xf32>
    %288 = arith.maximumf %286, %287 : vector<8x512xf32>
    %289 = vector.extract_strided_slice %288 {offsets = [0, 0], sizes = [8, 256], strides = [1, 1]} : vector<8x512xf32> to vector<8x256xf32>
    %290 = vector.extract_strided_slice %288 {offsets = [0, 256], sizes = [8, 256], strides = [1, 1]} : vector<8x512xf32> to vector<8x256xf32>
    %291 = arith.maximumf %289, %290 : vector<8x256xf32>
    %292 = vector.broadcast %230 : vector<1x256xf32> to vector<8x256xf32>
    %293 = arith.addf %291, %292 : vector<8x256xf32>
    %cst_215 = arith.constant 0.000000e+00 : f32
    %294 = vector.broadcast %cst_215 : f32 to vector<8x256xf32>
    %295 = arith.maximumf %293, %294 : vector<8x256xf32>
    %c40_216 = arith.constant 40 : index
    %c0_217 = arith.constant 0 : index
    %296 = vector.load %arg12[%c40_216, %c0_217] : memref<56x256xf32, #tpu.memory_space<vmem>>, vector<8x256xf32>
    tpu.vector_store %arg12[%c40_216, %c0_217], %295 {strides = array<i32>} : memref<56x256xf32, #tpu.memory_space<vmem>>, vector<8x256xf32>,
    %c96_218 = arith.constant 96 : index
    %c0_219 = arith.constant 0 : index
    %297 = vector.load %arg11[%c96_218, %c0_219] : memref<112x512xf32, #tpu.memory_space<vmem>>, vector<8x512xf32>
    %c104_220 = arith.constant 104 : index
    %c0_221 = arith.constant 0 : index
    %298 = vector.load %arg11[%c104_220, %c0_221] : memref<112x512xf32, #tpu.memory_space<vmem>>, vector<8x512xf32>
    %299 = arith.maximumf %297, %298 : vector<8x512xf32>
    %300 = vector.extract_strided_slice %299 {offsets = [0, 0], sizes = [8, 256], strides = [1, 1]} : vector<8x512xf32> to vector<8x256xf32>
    %301 = vector.extract_strided_slice %299 {offsets = [0, 256], sizes = [8, 256], strides = [1, 1]} : vector<8x512xf32> to vector<8x256xf32>
    %302 = arith.maximumf %300, %301 : vector<8x256xf32>
    %303 = vector.broadcast %230 : vector<1x256xf32> to vector<8x256xf32>
    %304 = arith.addf %302, %303 : vector<8x256xf32>
    %cst_222 = arith.constant 0.000000e+00 : f32
    %305 = vector.broadcast %cst_222 : f32 to vector<8x256xf32>
    %306 = arith.maximumf %304, %305 : vector<8x256xf32>
    %c48_223 = arith.constant 48 : index
    %c0_224 = arith.constant 0 : index
    %307 = vector.load %arg12[%c48_223, %c0_224] : memref<56x256xf32, #tpu.memory_space<vmem>>, vector<8x256xf32>
    tpu.vector_store %arg12[%c48_223, %c0_224], %306 {strides = array<i32>} : memref<56x256xf32, #tpu.memory_space<vmem>>, vector<8x256xf32>,
    %c0_225 = arith.constant 0 : index
    %c0_226 = arith.constant 0 : index
    %308 = vector.load %arg12[%c0_225, %c0_226] : memref<56x256xf32, #tpu.memory_space<vmem>>, vector<8x256xf32>
    %c0_227 = arith.constant 0 : index
    %c0_228 = arith.constant 0 : index
    %c0_229 = arith.constant 0 : index
    %309 = vector.load %arg6[%c0_227, %c0_228, %c0_229] : memref<7x256x128xf32, #tpu.memory_space<vmem>>, vector<1x256x128xf32>
    %310 = vector.shape_cast %309 : vector<1x256x128xf32> to vector<256x128xf32>
    %cst_230 = arith.constant dense<0.000000e+00> : vector<8x128xf32>
    %311 = tpu.matmul %308, %310, %cst_230 {dimension_numbers = #tpu.dot_dimension_numbers<[1], [0], [0], [1], [0, 0, 1, 1], [], []>} : vector<8x256xf32>, vector<256x128xf32>, vector<8x128xf32> -> vector<8x128xf32>
    %c8_231 = arith.constant 8 : index
    %c0_232 = arith.constant 0 : index
    %312 = vector.load %arg12[%c8_231, %c0_232] : memref<56x256xf32, #tpu.memory_space<vmem>>, vector<8x256xf32>
    %c1_233 = arith.constant 1 : index
    %c0_234 = arith.constant 0 : index
    %c0_235 = arith.constant 0 : index
    %313 = vector.load %arg6[%c1_233, %c0_234, %c0_235] : memref<7x256x128xf32, #tpu.memory_space<vmem>>, vector<1x256x128xf32>
    %314 = vector.shape_cast %313 : vector<1x256x128xf32> to vector<256x128xf32>
    %cst_236 = arith.constant dense<0.000000e+00> : vector<8x128xf32>
    %315 = tpu.matmul %312, %314, %cst_236 {dimension_numbers = #tpu.dot_dimension_numbers<[1], [0], [0], [1], [0, 0, 1, 1], [], []>} : vector<8x256xf32>, vector<256x128xf32>, vector<8x128xf32> -> vector<8x128xf32>
    %316 = arith.addf %311, %315 : vector<8x128xf32>
    %c16_237 = arith.constant 16 : index
    %c0_238 = arith.constant 0 : index
    %317 = vector.load %arg12[%c16_237, %c0_238] : memref<56x256xf32, #tpu.memory_space<vmem>>, vector<8x256xf32>
    %c2_239 = arith.constant 2 : index
    %c0_240 = arith.constant 0 : index
    %c0_241 = arith.constant 0 : index
    %318 = vector.load %arg6[%c2_239, %c0_240, %c0_241] : memref<7x256x128xf32, #tpu.memory_space<vmem>>, vector<1x256x128xf32>
    %319 = vector.shape_cast %318 : vector<1x256x128xf32> to vector<256x128xf32>
    %cst_242 = arith.constant dense<0.000000e+00> : vector<8x128xf32>
    %320 = tpu.matmul %317, %319, %cst_242 {dimension_numbers = #tpu.dot_dimension_numbers<[1], [0], [0], [1], [0, 0, 1, 1], [], []>} : vector<8x256xf32>, vector<256x128xf32>, vector<8x128xf32> -> vector<8x128xf32>
    %321 = arith.addf %316, %320 : vector<8x128xf32>
    %c24_243 = arith.constant 24 : index
    %c0_244 = arith.constant 0 : index
    %322 = vector.load %arg12[%c24_243, %c0_244] : memref<56x256xf32, #tpu.memory_space<vmem>>, vector<8x256xf32>
    %c3_245 = arith.constant 3 : index
    %c0_246 = arith.constant 0 : index
    %c0_247 = arith.constant 0 : index
    %323 = vector.load %arg6[%c3_245, %c0_246, %c0_247] : memref<7x256x128xf32, #tpu.memory_space<vmem>>, vector<1x256x128xf32>
    %324 = vector.shape_cast %323 : vector<1x256x128xf32> to vector<256x128xf32>
    %cst_248 = arith.constant dense<0.000000e+00> : vector<8x128xf32>
    %325 = tpu.matmul %322, %324, %cst_248 {dimension_numbers = #tpu.dot_dimension_numbers<[1], [0], [0], [1], [0, 0, 1, 1], [], []>} : vector<8x256xf32>, vector<256x128xf32>, vector<8x128xf32> -> vector<8x128xf32>
    %326 = arith.addf %321, %325 : vector<8x128xf32>
    %c32_249 = arith.constant 32 : index
    %c0_250 = arith.constant 0 : index
    %327 = vector.load %arg12[%c32_249, %c0_250] : memref<56x256xf32, #tpu.memory_space<vmem>>, vector<8x256xf32>
    %c4_251 = arith.constant 4 : index
    %c0_252 = arith.constant 0 : index
    %c0_253 = arith.constant 0 : index
    %328 = vector.load %arg6[%c4_251, %c0_252, %c0_253] : memref<7x256x128xf32, #tpu.memory_space<vmem>>, vector<1x256x128xf32>
    %329 = vector.shape_cast %328 : vector<1x256x128xf32> to vector<256x128xf32>
    %cst_254 = arith.constant dense<0.000000e+00> : vector<8x128xf32>
    %330 = tpu.matmul %327, %329, %cst_254 {dimension_numbers = #tpu.dot_dimension_numbers<[1], [0], [0], [1], [0, 0, 1, 1], [], []>} : vector<8x256xf32>, vector<256x128xf32>, vector<8x128xf32> -> vector<8x128xf32>
    %331 = arith.addf %326, %330 : vector<8x128xf32>
    %c40_255 = arith.constant 40 : index
    %c0_256 = arith.constant 0 : index
    %332 = vector.load %arg12[%c40_255, %c0_256] : memref<56x256xf32, #tpu.memory_space<vmem>>, vector<8x256xf32>
    %c5 = arith.constant 5 : index
    %c0_257 = arith.constant 0 : index
    %c0_258 = arith.constant 0 : index
    %333 = vector.load %arg6[%c5, %c0_257, %c0_258] : memref<7x256x128xf32, #tpu.memory_space<vmem>>, vector<1x256x128xf32>
    %334 = vector.shape_cast %333 : vector<1x256x128xf32> to vector<256x128xf32>
    %cst_259 = arith.constant dense<0.000000e+00> : vector<8x128xf32>
    %335 = tpu.matmul %332, %334, %cst_259 {dimension_numbers = #tpu.dot_dimension_numbers<[1], [0], [0], [1], [0, 0, 1, 1], [], []>} : vector<8x256xf32>, vector<256x128xf32>, vector<8x128xf32> -> vector<8x128xf32>
    %336 = arith.addf %331, %335 : vector<8x128xf32>
    %c48_260 = arith.constant 48 : index
    %c0_261 = arith.constant 0 : index
    %337 = vector.load %arg12[%c48_260, %c0_261] : memref<56x256xf32, #tpu.memory_space<vmem>>, vector<8x256xf32>
    %c6 = arith.constant 6 : index
    %c0_262 = arith.constant 0 : index
    %c0_263 = arith.constant 0 : index
    %338 = vector.load %arg6[%c6, %c0_262, %c0_263] : memref<7x256x128xf32, #tpu.memory_space<vmem>>, vector<1x256x128xf32>
    %339 = vector.shape_cast %338 : vector<1x256x128xf32> to vector<256x128xf32>
    %cst_264 = arith.constant dense<0.000000e+00> : vector<8x128xf32>
    %340 = tpu.matmul %337, %339, %cst_264 {dimension_numbers = #tpu.dot_dimension_numbers<[1], [0], [0], [1], [0, 0, 1, 1], [], []>} : vector<8x256xf32>, vector<256x128xf32>, vector<8x128xf32> -> vector<8x128xf32>
    %341 = arith.addf %336, %340 : vector<8x128xf32>
    %c0_265 = arith.constant 0 : index
    %c0_266 = arith.constant 0 : index
    %342 = vector.load %arg7[%c0_265, %c0_266] : memref<1x128xf32, #tpu.memory_space<vmem>>, vector<1x128xf32>
    %343 = vector.broadcast %342 : vector<1x128xf32> to vector<8x128xf32>
    %344 = arith.addf %341, %343 : vector<8x128xf32>
    %c0_267 = arith.constant 0 : index
    %c0_268 = arith.constant 0 : index
    %345 = vector.load %arg8[%c0_267, %c0_268] : memref<8x128xf32, #tpu.memory_space<vmem>>, vector<8x128xf32>
    tpu.vector_store %arg8[%c0_267, %c0_268], %344 {strides = array<i32>} : memref<8x128xf32, #tpu.memory_space<vmem>>, vector<8x128xf32>,
    return
  }
  func.func @transform_0(%arg0: i32) -> (i32, i32, i32) {
    %c0_i32 = arith.constant 0 : i32
    %c0_i32_0 = arith.constant 0 : i32
    %c0_i32_1 = arith.constant 0 : i32
    return %arg0, %c0_i32, %c0_i32_0 : i32, i32, i32
  }
  func.func @transform_1(%arg0: i32) -> (i32, i32, i32) {
    %c0_i32 = arith.constant 0 : i32
    %c0_i32_0 = arith.constant 0 : i32
    %c0_i32_1 = arith.constant 0 : i32
    %c0_i32_2 = arith.constant 0 : i32
    return %c0_i32, %c0_i32_0, %c0_i32_1 : i32, i32, i32
  }
  func.func @transform_2(%arg0: i32) -> (i32, i32) {
    %c0_i32 = arith.constant 0 : i32
    %c0_i32_0 = arith.constant 0 : i32
    %c0_i32_1 = arith.constant 0 : i32
    return %c0_i32, %c0_i32_0 : i32, i32
  }
  func.func @transform_3(%arg0: i32) -> (i32, i32, i32) {
    %c0_i32 = arith.constant 0 : i32
    %c0_i32_0 = arith.constant 0 : i32
    %c0_i32_1 = arith.constant 0 : i32
    %c0_i32_2 = arith.constant 0 : i32
    return %c0_i32, %c0_i32_0, %c0_i32_1 : i32, i32, i32
  }
  func.func @transform_4(%arg0: i32) -> (i32, i32) {
    %c0_i32 = arith.constant 0 : i32
    %c0_i32_0 = arith.constant 0 : i32
    %c0_i32_1 = arith.constant 0 : i32
    return %c0_i32, %c0_i32_0 : i32, i32
  }
  func.func @transform_5(%arg0: i32) -> (i32, i32, i32) {
    %c0_i32 = arith.constant 0 : i32
    %c0_i32_0 = arith.constant 0 : i32
    %c0_i32_1 = arith.constant 0 : i32
    %c0_i32_2 = arith.constant 0 : i32
    return %c0_i32, %c0_i32_0, %c0_i32_1 : i32, i32, i32
  }
  func.func @transform_6(%arg0: i32) -> (i32, i32) {
    %c0_i32 = arith.constant 0 : i32
    %c0_i32_0 = arith.constant 0 : i32
    %c0_i32_1 = arith.constant 0 : i32
    return %c0_i32, %c0_i32_0 : i32, i32
  }
  func.func @transform_7(%arg0: i32) -> (i32, i32) {
    %c0_i32 = arith.constant 0 : i32
    %c0_i32_0 = arith.constant 0 : i32
    return %arg0, %c0_i32 : i32, i32
  }
}

</mosaic_0001>

<llo_original>
// kernel: cnn_forward.1
$region0: #{cnn_forward.1}
  #allocation0 [shape = 'u32[]', space=smem, size = 0x4, offset = 0x4, fixed_abs, tag = 'smem constant byte address 0x4 - core index']
  #allocation1 [shape = 'u32[144,128]{1,0:T(1,128)}', space=vmem, size = 0x12000, scoped, tag = 'internal scratch']
  #allocation2 [shape = 'f32[224,512]{1,0:T(8,128)}', space=vmem, size = 0x70000, scoped, tag = 'scratch operand']
  #allocation3 [shape = 'f32[144,256]{1,0:T(8,128)}', space=vmem, size = 0x24000, scoped, tag = 'scratch operand']
  #allocation4 [shape = 'f32[112,512]{1,0:T(8,128)}', space=vmem, size = 0x38000, scoped, tag = 'scratch operand']
  #allocation5 [shape = 'f32[56,256]{1,0:T(8,128)}', space=vmem, size = 0xe000, scoped, tag = 'scratch operand']
  %s0 = inlined_call_operand.vmem [shape: f32[1,256,32], index: 0, kind: input, shape index: {}]
  %s1 = inlined_call_operand.hbm [shape: f32[5,32,512], index: 1, kind: input, shape index: {}]
  %s2 = inlined_call_operand.hbm [shape: f32[1,256], index: 2, kind: input, shape index: {}]
  %s3 = inlined_call_operand.hbm [shape: f32[5,256,512], index: 3, kind: input, shape index: {}]
  %s4 = inlined_call_operand.hbm [shape: f32[1,256], index: 4, kind: input, shape index: {}]
  %s5 = inlined_call_operand.hbm [shape: f32[7,256,128], index: 5, kind: input, shape index: {}]
  %s6 = inlined_call_operand.hbm [shape: f32[1,128], index: 6, kind: input, shape index: {}]
  %s7 = inlined_call_operand.vmem [shape: f32[8,128], index: 7, kind: output, shape index: {}]
  %s8 = sld [smem:[#allocation0]]
  $region62: #{cnn_forward.1} parent=0
    _
  %s10 = ssub.s32 1, %s8
  %s11 = scalar_select 0, %s10, %s8
  $region1: #{cnn_forward.1} parent=0
    #allocation6 [shape = 'u8[327680]{0}', space=vmem, size = 0x50000, scoped, tag = 'input window, operand 1, single buffered']
    #allocation7 [shape = 's32[1]{0}', space=sflag, size = 0x4, scoped, tag = 'scoped memory for cnn_forward.1']
    #allocation8 [shape = 'u8[1024]{0}', space=vmem, size = 0x400, scoped, tag = 'input window, operand 2, single buffered']
    #allocation9 [shape = 's32[1]{0}', space=sflag, size = 0x4, scoped, tag = 'scoped memory for cnn_forward.1']
    #allocation10 [shape = 'u8[2621440]{0}', space=vmem, size = 0x280000, scoped, tag = 'input window, operand 3, single buffered']
    #allocation11 [shape = 'u8[1024]{0}', space=vmem, size = 0x400, scoped, tag = 'input window, operand 4, single buffered']
    #allocation12 [shape = 's32[1]{0}', space=sflag, size = 0x4, scoped, tag = 'scoped memory for cnn_forward.1']
    #allocation13 [shape = 'u8[917504]{0}', space=vmem, size = 0xe0000, scoped, tag = 'input window, operand 5, single buffered']
    #allocation14 [shape = 'u8[512]{0}', space=vmem, size = 0x400, scoped, tag = 'input window, operand 6, single buffered']
    #allocation15 [shape = 's32[1]{0}', space=sflag, size = 0x4, scoped, tag = 'scoped memory for cnn_forward.1']
    %12 = vsyncpa [#allocation7], 0
    %13 = vsyncpa [#allocation9], 0
    %14 = vsyncpa [#allocation12], 0
    %15 = vsyncpa [#allocation15], 0
    // Predicated region
    $region2: #{cnn_forward.1} parent=1 // pred_check
      _
    $region3: #{cnn_forward.1} parent=1 // pred_check_branch
      %17 = sbr.rel (0) target = $region5
    $region4: #{cnn_forward.1} parent=1 // pred_region
      _
    $region5: #{cnn_forward.1} parent=1 // pred_fallthru
      _
    // Predicated region
    $region6: #{cnn_forward.1} parent=1 // pred_check
      _
    $region7: #{cnn_forward.1} parent=1 // pred_check_branch
      %19 = sbr.rel (0) target = $region9
    $region8: #{cnn_forward.1} parent=1 // pred_region
      %s21 = ssub.s32 10240, 10240
      %22 = vsyncadd [#allocation7], %s21
      %s23 = sshll.u32 [#allocation6], 4
      %s24 = int_to_ptr.vmem [resolvable:$true] %s23
      %29 = dma.hbm_to_vmem [thread:$0]  %s1, 10240, %s24, [#allocation7], 512, 512, 32
    $region9: #{cnn_forward.1} parent=1 // pred_fallthru
      _
    // Predicated region
    $region10: #{cnn_forward.1} parent=1 // pred_check
      _
    $region11: #{cnn_forward.1} parent=1 // pred_check_branch
      %31 = sbr.rel (0) target = $region13
    $region12: #{cnn_forward.1} parent=1 // pred_region
      %s33 = ssub.s32 32, 32
      %34 = vsyncadd [#allocation9], %s33
      %s36 = sshll.u32 [#allocation8], 4
      %s37 = int_to_ptr.vmem [resolvable:$true] %s36
      %39 = dma.hbm_to_vmem [thread:$0]  %s2, 32, %s37, [#allocation9]
    $region13: #{cnn_forward.1} parent=1 // pred_fallthru
      _
    // Predicated region
    $region14: #{cnn_forward.1} parent=1 // pred_check
      _
    $region15: #{cnn_forward.1} parent=1 // pred_check_branch
      %41 = sbr.rel (0) target = $region17
    $region16: #{cnn_forward.1} parent=1 // pred_region
      %s43 = ssub.s32 81920, 81920
      %44 = vsyncadd [#allocation9], %s43
      %s45 = sshll.u32 [#allocation10], 4
      %s46 = int_to_ptr.vmem [resolvable:$true] %s45
      %51 = dma.hbm_to_vmem [thread:$0]  %s3, 81920, %s46, [#allocation9], 512, 512, 32
    $region17: #{cnn_forward.1} parent=1 // pred_fallthru
      _
    // Predicated region
    $region18: #{cnn_forward.1} parent=1 // pred_check
      _
    $region19: #{cnn_forward.1} parent=1 // pred_check_branch
      %53 = sbr.rel (0) target = $region21
    $region20: #{cnn_forward.1} parent=1 // pred_region
      %s55 = ssub.s32 32, 32
      %56 = vsyncadd [#allocation12], %s55
      %s58 = sshll.u32 [#allocation11], 4
      %s59 = int_to_ptr.vmem [resolvable:$true] %s58
      %61 = dma.hbm_to_vmem [thread:$0]  %s4, 32, %s59, [#allocation12]
    $region21: #{cnn_forward.1} parent=1 // pred_fallthru
      _
    // Predicated region
    $region22: #{cnn_forward.1} parent=1 // pred_check
      _
    $region23: #{cnn_forward.1} parent=1 // pred_check_branch
      %63 = sbr.rel (0) target = $region25
    $region24: #{cnn_forward.1} parent=1 // pred_region
      %s65 = ssub.s32 28672, 28672
      %66 = vsyncadd [#allocation12], %s65
      %s67 = sshll.u32 [#allocation13], 4
      %s68 = int_to_ptr.vmem [resolvable:$true] %s67
      %73 = dma.hbm_to_vmem [thread:$0]  %s5, 28672, %s68, [#allocation12], 128, 128, 8
    $region25: #{cnn_forward.1} parent=1 // pred_fallthru
      _
    // Predicated region
    $region26: #{cnn_forward.1} parent=1 // pred_check
      _
    $region27: #{cnn_forward.1} parent=1 // pred_check_branch
      %75 = sbr.rel (0) target = $region29
    $region28: #{cnn_forward.1} parent=1 // pred_region
      %s77 = ssub.s32 16, 16
      %78 = vsyncadd [#allocation15], %s77
      %s80 = sshll.u32 [#allocation14], 4
      %s81 = int_to_ptr.vmem [resolvable:$true] %s80
      %83 = dma.hbm_to_vmem [thread:$0]  %s6, 16, %s81, [#allocation15]
    $region29: #{cnn_forward.1} parent=1 // pred_fallthru
      _
    // Predicated region
    $region30: #{cnn_forward.1} parent=1 // pred_check
      _
    $region31: #{cnn_forward.1} parent=1 // pred_check_branch
      %85 = sbr.rel (0) target = $region33
    $region32: #{cnn_forward.1} parent=1 // pred_region
      %86 = dma.done [#allocation7], 10240
    $region33: #{cnn_forward.1} parent=1 // pred_fallthru
      _
    // Predicated region
    $region34: #{cnn_forward.1} parent=1 // pred_check
      _
    $region35: #{cnn_forward.1} parent=1 // pred_check_branch
      %88 = sbr.rel (0) target = $region37
    $region36: #{cnn_forward.1} parent=1 // pred_region
      %89 = dma.done [#allocation9], 32
    $region37: #{cnn_forward.1} parent=1 // pred_fallthru
      _
    // Predicated region
    $region38: #{cnn_forward.1} parent=1 // pred_check
      _
    $region39: #{cnn_forward.1} parent=1 // pred_check_branch
      %91 = sbr.rel (0) target = $region41
    $region40: #{cnn_forward.1} parent=1 // pred_region
      %92 = dma.done [#allocation9], 81920
    $region41: #{cnn_forward.1} parent=1 // pred_fallthru
      _
    // Predicated region
    $region42: #{cnn_forward.1} parent=1 // pred_check
      _
    $region43: #{cnn_forward.1} parent=1 // pred_check_branch
      %94 = sbr.rel (0) target = $region45
    $region44: #{cnn_forward.1} parent=1 // pred_region
      %95 = dma.done [#allocation12], 32
    $region45: #{cnn_forward.1} parent=1 // pred_fallthru
      _
    // Predicated region
    $region46: #{cnn_forward.1} parent=1 // pred_check
      _
    $region47: #{cnn_forward.1} parent=1 // pred_check_branch
      %97 = sbr.rel (0) target = $region49
    $region48: #{cnn_forward.1} parent=1 // pred_region
      %98 = dma.done [#allocation12], 28672
    $region49: #{cnn_forward.1} parent=1 // pred_fallthru
      _
    // Predicated region
    $region50: #{cnn_forward.1} parent=1 // pred_check
      _
    $region51: #{cnn_forward.1} parent=1 // pred_check_branch
      %100 = sbr.rel (0) target = $region53
    $region52: #{cnn_forward.1} parent=1 // pred_region
      %101 = dma.done [#allocation15], 16
    $region53: #{cnn_forward.1} parent=1 // pred_fallthru
      _
    %102 = vst [vmem:[#allocation3] sm:$0xff] 0.0
    %103 = vst [vmem:[#allocation3 + $0x8] sm:$0xff] 0.0
    %104 = vst [vmem:[#allocation3 + $0x10] sm:$0xff] 0.0
    %105 = vst [vmem:[#allocation3 + $0x18] sm:$0xff] 0.0
    %106 = vst [vmem:[#allocation3 + $0x100] sm:$0xff] 0.0
    %107 = vst [vmem:[#allocation3 + $0x108] sm:$0xff] 0.0
    %108 = vst [vmem:[#allocation3 + $0x110] sm:$0xff] 0.0
    %109 = vst [vmem:[#allocation3 + $0x118] sm:$0xff] 0.0
    %v110 = vld [vmem:[%s0] sm:$0xff]
    %v111 = vld [vmem:[%s0 + $0x8] sm:$0xff]
    %v112 = vld [vmem:[%s0 + $0x10] sm:$0xff]
    %v113 = vld [vmem:[%s0 + $0x18] sm:$0xff]
    %v114 = vld [vmem:[%s0 + $0x20] sm:$0xff]
    %v115 = vld [vmem:[%s0 + $0x28] sm:$0xff]
    %v116 = vld [vmem:[%s0 + $0x30] sm:$0xff]
    %v117 = vld [vmem:[%s0 + $0x38] sm:$0xff]
    %v118 = vld [vmem:[%s0 + $0x40] sm:$0xff]
    %v119 = vld [vmem:[%s0 + $0x48] sm:$0xff]
    %v120 = vld [vmem:[%s0 + $0x50] sm:$0xff]
    %v121 = vld [vmem:[%s0 + $0x58] sm:$0xff]
    %v122 = vld [vmem:[%s0 + $0x60] sm:$0xff]
    %v123 = vld [vmem:[%s0 + $0x68] sm:$0xff]
    %v124 = vld [vmem:[%s0 + $0x70] sm:$0xff]
    %v125 = vld [vmem:[%s0 + $0x78] sm:$0xff]
    %v126 = vld [vmem:[%s0 + $0x80] sm:$0xff]
    %v127 = vld [vmem:[%s0 + $0x88] sm:$0xff]
    %v128 = vld [vmem:[%s0 + $0x90] sm:$0xff]
    %v129 = vld [vmem:[%s0 + $0x98] sm:$0xff]
    %v130 = vld [vmem:[%s0 + $0xa0] sm:$0xff]
    %v131 = vld [vmem:[%s0 + $0xa8] sm:$0xff]
    %v132 = vld [vmem:[%s0 + $0xb0] sm:$0xff]
    %v133 = vld [vmem:[%s0 + $0xb8] sm:$0xff]
    %v134 = vld [vmem:[%s0 + $0xc0] sm:$0xff]
    %v135 = vld [vmem:[%s0 + $0xc8] sm:$0xff]
    %v136 = vld [vmem:[%s0 + $0xd0] sm:$0xff]
    %v137 = vld [vmem:[%s0 + $0xd8] sm:$0xff]
    %v138 = vld [vmem:[#allocation6] sm:$0xff]
    %v139 = vld [vmem:[#allocation6 + $0x8] sm:$0xff]
    %v140 = vld [vmem:[#allocation6 + $0x10] sm:$0xff]
    %v141 = vld [vmem:[#allocation6 + $0x18] sm:$0xff]
    %v142 = vld [vmem:[#allocation6 + $0x20] sm:$0xff]
    %v143 = vld [vmem:[#allocation6 + $0x28] sm:$0xff]
    %v144 = vld [vmem:[#allocation6 + $0x30] sm:$0xff]
    %v145 = vld [vmem:[#allocation6 + $0x38] sm:$0xff]
    %v146 = vld [vmem:[#allocation6 + $0x40] sm:$0xff]
    %v147 = vld [vmem:[#allocation6 + $0x48] sm:$0xff]
    %v148 = vld [vmem:[#allocation6 + $0x50] sm:$0xff]
    %v149 = vld [vmem:[#allocation6 + $0x58] sm:$0xff]
    %v150 = vld [vmem:[#allocation6 + $0x60] sm:$0xff]
    %v151 = vld [vmem:[#allocation6 + $0x68] sm:$0xff]
    %v152 = vld [vmem:[#allocation6 + $0x70] sm:$0xff]
    %v153 = vld [vmem:[#allocation6 + $0x78] sm:$0xff]
    %vm154 = vcmask 261120
    %v156 = vsel %vm154, %v110, 0
    %v159 = vsel %vm154, %v111, 0
    %v162 = vsel %vm154, %v112, 0
    %v165 = vsel %vm154, %v113, 0
    %v168 = vsel %vm154, %v114, 0
    %v171 = vsel %vm154, %v115, 0
    %v174 = vsel %vm154, %v116, 0
    %v177 = vsel %vm154, %v117, 0
    %v180 = vsel %vm154, %v118, 0
    %v183 = vsel %vm154, %v119, 0
    %v186 = vsel %vm154, %v120, 0
    %v189 = vsel %vm154, %v121, 0
    %v192 = vsel %vm154, %v122, 0
    %v195 = vsel %vm154, %v123, 0
    %v198 = vsel %vm154, %v124, 0
    %v201 = vsel %vm154, %v125, 0
    %v204 = vsel %vm154, %v126, 0
    %v207 = vsel %vm154, %v127, 0
    %v210 = vsel %vm154, %v128, 0
    %v213 = vsel %vm154, %v129, 0
    %v216 = vsel %vm154, %v130, 0
    %v219 = vsel %vm154, %v131, 0
    %v222 = vsel %vm154, %v132, 0
    %v225 = vsel %vm154, %v133, 0
    %v228 = vsel %vm154, %v134, 0
    %v231 = vsel %vm154, %v135, 0
    %v234 = vsel %vm154, %v136, 0
    %v237 = vsel %vm154, %v137, 0
    %239 = vmatprep.subr.mxu0 %v139
    %240 = vmatpush1.msra.mxu0 %v138
    %241 = vmatprep.subr.mxu0 %v143
    %242 = vmatpush1.msra.mxu0 %v142
    %243 = vmatprep.subr.mxu0 %v147
    %244 = vmatpush1.msra.mxu0 %v146
    %245 = vmatprep.subr.mxu0 %v151
    %246 = vmatpush1.msra.mxu0 %v150
    %247 = vmatprep.subr.mxu0 0.0
    %248 = vmatpush1.msra.mxu0 0.0
    %249 = vmatprep.subr.mxu0 0.0
    %250 = vmatpush1.msra.mxu0 0.0
    %251 = vmatprep.subr.mxu0 0.0
    %252 = vmatpush1.msra.mxu0 0.0
    %253 = vmatprep.subr.mxu0 0.0
    %254 = vmatpush1.msra.mxu0 0.0
    %255 = vmatprep.subr.mxu0 0.0
    %256 = vmatpush1.msra.mxu0 0.0
    %257 = vmatprep.subr.mxu0 0.0
    %258 = vmatpush1.msra.mxu0 0.0
    %259 = vmatprep.subr.mxu0 0.0
    %260 = vmatpush1.msra.mxu0 0.0
    %261 = vmatprep.subr.mxu0 0.0
    %262 = vmatpush1.msra.mxu0 0.0
    %263 = vmatprep.subr.mxu0 0.0
    %264 = vmatpush1.msra.mxu0 0.0
    %265 = vmatprep.subr.mxu0 0.0
    %266 = vmatpush1.msra.mxu0 0.0
    %267 = vmatprep.subr.mxu0 0.0
    %268 = vmatpush1.msra.mxu0 0.0
    %269 = vmatprep.subr.mxu0 0.0
    %270 = vmatpush1.msra.mxu0 0.0
    %271 = vmatprep.subr.mxu0 0.0
    %272 = vmatpush1.msra.mxu0 0.0
    %273 = vmatprep.subr.mxu0 0.0
    %274 = vmatpush1.msra.mxu0 0.0
    %275 = vmatprep.subr.mxu0 0.0
    %276 = vmatpush1.msra.mxu0 0.0
    %277 = vmatprep.subr.mxu0 0.0
    %278 = vmatpush1.msra.mxu0 0.0
    %279 = vmatprep.subr.mxu0 0.0
    %280 = vmatpush1.msra.mxu0 0.0
    %281 = vmatprep.subr.mxu0 0.0
    %282 = vmatpush1.msra.mxu0 0.0
    %283 = vmatprep.subr.mxu0 0.0
    %284 = vmatpush1.msra.mxu0 0.0
    %285 = vmatprep.subr.mxu0 0.0
    %286 = vmatpush1.msra.mxu0 0.0
    %287 = vmatprep.subr.mxu0 0.0
    %288 = vmatpush1.msra.mxu0 0.0
    %289 = vmatprep.subr.mxu0 0.0
    %290 = vmatpush1.msra.mxu0 0.0
    %291 = vmatprep.subr.mxu0 0.0
    %292 = vmatpush1.msra.mxu0 0.0
    %293 = vmatprep.subr.mxu0 0.0
    %294 = vmatpush1.msra.mxu0 0.0
    %295 = vmatprep.subr.mxu0 0.0
    %296 = vmatpush1.msra.mxu0 0.0
    %297 = vmatprep.subr.mxu0 0.0
    %298 = vmatpush1.msra.mxu0 0.0
    %299 = vmatprep.subr.mxu0 0.0
    %300 = vmatpush1.msra.mxu0 0.0
    %301 = vmatprep.subr.mxu0 0.0
    %302 = vmatpush1.msra.mxu0 0.0
    %303 = vmatprep.mubr.f32.mxu0 0.0
    %304 = vmatmul.mubr.f32.gmra.mrb[0].mxu0 %v156
    %v305 = vpop.f32.mrb[0].mxu0
    %v306 = vadd.f32 0.0, %v305
    %v307 = vpop.f32.mrb[0].mxu0
    %v308 = vadd.f32 0.0, %v307
    %309 = vmatprep.mubr.f32.mxu0 0.0
    %310 = vmatmul.mubr.f32.gmra.mrb[0].mxu0 %v159
    %v311 = vpop.f32.mrb[0].mxu0
    %v312 = vadd.f32 0.0, %v311
    %v313 = vpop.f32.mrb[0].mxu0
    %v314 = vadd.f32 0.0, %v313
    %315 = vmatprep.mubr.f32.mxu0 0.0
    %316 = vmatmul.mubr.f32.gmra.mrb[0].mxu0 %v162
    %v317 = vpop.f32.mrb[0].mxu0
    %v318 = vadd.f32 0.0, %v317
    %v319 = vpop.f32.mrb[0].mxu0
    %v320 = vadd.f32 0.0, %v319
    %321 = vmatprep.mubr.f32.mxu0 0.0
    %322 = vmatmul.mubr.f32.gmra.mrb[0].mxu0 %v165
    %v323 = vpop.f32.mrb[0].mxu0
    %v324 = vadd.f32 0.0, %v323
    %v325 = vpop.f32.mrb[0].mxu0
    %v326 = vadd.f32 0.0, %v325
    %327 = vmatprep.mubr.f32.mxu0 0.0
    %328 = vmatmul.mubr.f32.gmra.mrb[0].mxu0 %v168
    %v329 = vpop.f32.mrb[0].mxu0
    %v330 = vadd.f32 0.0, %v329
    %v331 = vpop.f32.mrb[0].mxu0
    %v332 = vadd.f32 0.0, %v331
    %333 = vmatprep.mubr.f32.mxu0 0.0
    %334 = vmatmul.mubr.f32.gmra.mrb[0].mxu0 %v171
    %v335 = vpop.f32.mrb[0].mxu0
    %v336 = vadd.f32 0.0, %v335
    %v337 = vpop.f32.mrb[0].mxu0
    %v338 = vadd.f32 0.0, %v337
    %339 = vmatprep.mubr.f32.mxu0 0.0
    %340 = vmatmul.mubr.f32.gmra.mrb[0].mxu0 %v174
    %v341 = vpop.f32.mrb[0].mxu0
    %v342 = vadd.f32 0.0, %v341
    %v343 = vpop.f32.mrb[0].mxu0
    %v344 = vadd.f32 0.0, %v343
    %345 = vmatprep.mubr.f32.mxu0 0.0
    %346 = vmatmul.mubr.f32.gmra.mrb[0].mxu0 %v177
    %v347 = vpop.f32.mrb[0].mxu0
    %v348 = vadd.f32 0.0, %v347
    %v349 = vpop.f32.mrb[0].mxu0
    %v350 = vadd.f32 0.0, %v349
    %351 = vmatprep.mubr.f32.mxu0 0.0
    %352 = vmatmul.mubr.f32.gmra.mrb[0].mxu0 %v180
    %v353 = vpop.f32.mrb[0].mxu0
    %v354 = vadd.f32 0.0, %v353
    %v355 = vpop.f32.mrb[0].mxu0
    %v356 = vadd.f32 0.0, %v355
    %357 = vmatprep.mubr.f32.mxu0 0.0
    %358 = vmatmul.mubr.f32.gmra.mrb[0].mxu0 %v183
    %v359 = vpop.f32.mrb[0].mxu0
    %v360 = vadd.f32 0.0, %v359
    %v361 = vpop.f32.mrb[0].mxu0
    %v362 = vadd.f32 0.0, %v361
    %363 = vmatprep.mubr.f32.mxu0 0.0
    %364 = vmatmul.mubr.f32.gmra.mrb[0].mxu0 %v186
    %v365 = vpop.f32.mrb[0].mxu0
    %v366 = vadd.f32 0.0, %v365
    %v367 = vpop.f32.mrb[0].mxu0
    %v368 = vadd.f32 0.0, %v367
    %369 = vmatprep.mubr.f32.mxu0 0.0
    %370 = vmatmul.mubr.f32.gmra.mrb[0].mxu0 %v189
    %v371 = vpop.f32.mrb[0].mxu0
    %v372 = vadd.f32 0.0, %v371
    %v373 = vpop.f32.mrb[0].mxu0
    %v374 = vadd.f32 0.0, %v373
    %375 = vmatprep.mubr.f32.mxu0 0.0
    %376 = vmatmul.mubr.f32.gmra.mrb[0].mxu0 %v192
    %v377 = vpop.f32.mrb[0].mxu0
    %v378 = vadd.f32 0.0, %v377
    %v379 = vpop.f32.mrb[0].mxu0
    %v380 = vadd.f32 0.0, %v379
    %381 = vmatprep.mubr.f32.mxu0 0.0
    %382 = vmatmul.mubr.f32.gmra.mrb[0].mxu0 %v195
    %v383 = vpop.f32.mrb[0].mxu0
    %v384 = vadd.f32 0.0, %v383
    %v385 = vpop.f32.mrb[0].mxu0
    %v386 = vadd.f32 0.0, %v385
    %387 = vmatprep.mubr.f32.mxu0 0.0
    %388 = vmatmul.mubr.f32.gmra.mrb[0].mxu0 %v198
    %v389 = vpop.f32.mrb[0].mxu0
    %v390 = vadd.f32 0.0, %v389
    %v391 = vpop.f32.mrb[0].mxu0
    %v392 = vadd.f32 0.0, %v391
    %393 = vmatprep.mubr.f32.mxu0 0.0
    %394 = vmatmul.mubr.f32.gmra.mrb[0].mxu0 %v201
    %v395 = vpop.f32.mrb[0].mxu0
    %v396 = vadd.f32 0.0, %v395
    %v397 = vpop.f32.mrb[0].mxu0
    %v398 = vadd.f32 0.0, %v397
    %399 = vmatprep.mubr.f32.mxu0 0.0
    %400 = vmatmul.mubr.f32.gmra.mrb[0].mxu0 %v204
    %v401 = vpop.f32.mrb[0].mxu0
    %v402 = vadd.f32 0.0, %v401
    %v403 = vpop.f32.mrb[0].mxu0
    %v404 = vadd.f32 0.0, %v403
    %405 = vmatprep.mubr.f32.mxu0 0.0
    %406 = vmatmul.mubr.f32.gmra.mrb[0].mxu0 %v207
    %v407 = vpop.f32.mrb[0].mxu0
    %v408 = vadd.f32 0.0, %v407
    %v409 = vpop.f32.mrb[0].mxu0
    %v410 = vadd.f32 0.0, %v409
    %411 = vmatprep.mubr.f32.mxu0 0.0
    %412 = vmatmul.mubr.f32.gmra.mrb[0].mxu0 %v210
    %v413 = vpop.f32.mrb[0].mxu0
    %v414 = vadd.f32 0.0, %v413
    %v415 = vpop.f32.mrb[0].mxu0
    %v416 = vadd.f32 0.0, %v415
    %417 = vmatprep.mubr.f32.mxu0 0.0
    %418 = vmatmul.mubr.f32.gmra.mrb[0].mxu0 %v213
    %v419 = vpop.f32.mrb[0].mxu0
    %v420 = vadd.f32 0.0, %v419
    %v421 = vpop.f32.mrb[0].mxu0
    %v422 = vadd.f32 0.0, %v421
    %423 = vmatprep.mubr.f32.mxu0 0.0
    %424 = vmatmul.mubr.f32.gmra.mrb[0].mxu0 %v216
    %v425 = vpop.f32.mrb[0].mxu0
    %v426 = vadd.f32 0.0, %v425
    %v427 = vpop.f32.mrb[0].mxu0
    %v428 = vadd.f32 0.0, %v427
    %429 = vmatprep.mubr.f32.mxu0 0.0
    %430 = vmatmul.mubr.f32.gmra.mrb[0].mxu0 %v219
    %v431 = vpop.f32.mrb[0].mxu0
    %v432 = vadd.f32 0.0, %v431
    %v433 = vpop.f32.mrb[0].mxu0
    %v434 = vadd.f32 0.0, %v433
    %435 = vmatprep.mubr.f32.mxu0 0.0
    %436 = vmatmul.mubr.f32.gmra.mrb[0].mxu0 %v222
    %v437 = vpop.f32.mrb[0].mxu0
    %v438 = vadd.f32 0.0, %v437
    %v439 = vpop.f32.mrb[0].mxu0
    %v440 = vadd.f32 0.0, %v439
    %441 = vmatprep.mubr.f32.mxu0 0.0
    %442 = vmatmul.mubr.f32.gmra.mrb[0].mxu0 %v225
    %v443 = vpop.f32.mrb[0].mxu0
    %v444 = vadd.f32 0.0, %v443
    %v445 = vpop.f32.mrb[0].mxu0
    %v446 = vadd.f32 0.0, %v445
    %447 = vmatprep.mubr.f32.mxu0 0.0
    %448 = vmatmul.mubr.f32.gmra.mrb[0].mxu0 %v228
    %v449 = vpop.f32.mrb[0].mxu0
    %v450 = vadd.f32 0.0, %v449
    %v451 = vpop.f32.mrb[0].mxu0
    %v452 = vadd.f32 0.0, %v451
    %453 = vmatprep.mubr.f32.mxu0 0.0
    %454 = vmatmul.mubr.f32.gmra.mrb[0].mxu0 %v231
    %v455 = vpop.f32.mrb[0].mxu0
    %v456 = vadd.f32 0.0, %v455
    %v457 = vpop.f32.mrb[0].mxu0
    %v458 = vadd.f32 0.0, %v457
    %459 = vmatprep.mubr.f32.mxu0 0.0
    %460 = vmatmul.mubr.f32.gmra.mrb[0].mxu0 %v234
    %v461 = vpop.f32.mrb[0].mxu0
    %v462 = vadd.f32 0.0, %v461
    %v463 = vpop.f32.mrb[0].mxu0
    %v464 = vadd.f32 0.0, %v463
    %465 = vmatprep.mubr.f32.mxu0 0.0
    %466 = vmatmul.mubr.f32.gmra.mrb[0].mxu0 %v237
    %v467 = vpop.f32.mrb[0].mxu0
    %v468 = vadd.f32 0.0, %v467
    %v469 = vpop.f32.mrb[0].mxu0
    %v470 = vadd.f32 0.0, %v469
    %471 = vdwg.mxu0
    %472 = vmatprep.subr.mxu0 %v141
    %473 = vmatpush1.msra.mxu0 %v140
    %474 = vmatprep.subr.mxu0 %v145
    %475 = vmatpush1.msra.mxu0 %v144
    %476 = vmatprep.subr.mxu0 %v149
    %477 = vmatpush1.msra.mxu0 %v148
    %478 = vmatprep.subr.mxu0 %v153
    %479 = vmatpush1.msra.mxu0 %v152
    %480 = vmatprep.subr.mxu0 0.0
    %481 = vmatpush1.msra.mxu0 0.0
    %482 = vmatprep.subr.mxu0 0.0
    %483 = vmatpush1.msra.mxu0 0.0
    %484 = vmatprep.subr.mxu0 0.0
    %485 = vmatpush1.msra.mxu0 0.0
    %486 = vmatprep.subr.mxu0 0.0
    %487 = vmatpush1.msra.mxu0 0.0
    %488 = vmatprep.subr.mxu0 0.0
    %489 = vmatpush1.msra.mxu0 0.0
    %490 = vmatprep.subr.mxu0 0.0
    %491 = vmatpush1.msra.mxu0 0.0
    %492 = vmatprep.subr.mxu0 0.0
    %493 = vmatpush1.msra.mxu0 0.0
    %494 = vmatprep.subr.mxu0 0.0
    %495 = vmatpush1.msra.mxu0 0.0
    %496 = vmatprep.subr.mxu0 0.0
    %497 = vmatpush1.msra.mxu0 0.0
    %498 = vmatprep.subr.mxu0 0.0
    %499 = vmatpush1.msra.mxu0 0.0
    %500 = vmatprep.subr.mxu0 0.0
    %501 = vmatpush1.msra.mxu0 0.0
    %502 = vmatprep.subr.mxu0 0.0
    %503 = vmatpush1.msra.mxu0 0.0
    %504 = vmatprep.subr.mxu0 0.0
    %505 = vmatpush1.msra.mxu0 0.0
    %506 = vmatprep.subr.mxu0 0.0
    %507 = vmatpush1.msra.mxu0 0.0
    %508 = vmatprep.subr.mxu0 0.0
    %509 = vmatpush1.msra.mxu0 0.0
    %510 = vmatprep.subr.mxu0 0.0
    %511 = vmatpush1.msra.mxu0 0.0
    %512 = vmatprep.subr.mxu0 0.0
    %513 = vmatpush1.msra.mxu0 0.0
    %514 = vmatprep.subr.mxu0 0.0
    %515 = vmatpush1.msra.mxu0 0.0
    %516 = vmatprep.subr.mxu0 0.0
    %517 = vmatpush1.msra.mxu0 0.0
    %518 = vmatprep.subr.mxu0 0.0
    %519 = vmatpush1.msra.mxu0 0.0
    %520 = vmatprep.subr.mxu0 0.0
    %521 = vmatpush1.msra.mxu0 0.0
    %522 = vmatprep.subr.mxu0 0.0
    %523 = vmatpush1.msra.mxu0 0.0
    %524 = vmatprep.subr.mxu0 0.0
    %525 = vmatpush1.msra.mxu0 0.0
    %526 = vmatprep.subr.mxu0 0.0
    %527 = vmatpush1.msra.mxu0 0.0
    %528 = vmatprep.subr.mxu0 0.0
    %529 = vmatpush1.msra.mxu0 0.0
    %530 = vmatprep.subr.mxu0 0.0
    %531 = vmatpush1.msra.mxu0 0.0
    %532 = vmatprep.subr.mxu0 0.0
    %533 = vmatpush1.msra.mxu0 0.0
    %534 = vmatprep.subr.mxu0 0.0
    %535 = vmatpush1.msra.mxu0 0.0
    %536 = vmatprep.mubr.f32.mxu0 0.0
    %537 = vmatmul.mubr.f32.gmra.mrb[0].mxu0 %v156
    %v538 = vpop.f32.mrb[0].mxu0
    %v539 = vadd.f32 0.0, %v538
    %v540 = vpop.f32.mrb[0].mxu0
    %v541 = vadd.f32 0.0, %v540
    %542 = vmatprep.mubr.f32.mxu0 0.0
    %543 = vmatmul.mubr.f32.gmra.mrb[0].mxu0 %v159
    %v544 = vpop.f32.mrb[0].mxu0
    %v545 = vadd.f32 0.0, %v544
    %v546 = vpop.f32.mrb[0].mxu0
    %v547 = vadd.f32 0.0, %v546
    %548 = vmatprep.mubr.f32.mxu0 0.0
    %549 = vmatmul.mubr.f32.gmra.mrb[0].mxu0 %v162
    %v550 = vpop.f32.mrb[0].mxu0
    %v551 = vadd.f32 0.0, %v550
    %v552 = vpop.f32.mrb[0].mxu0
    %v553 = vadd.f32 0.0, %v552
    %554 = vmatprep.mubr.f32.mxu0 0.0
    %555 = vmatmul.mubr.f32.gmra.mrb[0].mxu0 %v165
    %v556 = vpop.f32.mrb[0].mxu0
    %v557 = vadd.f32 0.0, %v556
    %v558 = vpop.f32.mrb[0].mxu0
    %v559 = vadd.f32 0.0, %v558
    %560 = vmatprep.mubr.f32.mxu0 0.0
    %561 = vmatmul.mubr.f32.gmra.mrb[0].mxu0 %v168
    %v562 = vpop.f32.mrb[0].mxu0
    %v563 = vadd.f32 0.0, %v562
    %v564 = vpop.f32.mrb[0].mxu0
    %v565 = vadd.f32 0.0, %v564
    %566 = vmatprep.mubr.f32.mxu0 0.0
    %567 = vmatmul.mubr.f32.gmra.mrb[0].mxu0 %v171
    %v568 = vpop.f32.mrb[0].mxu0
    %v569 = vadd.f32 0.0, %v568
    %v570 = vpop.f32.mrb[0].mxu0
    %v571 = vadd.f32 0.0, %v570
    %572 = vmatprep.mubr.f32.mxu0 0.0
    %573 = vmatmul.mubr.f32.gmra.mrb[0].mxu0 %v174
    %v574 = vpop.f32.mrb[0].mxu0
    %v575 = vadd.f32 0.0, %v574
    %v576 = vpop.f32.mrb[0].mxu0
    %v577 = vadd.f32 0.0, %v576
    %578 = vmatprep.mubr.f32.mxu0 0.0
    %579 = vmatmul.mubr.f32.gmra.mrb[0].mxu0 %v177
    %v580 = vpop.f32.mrb[0].mxu0
    %v581 = vadd.f32 0.0, %v580
    %v582 = vpop.f32.mrb[0].mxu0
    %v583 = vadd.f32 0.0, %v582
    %584 = vmatprep.mubr.f32.mxu0 0.0
    %585 = vmatmul.mubr.f32.gmra.mrb[0].mxu0 %v180
    %v586 = vpop.f32.mrb[0].mxu0
    %v587 = vadd.f32 0.0, %v586
    %v588 = vpop.f32.mrb[0].mxu0
    %v589 = vadd.f32 0.0, %v588
    %590 = vmatprep.mubr.f32.mxu0 0.0
    %591 = vmatmul.mubr.f32.gmra.mrb[0].mxu0 %v183
    %v592 = vpop.f32.mrb[0].mxu0
    %v593 = vadd.f32 0.0, %v592
    %v594 = vpop.f32.mrb[0].mxu0
    %v595 = vadd.f32 0.0, %v594
    %596 = vmatprep.mubr.f32.mxu0 0.0
    %597 = vmatmul.mubr.f32.gmra.mrb[0].mxu0 %v186
    %v598 = vpop.f32.mrb[0].mxu0
    %v599 = vadd.f32 0.0, %v598
    %v600 = vpop.f32.mrb[0].mxu0
    %v601 = vadd.f32 0.0, %v600
    %602 = vmatprep.mubr.f32.mxu0 0.0
    %603 = vmatmul.mubr.f32.gmra.mrb[0].mxu0 %v189
    %v604 = vpop.f32.mrb[0].mxu0
    %v605 = vadd.f32 0.0, %v604
    %v606 = vpop.f32.mrb[0].mxu0
    %v607 = vadd.f32 0.0, %v606
    %608 = vmatprep.mubr.f32.mxu0 0.0
    %609 = vmatmul.mubr.f32.gmra.mrb[0].mxu0 %v192
    %v610 = vpop.f32.mrb[0].mxu0
    %v611 = vadd.f32 0.0, %v610
    %v612 = vpop.f32.mrb[0].mxu0
    %v613 = vadd.f32 0.0, %v612
    %614 = vmatprep.mubr.f32.mxu0 0.0
    %615 = vmatmul.mubr.f32.gmra.mrb[0].mxu0 %v195
    %v616 = vpop.f32.mrb[0].mxu0
    %v617 = vadd.f32 0.0, %v616
    %v618 = vpop.f32.mrb[0].mxu0
    %v619 = vadd.f32 0.0, %v618
    %620 = vmatprep.mubr.f32.mxu0 0.0
    %621 = vmatmul.mubr.f32.gmra.mrb[0].mxu0 %v198
    %v622 = vpop.f32.mrb[0].mxu0
    %v623 = vadd.f32 0.0, %v622
    %v624 = vpop.f32.mrb[0].mxu0
    %v625 = vadd.f32 0.0, %v624
    %626 = vmatprep.mubr.f32.mxu0 0.0
    %627 = vmatmul.mubr.f32.gmra.mrb[0].mxu0 %v201
    %v628 = vpop.f32.mrb[0].mxu0
    %v629 = vadd.f32 0.0, %v628
    %v630 = vpop.f32.mrb[0].mxu0
    %v631 = vadd.f32 0.0, %v630
    %632 = vmatprep.mubr.f32.mxu0 0.0
    %633 = vmatmul.mubr.f32.gmra.mrb[0].mxu0 %v204
    %v634 = vpop.f32.mrb[0].mxu0
    %v635 = vadd.f32 0.0, %v634
    %v636 = vpop.f32.mrb[0].mxu0
    %v637 = vadd.f32 0.0, %v636
    %638 = vmatprep.mubr.f32.mxu0 0.0
    %639 = vmatmul.mubr.f32.gmra.mrb[0].mxu0 %v207
    %v640 = vpop.f32.mrb[0].mxu0
    %v641 = vadd.f32 0.0, %v640
    %v642 = vpop.f32.mrb[0].mxu0
    %v643 = vadd.f32 0.0, %v642
    %644 = vmatprep.mubr.f32.mxu0 0.0
    %645 = vmatmul.mubr.f32.gmra.mrb[0].mxu0 %v210
    %v646 = vpop.f32.mrb[0].mxu0
    %v647 = vadd.f32 0.0, %v646
    %v648 = vpop.f32.mrb[0].mxu0
    %v649 = vadd.f32 0.0, %v648
    %650 = vmatprep.mubr.f32.mxu0 0.0
    %651 = vmatmul.mubr.f32.gmra.mrb[0].mxu0 %v213
    %v652 = vpop.f32.mrb[0].mxu0
    %v653 = vadd.f32 0.0, %v652
    %v654 = vpop.f32.mrb[0].mxu0
    %v655 = vadd.f32 0.0, %v654
    %656 = vmatprep.mubr.f32.mxu0 0.0
    %657 = vmatmul.mubr.f32.gmra.mrb[0].mxu0 %v216
    %v658 = vpop.f32.mrb[0].mxu0
    %v659 = vadd.f32 0.0, %v658
    %v660 = vpop.f32.mrb[0].mxu0
    %v661 = vadd.f32 0.0, %v660
    %662 = vmatprep.mubr.f32.mxu0 0.0
    %663 = vmatmul.mubr.f32.gmra.mrb[0].mxu0 %v219
    %v664 = vpop.f32.mrb[0].mxu0
    %v665 = vadd.f32 0.0, %v664
    %v666 = vpop.f32.mrb[0].mxu0
    %v667 = vadd.f32 0.0, %v666
    %668 = vmatprep.mubr.f32.mxu0 0.0
    %669 = vmatmul.mubr.f32.gmra.mrb[0].mxu0 %v222
    %v670 = vpop.f32.mrb[0].mxu0
    %v671 = vadd.f32 0.0, %v670
    %v672 = vpop.f32.mrb[0].mxu0
    %v673 = vadd.f32 0.0, %v672
    %674 = vmatprep.mubr.f32.mxu0 0.0
    %675 = vmatmul.mubr.f32.gmra.mrb[0].mxu0 %v225
    %v676 = vpop.f32.mrb[0].mxu0
    %v677 = vadd.f32 0.0, %v676
    %v678 = vpop.f32.mrb[0].mxu0
    %v679 = vadd.f32 0.0, %v678
    %680 = vmatprep.mubr.f32.mxu0 0.0
    %681 = vmatmul.mubr.f32.gmra.mrb[0].mxu0 %v228
    %v682 = vpop.f32.mrb[0].mxu0
    %v683 = vadd.f32 0.0, %v682
    %v684 = vpop.f32.mrb[0].mxu0
    %v685 = vadd.f32 0.0, %v684
    %686 = vmatprep.mubr.f32.mxu0 0.0
    %687 = vmatmul.mubr.f32.gmra.mrb[0].mxu0 %v231
    %v688 = vpop.f32.mrb[0].mxu0
    %v689 = vadd.f32 0.0, %v688
    %v690 = vpop.f32.mrb[0].mxu0
    %v691 = vadd.f32 0.0, %v690
    %692 = vmatprep.mubr.f32.mxu0 0.0
    %693 = vmatmul.mubr.f32.gmra.mrb[0].mxu0 %v234
    %v694 = vpop.f32.mrb[0].mxu0
    %v695 = vadd.f32 0.0, %v694
    %v696 = vpop.f32.mrb[0].mxu0
    %v697 = vadd.f32 0.0, %v696
    %698 = vmatprep.mubr.f32.mxu0 0.0
    %699 = vmatmul.mubr.f32.gmra.mrb[0].mxu0 %v237
    %v700 = vpop.f32.mrb[0].mxu0
    %v701 = vadd.f32 0.0, %v700
    %v702 = vpop.f32.mrb[0].mxu0
    %v703 = vadd.f32 0.0, %v702
    %704 = vdwg.mxu0
    %705 = vst [vmem:[#allocation2] sm:$0xff] %v306
    %706 = vst [vmem:[#allocation2 + $0x8] sm:$0xff] %v308
    %707 = vst [vmem:[#allocation2 + $0x10] sm:$0xff] %v539
    %708 = vst [vmem:[#allocation2 + $0x18] sm:$0xff] %v541
    %709 = vst [vmem:[#allocation2 + $0x20] sm:$0xff] %v312
    %710 = vst [vmem:[#allocation2 + $0x28] sm:$0xff] %v314
    %711 = vst [vmem:[#allocation2 + $0x30] sm:$0xff] %v545
    %712 = vst [vmem:[#allocation2 + $0x38] sm:$0xff] %v547
    %713 = vst [vmem:[#allocation2 + $0x40] sm:$0xff] %v318
    %714 = vst [vmem:[#allocation2 + $0x48] sm:$0xff] %v320
    %715 = vst [vmem:[#allocation2 + $0x50] sm:$0xff] %v551
    %716 = vst [vmem:[#allocation2 + $0x58] sm:$0xff] %v553
    %717 = vst [vmem:[#allocation2 + $0x60] sm:$0xff] %v324
    %718 = vst [vmem:[#allocation2 + $0x68] sm:$0xff] %v326
    %719 = vst [vmem:[#allocation2 + $0x70] sm:$0xff] %v557
    %720 = vst [vmem:[#allocation2 + $0x78] sm:$0xff] %v559
    %721 = vst [vmem:[#allocation2 + $0x80] sm:$0xff] %v330
    %722 = vst [vmem:[#allocation2 + $0x88] sm:$0xff] %v332
    %723 = vst [vmem:[#allocation2 + $0x90] sm:$0xff] %v563
    %724 = vst [vmem:[#allocation2 + $0x98] sm:$0xff] %v565
    %725 = vst [vmem:[#allocation2 + $0xa0] sm:$0xff] %v336
    %726 = vst [vmem:[#allocation2 + $0xa8] sm:$0xff] %v338
    %727 = vst [vmem:[#allocation2 + $0xb0] sm:$0xff] %v569
    %728 = vst [vmem:[#allocation2 + $0xb8] sm:$0xff] %v571
    %729 = vst [vmem:[#allocation2 + $0xc0] sm:$0xff] %v342
    %730 = vst [vmem:[#allocation2 + $0xc8] sm:$0xff] %v344
    %731 = vst [vmem:[#allocation2 + $0xd0] sm:$0xff] %v575
    %732 = vst [vmem:[#allocation2 + $0xd8] sm:$0xff] %v577
    %733 = vst [vmem:[#allocation2 + $0xe0] sm:$0xff] %v348
    %734 = vst [vmem:[#allocation2 + $0xe8] sm:$0xff] %v350
    %735 = vst [vmem:[#allocation2 + $0xf0] sm:$0xff] %v581
    %736 = vst [vmem:[#allocation2 + $0xf8] sm:$0xff] %v583
    %737 = vst [vmem:[#allocation2 + $0x100] sm:$0xff] %v354
    %738 = vst [vmem:[#allocation2 + $0x108] sm:$0xff] %v356
    %739 = vst [vmem:[#allocation2 + $0x110] sm:$0xff] %v587
    %740 = vst [vmem:[#allocation2 + $0x118] sm:$0xff] %v589
    %741 = vst [vmem:[#allocation2 + $0x120] sm:$0xff] %v360
    %742 = vst [vmem:[#allocation2 + $0x128] sm:$0xff] %v362
    %743 = vst [vmem:[#allocation2 + $0x130] sm:$0xff] %v593
    %744 = vst [vmem:[#allocation2 + $0x138] sm:$0xff] %v595
    %745 = vst [vmem:[#allocation2 + $0x140] sm:$0xff] %v366
    %746 = vst [vmem:[#allocation2 + $0x148] sm:$0xff] %v368
    %747 = vst [vmem:[#allocation2 + $0x150] sm:$0xff] %v599
    %748 = vst [vmem:[#allocation2 + $0x158] sm:$0xff] %v601
    %749 = vst [vmem:[#allocation2 + $0x160] sm:$0xff] %v372
    %750 = vst [vmem:[#allocation2 + $0x168] sm:$0xff] %v374
    %751 = vst [vmem:[#allocation2 + $0x170] sm:$0xff] %v605
    %752 = vst [vmem:[#allocation2 + $0x178] sm:$0xff] %v607
    %753 = vst [vmem:[#allocation2 + $0x180] sm:$0xff] %v378
    %754 = vst [vmem:[#allocation2 + $0x188] sm:$0xff] %v380
    %755 = vst [vmem:[#allocation2 + $0x190] sm:$0xff] %v611
    %756 = vst [vmem:[#allocation2 + $0x198] sm:$0xff] %v613
    %757 = vst [vmem:[#allocation2 + $0x1a0] sm:$0xff] %v384
    %758 = vst [vmem:[#allocation2 + $0x1a8] sm:$0xff] %v386
    %759 = vst [vmem:[#allocation2 + $0x1b0] sm:$0xff] %v617
    %760 = vst [vmem:[#allocation2 + $0x1b8] sm:$0xff] %v619
    %761 = vst [vmem:[#allocation2 + $0x1c0] sm:$0xff] %v390
    %762 = vst [vmem:[#allocation2 + $0x1c8] sm:$0xff] %v392
    %763 = vst [vmem:[#allocation2 + $0x1d0] sm:$0xff] %v623
    %764 = vst [vmem:[#allocation2 + $0x1d8] sm:$0xff] %v625
    %765 = vst [vmem:[#allocation2 + $0x1e0] sm:$0xff] %v396
    %766 = vst [vmem:[#allocation2 + $0x1e8] sm:$0xff] %v398
    %767 = vst [vmem:[#allocation2 + $0x1f0] sm:$0xff] %v629
    %768 = vst [vmem:[#allocation2 + $0x1f8] sm:$0xff] %v631
    %769 = vst [vmem:[#allocation2 + $0x200] sm:$0xff] %v402
    %770 = vst [vmem:[#allocation2 + $0x208] sm:$0xff] %v404
    %771 = vst [vmem:[#allocation2 + $0x210] sm:$0xff] %v635
    %772 = vst [vmem:[#allocation2 + $0x218] sm:$0xff] %v637
    %773 = vst [vmem:[#allocation2 + $0x220] sm:$0xff] %v408
    %774 = vst [vmem:[#allocation2 + $0x228] sm:$0xff] %v410
    %775 = vst [vmem:[#allocation2 + $0x230] sm:$0xff] %v641
    %776 = vst [vmem:[#allocation2 + $0x238] sm:$0xff] %v643
    %777 = vst [vmem:[#allocation2 + $0x240] sm:$0xff] %v414
    %778 = vst [vmem:[#allocation2 + $0x248] sm:$0xff] %v416
    %779 = vst [vmem:[#allocation2 + $0x250] sm:$0xff] %v647
    %780 = vst [vmem:[#allocation2 + $0x258] sm:$0xff] %v649
    %781 = vst [vmem:[#allocation2 + $0x260] sm:$0xff] %v420
    %782 = vst [vmem:[#allocation2 + $0x268] sm:$0xff] %v422
    %783 = vst [vmem:[#allocation2 + $0x270] sm:$0xff] %v653
    %784 = vst [vmem:[#allocation2 + $0x278] sm:$0xff] %v655
    %785 = vst [vmem:[#allocation2 + $0x280] sm:$0xff] %v426
    %786 = vst [vmem:[#allocation2 + $0x288] sm:$0xff] %v428
    %787 = vst [vmem:[#allocation2 + $0x290] sm:$0xff] %v659
    %788 = vst [vmem:[#allocation2 + $0x298] sm:$0xff] %v661
    %789 = vst [vmem:[#allocation2 + $0x2a0] sm:$0xff] %v432
    %790 = vst [vmem:[#allocation2 + $0x2a8] sm:$0xff] %v434
    %791 = vst [vmem:[#allocation2 + $0x2b0] sm:$0xff] %v665
    %792 = vst [vmem:[#allocation2 + $0x2b8] sm:$0xff] %v667
    %793 = vst [vmem:[#allocation2 + $0x2c0] sm:$0xff] %v438
    %794 = vst [vmem:[#allocation2 + $0x2c8] sm:$0xff] %v440
    %795 = vst [vmem:[#allocation2 + $0x2d0] sm:$0xff] %v671
    %796 = vst [vmem:[#allocation2 + $0x2d8] sm:$0xff] %v673
    %797 = vst [vmem:[#allocation2 + $0x2e0] sm:$0xff] %v444
    %798 = vst [vmem:[#allocation2 + $0x2e8] sm:$0xff] %v446
    %799 = vst [vmem:[#allocation2 + $0x2f0] sm:$0xff] %v677
    %800 = vst [vmem:[#allocation2 + $0x2f8] sm:$0xff] %v679
    %801 = vst [vmem:[#allocation2 + $0x300] sm:$0xff] %v450
    %802 = vst [vmem:[#allocation2 + $0x308] sm:$0xff] %v452
    %803 = vst [vmem:[#allocation2 + $0x310] sm:$0xff] %v683
    %804 = vst [vmem:[#allocation2 + $0x318] sm:$0xff] %v685
    %805 = vst [vmem:[#allocation2 + $0x320] sm:$0xff] %v456
    %806 = vst [vmem:[#allocation2 + $0x328] sm:$0xff] %v458
    %807 = vst [vmem:[#allocation2 + $0x330] sm:$0xff] %v689
    %808 = vst [vmem:[#allocation2 + $0x338] sm:$0xff] %v691
    %809 = vst [vmem:[#allocation2 + $0x340] sm:$0xff] %v462
    %810 = vst [vmem:[#allocation2 + $0x348] sm:$0xff] %v464
    %811 = vst [vmem:[#allocation2 + $0x350] sm:$0xff] %v695
    %812 = vst [vmem:[#allocation2 + $0x358] sm:$0xff] %v697
    %813 = vst [vmem:[#allocation2 + $0x360] sm:$0xff] %v468
    %814 = vst [vmem:[#allocation2 + $0x368] sm:$0xff] %v470
    %815 = vst [vmem:[#allocation2 + $0x370] sm:$0xff] %v701
    %816 = vst [vmem:[#allocation2 + $0x378] sm:$0xff] %v703
    %v817 = vld [vmem:[%s0 + $0x8] sm:$0xff]
    %v818 = vld [vmem:[%s0 + $0x10] sm:$0xff]
    %v819 = vld [vmem:[%s0 + $0x18] sm:$0xff]
    %v820 = vld [vmem:[%s0 + $0x20] sm:$0xff]
    %v821 = vld [vmem:[%s0 + $0x28] sm:$0xff]
    %v822 = vld [vmem:[%s0 + $0x30] sm:$0xff]
    %v823 = vld [vmem:[%s0 + $0x38] sm:$0xff]
    %v824 = vld [vmem:[%s0 + $0x40] sm:$0xff]
    %v825 = vld [vmem:[%s0 + $0x48] sm:$0xff]
    %v826 = vld [vmem:[%s0 + $0x50] sm:$0xff]
    %v827 = vld [vmem:[%s0 + $0x58] sm:$0xff]
    %v828 = vld [vmem:[%s0 + $0x60] sm:$0xff]
    %v829 = vld [vmem:[%s0 + $0x68] sm:$0xff]
    %v830 = vld [vmem:[%s0 + $0x70] sm:$0xff]
    %v831 = vld [vmem:[%s0 + $0x78] sm:$0xff]
    %v832 = vld [vmem:[%s0 + $0x80] sm:$0xff]
    %v833 = vld [vmem:[%s0 + $0x88] sm:$0xff]
    %v834 = vld [vmem:[%s0 + $0x90] sm:$0xff]
    %v835 = vld [vmem:[%s0 + $0x98] sm:$0xff]
    %v836 = vld [vmem:[%s0 + $0xa0] sm:$0xff]
    %v837 = vld [vmem:[%s0 + $0xa8] sm:$0xff]
    %v838 = vld [vmem:[%s0 + $0xb0] sm:$0xff]
    %v839 = vld [vmem:[%s0 + $0xb8] sm:$0xff]
    %v840 = vld [vmem:[%s0 + $0xc0] sm:$0xff]
    %v841 = vld [vmem:[%s0 + $0xc8] sm:$0xff]
    %v842 = vld [vmem:[%s0 + $0xd0] sm:$0xff]
    %v843 = vld [vmem:[%s0 + $0xd8] sm:$0xff]
    %v844 = vld [vmem:[%s0 + $0xe0] sm:$0xff]
    %s845 = scalar_lea.vmem [#allocation6], 128
    %v846 = vld [vmem:[%s845] sm:$0xff]
    %v847 = vld [vmem:[%s845 + $0x8] sm:$0xff]
    %v848 = vld [vmem:[%s845 + $0x10] sm:$0xff]
    %v849 = vld [vmem:[%s845 + $0x18] sm:$0xff]
    %v850 = vld [vmem:[%s845 + $0x20] sm:$0xff]
    %v851 = vld [vmem:[%s845 + $0x28] sm:$0xff]
    %v852 = vld [vmem:[%s845 + $0x30] sm:$0xff]
    %v853 = vld [vmem:[%s845 + $0x38] sm:$0xff]
    %v854 = vld [vmem:[%s845 + $0x40] sm:$0xff]
    %v855 = vld [vmem:[%s845 + $0x48] sm:$0xff]
    %v856 = vld [vmem:[%s845 + $0x50] sm:$0xff]
    %v857 = vld [vmem:[%s845 + $0x58] sm:$0xff]
    %v858 = vld [vmem:[%s845 + $0x60] sm:$0xff]
    %v859 = vld [vmem:[%s845 + $0x68] sm:$0xff]
    %v860 = vld [vmem:[%s845 + $0x70] sm:$0xff]
    %v861 = vld [vmem:[%s845 + $0x78] sm:$0xff]
    %v863 = vsel %vm154, %v817, 0
    %v866 = vsel %vm154, %v818, 0
    %v869 = vsel %vm154, %v819, 0
    %v872 = vsel %vm154, %v820, 0
    %v875 = vsel %vm154, %v821, 0
    %v878 = vsel %vm154, %v822, 0
    %v881 = vsel %vm154, %v823, 0
    %v884 = vsel %vm154, %v824, 0
    %v887 = vsel %vm154, %v825, 0
    %v890 = vsel %vm154, %v826, 0
    %v893 = vsel %vm154, %v827, 0
    %v896 = vsel %vm154, %v828, 0
    %v899 = vsel %vm154, %v829, 0
    %v902 = vsel %vm154, %v830, 0
    %v905 = vsel %vm154, %v831, 0
    %v908 = vsel %vm154, %v832, 0
    %v911 = vsel %vm154, %v833, 0
    %v914 = vsel %vm154, %v834, 0
    %v917 = vsel %vm154, %v835, 0
    %v920 = vsel %vm154, %v836, 0
    %v923 = vsel %vm154, %v837, 0
    %v926 = vsel %vm154, %v838, 0
    %v929 = vsel %vm154, %v839, 0
    %v932 = vsel %vm154, %v840, 0
    %v935 = vsel %vm154, %v841, 0
    %v938 = vsel %vm154, %v842, 0
    %v941 = vsel %vm154, %v843, 0
    %v944 = vsel %vm154, %v844, 0
    %946 = vmatprep.subr.mxu0 %v847
    %947 = vmatpush1.msra.mxu0 %v846
    %948 = vmatprep.subr.mxu0 %v851
    %949 = vmatpush1.msra.mxu0 %v850
    %950 = vmatprep.subr.mxu0 %v855
    %951 = vmatpush1.msra.mxu0 %v854
    %952 = vmatprep.subr.mxu0 %v859
    %953 = vmatpush1.msra.mxu0 %v858
    %954 = vmatprep.subr.mxu0 0.0
    %955 = vmatpush1.msra.mxu0 0.0
    %956 = vmatprep.subr.mxu0 0.0
    %957 = vmatpush1.msra.mxu0 0.0
    %958 = vmatprep.subr.mxu0 0.0
    %959 = vmatpush1.msra.mxu0 0.0
    %960 = vmatprep.subr.mxu0 0.0
    %961 = vmatpush1.msra.mxu0 0.0
    %962 = vmatprep.subr.mxu0 0.0
    %963 = vmatpush1.msra.mxu0 0.0
    %964 = vmatprep.subr.mxu0 0.0
    %965 = vmatpush1.msra.mxu0 0.0
    %966 = vmatprep.subr.mxu0 0.0
    %967 = vmatpush1.msra.mxu0 0.0
    %968 = vmatprep.subr.mxu0 0.0
    %969 = vmatpush1.msra.mxu0 0.0
    %970 = vmatprep.subr.mxu0 0.0
    %971 = vmatpush1.msra.mxu0 0.0
    %972 = vmatprep.subr.mxu0 0.0
    %973 = vmatpush1.msra.mxu0 0.0
    %974 = vmatprep.subr.mxu0 0.0
    %975 = vmatpush1.msra.mxu0 0.0
    %976 = vmatprep.subr.mxu0 0.0
    %977 = vmatpush1.msra.mxu0 0.0
    %978 = vmatprep.subr.mxu0 0.0
    %979 = vmatpush1.msra.mxu0 0.0
    %980 = vmatprep.subr.mxu0 0.0
    %981 = vmatpush1.msra.mxu0 0.0
    %982 = vmatprep.subr.mxu0 0.0
    %983 = vmatpush1.msra.mxu0 0.0
    %984 = vmatprep.subr.mxu0 0.0
    %985 = vmatpush1.msra.mxu0 0.0
    %986 = vmatprep.subr.mxu0 0.0
    %987 = vmatpush1.msra.mxu0 0.0
    %988 = vmatprep.subr.mxu0 0.0
    %989 = vmatpush1.msra.mxu0 0.0
    %990 = vmatprep.subr.mxu0 0.0
    %991 = vmatpush1.msra.mxu0 0.0
    %992 = vmatprep.subr.mxu0 0.0
    %993 = vmatpush1.msra.mxu0 0.0
    %994 = vmatprep.subr.mxu0 0.0
    %995 = vmatpush1.msra.mxu0 0.0
    %996 = vmatprep.subr.mxu0 0.0
    %997 = vmatpush1.msra.mxu0 0.0
    %998 = vmatprep.subr.mxu0 0.0
    %999 = vmatpush1.msra.mxu0 0.0
    %1000 = vmatprep.subr.mxu0 0.0
    %1001 = vmatpush1.msra.mxu0 0.0
    %1002 = vmatprep.subr.mxu0 0.0
    %1003 = vmatpush1.msra.mxu0 0.0
    %1004 = vmatprep.subr.mxu0 0.0
    %1005 = vmatpush1.msra.mxu0 0.0
    %1006 = vmatprep.subr.mxu0 0.0
    %1007 = vmatpush1.msra.mxu0 0.0
    %1008 = vmatprep.subr.mxu0 0.0
    %1009 = vmatpush1.msra.mxu0 0.0
    %1010 = vmatprep.mubr.f32.mxu0 0.0
    %1011 = vmatmul.mubr.f32.gmra.mrb[0].mxu0 %v863
    %v1012 = vpop.f32.mrb[0].mxu0
    %v1013 = vadd.f32 0.0, %v1012
    %v1014 = vpop.f32.mrb[0].mxu0
    %v1015 = vadd.f32 0.0, %v1014
    %1016 = vmatprep.mubr.f32.mxu0 0.0
    %1017 = vmatmul.mubr.f32.gmra.mrb[0].mxu0 %v866
    %v1018 = vpop.f32.mrb[0].mxu0
    %v1019 = vadd.f32 0.0, %v1018
    %v1020 = vpop.f32.mrb[0].mxu0
    %v1021 = vadd.f32 0.0, %v1020
    %1022 = vmatprep.mubr.f32.mxu0 0.0
    %1023 = vmatmul.mubr.f32.gmra.mrb[0].mxu0 %v869
    %v1024 = vpop.f32.mrb[0].mxu0
    %v1025 = vadd.f32 0.0, %v1024
    %v1026 = vpop.f32.mrb[0].mxu0
    %v1027 = vadd.f32 0.0, %v1026
    %1028 = vmatprep.mubr.f32.mxu0 0.0
    %1029 = vmatmul.mubr.f32.gmra.mrb[0].mxu0 %v872
    %v1030 = vpop.f32.mrb[0].mxu0
    %v1031 = vadd.f32 0.0, %v1030
    %v1032 = vpop.f32.mrb[0].mxu0
    %v1033 = vadd.f32 0.0, %v1032
    %1034 = vmatprep.mubr.f32.mxu0 0.0
    %1035 = vmatmul.mubr.f32.gmra.mrb[0].mxu0 %v875
    %v1036 = vpop.f32.mrb[0].mxu0
    %v1037 = vadd.f32 0.0, %v1036
    %v1038 = vpop.f32.mrb[0].mxu0
    %v1039 = vadd.f32 0.0, %v1038
    %1040 = vmatprep.mubr.f32.mxu0 0.0
    %1041 = vmatmul.mubr.f32.gmra.mrb[0].mxu0 %v878
    %v1042 = vpop.f32.mrb[0].mxu0
    %v1043 = vadd.f32 0.0, %v1042
    %v1044 = vpop.f32.mrb[0].mxu0
    %v1045 = vadd.f32 0.0, %v1044
    %1046 = vmatprep.mubr.f32.mxu0 0.0
    %1047 = vmatmul.mubr.f32.gmra.mrb[0].mxu0 %v881
    %v1048 = vpop.f32.mrb[0].mxu0
    %v1049 = vadd.f32 0.0, %v1048
    %v1050 = vpop.f32.mrb[0].mxu0
    %v1051 = vadd.f32 0.0, %v1050
    %1052 = vmatprep.mubr.f32.mxu0 0.0
    %1053 = vmatmul.mubr.f32.gmra.mrb[0].mxu0 %v884
    %v1054 = vpop.f32.mrb[0].mxu0
    %v1055 = vadd.f32 0.0, %v1054
    %v1056 = vpop.f32.mrb[0].mxu0
    %v1057 = vadd.f32 0.0, %v1056
    %1058 = vmatprep.mubr.f32.mxu0 0.0
    %1059 = vmatmul.mubr.f32.gmra.mrb[0].mxu0 %v887
    %v1060 = vpop.f32.mrb[0].mxu0
    %v1061 = vadd.f32 0.0, %v1060
    %v1062 = vpop.f32.mrb[0].mxu0
    %v1063 = vadd.f32 0.0, %v1062
    %1064 = vmatprep.mubr.f32.mxu0 0.0
    %1065 = vmatmul.mubr.f32.gmra.mrb[0].mxu0 %v890
    %v1066 = vpop.f32.mrb[0].mxu0
    %v1067 = vadd.f32 0.0, %v1066
    %v1068 = vpop.f32.mrb[0].mxu0
    %v1069 = vadd.f32 0.0, %v1068
    %1070 = vmatprep.mubr.f32.mxu0 0.0
    %1071 = vmatmul.mubr.f32.gmra.mrb[0].mxu0 %v893
    %v1072 = vpop.f32.mrb[0].mxu0
    %v1073 = vadd.f32 0.0, %v1072
    %v1074 = vpop.f32.mrb[0].mxu0
    %v1075 = vadd.f32 0.0, %v1074
    %1076 = vmatprep.mubr.f32.mxu0 0.0
    %1077 = vmatmul.mubr.f32.gmra.mrb[0].mxu0 %v896
    %v1078 = vpop.f32.mrb[0].mxu0
    %v1079 = vadd.f32 0.0, %v1078
    %v1080 = vpop.f32.mrb[0].mxu0
    %v1081 = vadd.f32 0.0, %v1080
    %1082 = vmatprep.mubr.f32.mxu0 0.0
    %1083 = vmatmul.mubr.f32.gmra.mrb[0].mxu0 %v899
    %v1084 = vpop.f32.mrb[0].mxu0
    %v1085 = vadd.f32 0.0, %v1084
    %v1086 = vpop.f32.mrb[0].mxu0
    %v1087 = vadd.f32 0.0, %v1086
    %1088 = vmatprep.mubr.f32.mxu0 0.0
    %1089 = vmatmul.mubr.f32.gmra.mrb[0].mxu0 %v902
    %v1090 = vpop.f32.mrb[0].mxu0
    %v1091 = vadd.f32 0.0, %v1090
    %v1092 = vpop.f32.mrb[0].mxu0
    %v1093 = vadd.f32 0.0, %v1092
    %1094 = vmatprep.mubr.f32.mxu0 0.0
    %1095 = vmatmul.mubr.f32.gmra.mrb[0].mxu0 %v905
    %v1096 = vpop.f32.mrb[0].mxu0
    %v1097 = vadd.f32 0.0, %v1096
    %v1098 = vpop.f32.mrb[0].mxu0
    %v1099 = vadd.f32 0.0, %v1098
    %1100 = vmatprep.mubr.f32.mxu0 0.0
    %1101 = vmatmul.mubr.f32.gmra.mrb[0].mxu0 %v908
    %v1102 = vpop.f32.mrb[0].mxu0
    %v1103 = vadd.f32 0.0, %v1102
    %v1104 = vpop.f32.mrb[0].mxu0
    %v1105 = vadd.f32 0.0, %v1104
    %1106 = vmatprep.mubr.f32.mxu0 0.0
    %1107 = vmatmul.mubr.f32.gmra.mrb[0].mxu0 %v911
    %v1108 = vpop.f32.mrb[0].mxu0
    %v1109 = vadd.f32 0.0, %v1108
    %v1110 = vpop.f32.mrb[0].mxu0
    %v1111 = vadd.f32 0.0, %v1110
    %1112 = vmatprep.mubr.f32.mxu0 0.0
    %1113 = vmatmul.mubr.f32.gmra.mrb[0].mxu0 %v914
    %v1114 = vpop.f32.mrb[0].mxu0
    %v1115 = vadd.f32 0.0, %v1114
    %v1116 = vpop.f32.mrb[0].mxu0
    %v1117 = vadd.f32 0.0, %v1116
    %1118 = vmatprep.mubr.f32.mxu0 0.0
    %1119 = vmatmul.mubr.f32.gmra.mrb[0].mxu0 %v917
    %v1120 = vpop.f32.mrb[0].mxu0
    %v1121 = vadd.f32 0.0, %v1120
    %v1122 = vpop.f32.mrb[0].mxu0
    %v1123 = vadd.f32 0.0, %v1122
    %1124 = vmatprep.mubr.f32.mxu0 0.0
    %1125 = vmatmul.mubr.f32.gmra.mrb[0].mxu0 %v920
    %v1126 = vpop.f32.mrb[0].mxu0
    %v1127 = vadd.f32 0.0, %v1126
    %v1128 = vpop.f32.mrb[0].mxu0
    %v1129 = vadd.f32 0.0, %v1128
    %1130 = vmatprep.mubr.f32.mxu0 0.0
    %1131 = vmatmul.mubr.f32.gmra.mrb[0].mxu0 %v923
    %v1132 = vpop.f32.mrb[0].mxu0
    %v1133 = vadd.f32 0.0, %v1132
    %v1134 = vpop.f32.mrb[0].mxu0
    %v1135 = vadd.f32 0.0, %v1134
    %1136 = vmatprep.mubr.f32.mxu0 0.0
    %1137 = vmatmul.mubr.f32.gmra.mrb[0].mxu0 %v926
    %v1138 = vpop.f32.mrb[0].mxu0
    %v1139 = vadd.f32 0.0, %v1138
    %v1140 = vpop.f32.mrb[0].mxu0
    %v1141 = vadd.f32 0.0, %v1140
    %1142 = vmatprep.mubr.f32.mxu0 0.0
    %1143 = vmatmul.mubr.f32.gmra.mrb[0].mxu0 %v929
    %v1144 = vpop.f32.mrb[0].mxu0
    %v1145 = vadd.f32 0.0, %v1144
    %v1146 = vpop.f32.mrb[0].mxu0
    %v1147 = vadd.f32 0.0, %v1146
    %1148 = vmatprep.mubr.f32.mxu0 0.0
    %1149 = vmatmul.mubr.f32.gmra.mrb[0].mxu0 %v932
    %v1150 = vpop.f32.mrb[0].mxu0
    %v1151 = vadd.f32 0.0, %v1150
    %v1152 = vpop.f32.mrb[0].mxu0
    %v1153 = vadd.f32 0.0, %v1152
    %1154 = vmatprep.mubr.f32.mxu0 0.0
    %1155 = vmatmul.mubr.f32.gmra.mrb[0].mxu0 %v935
    %v1156 = vpop.f32.mrb[0].mxu0
    %v1157 = vadd.f32 0.0, %v1156
    %v1158 = vpop.f32.mrb[0].mxu0
    %v1159 = vadd.f32 0.0, %v1158
    %1160 = vmatprep.mubr.f32.mxu0 0.0
    %1161 = vmatmul.mubr.f32.gmra.mrb[0].mxu0 %v938
    %v1162 = vpop.f32.mrb[0].mxu0
    %v1163 = vadd.f32 0.0, %v1162
    %v1164 = vpop.f32.mrb[0].mxu0
    %v1165 = vadd.f32 0.0, %v1164
    %1166 = vmatprep.mubr.f32.mxu0 0.0
    %1167 = vmatmul.mubr.f32.gmra.mrb[0].mxu0 %v941
    %v1168 = vpop.f32.mrb[0].mxu0
    %v1169 = vadd.f32 0.0, %v1168
    %v1170 = vpop.f32.mrb[0].mxu0
    %v1171 = vadd.f32 0.0, %v1170
    %1172 = vmatprep.mubr.f32.mxu0 0.0
    %1173 = vmatmul.mubr.f32.gmra.mrb[0].mxu0 %v944
    %v1174 = vpop.f32.mrb[0].mxu0
    %v1175 = vadd.f32 0.0, %v1174
    %v1176 = vpop.f32.mrb[0].mxu0
    %v1177 = vadd.f32 0.0, %v1176
    %1178 = vdwg.mxu0
    %1179 = vmatprep.subr.mxu0 %v849
    %1180 = vmatpush1.msra.mxu0 %v848
    %1181 = vmatprep.subr.mxu0 %v853
    %1182 = vmatpush1.msra.mxu0 %v852
    %1183 = vmatprep.subr.mxu0 %v857
    %1184 = vmatpush1.msra.mxu0 %v856
    %1185 = vmatprep.subr.mxu0 %v861
    %1186 = vmatpush1.msra.mxu0 %v860
    %1187 = vmatprep.subr.mxu0 0.0
    %1188 = vmatpush1.msra.mxu0 0.0
    %1189 = vmatprep.subr.mxu0 0.0
    %1190 = vmatpush1.msra.mxu0 0.0
    %1191 = vmatprep.subr.mxu0 0.0
    %1192 = vmatpush1.msra.mxu0 0.0
    %1193 = vmatprep.subr.mxu0 0.0
    %1194 = vmatpush1.msra.mxu0 0.0
    %1195 = vmatprep.subr.mxu0 0.0
    %1196 = vmatpush1.msra.mxu0 0.0
    %1197 = vmatprep.subr.mxu0 0.0
    %1198 = vmatpush1.msra.mxu0 0.0
    %1199 = vmatprep.subr.mxu0 0.0
    %1200 = vmatpush1.msra.mxu0 0.0
    %1201 = vmatprep.subr.mxu0 0.0
    %1202 = vmatpush1.msra.mxu0 0.0
    %1203 = vmatprep.subr.mxu0 0.0
    %1204 = vmatpush1.msra.mxu0 0.0
    %1205 = vmatprep.subr.mxu0 0.0
    %1206 = vmatpush1.msra.mxu0 0.0
    %1207 = vmatprep.subr.mxu0 0.0
    %1208 = vmatpush1.msra.mxu0 0.0
    %1209 = vmatprep.subr.mxu0 0.0
    %1210 = vmatpush1.msra.mxu0 0.0
    %1211 = vmatprep.subr.mxu0 0.0
    %1212 = vmatpush1.msra.mxu0 0.0
    %1213 = vmatprep.subr.mxu0 0.0
    %1214 = vmatpush1.msra.mxu0 0.0
    %1215 = vmatprep.subr.mxu0 0.0
    %1216 = vmatpush1.msra.mxu0 0.0
    %1217 = vmatprep.subr.mxu0 0.0
    %1218 = vmatpush1.msra.mxu0 0.0
    %1219 = vmatprep.subr.mxu0 0.0
    %1220 = vmatpush1.msra.mxu0 0.0
    %1221 = vmatprep.subr.mxu0 0.0
    %1222 = vmatpush1.msra.mxu0 0.0
    %1223 = vmatprep.subr.mxu0 0.0
    %1224 = vmatpush1.msra.mxu0 0.0
    %1225 = vmatprep.subr.mxu0 0.0
    %1226 = vmatpush1.msra.mxu0 0.0
    %1227 = vmatprep.subr.mxu0 0.0
    %1228 = vmatpush1.msra.mxu0 0.0
    %1229 = vmatprep.subr.mxu0 0.0
    %1230 = vmatpush1.msra.mxu0 0.0
    %1231 = vmatprep.subr.mxu0 0.0
    %1232 = vmatpush1.msra.mxu0 0.0
    %1233 = vmatprep.subr.mxu0 0.0
    %1234 = vmatpush1.msra.mxu0 0.0
    %1235 = vmatprep.subr.mxu0 0.0
    %1236 = vmatpush1.msra.mxu0 0.0
    %1237 = vmatprep.subr.mxu0 0.0
    %1238 = vmatpush1.msra.mxu0 0.0
    %1239 = vmatprep.subr.mxu0 0.0
    %1240 = vmatpush1.msra.mxu0 0.0
    %1241 = vmatprep.subr.mxu0 0.0
    %1242 = vmatpush1.msra.mxu0 0.0
    %1243 = vmatprep.mubr.f32.mxu0 0.0
    %1244 = vmatmul.mubr.f32.gmra.mrb[0].mxu0 %v863
    %v1245 = vpop.f32.mrb[0].mxu0
    %v1246 = vadd.f32 0.0, %v1245
    %v1247 = vpop.f32.mrb[0].mxu0
    %v1248 = vadd.f32 0.0, %v1247
    %1249 = vmatprep.mubr.f32.mxu0 0.0
    %1250 = vmatmul.mubr.f32.gmra.mrb[0].mxu0 %v866
    %v1251 = vpop.f32.mrb[0].mxu0
    %v1252 = vadd.f32 0.0, %v1251
    %v1253 = vpop.f32.mrb[0].mxu0
    %v1254 = vadd.f32 0.0, %v1253
    %1255 = vmatprep.mubr.f32.mxu0 0.0
    %1256 = vmatmul.mubr.f32.gmra.mrb[0].mxu0 %v869
    %v1257 = vpop.f32.mrb[0].mxu0
    %v1258 = vadd.f32 0.0, %v1257
    %v1259 = vpop.f32.mrb[0].mxu0
    %v1260 = vadd.f32 0.0, %v1259
    %1261 = vmatprep.mubr.f32.mxu0 0.0
    %1262 = vmatmul.mubr.f32.gmra.mrb[0].mxu0 %v872
    %v1263 = vpop.f32.mrb[0].mxu0
    %v1264 = vadd.f32 0.0, %v1263
    %v1265 = vpop.f32.mrb[0].mxu0
    %v1266 = vadd.f32 0.0, %v1265
    %1267 = vmatprep.mubr.f32.mxu0 0.0
    %1268 = vmatmul.mubr.f32.gmra.mrb[0].mxu0 %v875
    %v1269 = vpop.f32.mrb[0].mxu0
    %v1270 = vadd.f32 0.0, %v1269
    %v1271 = vpop.f32.mrb[0].mxu0
    %v1272 = vadd.f32 0.0, %v1271
    %1273 = vmatprep.mubr.f32.mxu0 0.0
    %1274 = vmatmul.mubr.f32.gmra.mrb[0].mxu0 %v878
    %v1275 = vpop.f32.mrb[0].mxu0
    %v1276 = vadd.f32 0.0, %v1275
    %v1277 = vpop.f32.mrb[0].mxu0
    %v1278 = vadd.f32 0.0, %v1277
    %1279 = vmatprep.mubr.f32.mxu0 0.0
    %1280 = vmatmul.mubr.f32.gmra.mrb[0].mxu0 %v881
    %v1281 = vpop.f32.mrb[0].mxu0
    %v1282 = vadd.f32 0.0, %v1281
    %v1283 = vpop.f32.mrb[0].mxu0
    %v1284 = vadd.f32 0.0, %v1283
    %1285 = vmatprep.mubr.f32.mxu0 0.0
    %1286 = vmatmul.mubr.f32.gmra.mrb[0].mxu0 %v884
    %v1287 = vpop.f32.mrb[0].mxu0
    %v1288 = vadd.f32 0.0, %v1287
    %v1289 = vpop.f32.mrb[0].mxu0
    %v1290 = vadd.f32 0.0, %v1289
    %1291 = vmatprep.mubr.f32.mxu0 0.0
    %1292 = vmatmul.mubr.f32.gmra.mrb[0].mxu0 %v887
    %v1293 = vpop.f32.mrb[0].mxu0
    %v1294 = vadd.f32 0.0, %v1293
    %v1295 = vpop.f32.mrb[0].mxu0
    %v1296 = vadd.f32 0.0, %v1295
    %1297 = vmatprep.mubr.f32.mxu0 0.0
    %1298 = vmatmul.mubr.f32.gmra.mrb[0].mxu0 %v890
    %v1299 = vpop.f32.mrb[0].mxu0
    %v1300 = vadd.f32 0.0, %v1299
    %v1301 = vpop.f32.mrb[0].mxu0
    %v1302 = vadd.f32 0.0, %v1301
    %1303 = vmatprep.mubr.f32.mxu0 0.0
    %1304 = vmatmul.mubr.f32.gmra.mrb[0].mxu0 %v893
    %v1305 = vpop.f32.mrb[0].mxu0
    %v1306 = vadd.f32 0.0, %v1305
    %v1307 = vpop.f32.mrb[0].mxu0
    %v1308 = vadd.f32 0.0, %v1307
    %1309 = vmatprep.mubr.f32.mxu0 0.0
    %1310 = vmatmul.mubr.f32.gmra.mrb[0].mxu0 %v896
    %v1311 = vpop.f32.mrb[0].mxu0
    %v1312 = vadd.f32 0.0, %v1311
    %v1313 = vpop.f32.mrb[0].mxu0
    %v1314 = vadd.f32 0.0, %v1313
    %1315 = vmatprep.mubr.f32.mxu0 0.0
    %1316 = vmatmul.mubr.f32.gmra.mrb[0].mxu0 %v899
    %v1317 = vpop.f32.mrb[0].mxu0
    %v1318 = vadd.f32 0.0, %v1317
    %v1319 = vpop.f32.mrb[0].mxu0
    %v1320 = vadd.f32 0.0, %v1319
    %1321 = vmatprep.mubr.f32.mxu0 0.0
    %1322 = vmatmul.mubr.f32.gmra.mrb[0].mxu0 %v902
    %v1323 = vpop.f32.mrb[0].mxu0
    %v1324 = vadd.f32 0.0, %v1323
    %v1325 = vpop.f32.mrb[0].mxu0
    %v1326 = vadd.f32 0.0, %v1325
    %1327 = vmatprep.mubr.f32.mxu0 0.0
    %1328 = vmatmul.mubr.f32.gmra.mrb[0].mxu0 %v905
    %v1329 = vpop.f32.mrb[0].mxu0
    %v1330 = vadd.f32 0.0, %v1329
    %v1331 = vpop.f32.mrb[0].mxu0
    %v1332 = vadd.f32 0.0, %v1331
    %1333 = vmatprep.mubr.f32.mxu0 0.0
    %1334 = vmatmul.mubr.f32.gmra.mrb[0].mxu0 %v908
    %v1335 = vpop.f32.mrb[0].mxu0
    %v1336 = vadd.f32 0.0, %v1335
    %v1337 = vpop.f32.mrb[0].mxu0
    %v1338 = vadd.f32 0.0, %v1337
    %1339 = vmatprep.mubr.f32.mxu0 0.0
    %1340 = vmatmul.mubr.f32.gmra.mrb[0].mxu0 %v911
    %v1341 = vpop.f32.mrb[0].mxu0
    %v1342 = vadd.f32 0.0, %v1341
    %v1343 = vpop.f32.mrb[0].mxu0
    %v1344 = vadd.f32 0.0, %v1343
    %1345 = vmatprep.mubr.f32.mxu0 0.0
    %1346 = vmatmul.mubr.f32.gmra.mrb[0].mxu0 %v914
    %v1347 = vpop.f32.mrb[0].mxu0
    %v1348 = vadd.f32 0.0, %v1347
    %v1349 = vpop.f32.mrb[0].mxu0
    %v1350 = vadd.f32 0.0, %v1349
    %1351 = vmatprep.mubr.f32.mxu0 0.0
    %1352 = vmatmul.mubr.f32.gmra.mrb[0].mxu0 %v917
    %v1353 = vpop.f32.mrb[0].mxu0
    %v1354 = vadd.f32 0.0, %v1353
    %v1355 = vpop.f32.mrb[0].mxu0
    %v1356 = vadd.f32 0.0, %v1355
    %1357 = vmatprep.mubr.f32.mxu0 0.0
    %1358 = vmatmul.mubr.f32.gmra.mrb[0].mxu0 %v920
    %v1359 = vpop.f32.mrb[0].mxu0
    %v1360 = vadd.f32 0.0, %v1359
    %v1361 = vpop.f32.mrb[0].mxu0
    %v1362 = vadd.f32 0.0, %v1361
    %1363 = vmatprep.mubr.f32.mxu0 0.0
    %1364 = vmatmul.mubr.f32.gmra.mrb[0].mxu0 %v923
    %v1365 = vpop.f32.mrb[0].mxu0
    %v1366 = vadd.f32 0.0, %v1365
    %v1367 = vpop.f32.mrb[0].mxu0
    %v1368 = vadd.f32 0.0, %v1367
    %1369 = vmatprep.mubr.f32.mxu0 0.0
    %1370 = vmatmul.mubr.f32.gmra.mrb[0].mxu0 %v926
    %v1371 = vpop.f32.mrb[0].mxu0
    %v1372 = vadd.f32 0.0, %v1371
    %v1373 = vpop.f32.mrb[0].mxu0
    %v1374 = vadd.f32 0.0, %v1373
    %1375 = vmatprep.mubr.f32.mxu0 0.0
    %1376 = vmatmul.mubr.f32.gmra.mrb[0].mxu0 %v929
    %v1377 = vpop.f32.mrb[0].mxu0
    %v1378 = vadd.f32 0.0, %v1377
    %v1379 = vpop.f32.mrb[0].mxu0
    %v1380 = vadd.f32 0.0, %v1379
    %1381 = vmatprep.mubr.f32.mxu0 0.0
    %1382 = vmatmul.mubr.f32.gmra.mrb[0].mxu0 %v932
    %v1383 = vpop.f32.mrb[0].mxu0
    %v1384 = vadd.f32 0.0, %v1383
    %v1385 = vpop.f32.mrb[0].mxu0
    %v1386 = vadd.f32 0.0, %v1385
    %1387 = vmatprep.mubr.f32.mxu0 0.0
    %1388 = vmatmul.mubr.f32.gmra.mrb[0].mxu0 %v935
    %v1389 = vpop.f32.mrb[0].mxu0
    %v1390 = vadd.f32 0.0, %v1389
    %v1391 = vpop.f32.mrb[0].mxu0
    %v1392 = vadd.f32 0.0, %v1391
    %1393 = vmatprep.mubr.f32.mxu0 0.0
    %1394 = vmatmul.mubr.f32.gmra.mrb[0].mxu0 %v938
    %v1395 = vpop.f32.mrb[0].mxu0
    %v1396 = vadd.f32 0.0, %v1395
    %v1397 = vpop.f32.mrb[0].mxu0
    %v1398 = vadd.f32 0.0, %v1397
    %1399 = vmatprep.mubr.f32.mxu0 0.0
    %1400 = vmatmul.mubr.f32.gmra.mrb[0].mxu0 %v941
    %v1401 = vpop.f32.mrb[0].mxu0
    %v1402 = vadd.f32 0.0, %v1401
    %v1403 = vpop.f32.mrb[0].mxu0
    %v1404 = vadd.f32 0.0, %v1403
    %1405 = vmatprep.mubr.f32.mxu0 0.0
    %1406 = vmatmul.mubr.f32.gmra.mrb[0].mxu0 %v944
    %v1407 = vpop.f32.mrb[0].mxu0
    %v1408 = vadd.f32 0.0, %v1407
    %v1409 = vpop.f32.mrb[0].mxu0
    %v1410 = vadd.f32 0.0, %v1409
    %1411 = vdwg.mxu0
    %v1412 = vld [vmem:[#allocation2] sm:$0xff]
    %v1413 = vld [vmem:[#allocation2 + $0x8] sm:$0xff]
    %v1414 = vld [vmem:[#allocation2 + $0x10] sm:$0xff]
    %v1415 = vld [vmem:[#allocation2 + $0x18] sm:$0xff]
    %v1416 = vld [vmem:[#allocation2 + $0x20] sm:$0xff]
    %v1417 = vld [vmem:[#allocation2 + $0x28] sm:$0xff]
    %v1418 = vld [vmem:[#allocation2 + $0x30] sm:$0xff]
    %v1419 = vld [vmem:[#allocation2 + $0x38] sm:$0xff]
    %v1420 = vld [vmem:[#allocation2 + $0x40] sm:$0xff]
    %v1421 = vld [vmem:[#allocation2 + $0x48] sm:$0xff]
    %v1422 = vld [vmem:[#allocation2 + $0x50] sm:$0xff]
    %v1423 = vld [vmem:[#allocation2 + $0x58] sm:$0xff]
    %v1424 = vld [vmem:[#allocation2 + $0x60] sm:$0xff]
    %v1425 = vld [vmem:[#allocation2 + $0x68] sm:$0xff]
    %v1426 = vld [vmem:[#allocation2 + $0x70] sm:$0xff]
    %v1427 = vld [vmem:[#allocation2 + $0x78] sm:$0xff]
    %v1428 = vld [vmem:[#allocation2 + $0x80] sm:$0xff]
    %v1429 = vld [vmem:[#allocation2 + $0x88] sm:$0xff]
    %v1430 = vld [vmem:[#allocation2 + $0x90] sm:$0xff]
    %v1431 = vld [vmem:[#allocation2 + $0x98] sm:$0xff]
    %v1432 = vld [vmem:[#allocation2 + $0xa0] sm:$0xff]
    %v1433 = vld [vmem:[#allocation2 + $0xa8] sm:$0xff]
    %v1434 = vld [vmem:[#allocation2 + $0xb0] sm:$0xff]
    %v1435 = vld [vmem:[#allocation2 + $0xb8] sm:$0xff]
    %v1436 = vld [vmem:[#allocation2 + $0xc0] sm:$0xff]
    %v1437 = vld [vmem:[#allocation2 + $0xc8] sm:$0xff]
    %v1438 = vld [vmem:[#allocation2 + $0xd0] sm:$0xff]
    %v1439 = vld [vmem:[#allocation2 + $0xd8] sm:$0xff]
    %v1440 = vld [vmem:[#allocation2 + $0xe0] sm:$0xff]
    %v1441 = vld [vmem:[#allocation2 + $0xe8] sm:$0xff]
    %v1442 = vld [vmem:[#allocation2 + $0xf0] sm:$0xff]
    %v1443 = vld [vmem:[#allocation2 + $0xf8] sm:$0xff]
    %v1444 = vld [vmem:[#allocation2 + $0x100] sm:$0xff]
    %v1445 = vld [vmem:[#allocation2 + $0x108] sm:$0xff]
    %v1446 = vld [vmem:[#allocation2 + $0x110] sm:$0xff]
    %v1447 = vld [vmem:[#allocation2 + $0x118] sm:$0xff]
    %v1448 = vld [vmem:[#allocation2 + $0x120] sm:$0xff]
    %v1449 = vld [vmem:[#allocation2 + $0x128] sm:$0xff]
    %v1450 = vld [vmem:[#allocation2 + $0x130] sm:$0xff]
    %v1451 = vld [vmem:[#allocation2 + $0x138] sm:$0xff]
    %v1452 = vld [vmem:[#allocation2 + $0x140] sm:$0xff]
    %v1453 = vld [vmem:[#allocation2 + $0x148] sm:$0xff]
    %v1454 = vld [vmem:[#allocation2 + $0x150] sm:$0xff]
    %v1455 = vld [vmem:[#allocation2 + $0x158] sm:$0xff]
    %v1456 = vld [vmem:[#allocation2 + $0x160] sm:$0xff]
    %v1457 = vld [vmem:[#allocation2 + $0x168] sm:$0xff]
    %v1458 = vld [vmem:[#allocation2 + $0x170] sm:$0xff]
    %v1459 = vld [vmem:[#allocation2 + $0x178] sm:$0xff]
    %v1460 = vld [vmem:[#allocation2 + $0x180] sm:$0xff]
    %v1461 = vld [vmem:[#allocation2 + $0x188] sm:$0xff]
    %v1462 = vld [vmem:[#allocation2 + $0x190] sm:$0xff]
    %v1463 = vld [vmem:[#allocation2 + $0x198] sm:$0xff]
    %v1464 = vld [vmem:[#allocation2 + $0x1a0] sm:$0xff]
    %v1465 = vld [vmem:[#allocation2 + $0x1a8] sm:$0xff]
    %v1466 = vld [vmem:[#allocation2 + $0x1b0] sm:$0xff]
    %v1467 = vld [vmem:[#allocation2 + $0x1b8] sm:$0xff]
    %v1468 = vld [vmem:[#allocation2 + $0x1c0] sm:$0xff]
    %v1469 = vld [vmem:[#allocation2 + $0x1c8] sm:$0xff]
    %v1470 = vld [vmem:[#allocation2 + $0x1d0] sm:$0xff]
    %v1471 = vld [vmem:[#allocation2 + $0x1d8] sm:$0xff]
    %v1472 = vld [vmem:[#allocation2 + $0x1e0] sm:$0xff]
    %v1473 = vld [vmem:[#allocation2 + $0x1e8] sm:$0xff]
    %v1474 = vld [vmem:[#allocation2 + $0x1f0] sm:$0xff]
    %v1475 = vld [vmem:[#allocation2 + $0x1f8] sm:$0xff]
    %v1476 = vld [vmem:[#allocation2 + $0x200] sm:$0xff]
    %v1477 = vld [vmem:[#allocation2 + $0x208] sm:$0xff]
    %v1478 = vld [vmem:[#allocation2 + $0x210] sm:$0xff]
    %v1479 = vld [vmem:[#allocation2 + $0x218] sm:$0xff]
    %v1480 = vld [vmem:[#allocation2 + $0x220] sm:$0xff]
    %v1481 = vld [vmem:[#allocation2 + $0x228] sm:$0xff]
    %v1482 = vld [vmem:[#allocation2 + $0x230] sm:$0xff]
    %v1483 = vld [vmem:[#allocation2 + $0x238] sm:$0xff]
    %v1484 = vld [vmem:[#allocation2 + $0x240] sm:$0xff]
    %v1485 = vld [vmem:[#allocation2 + $0x248] sm:$0xff]
    %v1486 = vld [vmem:[#allocation2 + $0x250] sm:$0xff]
    %v1487 = vld [vmem:[#allocation2 + $0x258] sm:$0xff]
    %v1488 = vld [vmem:[#allocation2 + $0x260] sm:$0xff]
    %v1489 = vld [vmem:[#allocation2 + $0x268] sm:$0xff]
    %v1490 = vld [vmem:[#allocation2 + $0x270] sm:$0xff]
    %v1491 = vld [vmem:[#allocation2 + $0x278] sm:$0xff]
    %v1492 = vld [vmem:[#allocation2 + $0x280] sm:$0xff]
    %v1493 = vld [vmem:[#allocation2 + $0x288] sm:$0xff]
    %v1494 = vld [vmem:[#allocation2 + $0x290] sm:$0xff]
    %v1495 = vld [vmem:[#allocation2 + $0x298] sm:$0xff]
    %v1496 = vld [vmem:[#allocation2 + $0x2a0] sm:$0xff]
    %v1497 = vld [vmem:[#allocation2 + $0x2a8] sm:$0xff]
    %v1498 = vld [vmem:[#allocation2 + $0x2b0] sm:$0xff]
    %v1499 = vld [vmem:[#allocation2 + $0x2b8] sm:$0xff]
    %v1500 = vld [vmem:[#allocation2 + $0x2c0] sm:$0xff]
    %v1501 = vld [vmem:[#allocation2 + $0x2c8] sm:$0xff]
    %v1502 = vld [vmem:[#allocation2 + $0x2d0] sm:$0xff]
    %v1503 = vld [vmem:[#allocation2 + $0x2d8] sm:$0xff]
    %v1504 = vld [vmem:[#allocation2 + $0x2e0] sm:$0xff]
    %v1505 = vld [vmem:[#allocation2 + $0x2e8] sm:$0xff]
    %v1506 = vld [vmem:[#allocation2 + $0x2f0] sm:$0xff]
    %v1507 = vld [vmem:[#allocation2 + $0x2f8] sm:$0xff]
    %v1508 = vld [vmem:[#allocation2 + $0x300] sm:$0xff]
    %v1509 = vld [vmem:[#allocation2 + $0x308] sm:$0xff]
    %v1510 = vld [vmem:[#allocation2 + $0x310] sm:$0xff]
    %v1511 = vld [vmem:[#allocation2 + $0x318] sm:$0xff]
    %v1512 = vld [vmem:[#allocation2 + $0x320] sm:$0xff]
    %v1513 = vld [vmem:[#allocation2 + $0x328] sm:$0xff]
    %v1514 = vld [vmem:[#allocation2 + $0x330] sm:$0xff]
    %v1515 = vld [vmem:[#allocation2 + $0x338] sm:$0xff]
    %v1516 = vld [vmem:[#allocation2 + $0x340] sm:$0xff]
    %v1517 = vld [vmem:[#allocation2 + $0x348] sm:$0xff]
    %v1518 = vld [vmem:[#allocation2 + $0x350] sm:$0xff]
    %v1519 = vld [vmem:[#allocation2 + $0x358] sm:$0xff]
    %v1520 = vld [vmem:[#allocation2 + $0x360] sm:$0xff]
    %v1521 = vld [vmem:[#allocation2 + $0x368] sm:$0xff]
    %v1522 = vld [vmem:[#allocation2 + $0x370] sm:$0xff]
    %v1523 = vld [vmem:[#allocation2 + $0x378] sm:$0xff]
    %v1524 = vadd.f32 %v1412, %v1013
    %v1525 = vadd.f32 %v1413, %v1015
    %v1526 = vadd.f32 %v1414, %v1246
    %v1527 = vadd.f32 %v1415, %v1248
    %v1528 = vadd.f32 %v1416, %v1019
    %v1529 = vadd.f32 %v1417, %v1021
    %v1530 = vadd.f32 %v1418, %v1252
    %v1531 = vadd.f32 %v1419, %v1254
    %v1532 = vadd.f32 %v1420, %v1025
    %v1533 = vadd.f32 %v1421, %v1027
    %v1534 = vadd.f32 %v1422, %v1258
    %v1535 = vadd.f32 %v1423, %v1260
    %v1536 = vadd.f32 %v1424, %v1031
    %v1537 = vadd.f32 %v1425, %v1033
    %v1538 = vadd.f32 %v1426, %v1264
    %v1539 = vadd.f32 %v1427, %v1266
    %v1540 = vadd.f32 %v1428, %v1037
    %v1541 = vadd.f32 %v1429, %v1039
    %v1542 = vadd.f32 %v1430, %v1270
    %v1543 = vadd.f32 %v1431, %v1272
    %v1544 = vadd.f32 %v1432, %v1043
    %v1545 = vadd.f32 %v1433, %v1045
    %v1546 = vadd.f32 %v1434, %v1276
    %v1547 = vadd.f32 %v1435, %v1278
    %v1548 = vadd.f32 %v1436, %v1049
    %v1549 = vadd.f32 %v1437, %v1051
    %v1550 = vadd.f32 %v1438, %v1282
    %v1551 = vadd.f32 %v1439, %v1284
    %v1552 = vadd.f32 %v1440, %v1055
    %v1553 = vadd.f32 %v1441, %v1057
    %v1554 = vadd.f32 %v1442, %v1288
    %v1555 = vadd.f32 %v1443, %v1290
    %v1556 = vadd.f32 %v1444, %v1061
    %v1557 = vadd.f32 %v1445, %v1063
    %v1558 = vadd.f32 %v1446, %v1294
    %v1559 = vadd.f32 %v1447, %v1296
    %v1560 = vadd.f32 %v1448, %v1067
    %v1561 = vadd.f32 %v1449, %v1069
    %v1562 = vadd.f32 %v1450, %v1300
    %v1563 = vadd.f32 %v1451, %v1302
    %v1564 = vadd.f32 %v1452, %v1073
    %v1565 = vadd.f32 %v1453, %v1075
    %v1566 = vadd.f32 %v1454, %v1306
    %v1567 = vadd.f32 %v1455, %v1308
    %v1568 = vadd.f32 %v1456, %v1079
    %v1569 = vadd.f32 %v1457, %v1081
    %v1570 = vadd.f32 %v1458, %v1312
    %v1571 = vadd.f32 %v1459, %v1314
    %v1572 = vadd.f32 %v1460, %v1085
    %v1573 = vadd.f32 %v1461, %v1087
    %v1574 = vadd.f32 %v1462, %v1318
    %v1575 = vadd.f32 %v1463, %v1320
    %v1576 = vadd.f32 %v1464, %v1091
    %v1577 = vadd.f32 %v1465, %v1093
    %v1578 = vadd.f32 %v1466, %v1324
    %v1579 = vadd.f32 %v1467, %v1326
    %v1580 = vadd.f32 %v1468, %v1097
    %v1581 = vadd.f32 %v1469, %v1099
    %v1582 = vadd.f32 %v1470, %v1330
    %v1583 = vadd.f32 %v1471, %v1332
    %v1584 = vadd.f32 %v1472, %v1103
    %v1585 = vadd.f32 %v1473, %v1105
    %v1586 = vadd.f32 %v1474, %v1336
    %v1587 = vadd.f32 %v1475, %v1338
    %v1588 = vadd.f32 %v1476, %v1109
    %v1589 = vadd.f32 %v1477, %v1111
    %v1590 = vadd.f32 %v1478, %v1342
    %v1591 = vadd.f32 %v1479, %v1344
    %v1592 = vadd.f32 %v1480, %v1115
    %v1593 = vadd.f32 %v1481, %v1117
    %v1594 = vadd.f32 %v1482, %v1348
    %v1595 = vadd.f32 %v1483, %v1350
    %v1596 = vadd.f32 %v1484, %v1121
    %v1597 = vadd.f32 %v1485, %v1123
    %v1598 = vadd.f32 %v1486, %v1354
    %v1599 = vadd.f32 %v1487, %v1356
    %v1600 = vadd.f32 %v1488, %v1127
    %v1601 = vadd.f32 %v1489, %v1129
    %v1602 = vadd.f32 %v1490, %v1360
    %v1603 = vadd.f32 %v1491, %v1362
    %v1604 = vadd.f32 %v1492, %v1133
    %v1605 = vadd.f32 %v1493, %v1135
    %v1606 = vadd.f32 %v1494, %v1366
    %v1607 = vadd.f32 %v1495, %v1368
    %v1608 = vadd.f32 %v1496, %v1139
    %v1609 = vadd.f32 %v1497, %v1141
    %v1610 = vadd.f32 %v1498, %v1372
    %v1611 = vadd.f32 %v1499, %v1374
    %v1612 = vadd.f32 %v1500, %v1145
    %v1613 = vadd.f32 %v1501, %v1147
    %v1614 = vadd.f32 %v1502, %v1378
    %v1615 = vadd.f32 %v1503, %v1380
    %v1616 = vadd.f32 %v1504, %v1151
    %v1617 = vadd.f32 %v1505, %v1153
    %v1618 = vadd.f32 %v1506, %v1384
    %v1619 = vadd.f32 %v1507, %v1386
    %v1620 = vadd.f32 %v1508, %v1157
    %v1621 = vadd.f32 %v1509, %v1159
    %v1622 = vadd.f32 %v1510, %v1390
    %v1623 = vadd.f32 %v1511, %v1392
    %v1624 = vadd.f32 %v1512, %v1163
    %v1625 = vadd.f32 %v1513, %v1165
    %v1626 = vadd.f32 %v1514, %v1396
    %v1627 = vadd.f32 %v1515, %v1398
    %v1628 = vadd.f32 %v1516, %v1169
    %v1629 = vadd.f32 %v1517, %v1171
    %v1630 = vadd.f32 %v1518, %v1402
    %v1631 = vadd.f32 %v1519, %v1404
    %v1632 = vadd.f32 %v1520, %v1175
    %v1633 = vadd.f32 %v1521, %v1177
    %v1634 = vadd.f32 %v1522, %v1408
    %v1635 = vadd.f32 %v1523, %v1410
    %1636 = vst [vmem:[#allocation2] sm:$0xff] %v1524
    %1637 = vst [vmem:[#allocation2 + $0x8] sm:$0xff] %v1525
    %1638 = vst [vmem:[#allocation2 + $0x10] sm:$0xff] %v1526
    %1639 = vst [vmem:[#allocation2 + $0x18] sm:$0xff] %v1527
    %1640 = vst [vmem:[#allocation2 + $0x20] sm:$0xff] %v1528
    %1641 = vst [vmem:[#allocation2 + $0x28] sm:$0xff] %v1529
    %1642 = vst [vmem:[#allocation2 + $0x30] sm:$0xff] %v1530
    %1643 = vst [vmem:[#allocation2 + $0x38] sm:$0xff] %v1531
    %1644 = vst [vmem:[#allocation2 + $0x40] sm:$0xff] %v1532
    %1645 = vst [vmem:[#allocation2 + $0x48] sm:$0xff] %v1533
    %1646 = vst [vmem:[#allocation2 + $0x50] sm:$0xff] %v1534
    %1647 = vst [vmem:[#allocation2 + $0x58] sm:$0xff] %v1535
    %1648 = vst [vmem:[#allocation2 + $0x60] sm:$0xff] %v1536
    %1649 = vst [vmem:[#allocation2 + $0x68] sm:$0xff] %v1537
    %1650 = vst [vmem:[#allocation2 + $0x70] sm:$0xff] %v1538
    %1651 = vst [vmem:[#allocation2 + $0x78] sm:$0xff] %v1539
    %1652 = vst [vmem:[#allocation2 + $0x80] sm:$0xff] %v1540
    %1653 = vst [vmem:[#allocation2 + $0x88] sm:$0xff] %v1541
    %1654 = vst [vmem:[#allocation2 + $0x90] sm:$0xff] %v1542
    %1655 = vst [vmem:[#allocation2 + $0x98] sm:$0xff] %v1543
    %1656 = vst [vmem:[#allocation2 + $0xa0] sm:$0xff] %v1544
    %1657 = vst [vmem:[#allocation2 + $0xa8] sm:$0xff] %v1545
    %1658 = vst [vmem:[#allocation2 + $0xb0] sm:$0xff] %v1546
    %1659 = vst [vmem:[#allocation2 + $0xb8] sm:$0xff] %v1547
    %1660 = vst [vmem:[#allocation2 + $0xc0] sm:$0xff] %v1548
    %1661 = vst [vmem:[#allocation2 + $0xc8] sm:$0xff] %v1549
    %1662 = vst [vmem:[#allocation2 + $0xd0] sm:$0xff] %v1550
    %1663 = vst [vmem:[#allocation2 + $0xd8] sm:$0xff] %v1551
    %1664 = vst [vmem:[#allocation2 + $0xe0] sm:$0xff] %v1552
    %1665 = vst [vmem:[#allocation2 + $0xe8] sm:$0xff] %v1553
    %1666 = vst [vmem:[#allocation2 + $0xf0] sm:$0xff] %v1554
    %1667 = vst [vmem:[#allocation2 + $0xf8] sm:$0xff] %v1555
    %1668 = vst [vmem:[#allocation2 + $0x100] sm:$0xff] %v1556
    %1669 = vst [vmem:[#allocation2 + $0x108] sm:$0xff] %v1557
    %1670 = vst [vmem:[#allocation2 + $0x110] sm:$0xff] %v1558
    %1671 = vst [vmem:[#allocation2 + $0x118] sm:$0xff] %v1559
    %1672 = vst [vmem:[#allocation2 + $0x120] sm:$0xff] %v1560
    %1673 = vst [vmem:[#allocation2 + $0x128] sm:$0xff] %v1561
    %1674 = vst [vmem:[#allocation2 + $0x130] sm:$0xff] %v1562
    %1675 = vst [vmem:[#allocation2 + $0x138] sm:$0xff] %v1563
    %1676 = vst [vmem:[#allocation2 + $0x140] sm:$0xff] %v1564
    %1677 = vst [vmem:[#allocation2 + $0x148] sm:$0xff] %v1565
    %1678 = vst [vmem:[#allocation2 + $0x150] sm:$0xff] %v1566
    %1679 = vst [vmem:[#allocation2 + $0x158] sm:$0xff] %v1567
    %1680 = vst [vmem:[#allocation2 + $0x160] sm:$0xff] %v1568
    %1681 = vst [vmem:[#allocation2 + $0x168] sm:$0xff] %v1569
    %1682 = vst [vmem:[#allocation2 + $0x170] sm:$0xff] %v1570
    %1683 = vst [vmem:[#allocation2 + $0x178] sm:$0xff] %v1571
    %1684 = vst [vmem:[#allocation2 + $0x180] sm:$0xff] %v1572
    %1685 = vst [vmem:[#allocation2 + $0x188] sm:$0xff] %v1573
    %1686 = vst [vmem:[#allocation2 + $0x190] sm:$0xff] %v1574
    %1687 = vst [vmem:[#allocation2 + $0x198] sm:$0xff] %v1575
    %1688 = vst [vmem:[#allocation2 + $0x1a0] sm:$0xff] %v1576
    %1689 = vst [vmem:[#allocation2 + $0x1a8] sm:$0xff] %v1577
    %1690 = vst [vmem:[#allocation2 + $0x1b0] sm:$0xff] %v1578
    %1691 = vst [vmem:[#allocation2 + $0x1b8] sm:$0xff] %v1579
    %1692 = vst [vmem:[#allocation2 + $0x1c0] sm:$0xff] %v1580
    %1693 = vst [vmem:[#allocation2 + $0x1c8] sm:$0xff] %v1581
    %1694 = vst [vmem:[#allocation2 + $0x1d0] sm:$0xff] %v1582
    %1695 = vst [vmem:[#allocation2 + $0x1d8] sm:$0xff] %v1583
    %1696 = vst [vmem:[#allocation2 + $0x1e0] sm:$0xff] %v1584
    %1697 = vst [vmem:[#allocation2 + $0x1e8] sm:$0xff] %v1585
    %1698 = vst [vmem:[#allocation2 + $0x1f0] sm:$0xff] %v1586
    %1699 = vst [vmem:[#allocation2 + $0x1f8] sm:$0xff] %v1587
    %1700 = vst [vmem:[#allocation2 + $0x200] sm:$0xff] %v1588
    %1701 = vst [vmem:[#allocation2 + $0x208] sm:$0xff] %v1589
    %1702 = vst [vmem:[#allocation2 + $0x210] sm:$0xff] %v1590
    %1703 = vst [vmem:[#allocation2 + $0x218] sm:$0xff] %v1591
    %1704 = vst [vmem:[#allocation2 + $0x220] sm:$0xff] %v1592
    %1705 = vst [vmem:[#allocation2 + $0x228] sm:$0xff] %v1593
    %1706 = vst [vmem:[#allocation2 + $0x230] sm:$0xff] %v1594
    %1707 = vst [vmem:[#allocation2 + $0x238] sm:$0xff] %v1595
    %1708 = vst [vmem:[#allocation2 + $0x240] sm:$0xff] %v1596
    %1709 = vst [vmem:[#allocation2 + $0x248] sm:$0xff] %v1597
    %1710 = vst [vmem:[#allocation2 + $0x250] sm:$0xff] %v1598
    %1711 = vst [vmem:[#allocation2 + $0x258] sm:$0xff] %v1599
    %1712 = vst [vmem:[#allocation2 + $0x260] sm:$0xff] %v1600
    %1713 = vst [vmem:[#allocation2 + $0x268] sm:$0xff] %v1601
    %1714 = vst [vmem:[#allocation2 + $0x270] sm:$0xff] %v1602
    %1715 = vst [vmem:[#allocation2 + $0x278] sm:$0xff] %v1603
    %1716 = vst [vmem:[#allocation2 + $0x280] sm:$0xff] %v1604
    %1717 = vst [vmem:[#allocation2 + $0x288] sm:$0xff] %v1605
    %1718 = vst [vmem:[#allocation2 + $0x290] sm:$0xff] %v1606
    %1719 = vst [vmem:[#allocation2 + $0x298] sm:$0xff] %v1607
    %1720 = vst [vmem:[#allocation2 + $0x2a0] sm:$0xff] %v1608
    %1721 = vst [vmem:[#allocation2 + $0x2a8] sm:$0xff] %v1609
    %1722 = vst [vmem:[#allocation2 + $0x2b0] sm:$0xff] %v1610
    %1723 = vst [vmem:[#allocation2 + $0x2b8] sm:$0xff] %v1611
    %1724 = vst [vmem:[#allocation2 + $0x2c0] sm:$0xff] %v1612
    %1725 = vst [vmem:[#allocation2 + $0x2c8] sm:$0xff] %v1613
    %1726 = vst [vmem:[#allocation2 + $0x2d0] sm:$0xff] %v1614
    %1727 = vst [vmem:[#allocation2 + $0x2d8] sm:$0xff] %v1615
    %1728 = vst [vmem:[#allocation2 + $0x2e0] sm:$0xff] %v1616
    %1729 = vst [vmem:[#allocation2 + $0x2e8] sm:$0xff] %v1617
    %1730 = vst [vmem:[#allocation2 + $0x2f0] sm:$0xff] %v1618
    %1731 = vst [vmem:[#allocation2 + $0x2f8] sm:$0xff] %v1619
    %1732 = vst [vmem:[#allocation2 + $0x300] sm:$0xff] %v1620
    %1733 = vst [vmem:[#allocation2 + $0x308] sm:$0xff] %v1621
    %1734 = vst [vmem:[#allocation2 + $0x310] sm:$0xff] %v1622
    %1735 = vst [vmem:[#allocation2 + $0x318] sm:$0xff] %v1623
    %1736 = vst [vmem:[#allocation2 + $0x320] sm:$0xff] %v1624
    %1737 = vst [vmem:[#allocation2 + $0x328] sm:$0xff] %v1625
    %1738 = vst [vmem:[#allocation2 + $0x330] sm:$0xff] %v1626
    %1739 = vst [vmem:[#allocation2 + $0x338] sm:$0xff] %v1627
    %1740 = vst [vmem:[#allocation2 + $0x340] sm:$0xff] %v1628
    %1741 = vst [vmem:[#allocation2 + $0x348] sm:$0xff] %v1629
    %1742 = vst [vmem:[#allocation2 + $0x350] sm:$0xff] %v1630
    %1743 = vst [vmem:[#allocation2 + $0x358] sm:$0xff] %v1631
    %1744 = vst [vmem:[#allocation2 + $0x360] sm:$0xff] %v1632
    %1745 = vst [vmem:[#allocation2 + $0x368] sm:$0xff] %v1633
    %1746 = vst [vmem:[#allocation2 + $0x370] sm:$0xff] %v1634
    %1747 = vst [vmem:[#allocation2 + $0x378] sm:$0xff] %v1635
    %v1748 = vld [vmem:[%s0 + $0x10] sm:$0xff]
    %v1749 = vld [vmem:[%s0 + $0x18] sm:$0xff]
    %v1750 = vld [vmem:[%s0 + $0x20] sm:$0xff]
    %v1751 = vld [vmem:[%s0 + $0x28] sm:$0xff]
    %v1752 = vld [vmem:[%s0 + $0x30] sm:$0xff]
    %v1753 = vld [vmem:[%s0 + $0x38] sm:$0xff]
    %v1754 = vld [vmem:[%s0 + $0x40] sm:$0xff]
    %v1755 = vld [vmem:[%s0 + $0x48] sm:$0xff]
    %v1756 = vld [vmem:[%s0 + $0x50] sm:$0xff]
    %v1757 = vld [vmem:[%s0 + $0x58] sm:$0xff]
    %v1758 = vld [vmem:[%s0 + $0x60] sm:$0xff]
    %v1759 = vld [vmem:[%s0 + $0x68] sm:$0xff]
    %v1760 = vld [vmem:[%s0 + $0x70] sm:$0xff]
    %v1761 = vld [vmem:[%s0 + $0x78] sm:$0xff]
    %v1762 = vld [vmem:[%s0 + $0x80] sm:$0xff]
    %v1763 = vld [vmem:[%s0 + $0x88] sm:$0xff]
    %v1764 = vld [vmem:[%s0 + $0x90] sm:$0xff]
    %v1765 = vld [vmem:[%s0 + $0x98] sm:$0xff]
    %v1766 = vld [vmem:[%s0 + $0xa0] sm:$0xff]
    %v1767 = vld [vmem:[%s0 + $0xa8] sm:$0xff]
    %v1768 = vld [vmem:[%s0 + $0xb0] sm:$0xff]
    %v1769 = vld [vmem:[%s0 + $0xb8] sm:$0xff]
    %v1770 = vld [vmem:[%s0 + $0xc0] sm:$0xff]
    %v1771 = vld [vmem:[%s0 + $0xc8] sm:$0xff]
    %v1772 = vld [vmem:[%s0 + $0xd0] sm:$0xff]
    %v1773 = vld [vmem:[%s0 + $0xd8] sm:$0xff]
    %v1774 = vld [vmem:[%s0 + $0xe0] sm:$0xff]
    %v1775 = vld [vmem:[%s0 + $0xe8] sm:$0xff]
    %s1776 = scalar_lea.vmem [#allocation6], 256
    %v1777 = vld [vmem:[%s1776] sm:$0xff]
    %v1778 = vld [vmem:[%s1776 + $0x8] sm:$0xff]
    %v1779 = vld [vmem:[%s1776 + $0x10] sm:$0xff]
    %v1780 = vld [vmem:[%s1776 + $0x18] sm:$0xff]
    %v1781 = vld [vmem:[%s1776 + $0x20] sm:$0xff]
    %v1782 = vld [vmem:[%s1776 + $0x28] sm:$0xff]
    %v1783 = vld [vmem:[%s1776 + $0x30] sm:$0xff]
    %v1784 = vld [vmem:[%s1776 + $0x38] sm:$0xff]
    %v1785 = vld [vmem:[%s1776 + $0x40] sm:$0xff]
    %v1786 = vld [vmem:[%s1776 + $0x48] sm:$0xff]
    %v1787 = vld [vmem:[%s1776 + $0x50] sm:$0xff]
    %v1788 = vld [vmem:[%s1776 + $0x58] sm:$0xff]
    %v1789 = vld [vmem:[%s1776 + $0x60] sm:$0xff]
    %v1790 = vld [vmem:[%s1776 + $0x68] sm:$0xff]
    %v1791 = vld [vmem:[%s1776 + $0x70] sm:$0xff]
    %v1792 = vld [vmem:[%s1776 + $0x78] sm:$0xff]
    %v1794 = vsel %vm154, %v1748, 0
    %v1797 = vsel %vm154, %v1749, 0
    %v1800 = vsel %vm154, %v1750, 0
    %v1803 = vsel %vm154, %v1751, 0
    %v1806 = vsel %vm154, %v1752, 0
    %v1809 = vsel %vm154, %v1753, 0
    %v1812 = vsel %vm154, %v1754, 0
    %v1815 = vsel %vm154, %v1755, 0
    %v1818 = vsel %vm154, %v1756, 0
    %v1821 = vsel %vm154, %v1757, 0
    %v1824 = vsel %vm154, %v1758, 0
    %v1827 = vsel %vm154, %v1759, 0
    %v1830 = vsel %vm154, %v1760, 0
    %v1833 = vsel %vm154, %v1761, 0
    %v1836 = vsel %vm154, %v1762, 0
    %v1839 = vsel %vm154, %v1763, 0
    %v1842 = vsel %vm154, %v1764, 0
    %v1845 = vsel %vm154, %v1765, 0
    %v1848 = vsel %vm154, %v1766, 0
    %v1851 = vsel %vm154, %v1767, 0
    %v1854 = vsel %vm154, %v1768, 0
    %v1857 = vsel %vm154, %v1769, 0
    %v1860 = vsel %vm154, %v1770, 0
    %v1863 = vsel %vm154, %v1771, 0
    %v1866 = vsel %vm154, %v1772, 0
    %v1869 = vsel %vm154, %v1773, 0
    %v1872 = vsel %vm154, %v1774, 0
    %v1875 = vsel %vm154, %v1775, 0
    %1877 = vmatprep.subr.mxu0 %v1778
    %1878 = vmatpush1.msra.mxu0 %v1777
    %1879 = vmatprep.subr.mxu0 %v1782
    %1880 = vmatpush1.msra.mxu0 %v1781
    %1881 = vmatprep.subr.mxu0 %v1786
    %1882 = vmatpush1.msra.mxu0 %v1785
    %1883 = vmatprep.subr.mxu0 %v1790
    %1884 = vmatpush1.msra.mxu0 %v1789
    %1885 = vmatprep.subr.mxu0 0.0
    %1886 = vmatpush1.msra.mxu0 0.0
    %1887 = vmatprep.subr.mxu0 0.0
    %1888 = vmatpush1.msra.mxu0 0.0
    %1889 = vmatprep.subr.mxu0 0.0
    %1890 = vmatpush1.msra.mxu0 0.0
    %1891 = vmatprep.subr.mxu0 0.0
    %1892 = vmatpush1.msra.mxu0 0.0
    %1893 = vmatprep.subr.mxu0 0.0
    %1894 = vmatpush1.msra.mxu0 0.0
    %1895 = vmatprep.subr.mxu0 0.0
    %1896 = vmatpush1.msra.mxu0 0.0
    %1897 = vmatprep.subr.mxu0 0.0
    %1898 = vmatpush1.msra.mxu0 0.0
    %1899 = vmatprep.subr.mxu0 0.0
    %1900 = vmatpush1.msra.mxu0 0.0
    %1901 = vmatprep.subr.mxu0 0.0
    %1902 = vmatpush1.msra.mxu0 0.0
    %1903 = vmatprep.subr.mxu0 0.0
    %1904 = vmatpush1.msra.mxu0 0.0
    %1905 = vmatprep.subr.mxu0 0.0
    %1906 = vmatpush1.msra.mxu0 0.0
    %1907 = vmatprep.subr.mxu0 0.0
    %1908 = vmatpush1.msra.mxu0 0.0
    %1909 = vmatprep.subr.mxu0 0.0
    %1910 = vmatpush1.msra.mxu0 0.0
    %1911 = vmatprep.subr.mxu0 0.0
    %1912 = vmatpush1.msra.mxu0 0.0
    %1913 = vmatprep.subr.mxu0 0.0
    %1914 = vmatpush1.msra.mxu0 0.0
    %1915 = vmatprep.subr.mxu0 0.0
    %1916 = vmatpush1.msra.mxu0 0.0
    %1917 = vmatprep.subr.mxu0 0.0
    %1918 = vmatpush1.msra.mxu0 0.0
    %1919 = vmatprep.subr.mxu0 0.0
    %1920 = vmatpush1.msra.mxu0 0.0
    %1921 = vmatprep.subr.mxu0 0.0
    %1922 = vmatpush1.msra.mxu0 0.0
    %1923 = vmatprep.subr.mxu0 0.0
    %1924 = vmatpush1.msra.mxu0 0.0
    %1925 = vmatprep.subr.mxu0 0.0
    %1926 = vmatpush1.msra.mxu0 0.0
    %1927 = vmatprep.subr.mxu0 0.0
    %1928 = vmatpush1.msra.mxu0 0.0
    %1929 = vmatprep.subr.mxu0 0.0
    %1930 = vmatpush1.msra.mxu0 0.0
    %1931 = vmatprep.subr.mxu0 0.0
    %1932 = vmatpush1.msra.mxu0 0.0
    %1933 = vmatprep.subr.mxu0 0.0
    %1934 = vmatpush1.msra.mxu0 0.0
    %1935 = vmatprep.subr.mxu0 0.0
    %1936 = vmatpush1.msra.mxu0 0.0
    %1937 = vmatprep.subr.mxu0 0.0
    %1938 = vmatpush1.msra.mxu0 0.0
    %1939 = vmatprep.subr.mxu0 0.0
    %1940 = vmatpush1.msra.mxu0 0.0
    %1941 = vmatprep.mubr.f32.mxu0 0.0
    %1942 = vmatmul.mubr.f32.gmra.mrb[0].mxu0 %v1794
    %v1943 = vpop.f32.mrb[0].mxu0
    %v1944 = vadd.f32 0.0, %v1943
    %v1945 = vpop.f32.mrb[0].mxu0
    %v1946 = vadd.f32 0.0, %v1945
    %1947 = vmatprep.mubr.f32.mxu0 0.0
    %1948 = vmatmul.mubr.f32.gmra.mrb[0].mxu0 %v1797
    %v1949 = vpop.f32.mrb[0].mxu0
    %v1950 = vadd.f32 0.0, %v1949
    %v1951 = vpop.f32.mrb[0].mxu0
    %v1952 = vadd.f32 0.0, %v1951
    %1953 = vmatprep.mubr.f32.mxu0 0.0
    %1954 = vmatmul.mubr.f32.gmra.mrb[0].mxu0 %v1800
    %v1955 = vpop.f32.mrb[0].mxu0
    %v1956 = vadd.f32 0.0, %v1955
    %v1957 = vpop.f32.mrb[0].mxu0
    %v1958 = vadd.f32 0.0, %v1957
    %1959 = vmatprep.mubr.f32.mxu0 0.0
    %1960 = vmatmul.mubr.f32.gmra.mrb[0].mxu0 %v1803
    %v1961 = vpop.f32.mrb[0].mxu0
    %v1962 = vadd.f32 0.0, %v1961
    %v1963 = vpop.f32.mrb[0].mxu0
    %v1964 = vadd.f32 0.0, %v1963
    %1965 = vmatprep.mubr.f32.mxu0 0.0
    %1966 = vmatmul.mubr.f32.gmra.mrb[0].mxu0 %v1806
    %v1967 = vpop.f32.mrb[0].mxu0
    %v1968 = vadd.f32 0.0, %v1967
    %v1969 = vpop.f32.mrb[0].mxu0
    %v1970 = vadd.f32 0.0, %v1969
    %1971 = vmatprep.mubr.f32.mxu0 0.0
    %1972 = vmatmul.mubr.f32.gmra.mrb[0].mxu0 %v1809
    %v1973 = vpop.f32.mrb[0].mxu0
    %v1974 = vadd.f32 0.0, %v1973
    %v1975 = vpop.f32.mrb[0].mxu0
    %v1976 = vadd.f32 0.0, %v1975
    %1977 = vmatprep.mubr.f32.mxu0 0.0
    %1978 = vmatmul.mubr.f32.gmra.mrb[0].mxu0 %v1812
    %v1979 = vpop.f32.mrb[0].mxu0
    %v1980 = vadd.f32 0.0, %v1979
    %v1981 = vpop.f32.mrb[0].mxu0
    %v1982 = vadd.f32 0.0, %v1981
    %1983 = vmatprep.mubr.f32.mxu0 0.0
    %1984 = vmatmul.mubr.f32.gmra.mrb[0].mxu0 %v1815
    %v1985 = vpop.f32.mrb[0].mxu0
    %v1986 = vadd.f32 0.0, %v1985
    %v1987 = vpop.f32.mrb[0].mxu0
    %v1988 = vadd.f32 0.0, %v1987
    %1989 = vmatprep.mubr.f32.mxu0 0.0
    %1990 = vmatmul.mubr.f32.gmra.mrb[0].mxu0 %v1818
    %v1991 = vpop.f32.mrb[0].mxu0
    %v1992 = vadd.f32 0.0, %v1991
    %v1993 = vpop.f32.mrb[0].mxu0
    %v1994 = vadd.f32 0.0, %v1993
    %1995 = vmatprep.mubr.f32.mxu0 0.0
    %1996 = vmatmul.mubr.f32.gmra.mrb[0].mxu0 %v1821
    %v1997 = vpop.f32.mrb[0].mxu0
    %v1998 = vadd.f32 0.0, %v1997
    %v1999 = vpop.f32.mrb[0].mxu0
    %v2000 = vadd.f32 0.0, %v1999
    %2001 = vmatprep.mubr.f32.mxu0 0.0
    %2002 = vmatmul.mubr.f32.gmra.mrb[0].mxu0 %v1824
    %v2003 = vpop.f32.mrb[0].mxu0
    %v2004 = vadd.f32 0.0, %v2003
    %v2005 = vpop.f32.mrb[0].mxu0
    %v2006 = vadd.f32 0.0, %v2005
    %2007 = vmatprep.mubr.f32.mxu0 0.0
    %2008 = vmatmul.mubr.f32.gmra.mrb[0].mxu0 %v1827
    %v2009 = vpop.f32.mrb[0].mxu0
    %v2010 = vadd.f32 0.0, %v2009
    %v2011 = vpop.f32.mrb[0].mxu0
    %v2012 = vadd.f32 0.0, %v2011
    %2013 = vmatprep.mubr.f32.mxu0 0.0
    %2014 = vmatmul.mubr.f32.gmra.mrb[0].mxu0 %v1830
    %v2015 = vpop.f32.mrb[0].mxu0
    %v2016 = vadd.f32 0.0, %v2015
    %v2017 = vpop.f32.mrb[0].mxu0
    %v2018 = vadd.f32 0.0, %v2017
    %2019 = vmatprep.mubr.f32.mxu0 0.0
    %2020 = vmatmul.mubr.f32.gmra.mrb[0].mxu0 %v1833
    %v2021 = vpop.f32.mrb[0].mxu0
    %v2022 = vadd.f32 0.0, %v2021
    %v2023 = vpop.f32.mrb[0].mxu0
    %v2024 = vadd.f32 0.0, %v2023
    %2025 = vmatprep.mubr.f32.mxu0 0.0
    %2026 = vmatmul.mubr.f32.gmra.mrb[0].mxu0 %v1836
    %v2027 = vpop.f32.mrb[0].mxu0
    %v2028 = vadd.f32 0.0, %v2027
    %v2029 = vpop.f32.mrb[0].mxu0
    %v2030 = vadd.f32 0.0, %v2029
    %2031 = vmatprep.mubr.f32.mxu0 0.0
    %2032 = vmatmul.mubr.f32.gmra.mrb[0].mxu0 %v1839
    %v2033 = vpop.f32.mrb[0].mxu0
    %v2034 = vadd.f32 0.0, %v2033
    %v2035 = vpop.f32.mrb[0].mxu0
    %v2036 = vadd.f32 0.0, %v2035
    %2037 = vmatprep.mubr.f32.mxu0 0.0
    %2038 = vmatmul.mubr.f32.gmra.mrb[0].mxu0 %v1842
    %v2039 = vpop.f32.mrb[0].mxu0
    %v2040 = vadd.f32 0.0, %v2039
    %v2041 = vpop.f32.mrb[0].mxu0
    %v2042 = vadd.f32 0.0, %v2041
    %2043 = vmatprep.mubr.f32.mxu0 0.0
    %2044 = vmatmul.mubr.f32.gmra.mrb[0].mxu0 %v1845
    %v2045 = vpop.f32.mrb[0].mxu0
    %v2046 = vadd.f32 0.0, %v2045
    %v2047 = vpop.f32.mrb[0].mxu0
    %v2048 = vadd.f32 0.0, %v2047
    %2049 = vmatprep.mubr.f32.mxu0 0.0
    %2050 = vmatmul.mubr.f32.gmra.mrb[0].mxu0 %v1848
    %v2051 = vpop.f32.mrb[0].mxu0
    %v2052 = vadd.f32 0.0, %v2051
    %v2053 = vpop.f32.mrb[0].mxu0
    %v2054 = vadd.f32 0.0, %v2053
    %2055 = vmatprep.mubr.f32.mxu0 0.0
    %2056 = vmatmul.mubr.f32.gmra.mrb[0].mxu0 %v1851
    %v2057 = vpop.f32.mrb[0].mxu0
    %v2058 = vadd.f32 0.0, %v2057
    %v2059 = vpop.f32.mrb[0].mxu0
    %v2060 = vadd.f32 0.0, %v2059
    %2061 = vmatprep.mubr.f32.mxu0 0.0
    %2062 = vmatmul.mubr.f32.gmra.mrb[0].mxu0 %v1854
    %v2063 = vpop.f32.mrb[0].mxu0
    %v2064 = vadd.f32 0.0, %v2063
    %v2065 = vpop.f32.mrb[0].mxu0
    %v2066 = vadd.f32 0.0, %v2065
    %2067 = vmatprep.mubr.f32.mxu0 0.0
    %2068 = vmatmul.mubr.f32.gmra.mrb[0].mxu0 %v1857
    %v2069 = vpop.f32.mrb[0].mxu0
    %v2070 = vadd.f32 0.0, %v2069
    %v2071 = vpop.f32.mrb[0].mxu0
    %v2072 = vadd.f32 0.0, %v2071
    %2073 = vmatprep.mubr.f32.mxu0 0.0
    %2074 = vmatmul.mubr.f32.gmra.mrb[0].mxu0 %v1860
    %v2075 = vpop.f32.mrb[0].mxu0
    %v2076 = vadd.f32 0.0, %v2075
    %v2077 = vpop.f32.mrb[0].mxu0
    %v2078 = vadd.f32 0.0, %v2077
    %2079 = vmatprep.mubr.f32.mxu0 0.0
    %2080 = vmatmul.mubr.f32.gmra.mrb[0].mxu0 %v1863
    %v2081 = vpop.f32.mrb[0].mxu0
    %v2082 = vadd.f32 0.0, %v2081
    %v2083 = vpop.f32.mrb[0].mxu0
    %v2084 = vadd.f32 0.0, %v2083
    %2085 = vmatprep.mubr.f32.mxu0 0.0
    %2086 = vmatmul.mubr.f32.gmra.mrb[0].mxu0 %v1866
    %v2087 = vpop.f32.mrb[0].mxu0
    %v2088 = vadd.f32 0.0, %v2087
    %v2089 = vpop.f32.mrb[0].mxu0
    %v2090 = vadd.f32 0.0, %v2089
    %2091 = vmatprep.mubr.f32.mxu0 0.0
    %2092 = vmatmul.mubr.f32.gmra.mrb[0].mxu0 %v1869
    %v2093 = vpop.f32.mrb[0].mxu0
    %v2094 = vadd.f32 0.0, %v2093
    %v2095 = vpop.f32.mrb[0].mxu0
    %v2096 = vadd.f32 0.0, %v2095
    %2097 = vmatprep.mubr.f32.mxu0 0.0
    %2098 = vmatmul.mubr.f32.gmra.mrb[0].mxu0 %v1872
    %v2099 = vpop.f32.mrb[0].mxu0
    %v2100 = vadd.f32 0.0, %v2099
    %v2101 = vpop.f32.mrb[0].mxu0
    %v2102 = vadd.f32 0.0, %v2101
    %2103 = vmatprep.mubr.f32.mxu0 0.0
    %2104 = vmatmul.mubr.f32.gmra.mrb[0].mxu0 %v1875
    %v2105 = vpop.f32.mrb[0].mxu0
    %v2106 = vadd.f32 0.0, %v2105
    %v2107 = vpop.f32.mrb[0].mxu0
    %v2108 = vadd.f32 0.0, %v2107
    %2109 = vdwg.mxu0
    %2110 = vmatprep.subr.mxu0 %v1780
    %2111 = vmatpush1.msra.mxu0 %v1779
    %2112 = vmatprep.subr.mxu0 %v1784
    %2113 = vmatpush1.msra.mxu0 %v1783
    %2114 = vmatprep.subr.mxu0 %v1788
    %2115 = vmatpush1.msra.mxu0 %v1787
    %2116 = vmatprep.subr.mxu0 %v1792
    %2117 = vmatpush1.msra.mxu0 %v1791
    %2118 = vmatprep.subr.mxu0 0.0
    %2119 = vmatpush1.msra.mxu0 0.0
    %2120 = vmatprep.subr.mxu0 0.0
    %2121 = vmatpush1.msra.mxu0 0.0
    %2122 = vmatprep.subr.mxu0 0.0
    %2123 = vmatpush1.msra.mxu0 0.0
    %2124 = vmatprep.subr.mxu0 0.0
    %2125 = vmatpush1.msra.mxu0 0.0
    %2126 = vmatprep.subr.mxu0 0.0
    %2127 = vmatpush1.msra.mxu0 0.0
    %2128 = vmatprep.subr.mxu0 0.0
    %2129 = vmatpush1.msra.mxu0 0.0
    %2130 = vmatprep.subr.mxu0 0.0
    %2131 = vmatpush1.msra.mxu0 0.0
    %2132 = vmatprep.subr.mxu0 0.0
    %2133 = vmatpush1.msra.mxu0 0.0
    %2134 = vmatprep.subr.mxu0 0.0
    %2135 = vmatpush1.msra.mxu0 0.0
    %2136 = vmatprep.subr.mxu0 0.0
    %2137 = vmatpush1.msra.mxu0 0.0
    %2138 = vmatprep.subr.mxu0 0.0
    %2139 = vmatpush1.msra.mxu0 0.0
    %2140 = vmatprep.subr.mxu0 0.0
    %2141 = vmatpush1.msra.mxu0 0.0
    %2142 = vmatprep.subr.mxu0 0.0
    %2143 = vmatpush1.msra.mxu0 0.0
    %2144 = vmatprep.subr.mxu0 0.0
    %2145 = vmatpush1.msra.mxu0 0.0
    %2146 = vmatprep.subr.mxu0 0.0
    %2147 = vmatpush1.msra.mxu0 0.0
    %2148 = vmatprep.subr.mxu0 0.0
    %2149 = vmatpush1.msra.mxu0 0.0
    %2150 = vmatprep.subr.mxu0 0.0
    %2151 = vmatpush1.msra.mxu0 0.0
    %2152 = vmatprep.subr.mxu0 0.0
    %2153 = vmatpush1.msra.mxu0 0.0
    %2154 = vmatprep.subr.mxu0 0.0
    %2155 = vmatpush1.msra.mxu0 0.0
    %2156 = vmatprep.subr.mxu0 0.0
    %2157 = vmatpush1.msra.mxu0 0.0
    %2158 = vmatprep.subr.mxu0 0.0
    %2159 = vmatpush1.msra.mxu0 0.0
    %2160 = vmatprep.subr.mxu0 0.0
    %2161 = vmatpush1.msra.mxu0 0.0
    %2162 = vmatprep.subr.mxu0 0.0
    %2163 = vmatpush1.msra.mxu0 0.0
    %2164 = vmatprep.subr.mxu0 0.0
    %2165 = vmatpush1.msra.mxu0 0.0
    %2166 = vmatprep.subr.mxu0 0.0
    %2167 = vmatpush1.msra.mxu0 0.0
    %2168 = vmatprep.subr.mxu0 0.0
    %2169 = vmatpush1.msra.mxu0 0.0
    %2170 = vmatprep.subr.mxu0 0.0
    %2171 = vmatpush1.msra.mxu0 0.0
    %2172 = vmatprep.subr.mxu0 0.0
    %2173 = vmatpush1.msra.mxu0 0.0
    %2174 = vmatprep.mubr.f32.mxu0 0.0
    %2175 = vmatmul.mubr.f32.gmra.mrb[0].mxu0 %v1794
    %v2176 = vpop.f32.mrb[0].mxu0
    %v2177 = vadd.f32 0.0, %v2176
    %v2178 = vpop.f32.mrb[0].mxu0
    %v2179 = vadd.f32 0.0, %v2178
    %2180 = vmatprep.mubr.f32.mxu0 0.0
    %2181 = vmatmul.mubr.f32.gmra.mrb[0].mxu0 %v1797
    %v2182 = vpop.f32.mrb[0].mxu0
    %v2183 = vadd.f32 0.0, %v2182
    %v2184 = vpop.f32.mrb[0].mxu0
    %v2185 = vadd.f32 0.0, %v2184
    %2186 = vmatprep.mubr.f32.mxu0 0.0
    %2187 = vmatmul.mubr.f32.gmra.mrb[0].mxu0 %v1800
    %v2188 = vpop.f32.mrb[0].mxu0
    %v2189 = vadd.f32 0.0, %v2188
    %v2190 = vpop.f32.mrb[0].mxu0
    %v2191 = vadd.f32 0.0, %v2190
    %2192 = vmatprep.mubr.f32.mxu0 0.0
    %2193 = vmatmul.mubr.f32.gmra.mrb[0].mxu0 %v1803
    %v2194 = vpop.f32.mrb[0].mxu0
    %v2195 = vadd.f32 0.0, %v2194
    %v2196 = vpop.f32.mrb[0].mxu0
    %v2197 = vadd.f32 0.0, %v2196
    %2198 = vmatprep.mubr.f32.mxu0 0.0
    %2199 = vmatmul.mubr.f32.gmra.mrb[0].mxu0 %v1806
    %v2200 = vpop.f32.mrb[0].mxu0
    %v2201 = vadd.f32 0.0, %v2200
    %v2202 = vpop.f32.mrb[0].mxu0
    %v2203 = vadd.f32 0.0, %v2202
    %2204 = vmatprep.mubr.f32.mxu0 0.0
    %2205 = vmatmul.mubr.f32.gmra.mrb[0].mxu0 %v1809
    %v2206 = vpop.f32.mrb[0].mxu0
    %v2207 = vadd.f32 0.0, %v2206
    %v2208 = vpop.f32.mrb[0].mxu0
    %v2209 = vadd.f32 0.0, %v2208
    %2210 = vmatprep.mubr.f32.mxu0 0.0
    %2211 = vmatmul.mubr.f32.gmra.mrb[0].mxu0 %v1812
    %v2212 = vpop.f32.mrb[0].mxu0
    %v2213 = vadd.f32 0.0, %v2212
    %v2214 = vpop.f32.mrb[0].mxu0
    %v2215 = vadd.f32 0.0, %v2214
    %2216 = vmatprep.mubr.f32.mxu0 0.0
    %2217 = vmatmul.mubr.f32.gmra.mrb[0].mxu0 %v1815
    %v2218 = vpop.f32.mrb[0].mxu0
    %v2219 = vadd.f32 0.0, %v2218
    %v2220 = vpop.f32.mrb[0].mxu0
    %v2221 = vadd.f32 0.0, %v2220
    %2222 = vmatprep.mubr.f32.mxu0 0.0
    %2223 = vmatmul.mubr.f32.gmra.mrb[0].mxu0 %v1818
    %v2224 = vpop.f32.mrb[0].mxu0
    %v2225 = vadd.f32 0.0, %v2224
    %v2226 = vpop.f32.mrb[0].mxu0
    %v2227 = vadd.f32 0.0, %v2226
    %2228 = vmatprep.mubr.f32.mxu0 0.0
    %2229 = vmatmul.mubr.f32.gmra.mrb[0].mxu0 %v1821
    %v2230 = vpop.f32.mrb[0].mxu0
    %v2231 = vadd.f32 0.0, %v2230
    %v2232 = vpop.f32.mrb[0].mxu0
    %v2233 = vadd.f32 0.0, %v2232
    %2234 = vmatprep.mubr.f32.mxu0 0.0
    %2235 = vmatmul.mubr.f32.gmra.mrb[0].mxu0 %v1824
    %v2236 = vpop.f32.mrb[0].mxu0
    %v2237 = vadd.f32 0.0, %v2236
    %v2238 = vpop.f32.mrb[0].mxu0
    %v2239 = vadd.f32 0.0, %v2238
    %2240 = vmatprep.mubr.f32.mxu0 0.0
    %2241 = vmatmul.mubr.f32.gmra.mrb[0].mxu0 %v1827
    %v2242 = vpop.f32.mrb[0].mxu0
    %v2243 = vadd.f32 0.0, %v2242
    %v2244 = vpop.f32.mrb[0].mxu0
    %v2245 = vadd.f32 0.0, %v2244
    %2246 = vmatprep.mubr.f32.mxu0 0.0
    %2247 = vmatmul.mubr.f32.gmra.mrb[0].mxu0 %v1830
    %v2248 = vpop.f32.mrb[0].mxu0
    %v2249 = vadd.f32 0.0, %v2248
    %v2250 = vpop.f32.mrb[0].mxu0
    %v2251 = vadd.f32 0.0, %v2250
    %2252 = vmatprep.mubr.f32.mxu0 0.0
    %2253 = vmatmul.mubr.f32.gmra.mrb[0].mxu0 %v1833
    %v2254 = vpop.f32.mrb[0].mxu0
    %v2255 = vadd.f32 0.0, %v2254
    %v2256 = vpop.f32.mrb[0].mxu0
    %v2257 = vadd.f32 0.0, %v2256
    %2258 = vmatprep.mubr.f32.mxu0 0.0
    %2259 = vmatmul.mubr.f32.gmra.mrb[0].mxu0 %v1836
    %v2260 = vpop.f32.mrb[0].mxu0
    %v2261 = vadd.f32 0.0, %v2260
    %v2262 = vpop.f32.mrb[0].mxu0
    %v2263 = vadd.f32 0.0, %v2262
    %2264 = vmatprep.mubr.f32.mxu0 0.0
    %2265 = vmatmul.mubr.f32.gmra.mrb[0].mxu0 %v1839
    %v2266 = vpop.f32.mrb[0].mxu0
    %v2267 = vadd.f32 0.0, %v2266
    %v2268 = vpop.f32.mrb[0].mxu0
    %v2269 = vadd.f32 0.0, %v2268
    %2270 = vmatprep.mubr.f32.mxu0 0.0
    %2271 = vmatmul.mubr.f32.gmra.mrb[0].mxu0 %v1842
    %v2272 = vpop.f32.mrb[0].mxu0
    %v2273 = vadd.f32 0.0, %v2272
    %v2274 = vpop.f32.mrb[0].mxu0
    %v2275 = vadd.f32 0.0, %v2274
    %2276 = vmatprep.mubr.f32.mxu0 0.0
    %2277 = vmatmul.mubr.f32.gmra.mrb[0].mxu0 %v1845
    %v2278 = vpop.f32.mrb[0].mxu0
    %v2279 = vadd.f32 0.0, %v2278
    %v2280 = vpop.f32.mrb[0].mxu0
    %v2281 = vadd.f32 0.0, %v2280
    %2282 = vmatprep.mubr.f32.mxu0 0.0
    %2283 = vmatmul.mubr.f32.gmra.mrb[0].mxu0 %v1848
    %v2284 = vpop.f32.mrb[0].mxu0
    %v2285 = vadd.f32 0.0, %v2284
    %v2286 = vpop.f32.mrb[0].mxu0
    %v2287 = vadd.f32 0.0, %v2286
    %2288 = vmatprep.mubr.f32.mxu0 0.0
    %2289 = vmatmul.mubr.f32.gmra.mrb[0].mxu0 %v1851
    %v2290 = vpop.f32.mrb[0].mxu0
    %v2291 = vadd.f32 0.0, %v2290
    %v2292 = vpop.f32.mrb[0].mxu0
    %v2293 = vadd.f32 0.0, %v2292
    %2294 = vmatprep.mubr.f32.mxu0 0.0
    %2295 = vmatmul.mubr.f32.gmra.mrb[0].mxu0 %v1854
    %v2296 = vpop.f32.mrb[0].mxu0
    %v2297 = vadd.f32 0.0, %v2296
    %v2298 = vpop.f32.mrb[0].mxu0
    %v2299 = vadd.f32 0.0, %v2298
    %2300 = vmatprep.mubr.f32.mxu0 0.0
    %2301 = vmatmul.mubr.f32.gmra.mrb[0].mxu0 %v1857
    %v2302 = vpop.f32.mrb[0].mxu0
    %v2303 = vadd.f32 0.0, %v2302
    %v2304 = vpop.f32.mrb[0].mxu0
    %v2305 = vadd.f32 0.0, %v2304
    %2306 = vmatprep.mubr.f32.mxu0 0.0
    %2307 = vmatmul.mubr.f32.gmra.mrb[0].mxu0 %v1860
    %v2308 = vpop.f32.mrb[0].mxu0
    %v2309 = vadd.f32 0.0, %v2308
    %v2310 = vpop.f32.mrb[0].mxu0
    %v2311 = vadd.f32 0.0, %v2310
    %2312 = vmatprep.mubr.f32.mxu0 0.0
    %2313 = vmatmul.mubr.f32.gmra.mrb[0].mxu0 %v1863
    %v2314 = vpop.f32.mrb[0].mxu0
    %v2315 = vadd.f32 0.0, %v2314
    %v2316 = vpop.f32.mrb[0].mxu0
    %v2317 = vadd.f32 0.0, %v2316
    %2318 = vmatprep.mubr.f32.mxu0 0.0
    %2319 = vmatmul.mubr.f32.gmra.mrb[0].mxu0 %v1866
    %v2320 = vpop.f32.mrb[0].mxu0
    %v2321 = vadd.f32 0.0, %v2320
    %v2322 = vpop.f32.mrb[0].mxu0
    %v2323 = vadd.f32 0.0, %v2322
    %2324 = vmatprep.mubr.f32.mxu0 0.0
    %2325 = vmatmul.mubr.f32.gmra.mrb[0].mxu0 %v1869
    %v2326 = vpop.f32.mrb[0].mxu0
    %v2327 = vadd.f32 0.0, %v2326
    %v2328 = vpop.f32.mrb[0].mxu0
    %v2329 = vadd.f32 0.0, %v2328
    %2330 = vmatprep.mubr.f32.mxu0 0.0
    %2331 = vmatmul.mubr.f32.gmra.mrb[0].mxu0 %v1872
    %v2332 = vpop.f32.mrb[0].mxu0
    %v2333 = vadd.f32 0.0, %v2332
    %v2334 = vpop.f32.mrb[0].mxu0
    %v2335 = vadd.f32 0.0, %v2334
    %2336 = vmatprep.mubr.f32.mxu0 0.0
    %2337 = vmatmul.mubr.f32.gmra.mrb[0].mxu0 %v1875
    %v2338 = vpop.f32.mrb[0].mxu0
    %v2339 = vadd.f32 0.0, %v2338
    %v2340 = vpop.f32.mrb[0].mxu0
    %v2341 = vadd.f32 0.0, %v2340
    %2342 = vdwg.mxu0
    %v2343 = vld [vmem:[#allocation2] sm:$0xff]
    %v2344 = vld [vmem:[#allocation2 + $0x8] sm:$0xff]
    %v2345 = vld [vmem:[#allocation2 + $0x10] sm:$0xff]
    %v2346 = vld [vmem:[#allocation2 + $0x18] sm:$0xff]
    %v2347 = vld [vmem:[#allocation2 + $0x20] sm:$0xff]
    %v2348 = vld [vmem:[#allocation2 + $0x28] sm:$0xff]
    %v2349 = vld [vmem:[#allocation2 + $0x30] sm:$0xff]
    %v2350 = vld [vmem:[#allocation2 + $0x38] sm:$0xff]
    %v2351 = vld [vmem:[#allocation2 + $0x40] sm:$0xff]
    %v2352 = vld [vmem:[#allocation2 + $0x48] sm:$0xff]
    %v2353 = vld [vmem:[#allocation2 + $0x50] sm:$0xff]
    %v2354 = vld [vmem:[#allocation2 + $0x58] sm:$0xff]
    %v2355 = vld [vmem:[#allocation2 + $0x60] sm:$0xff]
    %v2356 = vld [vmem:[#allocation2 + $0x68] sm:$0xff]
    %v2357 = vld [vmem:[#allocation2 + $0x70] sm:$0xff]
    %v2358 = vld [vmem:[#allocation2 + $0x78] sm:$0xff]
    %v2359 = vld [vmem:[#allocation2 + $0x80] sm:$0xff]
    %v2360 = vld [vmem:[#allocation2 + $0x88] sm:$0xff]
    %v2361 = vld [vmem:[#allocation2 + $0x90] sm:$0xff]
    %v2362 = vld [vmem:[#allocation2 + $0x98] sm:$0xff]
    %v2363 = vld [vmem:[#allocation2 + $0xa0] sm:$0xff]
    %v2364 = vld [vmem:[#allocation2 + $0xa8] sm:$0xff]
    %v2365 = vld [vmem:[#allocation2 + $0xb0] sm:$0xff]
    %v2366 = vld [vmem:[#allocation2 + $0xb8] sm:$0xff]
    %v2367 = vld [vmem:[#allocation2 + $0xc0] sm:$0xff]
    %v2368 = vld [vmem:[#allocation2 + $0xc8] sm:$0xff]
    %v2369 = vld [vmem:[#allocation2 + $0xd0] sm:$0xff]
    %v2370 = vld [vmem:[#allocation2 + $0xd8] sm:$0xff]
    %v2371 = vld [vmem:[#allocation2 + $0xe0] sm:$0xff]
    %v2372 = vld [vmem:[#allocation2 + $0xe8] sm:$0xff]
    %v2373 = vld [vmem:[#allocation2 + $0xf0] sm:$0xff]
    %v2374 = vld [vmem:[#allocation2 + $0xf8] sm:$0xff]
    %v2375 = vld [vmem:[#allocation2 + $0x100] sm:$0xff]
    %v2376 = vld [vmem:[#allocation2 + $0x108] sm:$0xff]
    %v2377 = vld [vmem:[#allocation2 + $0x110] sm:$0xff]
    %v2378 = vld [vmem:[#allocation2 + $0x118] sm:$0xff]
    %v2379 = vld [vmem:[#allocation2 + $0x120] sm:$0xff]
    %v2380 = vld [vmem:[#allocation2 + $0x128] sm:$0xff]
    %v2381 = vld [vmem:[#allocation2 + $0x130] sm:$0xff]
    %v2382 = vld [vmem:[#allocation2 + $0x138] sm:$0xff]
    %v2383 = vld [vmem:[#allocation2 + $0x140] sm:$0xff]
    %v2384 = vld [vmem:[#allocation2 + $0x148] sm:$0xff]
    %v2385 = vld [vmem:[#allocation2 + $0x150] sm:$0xff]
    %v2386 = vld [vmem:[#allocation2 + $0x158] sm:$0xff]
    %v2387 = vld [vmem:[#allocation2 + $0x160] sm:$0xff]
    %v2388 = vld [vmem:[#allocation2 + $0x168] sm:$0xff]
    %v2389 = vld [vmem:[#allocation2 + $0x170] sm:$0xff]
    %v2390 = vld [vmem:[#allocation2 + $0x178] sm:$0xff]
    %v2391 = vld [vmem:[#allocation2 + $0x180] sm:$0xff]
    %v2392 = vld [vmem:[#allocation2 + $0x188] sm:$0xff]
    %v2393 = vld [vmem:[#allocation2 + $0x190] sm:$0xff]
    %v2394 = vld [vmem:[#allocation2 + $0x198] sm:$0xff]
    %v2395 = vld [vmem:[#allocation2 + $0x1a0] sm:$0xff]
    %v2396 = vld [vmem:[#allocation2 + $0x1a8] sm:$0xff]
    %v2397 = vld [vmem:[#allocation2 + $0x1b0] sm:$0xff]
    %v2398 = vld [vmem:[#allocation2 + $0x1b8] sm:$0xff]
    %v2399 = vld [vmem:[#allocation2 + $0x1c0] sm:$0xff]
    %v2400 = vld [vmem:[#allocation2 + $0x1c8] sm:$0xff]
    %v2401 = vld [vmem:[#allocation2 + $0x1d0] sm:$0xff]
    %v2402 = vld [vmem:[#allocation2 + $0x1d8] sm:$0xff]
    %v2403 = vld [vmem:[#allocation2 + $0x1e0] sm:$0xff]
    %v2404 = vld [vmem:[#allocation2 + $0x1e8] sm:$0xff]
    %v2405 = vld [vmem:[#allocation2 + $0x1f0] sm:$0xff]
    %v2406 = vld [vmem:[#allocation2 + $0x1f8] sm:$0xff]
    %v2407 = vld [vmem:[#allocation2 + $0x200] sm:$0xff]
    %v2408 = vld [vmem:[#allocation2 + $0x208] sm:$0xff]
    %v2409 = vld [vmem:[#allocation2 + $0x210] sm:$0xff]
    %v2410 = vld [vmem:[#allocation2 + $0x218] sm:$0xff]
    %v2411 = vld [vmem:[#allocation2 + $0x220] sm:$0xff]
    %v2412 = vld [vmem:[#allocation2 + $0x228] sm:$0xff]
    %v2413 = vld [vmem:[#allocation2 + $0x230] sm:$0xff]
    %v2414 = vld [vmem:[#allocation2 + $0x238] sm:$0xff]
    %v2415 = vld [vmem:[#allocation2 + $0x240] sm:$0xff]
    %v2416 = vld [vmem:[#allocation2 + $0x248] sm:$0xff]
    %v2417 = vld [vmem:[#allocation2 + $0x250] sm:$0xff]
    %v2418 = vld [vmem:[#allocation2 + $0x258] sm:$0xff]
    %v2419 = vld [vmem:[#allocation2 + $0x260] sm:$0xff]
    %v2420 = vld [vmem:[#allocation2 + $0x268] sm:$0xff]
    %v2421 = vld [vmem:[#allocation2 + $0x270] sm:$0xff]
    %v2422 = vld [vmem:[#allocation2 + $0x278] sm:$0xff]
    %v2423 = vld [vmem:[#allocation2 + $0x280] sm:$0xff]
    %v2424 = vld [vmem:[#allocation2 + $0x288] sm:$0xff]
    %v2425 = vld [vmem:[#allocation2 + $0x290] sm:$0xff]
    %v2426 = vld [vmem:[#allocation2 + $0x298] sm:$0xff]
    %v2427 = vld [vmem:[#allocation2 + $0x2a0] sm:$0xff]
    %v2428 = vld [vmem:[#allocation2 + $0x2a8] sm:$0xff]
    %v2429 = vld [vmem:[#allocation2 + $0x2b0] sm:$0xff]
    %v2430 = vld [vmem:[#allocation2 + $0x2b8] sm:$0xff]
    %v2431 = vld [vmem:[#allocation2 + $0x2c0] sm:$0xff]
    %v2432 = vld [vmem:[#allocation2 + $0x2c8] sm:$0xff]
    %v2433 = vld [vmem:[#allocation2 + $0x2d0] sm:$0xff]
    %v2434 = vld [vmem:[#allocation2 + $0x2d8] sm:$0xff]
    %v2435 = vld [vmem:[#allocation2 + $0x2e0] sm:$0xff]
    %v2436 = vld [vmem:[#allocation2 + $0x2e8] sm:$0xff]
    %v2437 = vld [vmem:[#allocation2 + $0x2f0] sm:$0xff]
    %v2438 = vld [vmem:[#allocation2 + $0x2f8] sm:$0xff]
    %v2439 = vld [vmem:[#allocation2 + $0x300] sm:$0xff]
    %v2440 = vld [vmem:[#allocation2 + $0x308] sm:$0xff]
    %v2441 = vld [vmem:[#allocation2 + $0x310] sm:$0xff]
    %v2442 = vld [vmem:[#allocation2 + $0x318] sm:$0xff]
    %v2443 = vld [vmem:[#allocation2 + $0x320] sm:$0xff]
    %v2444 = vld [vmem:[#allocation2 + $0x328] sm:$0xff]
    %v2445 = vld [vmem:[#allocation2 + $0x330] sm:$0xff]
    %v2446 = vld [vmem:[#allocation2 + $0x338] sm:$0xff]
    %v2447 = vld [vmem:[#allocation2 + $0x340] sm:$0xff]
    %v2448 = vld [vmem:[#allocation2 + $0x348] sm:$0xff]
    %v2449 = vld [vmem:[#allocation2 + $0x350] sm:$0xff]
    %v2450 = vld [vmem:[#allocation2 + $0x358] sm:$0xff]
    %v2451 = vld [vmem:[#allocation2 + $0x360] sm:$0xff]
    %v2452 = vld [vmem:[#allocation2 + $0x368] sm:$0xff]
    %v2453 = vld [vmem:[#allocation2 + $0x370] sm:$0xff]
    %v2454 = vld [vmem:[#allocation2 + $0x378] sm:$0xff]
    %v2455 = vadd.f32 %v2343, %v1944
    %v2456 = vadd.f32 %v2344, %v1946
    %v2457 = vadd.f32 %v2345, %v2177
    %v2458 = vadd.f32 %v2346, %v2179
    %v2459 = vadd.f32 %v2347, %v1950
    %v2460 = vadd.f32 %v2348, %v1952
    %v2461 = vadd.f32 %v2349, %v2183
    %v2462 = vadd.f32 %v2350, %v2185
    %v2463 = vadd.f32 %v2351, %v1956
    %v2464 = vadd.f32 %v2352, %v1958
    %v2465 = vadd.f32 %v2353, %v2189
    %v2466 = vadd.f32 %v2354, %v2191
    %v2467 = vadd.f32 %v2355, %v1962
    %v2468 = vadd.f32 %v2356, %v1964
    %v2469 = vadd.f32 %v2357, %v2195
    %v2470 = vadd.f32 %v2358, %v2197
    %v2471 = vadd.f32 %v2359, %v1968
    %v2472 = vadd.f32 %v2360, %v1970
    %v2473 = vadd.f32 %v2361, %v2201
    %v2474 = vadd.f32 %v2362, %v2203
    %v2475 = vadd.f32 %v2363, %v1974
    %v2476 = vadd.f32 %v2364, %v1976
    %v2477 = vadd.f32 %v2365, %v2207
    %v2478 = vadd.f32 %v2366, %v2209
    %v2479 = vadd.f32 %v2367, %v1980
    %v2480 = vadd.f32 %v2368, %v1982
    %v2481 = vadd.f32 %v2369, %v2213
    %v2482 = vadd.f32 %v2370, %v2215
    %v2483 = vadd.f32 %v2371, %v1986
    %v2484 = vadd.f32 %v2372, %v1988
    %v2485 = vadd.f32 %v2373, %v2219
    %v2486 = vadd.f32 %v2374, %v2221
    %v2487 = vadd.f32 %v2375, %v1992
    %v2488 = vadd.f32 %v2376, %v1994
    %v2489 = vadd.f32 %v2377, %v2225
    %v2490 = vadd.f32 %v2378, %v2227
    %v2491 = vadd.f32 %v2379, %v1998
    %v2492 = vadd.f32 %v2380, %v2000
    %v2493 = vadd.f32 %v2381, %v2231
    %v2494 = vadd.f32 %v2382, %v2233
    %v2495 = vadd.f32 %v2383, %v2004
    %v2496 = vadd.f32 %v2384, %v2006
    %v2497 = vadd.f32 %v2385, %v2237
    %v2498 = vadd.f32 %v2386, %v2239
    %v2499 = vadd.f32 %v2387, %v2010
    %v2500 = vadd.f32 %v2388, %v2012
    %v2501 = vadd.f32 %v2389, %v2243
    %v2502 = vadd.f32 %v2390, %v2245
    %v2503 = vadd.f32 %v2391, %v2016
    %v2504 = vadd.f32 %v2392, %v2018
    %v2505 = vadd.f32 %v2393, %v2249
    %v2506 = vadd.f32 %v2394, %v2251
    %v2507 = vadd.f32 %v2395, %v2022
    %v2508 = vadd.f32 %v2396, %v2024
    %v2509 = vadd.f32 %v2397, %v2255
    %v2510 = vadd.f32 %v2398, %v2257
    %v2511 = vadd.f32 %v2399, %v2028
    %v2512 = vadd.f32 %v2400, %v2030
    %v2513 = vadd.f32 %v2401, %v2261
    %v2514 = vadd.f32 %v2402, %v2263
    %v2515 = vadd.f32 %v2403, %v2034
    %v2516 = vadd.f32 %v2404, %v2036
    %v2517 = vadd.f32 %v2405, %v2267
    %v2518 = vadd.f32 %v2406, %v2269
    %v2519 = vadd.f32 %v2407, %v2040
    %v2520 = vadd.f32 %v2408, %v2042
    %v2521 = vadd.f32 %v2409, %v2273
    %v2522 = vadd.f32 %v2410, %v2275
    %v2523 = vadd.f32 %v2411, %v2046
    %v2524 = vadd.f32 %v2412, %v2048
    %v2525 = vadd.f32 %v2413, %v2279
    %v2526 = vadd.f32 %v2414, %v2281
    %v2527 = vadd.f32 %v2415, %v2052
    %v2528 = vadd.f32 %v2416, %v2054
    %v2529 = vadd.f32 %v2417, %v2285
    %v2530 = vadd.f32 %v2418, %v2287
    %v2531 = vadd.f32 %v2419, %v2058
    %v2532 = vadd.f32 %v2420, %v2060
    %v2533 = vadd.f32 %v2421, %v2291
    %v2534 = vadd.f32 %v2422, %v2293
    %v2535 = vadd.f32 %v2423, %v2064
    %v2536 = vadd.f32 %v2424, %v2066
    %v2537 = vadd.f32 %v2425, %v2297
    %v2538 = vadd.f32 %v2426, %v2299
    %v2539 = vadd.f32 %v2427, %v2070
    %v2540 = vadd.f32 %v2428, %v2072
    %v2541 = vadd.f32 %v2429, %v2303
    %v2542 = vadd.f32 %v2430, %v2305
    %v2543 = vadd.f32 %v2431, %v2076
    %v2544 = vadd.f32 %v2432, %v2078
    %v2545 = vadd.f32 %v2433, %v2309
    %v2546 = vadd.f32 %v2434, %v2311
    %v2547 = vadd.f32 %v2435, %v2082
    %v2548 = vadd.f32 %v2436, %v2084
    %v2549 = vadd.f32 %v2437, %v2315
    %v2550 = vadd.f32 %v2438, %v2317
    %v2551 = vadd.f32 %v2439, %v2088
    %v2552 = vadd.f32 %v2440, %v2090
    %v2553 = vadd.f32 %v2441, %v2321
    %v2554 = vadd.f32 %v2442, %v2323
    %v2555 = vadd.f32 %v2443, %v2094
    %v2556 = vadd.f32 %v2444, %v2096
    %v2557 = vadd.f32 %v2445, %v2327
    %v2558 = vadd.f32 %v2446, %v2329
    %v2559 = vadd.f32 %v2447, %v2100
    %v2560 = vadd.f32 %v2448, %v2102
    %v2561 = vadd.f32 %v2449, %v2333
    %v2562 = vadd.f32 %v2450, %v2335
    %v2563 = vadd.f32 %v2451, %v2106
    %v2564 = vadd.f32 %v2452, %v2108
    %v2565 = vadd.f32 %v2453, %v2339
    %v2566 = vadd.f32 %v2454, %v2341
    %2567 = vst [vmem:[#allocation2] sm:$0xff] %v2455
    %2568 = vst [vmem:[#allocation2 + $0x8] sm:$0xff] %v2456
    %2569 = vst [vmem:[#allocation2 + $0x10] sm:$0xff] %v2457
    %2570 = vst [vmem:[#allocation2 + $0x18] sm:$0xff] %v2458
    %2571 = vst [vmem:[#allocation2 + $0x20] sm:$0xff] %v2459
    %2572 = vst [vmem:[#allocation2 + $0x28] sm:$0xff] %v2460
    %2573 = vst [vmem:[#allocation2 + $0x30] sm:$0xff] %v2461
    %2574 = vst [vmem:[#allocation2 + $0x38] sm:$0xff] %v2462
    %2575 = vst [vmem:[#allocation2 + $0x40] sm:$0xff] %v2463
    %2576 = vst [vmem:[#allocation2 + $0x48] sm:$0xff] %v2464
    %2577 = vst [vmem:[#allocation2 + $0x50] sm:$0xff] %v2465
    %2578 = vst [vmem:[#allocation2 + $0x58] sm:$0xff] %v2466
    %2579 = vst [vmem:[#allocation2 + $0x60] sm:$0xff] %v2467
    %2580 = vst [vmem:[#allocation2 + $0x68] sm:$0xff] %v2468
    %2581 = vst [vmem:[#allocation2 + $0x70] sm:$0xff] %v2469
    %2582 = vst [vmem:[#allocation2 + $0x78] sm:$0xff] %v2470
    %2583 = vst [vmem:[#allocation2 + $0x80] sm:$0xff] %v2471
    %2584 = vst [vmem:[#allocation2 + $0x88] sm:$0xff] %v2472
    %2585 = vst [vmem:[#allocation2 + $0x90] sm:$0xff] %v2473
    %2586 = vst [vmem:[#allocation2 + $0x98] sm:$0xff] %v2474
    %2587 = vst [vmem:[#allocation2 + $0xa0] sm:$0xff] %v2475
    %2588 = vst [vmem:[#allocation2 + $0xa8] sm:$0xff] %v2476
    %2589 = vst [vmem:[#allocation2 + $0xb0] sm:$0xff] %v2477
    %2590 = vst [vmem:[#allocation2 + $0xb8] sm:$0xff] %v2478
    %2591 = vst [vmem:[#allocation2 + $0xc0] sm:$0xff] %v2479
    %2592 = vst [vmem:[#allocation2 + $0xc8] sm:$0xff] %v2480
    %2593 = vst [vmem:[#allocation2 + $0xd0] sm:$0xff] %v2481
    %2594 = vst [vmem:[#allocation2 + $0xd8] sm:$0xff] %v2482
    %2595 = vst [vmem:[#allocation2 + $0xe0] sm:$0xff] %v2483
    %2596 = vst [vmem:[#allocation2 + $0xe8] sm:$0xff] %v2484
    %2597 = vst [vmem:[#allocation2 + $0xf0] sm:$0xff] %v2485
    %2598 = vst [vmem:[#allocation2 + $0xf8] sm:$0xff] %v2486
    %2599 = vst [vmem:[#allocation2 + $0x100] sm:$0xff] %v2487
    %2600 = vst [vmem:[#allocation2 + $0x108] sm:$0xff] %v2488
    %2601 = vst [vmem:[#allocation2 + $0x110] sm:$0xff] %v2489
    %2602 = vst [vmem:[#allocation2 + $0x118] sm:$0xff] %v2490
    %2603 = vst [vmem:[#allocation2 + $0x120] sm:$0xff] %v2491
    %2604 = vst [vmem:[#allocation2 + $0x128] sm:$0xff] %v2492
    %2605 = vst [vmem:[#allocation2 + $0x130] sm:$0xff] %v2493
    %2606 = vst [vmem:[#allocation2 + $0x138] sm:$0xff] %v2494
    %2607 = vst [vmem:[#allocation2 + $0x140] sm:$0xff] %v2495
    %2608 = vst [vmem:[#allocation2 + $0x148] sm:$0xff] %v2496
    %2609 = vst [vmem:[#allocation2 + $0x150] sm:$0xff] %v2497
    %2610 = vst [vmem:[#allocation2 + $0x158] sm:$0xff] %v2498
    %2611 = vst [vmem:[#allocation2 + $0x160] sm:$0xff] %v2499
    %2612 = vst [vmem:[#allocation2 + $0x168] sm:$0xff] %v2500
    %2613 = vst [vmem:[#allocation2 + $0x170] sm:$0xff] %v2501
    %2614 = vst [vmem:[#allocation2 + $0x178] sm:$0xff] %v2502
    %2615 = vst [vmem:[#allocation2 + $0x180] sm:$0xff] %v2503
    %2616 = vst [vmem:[#allocation2 + $0x188] sm:$0xff] %v2504
    %2617 = vst [vmem:[#allocation2 + $0x190] sm:$0xff] %v2505
    %2618 = vst [vmem:[#allocation2 + $0x198] sm:$0xff] %v2506
    %2619 = vst [vmem:[#allocation2 + $0x1a0] sm:$0xff] %v2507
    %2620 = vst [vmem:[#allocation2 + $0x1a8] sm:$0xff] %v2508
    %2621 = vst [vmem:[#allocation2 + $0x1b0] sm:$0xff] %v2509
    %2622 = vst [vmem:[#allocation2 + $0x1b8] sm:$0xff] %v2510
    %2623 = vst [vmem:[#allocation2 + $0x1c0] sm:$0xff] %v2511
    %2624 = vst [vmem:[#allocation2 + $0x1c8] sm:$0xff] %v2512
    %2625 = vst [vmem:[#allocation2 + $0x1d0] sm:$0xff] %v2513
    %2626 = vst [vmem:[#allocation2 + $0x1d8] sm:$0xff] %v2514
    %2627 = vst [vmem:[#allocation2 + $0x1e0] sm:$0xff] %v2515
    %2628 = vst [vmem:[#allocation2 + $0x1e8] sm:$0xff] %v2516
    %2629 = vst [vmem:[#allocation2 + $0x1f0] sm:$0xff] %v2517
    %2630 = vst [vmem:[#allocation2 + $0x1f8] sm:$0xff] %v2518
    %2631 = vst [vmem:[#allocation2 + $0x200] sm:$0xff] %v2519
    %2632 = vst [vmem:[#allocation2 + $0x208] sm:$0xff] %v2520
    %2633 = vst [vmem:[#allocation2 + $0x210] sm:$0xff] %v2521
    %2634 = vst [vmem:[#allocation2 + $0x218] sm:$0xff] %v2522
    %2635 = vst [vmem:[#allocation2 + $0x220] sm:$0xff] %v2523
    %2636 = vst [vmem:[#allocation2 + $0x228] sm:$0xff] %v2524
    %2637 = vst [vmem:[#allocation2 + $0x230] sm:$0xff] %v2525
    %2638 = vst [vmem:[#allocation2 + $0x238] sm:$0xff] %v2526
    %2639 = vst [vmem:[#allocation2 + $0x240] sm:$0xff] %v2527
    %2640 = vst [vmem:[#allocation2 + $0x248] sm:$0xff] %v2528
    %2641 = vst [vmem:[#allocation2 + $0x250] sm:$0xff] %v2529
    %2642 = vst [vmem:[#allocation2 + $0x258] sm:$0xff] %v2530
    %2643 = vst [vmem:[#allocation2 + $0x260] sm:$0xff] %v2531
    %2644 = vst [vmem:[#allocation2 + $0x268] sm:$0xff] %v2532
    %2645 = vst [vmem:[#allocation2 + $0x270] sm:$0xff] %v2533
    %2646 = vst [vmem:[#allocation2 + $0x278] sm:$0xff] %v2534
    %2647 = vst [vmem:[#allocation2 + $0x280] sm:$0xff] %v2535
    %2648 = vst [vmem:[#allocation2 + $0x288] sm:$0xff] %v2536
    %2649 = vst [vmem:[#allocation2 + $0x290] sm:$0xff] %v2537
    %2650 = vst [vmem:[#allocation2 + $0x298] sm:$0xff] %v2538
    %2651 = vst [vmem:[#allocation2 + $0x2a0] sm:$0xff] %v2539
    %2652 = vst [vmem:[#allocation2 + $0x2a8] sm:$0xff] %v2540
    %2653 = vst [vmem:[#allocation2 + $0x2b0] sm:$0xff] %v2541
    %2654 = vst [vmem:[#allocation2 + $0x2b8] sm:$0xff] %v2542
    %2655 = vst [vmem:[#allocation2 + $0x2c0] sm:$0xff] %v2543
    %2656 = vst [vmem:[#allocation2 + $0x2c8] sm:$0xff] %v2544
    %2657 = vst [vmem:[#allocation2 + $0x2d0] sm:$0xff] %v2545
    %2658 = vst [vmem:[#allocation2 + $0x2d8] sm:$0xff] %v2546
    %2659 = vst [vmem:[#allocation2 + $0x2e0] sm:$0xff] %v2547
    %2660 = vst [vmem:[#allocation2 + $0x2e8] sm:$0xff] %v2548
    %2661 = vst [vmem:[#allocation2 + $0x2f0] sm:$0xff] %v2549
    %2662 = vst [vmem:[#allocation2 + $0x2f8] sm:$0xff] %v2550
    %2663 = vst [vmem:[#allocation2 + $0x300] sm:$0xff] %v2551
    %2664 = vst [vmem:[#allocation2 + $0x308] sm:$0xff] %v2552
    %2665 = vst [vmem:[#allocation2 + $0x310] sm:$0xff] %v2553
    %2666 = vst [vmem:[#allocation2 + $0x318] sm:$0xff] %v2554
    %2667 = vst [vmem:[#allocation2 + $0x320] sm:$0xff] %v2555
    %2668 = vst [vmem:[#allocation2 + $0x328] sm:$0xff] %v2556
    %2669 = vst [vmem:[#allocation2 + $0x330] sm:$0xff] %v2557
    %2670 = vst [vmem:[#allocation2 + $0x338] sm:$0xff] %v2558
    %2671 = vst [vmem:[#allocation2 + $0x340] sm:$0xff] %v2559
    %2672 = vst [vmem:[#allocation2 + $0x348] sm:$0xff] %v2560
    %2673 = vst [vmem:[#allocation2 + $0x350] sm:$0xff] %v2561
    %2674 = vst [vmem:[#allocation2 + $0x358] sm:$0xff] %v2562
    %2675 = vst [vmem:[#allocation2 + $0x360] sm:$0xff] %v2563
    %2676 = vst [vmem:[#allocation2 + $0x368] sm:$0xff] %v2564
    %2677 = vst [vmem:[#allocation2 + $0x370] sm:$0xff] %v2565
    %2678 = vst [vmem:[#allocation2 + $0x378] sm:$0xff] %v2566
    %v2679 = vld [vmem:[%s0 + $0x18] sm:$0xff]
    %v2680 = vld [vmem:[%s0 + $0x20] sm:$0xff]
    %v2681 = vld [vmem:[%s0 + $0x28] sm:$0xff]
    %v2682 = vld [vmem:[%s0 + $0x30] sm:$0xff]
    %v2683 = vld [vmem:[%s0 + $0x38] sm:$0xff]
    %v2684 = vld [vmem:[%s0 + $0x40] sm:$0xff]
    %v2685 = vld [vmem:[%s0 + $0x48] sm:$0xff]
    %v2686 = vld [vmem:[%s0 + $0x50] sm:$0xff]
    %v2687 = vld [vmem:[%s0 + $0x58] sm:$0xff]
    %v2688 = vld [vmem:[%s0 + $0x60] sm:$0xff]
    %v2689 = vld [vmem:[%s0 + $0x68] sm:$0xff]
    %v2690 = vld [vmem:[%s0 + $0x70] sm:$0xff]
    %v2691 = vld [vmem:[%s0 + $0x78] sm:$0xff]
    %v2692 = vld [vmem:[%s0 + $0x80] sm:$0xff]
    %v2693 = vld [vmem:[%s0 + $0x88] sm:$0xff]
    %v2694 = vld [vmem:[%s0 + $0x90] sm:$0xff]
    %v2695 = vld [vmem:[%s0 + $0x98] sm:$0xff]
    %v2696 = vld [vmem:[%s0 + $0xa0] sm:$0xff]
    %v2697 = vld [vmem:[%s0 + $0xa8] sm:$0xff]
    %v2698 = vld [vmem:[%s0 + $0xb0] sm:$0xff]
    %v2699 = vld [vmem:[%s0 + $0xb8] sm:$0xff]
    %v2700 = vld [vmem:[%s0 + $0xc0] sm:$0xff]
    %v2701 = vld [vmem:[%s0 + $0xc8] sm:$0xff]
    %v2702 = vld [vmem:[%s0 + $0xd0] sm:$0xff]
    %v2703 = vld [vmem:[%s0 + $0xd8] sm:$0xff]
    %v2704 = vld [vmem:[%s0 + $0xe0] sm:$0xff]
    %v2705 = vld [vmem:[%s0 + $0xe8] sm:$0xff]
    %v2706 = vld [vmem:[%s0 + $0xf0] sm:$0xff]
    %s2707 = scalar_lea.vmem [#allocation6], 384
    %v2708 = vld [vmem:[%s2707] sm:$0xff]
    %v2709 = vld [vmem:[%s2707 + $0x8] sm:$0xff]
    %v2710 = vld [vmem:[%s2707 + $0x10] sm:$0xff]
    %v2711 = vld [vmem:[%s2707 + $0x18] sm:$0xff]
    %v2712 = vld [vmem:[%s2707 + $0x20] sm:$0xff]
    %v2713 = vld [vmem:[%s2707 + $0x28] sm:$0xff]
    %v2714 = vld [vmem:[%s2707 + $0x30] sm:$0xff]
    %v2715 = vld [vmem:[%s2707 + $0x38] sm:$0xff]
    %v2716 = vld [vmem:[%s2707 + $0x40] sm:$0xff]
    %v2717 = vld [vmem:[%s2707 + $0x48] sm:$0xff]
    %v2718 = vld [vmem:[%s2707 + $0x50] sm:$0xff]
    %v2719 = vld [vmem:[%s2707 + $0x58] sm:$0xff]
    %v2720 = vld [vmem:[%s2707 + $0x60] sm:$0xff]
    %v2721 = vld [vmem:[%s2707 + $0x68] sm:$0xff]
    %v2722 = vld [vmem:[%s2707 + $0x70] sm:$0xff]
    %v2723 = vld [vmem:[%s2707 + $0x78] sm:$0xff]
    %v2725 = vsel %vm154, %v2679, 0
    %v2728 = vsel %vm154, %v2680, 0
    %v2731 = vsel %vm154, %v2681, 0
    %v2734 = vsel %vm154, %v2682, 0
    %v2737 = vsel %vm154, %v2683, 0
    %v2740 = vsel %vm154, %v2684, 0
    %v2743 = vsel %vm154, %v2685, 0
    %v2746 = vsel %vm154, %v2686, 0
    %v2749 = vsel %vm154, %v2687, 0
    %v2752 = vsel %vm154, %v2688, 0
    %v2755 = vsel %vm154, %v2689, 0
    %v2758 = vsel %vm154, %v2690, 0
    %v2761 = vsel %vm154, %v2691, 0
    %v2764 = vsel %vm154, %v2692, 0
    %v2767 = vsel %vm154, %v2693, 0
    %v2770 = vsel %vm154, %v2694, 0
    %v2773 = vsel %vm154, %v2695, 0
    %v2776 = vsel %vm154, %v2696, 0
    %v2779 = vsel %vm154, %v2697, 0
    %v2782 = vsel %vm154, %v2698, 0
    %v2785 = vsel %vm154, %v2699, 0
    %v2788 = vsel %vm154, %v2700, 0
    %v2791 = vsel %vm154, %v2701, 0
    %v2794 = vsel %vm154, %v2702, 0
    %v2797 = vsel %vm154, %v2703, 0
    %v2800 = vsel %vm154, %v2704, 0
    %v2803 = vsel %vm154, %v2705, 0
    %v2806 = vsel %vm154, %v2706, 0
    %2808 = vmatprep.subr.mxu0 %v2709
    %2809 = vmatpush1.msra.mxu0 %v2708
    %2810 = vmatprep.subr.mxu0 %v2713
    %2811 = vmatpush1.msra.mxu0 %v2712
    %2812 = vmatprep.subr.mxu0 %v2717
    %2813 = vmatpush1.msra.mxu0 %v2716
    %2814 = vmatprep.subr.mxu0 %v2721
    %2815 = vmatpush1.msra.mxu0 %v2720
    %2816 = vmatprep.subr.mxu0 0.0
    %2817 = vmatpush1.msra.mxu0 0.0
    %2818 = vmatprep.subr.mxu0 0.0
    %2819 = vmatpush1.msra.mxu0 0.0
    %2820 = vmatprep.subr.mxu0 0.0
    %2821 = vmatpush1.msra.mxu0 0.0
    %2822 = vmatprep.subr.mxu0 0.0
    %2823 = vmatpush1.msra.mxu0 0.0
    %2824 = vmatprep.subr.mxu0 0.0
    %2825 = vmatpush1.msra.mxu0 0.0
    %2826 = vmatprep.subr.mxu0 0.0
    %2827 = vmatpush1.msra.mxu0 0.0
    %2828 = vmatprep.subr.mxu0 0.0
    %2829 = vmatpush1.msra.mxu0 0.0
    %2830 = vmatprep.subr.mxu0 0.0
    %2831 = vmatpush1.msra.mxu0 0.0
    %2832 = vmatprep.subr.mxu0 0.0
    %2833 = vmatpush1.msra.mxu0 0.0
    %2834 = vmatprep.subr.mxu0 0.0
    %2835 = vmatpush1.msra.mxu0 0.0
    %2836 = vmatprep.subr.mxu0 0.0
    %2837 = vmatpush1.msra.mxu0 0.0
    %2838 = vmatprep.subr.mxu0 0.0
    %2839 = vmatpush1.msra.mxu0 0.0
    %2840 = vmatprep.subr.mxu0 0.0
    %2841 = vmatpush1.msra.mxu0 0.0
    %2842 = vmatprep.subr.mxu0 0.0
    %2843 = vmatpush1.msra.mxu0 0.0
    %2844 = vmatprep.subr.mxu0 0.0
    %2845 = vmatpush1.msra.mxu0 0.0
    %2846 = vmatprep.subr.mxu0 0.0
    %2847 = vmatpush1.msra.mxu0 0.0
    %2848 = vmatprep.subr.mxu0 0.0
    %2849 = vmatpush1.msra.mxu0 0.0
    %2850 = vmatprep.subr.mxu0 0.0
    %2851 = vmatpush1.msra.mxu0 0.0
    %2852 = vmatprep.subr.mxu0 0.0
    %2853 = vmatpush1.msra.mxu0 0.0
    %2854 = vmatprep.subr.mxu0 0.0
    %2855 = vmatpush1.msra.mxu0 0.0
    %2856 = vmatprep.subr.mxu0 0.0
    %2857 = vmatpush1.msra.mxu0 0.0
    %2858 = vmatprep.subr.mxu0 0.0
    %2859 = vmatpush1.msra.mxu0 0.0
    %2860 = vmatprep.subr.mxu0 0.0
    %2861 = vmatpush1.msra.mxu0 0.0
    %2862 = vmatprep.subr.mxu0 0.0
    %2863 = vmatpush1.msra.mxu0 0.0
    %2864 = vmatprep.subr.mxu0 0.0
    %2865 = vmatpush1.msra.mxu0 0.0
    %2866 = vmatprep.subr.mxu0 0.0
    %2867 = vmatpush1.msra.mxu0 0.0
    %2868 = vmatprep.subr.mxu0 0.0
    %2869 = vmatpush1.msra.mxu0 0.0
    %2870 = vmatprep.subr.mxu0 0.0
    %2871 = vmatpush1.msra.mxu0 0.0
    %2872 = vmatprep.mubr.f32.mxu0 0.0
    %2873 = vmatmul.mubr.f32.gmra.mrb[0].mxu0 %v2725
    %v2874 = vpop.f32.mrb[0].mxu0
    %v2875 = vadd.f32 0.0, %v2874
    %v2876 = vpop.f32.mrb[0].mxu0
    %v2877 = vadd.f32 0.0, %v2876
    %2878 = vmatprep.mubr.f32.mxu0 0.0
    %2879 = vmatmul.mubr.f32.gmra.mrb[0].mxu0 %v2728
    %v2880 = vpop.f32.mrb[0].mxu0
    %v2881 = vadd.f32 0.0, %v2880
    %v2882 = vpop.f32.mrb[0].mxu0
    %v2883 = vadd.f32 0.0, %v2882
    %2884 = vmatprep.mubr.f32.mxu0 0.0
    %2885 = vmatmul.mubr.f32.gmra.mrb[0].mxu0 %v2731
    %v2886 = vpop.f32.mrb[0].mxu0
    %v2887 = vadd.f32 0.0, %v2886
    %v2888 = vpop.f32.mrb[0].mxu0
    %v2889 = vadd.f32 0.0, %v2888
    %2890 = vmatprep.mubr.f32.mxu0 0.0
    %2891 = vmatmul.mubr.f32.gmra.mrb[0].mxu0 %v2734
    %v2892 = vpop.f32.mrb[0].mxu0
    %v2893 = vadd.f32 0.0, %v2892
    %v2894 = vpop.f32.mrb[0].mxu0
    %v2895 = vadd.f32 0.0, %v2894
    %2896 = vmatprep.mubr.f32.mxu0 0.0
    %2897 = vmatmul.mubr.f32.gmra.mrb[0].mxu0 %v2737
    %v2898 = vpop.f32.mrb[0].mxu0
    %v2899 = vadd.f32 0.0, %v2898
    %v2900 = vpop.f32.mrb[0].mxu0
    %v2901 = vadd.f32 0.0, %v2900
    %2902 = vmatprep.mubr.f32.mxu0 0.0
    %2903 = vmatmul.mubr.f32.gmra.mrb[0].mxu0 %v2740
    %v2904 = vpop.f32.mrb[0].mxu0
    %v2905 = vadd.f32 0.0, %v2904
    %v2906 = vpop.f32.mrb[0].mxu0
    %v2907 = vadd.f32 0.0, %v2906
    %2908 = vmatprep.mubr.f32.mxu0 0.0
    %2909 = vmatmul.mubr.f32.gmra.mrb[0].mxu0 %v2743
    %v2910 = vpop.f32.mrb[0].mxu0
    %v2911 = vadd.f32 0.0, %v2910
    %v2912 = vpop.f32.mrb[0].mxu0
    %v2913 = vadd.f32 0.0, %v2912
    %2914 = vmatprep.mubr.f32.mxu0 0.0
    %2915 = vmatmul.mubr.f32.gmra.mrb[0].mxu0 %v2746
    %v2916 = vpop.f32.mrb[0].mxu0
    %v2917 = vadd.f32 0.0, %v2916
    %v2918 = vpop.f32.mrb[0].mxu0
    %v2919 = vadd.f32 0.0, %v2918
    %2920 = vmatprep.mubr.f32.mxu0 0.0
    %2921 = vmatmul.mubr.f32.gmra.mrb[0].mxu0 %v2749
    %v2922 = vpop.f32.mrb[0].mxu0
    %v2923 = vadd.f32 0.0, %v2922
    %v2924 = vpop.f32.mrb[0].mxu0
    %v2925 = vadd.f32 0.0, %v2924
    %2926 = vmatprep.mubr.f32.mxu0 0.0
    %2927 = vmatmul.mubr.f32.gmra.mrb[0].mxu0 %v2752
    %v2928 = vpop.f32.mrb[0].mxu0
    %v2929 = vadd.f32 0.0, %v2928
    %v2930 = vpop.f32.mrb[0].mxu0
    %v2931 = vadd.f32 0.0, %v2930
    %2932 = vmatprep.mubr.f32.mxu0 0.0
    %2933 = vmatmul.mubr.f32.gmra.mrb[0].mxu0 %v2755
    %v2934 = vpop.f32.mrb[0].mxu0
    %v2935 = vadd.f32 0.0, %v2934
    %v2936 = vpop.f32.mrb[0].mxu0
    %v2937 = vadd.f32 0.0, %v2936
    %2938 = vmatprep.mubr.f32.mxu0 0.0
    %2939 = vmatmul.mubr.f32.gmra.mrb[0].mxu0 %v2758
    %v2940 = vpop.f32.mrb[0].mxu0
    %v2941 = vadd.f32 0.0, %v2940
    %v2942 = vpop.f32.mrb[0].mxu0
    %v2943 = vadd.f32 0.0, %v2942
    %2944 = vmatprep.mubr.f32.mxu0 0.0
    %2945 = vmatmul.mubr.f32.gmra.mrb[0].mxu0 %v2761
    %v2946 = vpop.f32.mrb[0].mxu0
    %v2947 = vadd.f32 0.0, %v2946
    %v2948 = vpop.f32.mrb[0].mxu0
    %v2949 = vadd.f32 0.0, %v2948
    %2950 = vmatprep.mubr.f32.mxu0 0.0
    %2951 = vmatmul.mubr.f32.gmra.mrb[0].mxu0 %v2764
    %v2952 = vpop.f32.mrb[0].mxu0
    %v2953 = vadd.f32 0.0, %v2952
    %v2954 = vpop.f32.mrb[0].mxu0
    %v2955 = vadd.f32 0.0, %v2954
    %2956 = vmatprep.mubr.f32.mxu0 0.0
    %2957 = vmatmul.mubr.f32.gmra.mrb[0].mxu0 %v2767
    %v2958 = vpop.f32.mrb[0].mxu0
    %v2959 = vadd.f32 0.0, %v2958
    %v2960 = vpop.f32.mrb[0].mxu0
    %v2961 = vadd.f32 0.0, %v2960
    %2962 = vmatprep.mubr.f32.mxu0 0.0
    %2963 = vmatmul.mubr.f32.gmra.mrb[0].mxu0 %v2770
    %v2964 = vpop.f32.mrb[0].mxu0
    %v2965 = vadd.f32 0.0, %v2964
    %v2966 = vpop.f32.mrb[0].mxu0
    %v2967 = vadd.f32 0.0, %v2966
    %2968 = vmatprep.mubr.f32.mxu0 0.0
    %2969 = vmatmul.mubr.f32.gmra.mrb[0].mxu0 %v2773
    %v2970 = vpop.f32.mrb[0].mxu0
    %v2971 = vadd.f32 0.0, %v2970
    %v2972 = vpop.f32.mrb[0].mxu0
    %v2973 = vadd.f32 0.0, %v2972
    %2974 = vmatprep.mubr.f32.mxu0 0.0
    %2975 = vmatmul.mubr.f32.gmra.mrb[0].mxu0 %v2776
    %v2976 = vpop.f32.mrb[0].mxu0
    %v2977 = vadd.f32 0.0, %v2976
    %v2978 = vpop.f32.mrb[0].mxu0
    %v2979 = vadd.f32 0.0, %v2978
    %2980 = vmatprep.mubr.f32.mxu0 0.0
    %2981 = vmatmul.mubr.f32.gmra.mrb[0].mxu0 %v2779
    %v2982 = vpop.f32.mrb[0].mxu0
    %v2983 = vadd.f32 0.0, %v2982
    %v2984 = vpop.f32.mrb[0].mxu0
    %v2985 = vadd.f32 0.0, %v2984
    %2986 = vmatprep.mubr.f32.mxu0 0.0
    %2987 = vmatmul.mubr.f32.gmra.mrb[0].mxu0 %v2782
    %v2988 = vpop.f32.mrb[0].mxu0
    %v2989 = vadd.f32 0.0, %v2988
    %v2990 = vpop.f32.mrb[0].mxu0
    %v2991 = vadd.f32 0.0, %v2990
    %2992 = vmatprep.mubr.f32.mxu0 0.0
    %2993 = vmatmul.mubr.f32.gmra.mrb[0].mxu0 %v2785
    %v2994 = vpop.f32.mrb[0].mxu0
    %v2995 = vadd.f32 0.0, %v2994
    %v2996 = vpop.f32.mrb[0].mxu0
    %v2997 = vadd.f32 0.0, %v2996
    %2998 = vmatprep.mubr.f32.mxu0 0.0
    %2999 = vmatmul.mubr.f32.gmra.mrb[0].mxu0 %v2788
    %v3000 = vpop.f32.mrb[0].mxu0
    %v3001 = vadd.f32 0.0, %v3000
    %v3002 = vpop.f32.mrb[0].mxu0
    %v3003 = vadd.f32 0.0, %v3002
    %3004 = vmatprep.mubr.f32.mxu0 0.0
    %3005 = vmatmul.mubr.f32.gmra.mrb[0].mxu0 %v2791
    %v3006 = vpop.f32.mrb[0].mxu0
    %v3007 = vadd.f32 0.0, %v3006
    %v3008 = vpop.f32.mrb[0].mxu0
    %v3009 = vadd.f32 0.0, %v3008
    %3010 = vmatprep.mubr.f32.mxu0 0.0
    %3011 = vmatmul.mubr.f32.gmra.mrb[0].mxu0 %v2794
    %v3012 = vpop.f32.mrb[0].mxu0
    %v3013 = vadd.f32 0.0, %v3012
    %v3014 = vpop.f32.mrb[0].mxu0
    %v3015 = vadd.f32 0.0, %v3014
    %3016 = vmatprep.mubr.f32.mxu0 0.0
    %3017 = vmatmul.mubr.f32.gmra.mrb[0].mxu0 %v2797
    %v3018 = vpop.f32.mrb[0].mxu0
    %v3019 = vadd.f32 0.0, %v3018
    %v3020 = vpop.f32.mrb[0].mxu0
    %v3021 = vadd.f32 0.0, %v3020
    %3022 = vmatprep.mubr.f32.mxu0 0.0
    %3023 = vmatmul.mubr.f32.gmra.mrb[0].mxu0 %v2800
    %v3024 = vpop.f32.mrb[0].mxu0
    %v3025 = vadd.f32 0.0, %v3024
    %v3026 = vpop.f32.mrb[0].mxu0
    %v3027 = vadd.f32 0.0, %v3026
    %3028 = vmatprep.mubr.f32.mxu0 0.0
    %3029 = vmatmul.mubr.f32.gmra.mrb[0].mxu0 %v2803
    %v3030 = vpop.f32.mrb[0].mxu0
    %v3031 = vadd.f32 0.0, %v3030
    %v3032 = vpop.f32.mrb[0].mxu0
    %v3033 = vadd.f32 0.0, %v3032
    %3034 = vmatprep.mubr.f32.mxu0 0.0
    %3035 = vmatmul.mubr.f32.gmra.mrb[0].mxu0 %v2806
    %v3036 = vpop.f32.mrb[0].mxu0
    %v3037 = vadd.f32 0.0, %v3036
    %v3038 = vpop.f32.mrb[0].mxu0
    %v3039 = vadd.f32 0.0, %v3038
    %3040 = vdwg.mxu0
    %3041 = vmatprep.subr.mxu0 %v2711
    %3042 = vmatpush1.msra.mxu0 %v2710
    %3043 = vmatprep.subr.mxu0 %v2715
    %3044 = vmatpush1.msra.mxu0 %v2714
    %3045 = vmatprep.subr.mxu0 %v2719
    %3046 = vmatpush1.msra.mxu0 %v2718
    %3047 = vmatprep.subr.mxu0 %v2723
    %3048 = vmatpush1.msra.mxu0 %v2722
    %3049 = vmatprep.subr.mxu0 0.0
    %3050 = vmatpush1.msra.mxu0 0.0
    %3051 = vmatprep.subr.mxu0 0.0
    %3052 = vmatpush1.msra.mxu0 0.0
    %3053 = vmatprep.subr.mxu0 0.0
    %3054 = vmatpush1.msra.mxu0 0.0
    %3055 = vmatprep.subr.mxu0 0.0
    %3056 = vmatpush1.msra.mxu0 0.0
    %3057 = vmatprep.subr.mxu0 0.0
    %3058 = vmatpush1.msra.mxu0 0.0
    %3059 = vmatprep.subr.mxu0 0.0
    %3060 = vmatpush1.msra.mxu0 0.0
    %3061 = vmatprep.subr.mxu0 0.0
    %3062 = vmatpush1.msra.mxu0 0.0
    %3063 = vmatprep.subr.mxu0 0.0
    %3064 = vmatpush1.msra.mxu0 0.0
    %3065 = vmatprep.subr.mxu0 0.0
    %3066 = vmatpush1.msra.mxu0 0.0
    %3067 = vmatprep.subr.mxu0 0.0
    %3068 = vmatpush1.msra.mxu0 0.0
    %3069 = vmatprep.subr.mxu0 0.0
    %3070 = vmatpush1.msra.mxu0 0.0
    %3071 = vmatprep.subr.mxu0 0.0
    %3072 = vmatpush1.msra.mxu0 0.0
    %3073 = vmatprep.subr.mxu0 0.0
    %3074 = vmatpush1.msra.mxu0 0.0
    %3075 = vmatprep.subr.mxu0 0.0
    %3076 = vmatpush1.msra.mxu0 0.0
    %3077 = vmatprep.subr.mxu0 0.0
    %3078 = vmatpush1.msra.mxu0 0.0
    %3079 = vmatprep.subr.mxu0 0.0
    %3080 = vmatpush1.msra.mxu0 0.0
    %3081 = vmatprep.subr.mxu0 0.0
    %3082 = vmatpush1.msra.mxu0 0.0
    %3083 = vmatprep.subr.mxu0 0.0
    %3084 = vmatpush1.msra.mxu0 0.0
    %3085 = vmatprep.subr.mxu0 0.0
    %3086 = vmatpush1.msra.mxu0 0.0
    %3087 = vmatprep.subr.mxu0 0.0
    %3088 = vmatpush1.msra.mxu0 0.0
    %3089 = vmatprep.subr.mxu0 0.0
    %3090 = vmatpush1.msra.mxu0 0.0
    %3091 = vmatprep.subr.mxu0 0.0
    %3092 = vmatpush1.msra.mxu0 0.0
    %3093 = vmatprep.subr.mxu0 0.0
    %3094 = vmatpush1.msra.mxu0 0.0
    %3095 = vmatprep.subr.mxu0 0.0
    %3096 = vmatpush1.msra.mxu0 0.0
    %3097 = vmatprep.subr.mxu0 0.0
    %3098 = vmatpush1.msra.mxu0 0.0
    %3099 = vmatprep.subr.mxu0 0.0
    %3100 = vmatpush1.msra.mxu0 0.0
    %3101 = vmatprep.subr.mxu0 0.0
    %3102 = vmatpush1.msra.mxu0 0.0
    %3103 = vmatprep.subr.mxu0 0.0
    %3104 = vmatpush1.msra.mxu0 0.0
    %3105 = vmatprep.mubr.f32.mxu0 0.0
    %3106 = vmatmul.mubr.f32.gmra.mrb[0].mxu0 %v2725
    %v3107 = vpop.f32.mrb[0].mxu0
    %v3108 = vadd.f32 0.0, %v3107
    %v3109 = vpop.f32.mrb[0].mxu0
    %v3110 = vadd.f32 0.0, %v3109
    %3111 = vmatprep.mubr.f32.mxu0 0.0
    %3112 = vmatmul.mubr.f32.gmra.mrb[0].mxu0 %v2728
    %v3113 = vpop.f32.mrb[0].mxu0
    %v3114 = vadd.f32 0.0, %v3113
    %v3115 = vpop.f32.mrb[0].mxu0
    %v3116 = vadd.f32 0.0, %v3115
    %3117 = vmatprep.mubr.f32.mxu0 0.0
    %3118 = vmatmul.mubr.f32.gmra.mrb[0].mxu0 %v2731
    %v3119 = vpop.f32.mrb[0].mxu0
    %v3120 = vadd.f32 0.0, %v3119
    %v3121 = vpop.f32.mrb[0].mxu0
    %v3122 = vadd.f32 0.0, %v3121
    %3123 = vmatprep.mubr.f32.mxu0 0.0
    %3124 = vmatmul.mubr.f32.gmra.mrb[0].mxu0 %v2734
    %v3125 = vpop.f32.mrb[0].mxu0
    %v3126 = vadd.f32 0.0, %v3125
    %v3127 = vpop.f32.mrb[0].mxu0
    %v3128 = vadd.f32 0.0, %v3127
    %3129 = vmatprep.mubr.f32.mxu0 0.0
    %3130 = vmatmul.mubr.f32.gmra.mrb[0].mxu0 %v2737
    %v3131 = vpop.f32.mrb[0].mxu0
    %v3132 = vadd.f32 0.0, %v3131
    %v3133 = vpop.f32.mrb[0].mxu0
    %v3134 = vadd.f32 0.0, %v3133
    %3135 = vmatprep.mubr.f32.mxu0 0.0
    %3136 = vmatmul.mubr.f32.gmra.mrb[0].mxu0 %v2740
    %v3137 = vpop.f32.mrb[0].mxu0
    %v3138 = vadd.f32 0.0, %v3137
    %v3139 = vpop.f32.mrb[0].mxu0
    %v3140 = vadd.f32 0.0, %v3139
    %3141 = vmatprep.mubr.f32.mxu0 0.0
    %3142 = vmatmul.mubr.f32.gmra.mrb[0].mxu0 %v2743
    %v3143 = vpop.f32.mrb[0].mxu0
    %v3144 = vadd.f32 0.0, %v3143
    %v3145 = vpop.f32.mrb[0].mxu0
    %v3146 = vadd.f32 0.0, %v3145
    %3147 = vmatprep.mubr.f32.mxu0 0.0
    %3148 = vmatmul.mubr.f32.gmra.mrb[0].mxu0 %v2746
    %v3149 = vpop.f32.mrb[0].mxu0
    %v3150 = vadd.f32 0.0, %v3149
    %v3151 = vpop.f32.mrb[0].mxu0
    %v3152 = vadd.f32 0.0, %v3151
    %3153 = vmatprep.mubr.f32.mxu0 0.0
    %3154 = vmatmul.mubr.f32.gmra.mrb[0].mxu0 %v2749
    %v3155 = vpop.f32.mrb[0].mxu0
    %v3156 = vadd.f32 0.0, %v3155
    %v3157 = vpop.f32.mrb[0].mxu0
    %v3158 = vadd.f32 0.0, %v3157
    %3159 = vmatprep.mubr.f32.mxu0 0.0
    %3160 = vmatmul.mubr.f32.gmra.mrb[0].mxu0 %v2752
    %v3161 = vpop.f32.mrb[0].mxu0
    %v3162 = vadd.f32 0.0, %v3161
    %v3163 = vpop.f32.mrb[0].mxu0
    %v3164 = vadd.f32 0.0, %v3163
    %3165 = vmatprep.mubr.f32.mxu0 0.0
    %3166 = vmatmul.mubr.f32.gmra.mrb[0].mxu0 %v2755
    %v3167 = vpop.f32.mrb[0].mxu0
    %v3168 = vadd.f32 0.0, %v3167
    %v3169 = vpop.f32.mrb[0].mxu0
    %v3170 = vadd.f32 0.0, %v3169
    %3171 = vmatprep.mubr.f32.mxu0 0.0
    %3172 = vmatmul.mubr.f32.gmra.mrb[0].mxu0 %v2758
    %v3173 = vpop.f32.mrb[0].mxu0
    %v3174 = vadd.f32 0.0, %v3173
    %v3175 = vpop.f32.mrb[0].mxu0
    %v3176 = vadd.f32 0.0, %v3175
    %3177 = vmatprep.mubr.f32.mxu0 0.0
    %3178 = vmatmul.mubr.f32.gmra.mrb[0].mxu0 %v2761
    %v3179 = vpop.f32.mrb[0].mxu0
    %v3180 = vadd.f32 0.0, %v3179
    %v3181 = vpop.f32.mrb[0].mxu0
    %v3182 = vadd.f32 0.0, %v3181
    %3183 = vmatprep.mubr.f32.mxu0 0.0
    %3184 = vmatmul.mubr.f32.gmra.mrb[0].mxu0 %v2764
    %v3185 = vpop.f32.mrb[0].mxu0
    %v3186 = vadd.f32 0.0, %v3185
    %v3187 = vpop.f32.mrb[0].mxu0
    %v3188 = vadd.f32 0.0, %v3187
    %3189 = vmatprep.mubr.f32.mxu0 0.0
    %3190 = vmatmul.mubr.f32.gmra.mrb[0].mxu0 %v2767
    %v3191 = vpop.f32.mrb[0].mxu0
    %v3192 = vadd.f32 0.0, %v3191
    %v3193 = vpop.f32.mrb[0].mxu0
    %v3194 = vadd.f32 0.0, %v3193
    %3195 = vmatprep.mubr.f32.mxu0 0.0
    %3196 = vmatmul.mubr.f32.gmra.mrb[0].mxu0 %v2770
    %v3197 = vpop.f32.mrb[0].mxu0
    %v3198 = vadd.f32 0.0, %v3197
    %v3199 = vpop.f32.mrb[0].mxu0
    %v3200 = vadd.f32 0.0, %v3199
    %3201 = vmatprep.mubr.f32.mxu0 0.0
    %3202 = vmatmul.mubr.f32.gmra.mrb[0].mxu0 %v2773
    %v3203 = vpop.f32.mrb[0].mxu0
    %v3204 = vadd.f32 0.0, %v3203
    %v3205 = vpop.f32.mrb[0].mxu0
    %v3206 = vadd.f32 0.0, %v3205
    %3207 = vmatprep.mubr.f32.mxu0 0.0
    %3208 = vmatmul.mubr.f32.gmra.mrb[0].mxu0 %v2776
    %v3209 = vpop.f32.mrb[0].mxu0
    %v3210 = vadd.f32 0.0, %v3209
    %v3211 = vpop.f32.mrb[0].mxu0
    %v3212 = vadd.f32 0.0, %v3211
    %3213 = vmatprep.mubr.f32.mxu0 0.0
    %3214 = vmatmul.mubr.f32.gmra.mrb[0].mxu0 %v2779
    %v3215 = vpop.f32.mrb[0].mxu0
    %v3216 = vadd.f32 0.0, %v3215
    %v3217 = vpop.f32.mrb[0].mxu0
    %v3218 = vadd.f32 0.0, %v3217
    %3219 = vmatprep.mubr.f32.mxu0 0.0
    %3220 = vmatmul.mubr.f32.gmra.mrb[0].mxu0 %v2782
    %v3221 = vpop.f32.mrb[0].mxu0
    %v3222 = vadd.f32 0.0, %v3221
    %v3223 = vpop.f32.mrb[0].mxu0
    %v3224 = vadd.f32 0.0, %v3223
    %3225 = vmatprep.mubr.f32.mxu0 0.0
    %3226 = vmatmul.mubr.f32.gmra.mrb[0].mxu0 %v2785
    %v3227 = vpop.f32.mrb[0].mxu0
    %v3228 = vadd.f32 0.0, %v3227
    %v3229 = vpop.f32.mrb[0].mxu0
    %v3230 = vadd.f32 0.0, %v3229
    %3231 = vmatprep.mubr.f32.mxu0 0.0
    %3232 = vmatmul.mubr.f32.gmra.mrb[0].mxu0 %v2788
    %v3233 = vpop.f32.mrb[0].mxu0
    %v3234 = vadd.f32 0.0, %v3233
    %v3235 = vpop.f32.mrb[0].mxu0
    %v3236 = vadd.f32 0.0, %v3235
    %3237 = vmatprep.mubr.f32.mxu0 0.0
    %3238 = vmatmul.mubr.f32.gmra.mrb[0].mxu0 %v2791
    %v3239 = vpop.f32.mrb[0].mxu0
    %v3240 = vadd.f32 0.0, %v3239
    %v3241 = vpop.f32.mrb[0].mxu0
    %v3242 = vadd.f32 0.0, %v3241
    %3243 = vmatprep.mubr.f32.mxu0 0.0
    %3244 = vmatmul.mubr.f32.gmra.mrb[0].mxu0 %v2794
    %v3245 = vpop.f32.mrb[0].mxu0
    %v3246 = vadd.f32 0.0, %v3245
    %v3247 = vpop.f32.mrb[0].mxu0
    %v3248 = vadd.f32 0.0, %v3247
    %3249 = vmatprep.mubr.f32.mxu0 0.0
    %3250 = vmatmul.mubr.f32.gmra.mrb[0].mxu0 %v2797
    %v3251 = vpop.f32.mrb[0].mxu0
    %v3252 = vadd.f32 0.0, %v3251
    %v3253 = vpop.f32.mrb[0].mxu0
    %v3254 = vadd.f32 0.0, %v3253
    %3255 = vmatprep.mubr.f32.mxu0 0.0
    %3256 = vmatmul.mubr.f32.gmra.mrb[0].mxu0 %v2800
    %v3257 = vpop.f32.mrb[0].mxu0
    %v3258 = vadd.f32 0.0, %v3257
    %v3259 = vpop.f32.mrb[0].mxu0
    %v3260 = vadd.f32 0.0, %v3259
    %3261 = vmatprep.mubr.f32.mxu0 0.0
    %3262 = vmatmul.mubr.f32.gmra.mrb[0].mxu0 %v2803
    %v3263 = vpop.f32.mrb[0].mxu0
    %v3264 = vadd.f32 0.0, %v3263
    %v3265 = vpop.f32.mrb[0].mxu0
    %v3266 = vadd.f32 0.0, %v3265
    %3267 = vmatprep.mubr.f32.mxu0 0.0
    %3268 = vmatmul.mubr.f32.gmra.mrb[0].mxu0 %v2806
    %v3269 = vpop.f32.mrb[0].mxu0
    %v3270 = vadd.f32 0.0, %v3269
    %v3271 = vpop.f32.mrb[0].mxu0
    %v3272 = vadd.f32 0.0, %v3271
    %3273 = vdwg.mxu0
    %v3274 = vld [vmem:[#allocation2] sm:$0xff]
    %v3275 = vld [vmem:[#allocation2 + $0x8] sm:$0xff]
    %v3276 = vld [vmem:[#allocation2 + $0x10] sm:$0xff]
    %v3277 = vld [vmem:[#allocation2 + $0x18] sm:$0xff]
    %v3278 = vld [vmem:[#allocation2 + $0x20] sm:$0xff]
    %v3279 = vld [vmem:[#allocation2 + $0x28] sm:$0xff]
    %v3280 = vld [vmem:[#allocation2 + $0x30] sm:$0xff]
    %v3281 = vld [vmem:[#allocation2 + $0x38] sm:$0xff]
    %v3282 = vld [vmem:[#allocation2 + $0x40] sm:$0xff]
    %v3283 = vld [vmem:[#allocation2 + $0x48] sm:$0xff]
    %v3284 = vld [vmem:[#allocation2 + $0x50] sm:$0xff]
    %v3285 = vld [vmem:[#allocation2 + $0x58] sm:$0xff]
    %v3286 = vld [vmem:[#allocation2 + $0x60] sm:$0xff]
    %v3287 = vld [vmem:[#allocation2 + $0x68] sm:$0xff]
    %v3288 = vld [vmem:[#allocation2 + $0x70] sm:$0xff]
    %v3289 = vld [vmem:[#allocation2 + $0x78] sm:$0xff]
    %v3290 = vld [vmem:[#allocation2 + $0x80] sm:$0xff]
    %v3291 = vld [vmem:[#allocation2 + $0x88] sm:$0xff]
    %v3292 = vld [vmem:[#allocation2 + $0x90] sm:$0xff]
    %v3293 = vld [vmem:[#allocation2 + $0x98] sm:$0xff]
    %v3294 = vld [vmem:[#allocation2 + $0xa0] sm:$0xff]
    %v3295 = vld [vmem:[#allocation2 + $0xa8] sm:$0xff]
    %v3296 = vld [vmem:[#allocation2 + $0xb0] sm:$0xff]
    %v3297 = vld [vmem:[#allocation2 + $0xb8] sm:$0xff]
    %v3298 = vld [vmem:[#allocation2 + $0xc0] sm:$0xff]
    %v3299 = vld [vmem:[#allocation2 + $0xc8] sm:$0xff]
    %v3300 = vld [vmem:[#allocation2 + $0xd0] sm:$0xff]
    %v3301 = vld [vmem:[#allocation2 + $0xd8] sm:$0xff]
    %v3302 = vld [vmem:[#allocation2 + $0xe0] sm:$0xff]
    %v3303 = vld [vmem:[#allocation2 + $0xe8] sm:$0xff]
    %v3304 = vld [vmem:[#allocation2 + $0xf0] sm:$0xff]
    %v3305 = vld [vmem:[#allocation2 + $0xf8] sm:$0xff]
    %v3306 = vld [vmem:[#allocation2 + $0x100] sm:$0xff]
    %v3307 = vld [vmem:[#allocation2 + $0x108] sm:$0xff]
    %v3308 = vld [vmem:[#allocation2 + $0x110] sm:$0xff]
    %v3309 = vld [vmem:[#allocation2 + $0x118] sm:$0xff]
    %v3310 = vld [vmem:[#allocation2 + $0x120] sm:$0xff]
    %v3311 = vld [vmem:[#allocation2 + $0x128] sm:$0xff]
    %v3312 = vld [vmem:[#allocation2 + $0x130] sm:$0xff]
    %v3313 = vld [vmem:[#allocation2 + $0x138] sm:$0xff]
    %v3314 = vld [vmem:[#allocation2 + $0x140] sm:$0xff]
    %v3315 = vld [vmem:[#allocation2 + $0x148] sm:$0xff]
    %v3316 = vld [vmem:[#allocation2 + $0x150] sm:$0xff]
    %v3317 = vld [vmem:[#allocation2 + $0x158] sm:$0xff]
    %v3318 = vld [vmem:[#allocation2 + $0x160] sm:$0xff]
    %v3319 = vld [vmem:[#allocation2 + $0x168] sm:$0xff]
    %v3320 = vld [vmem:[#allocation2 + $0x170] sm:$0xff]
    %v3321 = vld [vmem:[#allocation2 + $0x178] sm:$0xff]
    %v3322 = vld [vmem:[#allocation2 + $0x180] sm:$0xff]
    %v3323 = vld [vmem:[#allocation2 + $0x188] sm:$0xff]
    %v3324 = vld [vmem:[#allocation2 + $0x190] sm:$0xff]
    %v3325 = vld [vmem:[#allocation2 + $0x198] sm:$0xff]
    %v3326 = vld [vmem:[#allocation2 + $0x1a0] sm:$0xff]
    %v3327 = vld [vmem:[#allocation2 + $0x1a8] sm:$0xff]
    %v3328 = vld [vmem:[#allocation2 + $0x1b0] sm:$0xff]
    %v3329 = vld [vmem:[#allocation2 + $0x1b8] sm:$0xff]
    %v3330 = vld [vmem:[#allocation2 + $0x1c0] sm:$0xff]
    %v3331 = vld [vmem:[#allocation2 + $0x1c8] sm:$0xff]
    %v3332 = vld [vmem:[#allocation2 + $0x1d0] sm:$0xff]
    %v3333 = vld [vmem:[#allocation2 + $0x1d8] sm:$0xff]
    %v3334 = vld [vmem:[#allocation2 + $0x1e0] sm:$0xff]
    %v3335 = vld [vmem:[#allocation2 + $0x1e8] sm:$0xff]
    %v3336 = vld [vmem:[#allocation2 + $0x1f0] sm:$0xff]
    %v3337 = vld [vmem:[#allocation2 + $0x1f8] sm:$0xff]
    %v3338 = vld [vmem:[#allocation2 + $0x200] sm:$0xff]
    %v3339 = vld [vmem:[#allocation2 + $0x208] sm:$0xff]
    %v3340 = vld [vmem:[#allocation2 + $0x210] sm:$0xff]
    %v3341 = vld [vmem:[#allocation2 + $0x218] sm:$0xff]
    %v3342 = vld [vmem:[#allocation2 + $0x220] sm:$0xff]
    %v3343 = vld [vmem:[#allocation2 + $0x228] sm:$0xff]
    %v3344 = vld [vmem:[#allocation2 + $0x230] sm:$0xff]
    %v3345 = vld [vmem:[#allocation2 + $0x238] sm:$0xff]
    %v3346 = vld [vmem:[#allocation2 + $0x240] sm:$0xff]
    %v3347 = vld [vmem:[#allocation2 + $0x248] sm:$0xff]
    %v3348 = vld [vmem:[#allocation2 + $0x250] sm:$0xff]
    %v3349 = vld [vmem:[#allocation2 + $0x258] sm:$0xff]
    %v3350 = vld [vmem:[#allocation2 + $0x260] sm:$0xff]
    %v3351 = vld [vmem:[#allocation2 + $0x268] sm:$0xff]
    %v3352 = vld [vmem:[#allocation2 + $0x270] sm:$0xff]
    %v3353 = vld [vmem:[#allocation2 + $0x278] sm:$0xff]
    %v3354 = vld [vmem:[#allocation2 + $0x280] sm:$0xff]
    %v3355 = vld [vmem:[#allocation2 + $0x288] sm:$0xff]
    %v3356 = vld [vmem:[#allocation2 + $0x290] sm:$0xff]
    %v3357 = vld [vmem:[#allocation2 + $0x298] sm:$0xff]
    %v3358 = vld [vmem:[#allocation2 + $0x2a0] sm:$0xff]
    %v3359 = vld [vmem:[#allocation2 + $0x2a8] sm:$0xff]
    %v3360 = vld [vmem:[#allocation2 + $0x2b0] sm:$0xff]
    %v3361 = vld [vmem:[#allocation2 + $0x2b8] sm:$0xff]
    %v3362 = vld [vmem:[#allocation2 + $0x2c0] sm:$0xff]
    %v3363 = vld [vmem:[#allocation2 + $0x2c8] sm:$0xff]
    %v3364 = vld [vmem:[#allocation2 + $0x2d0] sm:$0xff]
    %v3365 = vld [vmem:[#allocation2 + $0x2d8] sm:$0xff]
    %v3366 = vld [vmem:[#allocation2 + $0x2e0] sm:$0xff]
    %v3367 = vld [vmem:[#allocation2 + $0x2e8] sm:$0xff]
    %v3368 = vld [vmem:[#allocation2 + $0x2f0] sm:$0xff]
    %v3369 = vld [vmem:[#allocation2 + $0x2f8] sm:$0xff]
    %v3370 = vld [vmem:[#allocation2 + $0x300] sm:$0xff]
    %v3371 = vld [vmem:[#allocation2 + $0x308] sm:$0xff]
    %v3372 = vld [vmem:[#allocation2 + $0x310] sm:$0xff]
    %v3373 = vld [vmem:[#allocation2 + $0x318] sm:$0xff]
    %v3374 = vld [vmem:[#allocation2 + $0x320] sm:$0xff]
    %v3375 = vld [vmem:[#allocation2 + $0x328] sm:$0xff]
    %v3376 = vld [vmem:[#allocation2 + $0x330] sm:$0xff]
    %v3377 = vld [vmem:[#allocation2 + $0x338] sm:$0xff]
    %v3378 = vld [vmem:[#allocation2 + $0x340] sm:$0xff]
    %v3379 = vld [vmem:[#allocation2 + $0x348] sm:$0xff]
    %v3380 = vld [vmem:[#allocation2 + $0x350] sm:$0xff]
    %v3381 = vld [vmem:[#allocation2 + $0x358] sm:$0xff]
    %v3382 = vld [vmem:[#allocation2 + $0x360] sm:$0xff]
    %v3383 = vld [vmem:[#allocation2 + $0x368] sm:$0xff]
    %v3384 = vld [vmem:[#allocation2 + $0x370] sm:$0xff]
    %v3385 = vld [vmem:[#allocation2 + $0x378] sm:$0xff]
    %v3386 = vadd.f32 %v3274, %v2875
    %v3387 = vadd.f32 %v3275, %v2877
    %v3388 = vadd.f32 %v3276, %v3108
    %v3389 = vadd.f32 %v3277, %v3110
    %v3390 = vadd.f32 %v3278, %v2881
    %v3391 = vadd.f32 %v3279, %v2883
    %v3392 = vadd.f32 %v3280, %v3114
    %v3393 = vadd.f32 %v3281, %v3116
    %v3394 = vadd.f32 %v3282, %v2887
    %v3395 = vadd.f32 %v3283, %v2889
    %v3396 = vadd.f32 %v3284, %v3120
    %v3397 = vadd.f32 %v3285, %v3122
    %v3398 = vadd.f32 %v3286, %v2893
    %v3399 = vadd.f32 %v3287, %v2895
    %v3400 = vadd.f32 %v3288, %v3126
    %v3401 = vadd.f32 %v3289, %v3128
    %v3402 = vadd.f32 %v3290, %v2899
    %v3403 = vadd.f32 %v3291, %v2901
    %v3404 = vadd.f32 %v3292, %v3132
    %v3405 = vadd.f32 %v3293, %v3134
    %v3406 = vadd.f32 %v3294, %v2905
    %v3407 = vadd.f32 %v3295, %v2907
    %v3408 = vadd.f32 %v3296, %v3138
    %v3409 = vadd.f32 %v3297, %v3140
    %v3410 = vadd.f32 %v3298, %v2911
    %v3411 = vadd.f32 %v3299, %v2913
    %v3412 = vadd.f32 %v3300, %v3144
    %v3413 = vadd.f32 %v3301, %v3146
    %v3414 = vadd.f32 %v3302, %v2917
    %v3415 = vadd.f32 %v3303, %v2919
    %v3416 = vadd.f32 %v3304, %v3150
    %v3417 = vadd.f32 %v3305, %v3152
    %v3418 = vadd.f32 %v3306, %v2923
    %v3419 = vadd.f32 %v3307, %v2925
    %v3420 = vadd.f32 %v3308, %v3156
    %v3421 = vadd.f32 %v3309, %v3158
    %v3422 = vadd.f32 %v3310, %v2929
    %v3423 = vadd.f32 %v3311, %v2931
    %v3424 = vadd.f32 %v3312, %v3162
    %v3425 = vadd.f32 %v3313, %v3164
    %v3426 = vadd.f32 %v3314, %v2935
    %v3427 = vadd.f32 %v3315, %v2937
    %v3428 = vadd.f32 %v3316, %v3168
    %v3429 = vadd.f32 %v3317, %v3170
    %v3430 = vadd.f32 %v3318, %v2941
    %v3431 = vadd.f32 %v3319, %v2943
    %v3432 = vadd.f32 %v3320, %v3174
    %v3433 = vadd.f32 %v3321, %v3176
    %v3434 = vadd.f32 %v3322, %v2947
    %v3435 = vadd.f32 %v3323, %v2949
    %v3436 = vadd.f32 %v3324, %v3180
    %v3437 = vadd.f32 %v3325, %v3182
    %v3438 = vadd.f32 %v3326, %v2953
    %v3439 = vadd.f32 %v3327, %v2955
    %v3440 = vadd.f32 %v3328, %v3186
    %v3441 = vadd.f32 %v3329, %v3188
    %v3442 = vadd.f32 %v3330, %v2959
    %v3443 = vadd.f32 %v3331, %v2961
    %v3444 = vadd.f32 %v3332, %v3192
    %v3445 = vadd.f32 %v3333, %v3194
    %v3446 = vadd.f32 %v3334, %v2965
    %v3447 = vadd.f32 %v3335, %v2967
    %v3448 = vadd.f32 %v3336, %v3198
    %v3449 = vadd.f32 %v3337, %v3200
    %v3450 = vadd.f32 %v3338, %v2971
    %v3451 = vadd.f32 %v3339, %v2973
    %v3452 = vadd.f32 %v3340, %v3204
    %v3453 = vadd.f32 %v3341, %v3206
    %v3454 = vadd.f32 %v3342, %v2977
    %v3455 = vadd.f32 %v3343, %v2979
    %v3456 = vadd.f32 %v3344, %v3210
    %v3457 = vadd.f32 %v3345, %v3212
    %v3458 = vadd.f32 %v3346, %v2983
    %v3459 = vadd.f32 %v3347, %v2985
    %v3460 = vadd.f32 %v3348, %v3216
    %v3461 = vadd.f32 %v3349, %v3218
    %v3462 = vadd.f32 %v3350, %v2989
    %v3463 = vadd.f32 %v3351, %v2991
    %v3464 = vadd.f32 %v3352, %v3222
    %v3465 = vadd.f32 %v3353, %v3224
    %v3466 = vadd.f32 %v3354, %v2995
    %v3467 = vadd.f32 %v3355, %v2997
    %v3468 = vadd.f32 %v3356, %v3228
    %v3469 = vadd.f32 %v3357, %v3230
    %v3470 = vadd.f32 %v3358, %v3001
    %v3471 = vadd.f32 %v3359, %v3003
    %v3472 = vadd.f32 %v3360, %v3234
    %v3473 = vadd.f32 %v3361, %v3236
    %v3474 = vadd.f32 %v3362, %v3007
    %v3475 = vadd.f32 %v3363, %v3009
    %v3476 = vadd.f32 %v3364, %v3240
    %v3477 = vadd.f32 %v3365, %v3242
    %v3478 = vadd.f32 %v3366, %v3013
    %v3479 = vadd.f32 %v3367, %v3015
    %v3480 = vadd.f32 %v3368, %v3246
    %v3481 = vadd.f32 %v3369, %v3248
    %v3482 = vadd.f32 %v3370, %v3019
    %v3483 = vadd.f32 %v3371, %v3021
    %v3484 = vadd.f32 %v3372, %v3252
    %v3485 = vadd.f32 %v3373, %v3254
    %v3486 = vadd.f32 %v3374, %v3025
    %v3487 = vadd.f32 %v3375, %v3027
    %v3488 = vadd.f32 %v3376, %v3258
    %v3489 = vadd.f32 %v3377, %v3260
    %v3490 = vadd.f32 %v3378, %v3031
    %v3491 = vadd.f32 %v3379, %v3033
    %v3492 = vadd.f32 %v3380, %v3264
    %v3493 = vadd.f32 %v3381, %v3266
    %v3494 = vadd.f32 %v3382, %v3037
    %v3495 = vadd.f32 %v3383, %v3039
    %v3496 = vadd.f32 %v3384, %v3270
    %v3497 = vadd.f32 %v3385, %v3272
    %3498 = vst [vmem:[#allocation2] sm:$0xff] %v3386
    %3499 = vst [vmem:[#allocation2 + $0x8] sm:$0xff] %v3387
    %3500 = vst [vmem:[#allocation2 + $0x10] sm:$0xff] %v3388
    %3501 = vst [vmem:[#allocation2 + $0x18] sm:$0xff] %v3389
    %3502 = vst [vmem:[#allocation2 + $0x20] sm:$0xff] %v3390
    %3503 = vst [vmem:[#allocation2 + $0x28] sm:$0xff] %v3391
    %3504 = vst [vmem:[#allocation2 + $0x30] sm:$0xff] %v3392
    %3505 = vst [vmem:[#allocation2 + $0x38] sm:$0xff] %v3393
    %3506 = vst [vmem:[#allocation2 + $0x40] sm:$0xff] %v3394
    %3507 = vst [vmem:[#allocation2 + $0x48] sm:$0xff] %v3395
    %3508 = vst [vmem:[#allocation2 + $0x50] sm:$0xff] %v3396
    %3509 = vst [vmem:[#allocation2 + $0x58] sm:$0xff] %v3397
    %3510 = vst [vmem:[#allocation2 + $0x60] sm:$0xff] %v3398
    %3511 = vst [vmem:[#allocation2 + $0x68] sm:$0xff] %v3399
    %3512 = vst [vmem:[#allocation2 + $0x70] sm:$0xff] %v3400
    %3513 = vst [vmem:[#allocation2 + $0x78] sm:$0xff] %v3401
    %3514 = vst [vmem:[#allocation2 + $0x80] sm:$0xff] %v3402
    %3515 = vst [vmem:[#allocation2 + $0x88] sm:$0xff] %v3403
    %3516 = vst [vmem:[#allocation2 + $0x90] sm:$0xff] %v3404
    %3517 = vst [vmem:[#allocation2 + $0x98] sm:$0xff] %v3405
    %3518 = vst [vmem:[#allocation2 + $0xa0] sm:$0xff] %v3406
    %3519 = vst [vmem:[#allocation2 + $0xa8] sm:$0xff] %v3407
    %3520 = vst [vmem:[#allocation2 + $0xb0] sm:$0xff] %v3408
    %3521 = vst [vmem:[#allocation2 + $0xb8] sm:$0xff] %v3409
    %3522 = vst [vmem:[#allocation2 + $0xc0] sm:$0xff] %v3410
    %3523 = vst [vmem:[#allocation2 + $0xc8] sm:$0xff] %v3411
    %3524 = vst [vmem:[#allocation2 + $0xd0] sm:$0xff] %v3412
    %3525 = vst [vmem:[#allocation2 + $0xd8] sm:$0xff] %v3413
    %3526 = vst [vmem:[#allocation2 + $0xe0] sm:$0xff] %v3414
    %3527 = vst [vmem:[#allocation2 + $0xe8] sm:$0xff] %v3415
    %3528 = vst [vmem:[#allocation2 + $0xf0] sm:$0xff] %v3416
    %3529 = vst [vmem:[#allocation2 + $0xf8] sm:$0xff] %v3417
    %3530 = vst [vmem:[#allocation2 + $0x100] sm:$0xff] %v3418
    %3531 = vst [vmem:[#allocation2 + $0x108] sm:$0xff] %v3419
    %3532 = vst [vmem:[#allocation2 + $0x110] sm:$0xff] %v3420
    %3533 = vst [vmem:[#allocation2 + $0x118] sm:$0xff] %v3421
    %3534 = vst [vmem:[#allocation2 + $0x120] sm:$0xff] %v3422
    %3535 = vst [vmem:[#allocation2 + $0x128] sm:$0xff] %v3423
    %3536 = vst [vmem:[#allocation2 + $0x130] sm:$0xff] %v3424
    %3537 = vst [vmem:[#allocation2 + $0x138] sm:$0xff] %v3425
    %3538 = vst [vmem:[#allocation2 + $0x140] sm:$0xff] %v3426
    %3539 = vst [vmem:[#allocation2 + $0x148] sm:$0xff] %v3427
    %3540 = vst [vmem:[#allocation2 + $0x150] sm:$0xff] %v3428
    %3541 = vst [vmem:[#allocation2 + $0x158] sm:$0xff] %v3429
    %3542 = vst [vmem:[#allocation2 + $0x160] sm:$0xff] %v3430
    %3543 = vst [vmem:[#allocation2 + $0x168] sm:$0xff] %v3431
    %3544 = vst [vmem:[#allocation2 + $0x170] sm:$0xff] %v3432
    %3545 = vst [vmem:[#allocation2 + $0x178] sm:$0xff] %v3433
    %3546 = vst [vmem:[#allocation2 + $0x180] sm:$0xff] %v3434
    %3547 = vst [vmem:[#allocation2 + $0x188] sm:$0xff] %v3435
    %3548 = vst [vmem:[#allocation2 + $0x190] sm:$0xff] %v3436
    %3549 = vst [vmem:[#allocation2 + $0x198] sm:$0xff] %v3437
    %3550 = vst [vmem:[#allocation2 + $0x1a0] sm:$0xff] %v3438
    %3551 = vst [vmem:[#allocation2 + $0x1a8] sm:$0xff] %v3439
    %3552 = vst [vmem:[#allocation2 + $0x1b0] sm:$0xff] %v3440
    %3553 = vst [vmem:[#allocation2 + $0x1b8] sm:$0xff] %v3441
    %3554 = vst [vmem:[#allocation2 + $0x1c0] sm:$0xff] %v3442
    %3555 = vst [vmem:[#allocation2 + $0x1c8] sm:$0xff] %v3443
    %3556 = vst [vmem:[#allocation2 + $0x1d0] sm:$0xff] %v3444
    %3557 = vst [vmem:[#allocation2 + $0x1d8] sm:$0xff] %v3445
    %3558 = vst [vmem:[#allocation2 + $0x1e0] sm:$0xff] %v3446
    %3559 = vst [vmem:[#allocation2 + $0x1e8] sm:$0xff] %v3447
    %3560 = vst [vmem:[#allocation2 + $0x1f0] sm:$0xff] %v3448
    %3561 = vst [vmem:[#allocation2 + $0x1f8] sm:$0xff] %v3449
    %3562 = vst [vmem:[#allocation2 + $0x200] sm:$0xff] %v3450
    %3563 = vst [vmem:[#allocation2 + $0x208] sm:$0xff] %v3451
    %3564 = vst [vmem:[#allocation2 + $0x210] sm:$0xff] %v3452
    %3565 = vst [vmem:[#allocation2 + $0x218] sm:$0xff] %v3453
    %3566 = vst [vmem:[#allocation2 + $0x220] sm:$0xff] %v3454
    %3567 = vst [vmem:[#allocation2 + $0x228] sm:$0xff] %v3455
    %3568 = vst [vmem:[#allocation2 + $0x230] sm:$0xff] %v3456
    %3569 = vst [vmem:[#allocation2 + $0x238] sm:$0xff] %v3457
    %3570 = vst [vmem:[#allocation2 + $0x240] sm:$0xff] %v3458
    %3571 = vst [vmem:[#allocation2 + $0x248] sm:$0xff] %v3459
    %3572 = vst [vmem:[#allocation2 + $0x250] sm:$0xff] %v3460
    %3573 = vst [vmem:[#allocation2 + $0x258] sm:$0xff] %v3461
    %3574 = vst [vmem:[#allocation2 + $0x260] sm:$0xff] %v3462
    %3575 = vst [vmem:[#allocation2 + $0x268] sm:$0xff] %v3463
    %3576 = vst [vmem:[#allocation2 + $0x270] sm:$0xff] %v3464
    %3577 = vst [vmem:[#allocation2 + $0x278] sm:$0xff] %v3465
    %3578 = vst [vmem:[#allocation2 + $0x280] sm:$0xff] %v3466
    %3579 = vst [vmem:[#allocation2 + $0x288] sm:$0xff] %v3467
    %3580 = vst [vmem:[#allocation2 + $0x290] sm:$0xff] %v3468
    %3581 = vst [vmem:[#allocation2 + $0x298] sm:$0xff] %v3469
    %3582 = vst [vmem:[#allocation2 + $0x2a0] sm:$0xff] %v3470
    %3583 = vst [vmem:[#allocation2 + $0x2a8] sm:$0xff] %v3471
    %3584 = vst [vmem:[#allocation2 + $0x2b0] sm:$0xff] %v3472
    %3585 = vst [vmem:[#allocation2 + $0x2b8] sm:$0xff] %v3473
    %3586 = vst [vmem:[#allocation2 + $0x2c0] sm:$0xff] %v3474
    %3587 = vst [vmem:[#allocation2 + $0x2c8] sm:$0xff] %v3475
    %3588 = vst [vmem:[#allocation2 + $0x2d0] sm:$0xff] %v3476
    %3589 = vst [vmem:[#allocation2 + $0x2d8] sm:$0xff] %v3477
    %3590 = vst [vmem:[#allocation2 + $0x2e0] sm:$0xff] %v3478
    %3591 = vst [vmem:[#allocation2 + $0x2e8] sm:$0xff] %v3479
    %3592 = vst [vmem:[#allocation2 + $0x2f0] sm:$0xff] %v3480
    %3593 = vst [vmem:[#allocation2 + $0x2f8] sm:$0xff] %v3481
    %3594 = vst [vmem:[#allocation2 + $0x300] sm:$0xff] %v3482
    %3595 = vst [vmem:[#allocation2 + $0x308] sm:$0xff] %v3483
    %3596 = vst [vmem:[#allocation2 + $0x310] sm:$0xff] %v3484
    %3597 = vst [vmem:[#allocation2 + $0x318] sm:$0xff] %v3485
    %3598 = vst [vmem:[#allocation2 + $0x320] sm:$0xff] %v3486
    %3599 = vst [vmem:[#allocation2 + $0x328] sm:$0xff] %v3487
    %3600 = vst [vmem:[#allocation2 + $0x330] sm:$0xff] %v3488
    %3601 = vst [vmem:[#allocation2 + $0x338] sm:$0xff] %v3489
    %3602 = vst [vmem:[#allocation2 + $0x340] sm:$0xff] %v3490
    %3603 = vst [vmem:[#allocation2 + $0x348] sm:$0xff] %v3491
    %3604 = vst [vmem:[#allocation2 + $0x350] sm:$0xff] %v3492
    %3605 = vst [vmem:[#allocation2 + $0x358] sm:$0xff] %v3493
    %3606 = vst [vmem:[#allocation2 + $0x360] sm:$0xff] %v3494
    %3607 = vst [vmem:[#allocation2 + $0x368] sm:$0xff] %v3495
    %3608 = vst [vmem:[#allocation2 + $0x370] sm:$0xff] %v3496
    %3609 = vst [vmem:[#allocation2 + $0x378] sm:$0xff] %v3497
    %v3610 = vld [vmem:[%s0 + $0x20] sm:$0xff]
    %v3611 = vld [vmem:[%s0 + $0x28] sm:$0xff]
    %v3612 = vld [vmem:[%s0 + $0x30] sm:$0xff]
    %v3613 = vld [vmem:[%s0 + $0x38] sm:$0xff]
    %v3614 = vld [vmem:[%s0 + $0x40] sm:$0xff]
    %v3615 = vld [vmem:[%s0 + $0x48] sm:$0xff]
    %v3616 = vld [vmem:[%s0 + $0x50] sm:$0xff]
    %v3617 = vld [vmem:[%s0 + $0x58] sm:$0xff]
    %v3618 = vld [vmem:[%s0 + $0x60] sm:$0xff]
    %v3619 = vld [vmem:[%s0 + $0x68] sm:$0xff]
    %v3620 = vld [vmem:[%s0 + $0x70] sm:$0xff]
    %v3621 = vld [vmem:[%s0 + $0x78] sm:$0xff]
    %v3622 = vld [vmem:[%s0 + $0x80] sm:$0xff]
    %v3623 = vld [vmem:[%s0 + $0x88] sm:$0xff]
    %v3624 = vld [vmem:[%s0 + $0x90] sm:$0xff]
    %v3625 = vld [vmem:[%s0 + $0x98] sm:$0xff]
    %v3626 = vld [vmem:[%s0 + $0xa0] sm:$0xff]
    %v3627 = vld [vmem:[%s0 + $0xa8] sm:$0xff]
    %v3628 = vld [vmem:[%s0 + $0xb0] sm:$0xff]
    %v3629 = vld [vmem:[%s0 + $0xb8] sm:$0xff]
    %v3630 = vld [vmem:[%s0 + $0xc0] sm:$0xff]
    %v3631 = vld [vmem:[%s0 + $0xc8] sm:$0xff]
    %v3632 = vld [vmem:[%s0 + $0xd0] sm:$0xff]
    %v3633 = vld [vmem:[%s0 + $0xd8] sm:$0xff]
    %v3634 = vld [vmem:[%s0 + $0xe0] sm:$0xff]
    %v3635 = vld [vmem:[%s0 + $0xe8] sm:$0xff]
    %v3636 = vld [vmem:[%s0 + $0xf0] sm:$0xff]
    %v3637 = vld [vmem:[%s0 + $0xf8] sm:$0xff]
    %s3638 = scalar_lea.vmem [#allocation6], 512
    %v3639 = vld [vmem:[%s3638] sm:$0xff]
    %v3640 = vld [vmem:[%s3638 + $0x8] sm:$0xff]
    %v3641 = vld [vmem:[%s3638 + $0x10] sm:$0xff]
    %v3642 = vld [vmem:[%s3638 + $0x18] sm:$0xff]
    %v3643 = vld [vmem:[%s3638 + $0x20] sm:$0xff]
    %v3644 = vld [vmem:[%s3638 + $0x28] sm:$0xff]
    %v3645 = vld [vmem:[%s3638 + $0x30] sm:$0xff]
    %v3646 = vld [vmem:[%s3638 + $0x38] sm:$0xff]
    %v3647 = vld [vmem:[%s3638 + $0x40] sm:$0xff]
    %v3648 = vld [vmem:[%s3638 + $0x48] sm:$0xff]
    %v3649 = vld [vmem:[%s3638 + $0x50] sm:$0xff]
    %v3650 = vld [vmem:[%s3638 + $0x58] sm:$0xff]
    %v3651 = vld [vmem:[%s3638 + $0x60] sm:$0xff]
    %v3652 = vld [vmem:[%s3638 + $0x68] sm:$0xff]
    %v3653 = vld [vmem:[%s3638 + $0x70] sm:$0xff]
    %v3654 = vld [vmem:[%s3638 + $0x78] sm:$0xff]
    %v3656 = vsel %vm154, %v3610, 0
    %v3659 = vsel %vm154, %v3611, 0
    %v3662 = vsel %vm154, %v3612, 0
    %v3665 = vsel %vm154, %v3613, 0
    %v3668 = vsel %vm154, %v3614, 0
    %v3671 = vsel %vm154, %v3615, 0
    %v3674 = vsel %vm154, %v3616, 0
    %v3677 = vsel %vm154, %v3617, 0
    %v3680 = vsel %vm154, %v3618, 0
    %v3683 = vsel %vm154, %v3619, 0
    %v3686 = vsel %vm154, %v3620, 0
    %v3689 = vsel %vm154, %v3621, 0
    %v3692 = vsel %vm154, %v3622, 0
    %v3695 = vsel %vm154, %v3623, 0
    %v3698 = vsel %vm154, %v3624, 0
    %v3701 = vsel %vm154, %v3625, 0
    %v3704 = vsel %vm154, %v3626, 0
    %v3707 = vsel %vm154, %v3627, 0
    %v3710 = vsel %vm154, %v3628, 0
    %v3713 = vsel %vm154, %v3629, 0
    %v3716 = vsel %vm154, %v3630, 0
    %v3719 = vsel %vm154, %v3631, 0
    %v3722 = vsel %vm154, %v3632, 0
    %v3725 = vsel %vm154, %v3633, 0
    %v3728 = vsel %vm154, %v3634, 0
    %v3731 = vsel %vm154, %v3635, 0
    %v3734 = vsel %vm154, %v3636, 0
    %v3737 = vsel %vm154, %v3637, 0
    %3739 = vmatprep.subr.mxu0 %v3640
    %3740 = vmatpush1.msra.mxu0 %v3639
    %3741 = vmatprep.subr.mxu0 %v3644
    %3742 = vmatpush1.msra.mxu0 %v3643
    %3743 = vmatprep.subr.mxu0 %v3648
    %3744 = vmatpush1.msra.mxu0 %v3647
    %3745 = vmatprep.subr.mxu0 %v3652
    %3746 = vmatpush1.msra.mxu0 %v3651
    %3747 = vmatprep.subr.mxu0 0.0
    %3748 = vmatpush1.msra.mxu0 0.0
    %3749 = vmatprep.subr.mxu0 0.0
    %3750 = vmatpush1.msra.mxu0 0.0
    %3751 = vmatprep.subr.mxu0 0.0
    %3752 = vmatpush1.msra.mxu0 0.0
    %3753 = vmatprep.subr.mxu0 0.0
    %3754 = vmatpush1.msra.mxu0 0.0
    %3755 = vmatprep.subr.mxu0 0.0
    %3756 = vmatpush1.msra.mxu0 0.0
    %3757 = vmatprep.subr.mxu0 0.0
    %3758 = vmatpush1.msra.mxu0 0.0
    %3759 = vmatprep.subr.mxu0 0.0
    %3760 = vmatpush1.msra.mxu0 0.0
    %3761 = vmatprep.subr.mxu0 0.0
    %3762 = vmatpush1.msra.mxu0 0.0
    %3763 = vmatprep.subr.mxu0 0.0
    %3764 = vmatpush1.msra.mxu0 0.0
    %3765 = vmatprep.subr.mxu0 0.0
    %3766 = vmatpush1.msra.mxu0 0.0
    %3767 = vmatprep.subr.mxu0 0.0
    %3768 = vmatpush1.msra.mxu0 0.0
    %3769 = vmatprep.subr.mxu0 0.0
    %3770 = vmatpush1.msra.mxu0 0.0
    %3771 = vmatprep.subr.mxu0 0.0
    %3772 = vmatpush1.msra.mxu0 0.0
    %3773 = vmatprep.subr.mxu0 0.0
    %3774 = vmatpush1.msra.mxu0 0.0
    %3775 = vmatprep.subr.mxu0 0.0
    %3776 = vmatpush1.msra.mxu0 0.0
    %3777 = vmatprep.subr.mxu0 0.0
    %3778 = vmatpush1.msra.mxu0 0.0
    %3779 = vmatprep.subr.mxu0 0.0
    %3780 = vmatpush1.msra.mxu0 0.0
    %3781 = vmatprep.subr.mxu0 0.0
    %3782 = vmatpush1.msra.mxu0 0.0
    %3783 = vmatprep.subr.mxu0 0.0
    %3784 = vmatpush1.msra.mxu0 0.0
    %3785 = vmatprep.subr.mxu0 0.0
    %3786 = vmatpush1.msra.mxu0 0.0
    %3787 = vmatprep.subr.mxu0 0.0
    %3788 = vmatpush1.msra.mxu0 0.0
    %3789 = vmatprep.subr.mxu0 0.0
    %3790 = vmatpush1.msra.mxu0 0.0
    %3791 = vmatprep.subr.mxu0 0.0
    %3792 = vmatpush1.msra.mxu0 0.0
    %3793 = vmatprep.subr.mxu0 0.0
    %3794 = vmatpush1.msra.mxu0 0.0
    %3795 = vmatprep.subr.mxu0 0.0
    %3796 = vmatpush1.msra.mxu0 0.0
    %3797 = vmatprep.subr.mxu0 0.0
    %3798 = vmatpush1.msra.mxu0 0.0
    %3799 = vmatprep.subr.mxu0 0.0
    %3800 = vmatpush1.msra.mxu0 0.0
    %3801 = vmatprep.subr.mxu0 0.0
    %3802 = vmatpush1.msra.mxu0 0.0
    %3803 = vmatprep.mubr.f32.mxu0 0.0
    %3804 = vmatmul.mubr.f32.gmra.mrb[0].mxu0 %v3656
    %v3805 = vpop.f32.mrb[0].mxu0
    %v3806 = vadd.f32 0.0, %v3805
    %v3807 = vpop.f32.mrb[0].mxu0
    %v3808 = vadd.f32 0.0, %v3807
    %3809 = vmatprep.mubr.f32.mxu0 0.0
    %3810 = vmatmul.mubr.f32.gmra.mrb[0].mxu0 %v3659
    %v3811 = vpop.f32.mrb[0].mxu0
    %v3812 = vadd.f32 0.0, %v3811
    %v3813 = vpop.f32.mrb[0].mxu0
    %v3814 = vadd.f32 0.0, %v3813
    %3815 = vmatprep.mubr.f32.mxu0 0.0
    %3816 = vmatmul.mubr.f32.gmra.mrb[0].mxu0 %v3662
    %v3817 = vpop.f32.mrb[0].mxu0
    %v3818 = vadd.f32 0.0, %v3817
    %v3819 = vpop.f32.mrb[0].mxu0
    %v3820 = vadd.f32 0.0, %v3819
    %3821 = vmatprep.mubr.f32.mxu0 0.0
    %3822 = vmatmul.mubr.f32.gmra.mrb[0].mxu0 %v3665
    %v3823 = vpop.f32.mrb[0].mxu0
    %v3824 = vadd.f32 0.0, %v3823
    %v3825 = vpop.f32.mrb[0].mxu0
    %v3826 = vadd.f32 0.0, %v3825
    %3827 = vmatprep.mubr.f32.mxu0 0.0
    %3828 = vmatmul.mubr.f32.gmra.mrb[0].mxu0 %v3668
    %v3829 = vpop.f32.mrb[0].mxu0
    %v3830 = vadd.f32 0.0, %v3829
    %v3831 = vpop.f32.mrb[0].mxu0
    %v3832 = vadd.f32 0.0, %v3831
    %3833 = vmatprep.mubr.f32.mxu0 0.0
    %3834 = vmatmul.mubr.f32.gmra.mrb[0].mxu0 %v3671
    %v3835 = vpop.f32.mrb[0].mxu0
    %v3836 = vadd.f32 0.0, %v3835
    %v3837 = vpop.f32.mrb[0].mxu0
    %v3838 = vadd.f32 0.0, %v3837
    %3839 = vmatprep.mubr.f32.mxu0 0.0
    %3840 = vmatmul.mubr.f32.gmra.mrb[0].mxu0 %v3674
    %v3841 = vpop.f32.mrb[0].mxu0
    %v3842 = vadd.f32 0.0, %v3841
    %v3843 = vpop.f32.mrb[0].mxu0
    %v3844 = vadd.f32 0.0, %v3843
    %3845 = vmatprep.mubr.f32.mxu0 0.0
    %3846 = vmatmul.mubr.f32.gmra.mrb[0].mxu0 %v3677
    %v3847 = vpop.f32.mrb[0].mxu0
    %v3848 = vadd.f32 0.0, %v3847
    %v3849 = vpop.f32.mrb[0].mxu0
    %v3850 = vadd.f32 0.0, %v3849
    %3851 = vmatprep.mubr.f32.mxu0 0.0
    %3852 = vmatmul.mubr.f32.gmra.mrb[0].mxu0 %v3680
    %v3853 = vpop.f32.mrb[0].mxu0
    %v3854 = vadd.f32 0.0, %v3853
    %v3855 = vpop.f32.mrb[0].mxu0
    %v3856 = vadd.f32 0.0, %v3855
    %3857 = vmatprep.mubr.f32.mxu0 0.0
    %3858 = vmatmul.mubr.f32.gmra.mrb[0].mxu0 %v3683
    %v3859 = vpop.f32.mrb[0].mxu0
    %v3860 = vadd.f32 0.0, %v3859
    %v3861 = vpop.f32.mrb[0].mxu0
    %v3862 = vadd.f32 0.0, %v3861
    %3863 = vmatprep.mubr.f32.mxu0 0.0
    %3864 = vmatmul.mubr.f32.gmra.mrb[0].mxu0 %v3686
    %v3865 = vpop.f32.mrb[0].mxu0
    %v3866 = vadd.f32 0.0, %v3865
    %v3867 = vpop.f32.mrb[0].mxu0
    %v3868 = vadd.f32 0.0, %v3867
    %3869 = vmatprep.mubr.f32.mxu0 0.0
    %3870 = vmatmul.mubr.f32.gmra.mrb[0].mxu0 %v3689
    %v3871 = vpop.f32.mrb[0].mxu0
    %v3872 = vadd.f32 0.0, %v3871
    %v3873 = vpop.f32.mrb[0].mxu0
    %v3874 = vadd.f32 0.0, %v3873
    %3875 = vmatprep.mubr.f32.mxu0 0.0
    %3876 = vmatmul.mubr.f32.gmra.mrb[0].mxu0 %v3692
    %v3877 = vpop.f32.mrb[0].mxu0
    %v3878 = vadd.f32 0.0, %v3877
    %v3879 = vpop.f32.mrb[0].mxu0
    %v3880 = vadd.f32 0.0, %v3879
    %3881 = vmatprep.mubr.f32.mxu0 0.0
    %3882 = vmatmul.mubr.f32.gmra.mrb[0].mxu0 %v3695
    %v3883 = vpop.f32.mrb[0].mxu0
    %v3884 = vadd.f32 0.0, %v3883
    %v3885 = vpop.f32.mrb[0].mxu0
    %v3886 = vadd.f32 0.0, %v3885
    %3887 = vmatprep.mubr.f32.mxu0 0.0
    %3888 = vmatmul.mubr.f32.gmra.mrb[0].mxu0 %v3698
    %v3889 = vpop.f32.mrb[0].mxu0
    %v3890 = vadd.f32 0.0, %v3889
    %v3891 = vpop.f32.mrb[0].mxu0
    %v3892 = vadd.f32 0.0, %v3891
    %3893 = vmatprep.mubr.f32.mxu0 0.0
    %3894 = vmatmul.mubr.f32.gmra.mrb[0].mxu0 %v3701
    %v3895 = vpop.f32.mrb[0].mxu0
    %v3896 = vadd.f32 0.0, %v3895
    %v3897 = vpop.f32.mrb[0].mxu0
    %v3898 = vadd.f32 0.0, %v3897
    %3899 = vmatprep.mubr.f32.mxu0 0.0
    %3900 = vmatmul.mubr.f32.gmra.mrb[0].mxu0 %v3704
    %v3901 = vpop.f32.mrb[0].mxu0
    %v3902 = vadd.f32 0.0, %v3901
    %v3903 = vpop.f32.mrb[0].mxu0
    %v3904 = vadd.f32 0.0, %v3903
    %3905 = vmatprep.mubr.f32.mxu0 0.0
    %3906 = vmatmul.mubr.f32.gmra.mrb[0].mxu0 %v3707
    %v3907 = vpop.f32.mrb[0].mxu0
    %v3908 = vadd.f32 0.0, %v3907
    %v3909 = vpop.f32.mrb[0].mxu0
    %v3910 = vadd.f32 0.0, %v3909
    %3911 = vmatprep.mubr.f32.mxu0 0.0
    %3912 = vmatmul.mubr.f32.gmra.mrb[0].mxu0 %v3710
    %v3913 = vpop.f32.mrb[0].mxu0
    %v3914 = vadd.f32 0.0, %v3913
    %v3915 = vpop.f32.mrb[0].mxu0
    %v3916 = vadd.f32 0.0, %v3915
    %3917 = vmatprep.mubr.f32.mxu0 0.0
    %3918 = vmatmul.mubr.f32.gmra.mrb[0].mxu0 %v3713
    %v3919 = vpop.f32.mrb[0].mxu0
    %v3920 = vadd.f32 0.0, %v3919
    %v3921 = vpop.f32.mrb[0].mxu0
    %v3922 = vadd.f32 0.0, %v3921
    %3923 = vmatprep.mubr.f32.mxu0 0.0
    %3924 = vmatmul.mubr.f32.gmra.mrb[0].mxu0 %v3716
    %v3925 = vpop.f32.mrb[0].mxu0
    %v3926 = vadd.f32 0.0, %v3925
    %v3927 = vpop.f32.mrb[0].mxu0
    %v3928 = vadd.f32 0.0, %v3927
    %3929 = vmatprep.mubr.f32.mxu0 0.0
    %3930 = vmatmul.mubr.f32.gmra.mrb[0].mxu0 %v3719
    %v3931 = vpop.f32.mrb[0].mxu0
    %v3932 = vadd.f32 0.0, %v3931
    %v3933 = vpop.f32.mrb[0].mxu0
    %v3934 = vadd.f32 0.0, %v3933
    %3935 = vmatprep.mubr.f32.mxu0 0.0
    %3936 = vmatmul.mubr.f32.gmra.mrb[0].mxu0 %v3722
    %v3937 = vpop.f32.mrb[0].mxu0
    %v3938 = vadd.f32 0.0, %v3937
    %v3939 = vpop.f32.mrb[0].mxu0
    %v3940 = vadd.f32 0.0, %v3939
    %3941 = vmatprep.mubr.f32.mxu0 0.0
    %3942 = vmatmul.mubr.f32.gmra.mrb[0].mxu0 %v3725
    %v3943 = vpop.f32.mrb[0].mxu0
    %v3944 = vadd.f32 0.0, %v3943
    %v3945 = vpop.f32.mrb[0].mxu0
    %v3946 = vadd.f32 0.0, %v3945
    %3947 = vmatprep.mubr.f32.mxu0 0.0
    %3948 = vmatmul.mubr.f32.gmra.mrb[0].mxu0 %v3728
    %v3949 = vpop.f32.mrb[0].mxu0
    %v3950 = vadd.f32 0.0, %v3949
    %v3951 = vpop.f32.mrb[0].mxu0
    %v3952 = vadd.f32 0.0, %v3951
    %3953 = vmatprep.mubr.f32.mxu0 0.0
    %3954 = vmatmul.mubr.f32.gmra.mrb[0].mxu0 %v3731
    %v3955 = vpop.f32.mrb[0].mxu0
    %v3956 = vadd.f32 0.0, %v3955
    %v3957 = vpop.f32.mrb[0].mxu0
    %v3958 = vadd.f32 0.0, %v3957
    %3959 = vmatprep.mubr.f32.mxu0 0.0
    %3960 = vmatmul.mubr.f32.gmra.mrb[0].mxu0 %v3734
    %v3961 = vpop.f32.mrb[0].mxu0
    %v3962 = vadd.f32 0.0, %v3961
    %v3963 = vpop.f32.mrb[0].mxu0
    %v3964 = vadd.f32 0.0, %v3963
    %3965 = vmatprep.mubr.f32.mxu0 0.0
    %3966 = vmatmul.mubr.f32.gmra.mrb[0].mxu0 %v3737
    %v3967 = vpop.f32.mrb[0].mxu0
    %v3968 = vadd.f32 0.0, %v3967
    %v3969 = vpop.f32.mrb[0].mxu0
    %v3970 = vadd.f32 0.0, %v3969
    %3971 = vdwg.mxu0
    %3972 = vmatprep.subr.mxu0 %v3642
    %3973 = vmatpush1.msra.mxu0 %v3641
    %3974 = vmatprep.subr.mxu0 %v3646
    %3975 = vmatpush1.msra.mxu0 %v3645
    %3976 = vmatprep.subr.mxu0 %v3650
    %3977 = vmatpush1.msra.mxu0 %v3649
    %3978 = vmatprep.subr.mxu0 %v3654
    %3979 = vmatpush1.msra.mxu0 %v3653
    %3980 = vmatprep.subr.mxu0 0.0
    %3981 = vmatpush1.msra.mxu0 0.0
    %3982 = vmatprep.subr.mxu0 0.0
    %3983 = vmatpush1.msra.mxu0 0.0
    %3984 = vmatprep.subr.mxu0 0.0
    %3985 = vmatpush1.msra.mxu0 0.0
    %3986 = vmatprep.subr.mxu0 0.0
    %3987 = vmatpush1.msra.mxu0 0.0
    %3988 = vmatprep.subr.mxu0 0.0
    %3989 = vmatpush1.msra.mxu0 0.0
    %3990 = vmatprep.subr.mxu0 0.0
    %3991 = vmatpush1.msra.mxu0 0.0
    %3992 = vmatprep.subr.mxu0 0.0
    %3993 = vmatpush1.msra.mxu0 0.0
    %3994 = vmatprep.subr.mxu0 0.0
    %3995 = vmatpush1.msra.mxu0 0.0
    %3996 = vmatprep.subr.mxu0 0.0
    %3997 = vmatpush1.msra.mxu0 0.0
    %3998 = vmatprep.subr.mxu0 0.0
    %3999 = vmatpush1.msra.mxu0 0.0
    %4000 = vmatprep.subr.mxu0 0.0
    %4001 = vmatpush1.msra.mxu0 0.0
    %4002 = vmatprep.subr.mxu0 0.0
    %4003 = vmatpush1.msra.mxu0 0.0
    %4004 = vmatprep.subr.mxu0 0.0
    %4005 = vmatpush1.msra.mxu0 0.0
    %4006 = vmatprep.subr.mxu0 0.0
    %4007 = vmatpush1.msra.mxu0 0.0
    %4008 = vmatprep.subr.mxu0 0.0
    %4009 = vmatpush1.msra.mxu0 0.0
    %4010 = vmatprep.subr.mxu0 0.0
    %4011 = vmatpush1.msra.mxu0 0.0
    %4012 = vmatprep.subr.mxu0 0.0
    %4013 = vmatpush1.msra.mxu0 0.0
    %4014 = vmatprep.subr.mxu0 0.0
    %4015 = vmatpush1.msra.mxu0 0.0
    %4016 = vmatprep.subr.mxu0 0.0
    %4017 = vmatpush1.msra.mxu0 0.0
    %4018 = vmatprep.subr.mxu0 0.0
    %4019 = vmatpush1.msra.mxu0 0.0
    %4020 = vmatprep.subr.mxu0 0.0
    %4021 = vmatpush1.msra.mxu0 0.0
    %4022 = vmatprep.subr.mxu0 0.0
    %4023 = vmatpush1.msra.mxu0 0.0
    %4024 = vmatprep.subr.mxu0 0.0
    %4025 = vmatpush1.msra.mxu0 0.0
    %4026 = vmatprep.subr.mxu0 0.0
    %4027 = vmatpush1.msra.mxu0 0.0
    %4028 = vmatprep.subr.mxu0 0.0
    %4029 = vmatpush1.msra.mxu0 0.0
    %4030 = vmatprep.subr.mxu0 0.0
    %4031 = vmatpush1.msra.mxu0 0.0
    %4032 = vmatprep.subr.mxu0 0.0
    %4033 = vmatpush1.msra.mxu0 0.0
    %4034 = vmatprep.subr.mxu0 0.0
    %4035 = vmatpush1.msra.mxu0 0.0
    %4036 = vmatprep.mubr.f32.mxu0 0.0
    %4037 = vmatmul.mubr.f32.gmra.mrb[0].mxu0 %v3656
    %v4038 = vpop.f32.mrb[0].mxu0
    %v4039 = vadd.f32 0.0, %v4038
    %v4040 = vpop.f32.mrb[0].mxu0
    %v4041 = vadd.f32 0.0, %v4040
    %4042 = vmatprep.mubr.f32.mxu0 0.0
    %4043 = vmatmul.mubr.f32.gmra.mrb[0].mxu0 %v3659
    %v4044 = vpop.f32.mrb[0].mxu0
    %v4045 = vadd.f32 0.0, %v4044
    %v4046 = vpop.f32.mrb[0].mxu0
    %v4047 = vadd.f32 0.0, %v4046
    %4048 = vmatprep.mubr.f32.mxu0 0.0
    %4049 = vmatmul.mubr.f32.gmra.mrb[0].mxu0 %v3662
    %v4050 = vpop.f32.mrb[0].mxu0
    %v4051 = vadd.f32 0.0, %v4050
    %v4052 = vpop.f32.mrb[0].mxu0
    %v4053 = vadd.f32 0.0, %v4052
    %4054 = vmatprep.mubr.f32.mxu0 0.0
    %4055 = vmatmul.mubr.f32.gmra.mrb[0].mxu0 %v3665
    %v4056 = vpop.f32.mrb[0].mxu0
    %v4057 = vadd.f32 0.0, %v4056
    %v4058 = vpop.f32.mrb[0].mxu0
    %v4059 = vadd.f32 0.0, %v4058
    %4060 = vmatprep.mubr.f32.mxu0 0.0
    %4061 = vmatmul.mubr.f32.gmra.mrb[0].mxu0 %v3668
    %v4062 = vpop.f32.mrb[0].mxu0
    %v4063 = vadd.f32 0.0, %v4062
    %v4064 = vpop.f32.mrb[0].mxu0
    %v4065 = vadd.f32 0.0, %v4064
    %4066 = vmatprep.mubr.f32.mxu0 0.0
    %4067 = vmatmul.mubr.f32.gmra.mrb[0].mxu0 %v3671
    %v4068 = vpop.f32.mrb[0].mxu0
    %v4069 = vadd.f32 0.0, %v4068
    %v4070 = vpop.f32.mrb[0].mxu0
    %v4071 = vadd.f32 0.0, %v4070
    %4072 = vmatprep.mubr.f32.mxu0 0.0
    %4073 = vmatmul.mubr.f32.gmra.mrb[0].mxu0 %v3674
    %v4074 = vpop.f32.mrb[0].mxu0
    %v4075 = vadd.f32 0.0, %v4074
    %v4076 = vpop.f32.mrb[0].mxu0
    %v4077 = vadd.f32 0.0, %v4076
    %4078 = vmatprep.mubr.f32.mxu0 0.0
    %4079 = vmatmul.mubr.f32.gmra.mrb[0].mxu0 %v3677
    %v4080 = vpop.f32.mrb[0].mxu0
    %v4081 = vadd.f32 0.0, %v4080
    %v4082 = vpop.f32.mrb[0].mxu0
    %v4083 = vadd.f32 0.0, %v4082
    %4084 = vmatprep.mubr.f32.mxu0 0.0
    %4085 = vmatmul.mubr.f32.gmra.mrb[0].mxu0 %v3680
    %v4086 = vpop.f32.mrb[0].mxu0
    %v4087 = vadd.f32 0.0, %v4086
    %v4088 = vpop.f32.mrb[0].mxu0
    %v4089 = vadd.f32 0.0, %v4088
    %4090 = vmatprep.mubr.f32.mxu0 0.0
    %4091 = vmatmul.mubr.f32.gmra.mrb[0].mxu0 %v3683
    %v4092 = vpop.f32.mrb[0].mxu0
    %v4093 = vadd.f32 0.0, %v4092
    %v4094 = vpop.f32.mrb[0].mxu0
    %v4095 = vadd.f32 0.0, %v4094
    %4096 = vmatprep.mubr.f32.mxu0 0.0
    %4097 = vmatmul.mubr.f32.gmra.mrb[0].mxu0 %v3686
    %v4098 = vpop.f32.mrb[0].mxu0
    %v4099 = vadd.f32 0.0, %v4098
    %v4100 = vpop.f32.mrb[0].mxu0
    %v4101 = vadd.f32 0.0, %v4100
    %4102 = vmatprep.mubr.f32.mxu0 0.0
    %4103 = vmatmul.mubr.f32.gmra.mrb[0].mxu0 %v3689
    %v4104 = vpop.f32.mrb[0].mxu0
    %v4105 = vadd.f32 0.0, %v4104
    %v4106 = vpop.f32.mrb[0].mxu0
    %v4107 = vadd.f32 0.0, %v4106
    %4108 = vmatprep.mubr.f32.mxu0 0.0
    %4109 = vmatmul.mubr.f32.gmra.mrb[0].mxu0 %v3692
    %v4110 = vpop.f32.mrb[0].mxu0
    %v4111 = vadd.f32 0.0, %v4110
    %v4112 = vpop.f32.mrb[0].mxu0
    %v4113 = vadd.f32 0.0, %v4112
    %4114 = vmatprep.mubr.f32.mxu0 0.0
    %4115 = vmatmul.mubr.f32.gmra.mrb[0].mxu0 %v3695
    %v4116 = vpop.f32.mrb[0].mxu0
    %v4117 = vadd.f32 0.0, %v4116
    %v4118 = vpop.f32.mrb[0].mxu0
    %v4119 = vadd.f32 0.0, %v4118
    %4120 = vmatprep.mubr.f32.mxu0 0.0
    %4121 = vmatmul.mubr.f32.gmra.mrb[0].mxu0 %v3698
    %v4122 = vpop.f32.mrb[0].mxu0
    %v4123 = vadd.f32 0.0, %v4122
    %v4124 = vpop.f32.mrb[0].mxu0
    %v4125 = vadd.f32 0.0, %v4124
    %4126 = vmatprep.mubr.f32.mxu0 0.0
    %4127 = vmatmul.mubr.f32.gmra.mrb[0].mxu0 %v3701
    %v4128 = vpop.f32.mrb[0].mxu0
    %v4129 = vadd.f32 0.0, %v4128
    %v4130 = vpop.f32.mrb[0].mxu0
    %v4131 = vadd.f32 0.0, %v4130
    %4132 = vmatprep.mubr.f32.mxu0 0.0
    %4133 = vmatmul.mubr.f32.gmra.mrb[0].mxu0 %v3704
    %v4134 = vpop.f32.mrb[0].mxu0
    %v4135 = vadd.f32 0.0, %v4134
    %v4136 = vpop.f32.mrb[0].mxu0
    %v4137 = vadd.f32 0.0, %v4136
    %4138 = vmatprep.mubr.f32.mxu0 0.0
    %4139 = vmatmul.mubr.f32.gmra.mrb[0].mxu0 %v3707
    %v4140 = vpop.f32.mrb[0].mxu0
    %v4141 = vadd.f32 0.0, %v4140
    %v4142 = vpop.f32.mrb[0].mxu0
    %v4143 = vadd.f32 0.0, %v4142
    %4144 = vmatprep.mubr.f32.mxu0 0.0
    %4145 = vmatmul.mubr.f32.gmra.mrb[0].mxu0 %v3710
    %v4146 = vpop.f32.mrb[0].mxu0
    %v4147 = vadd.f32 0.0, %v4146
    %v4148 = vpop.f32.mrb[0].mxu0
    %v4149 = vadd.f32 0.0, %v4148
    %4150 = vmatprep.mubr.f32.mxu0 0.0
    %4151 = vmatmul.mubr.f32.gmra.mrb[0].mxu0 %v3713
    %v4152 = vpop.f32.mrb[0].mxu0
    %v4153 = vadd.f32 0.0, %v4152
    %v4154 = vpop.f32.mrb[0].mxu0
    %v4155 = vadd.f32 0.0, %v4154
    %4156 = vmatprep.mubr.f32.mxu0 0.0
    %4157 = vmatmul.mubr.f32.gmra.mrb[0].mxu0 %v3716
    %v4158 = vpop.f32.mrb[0].mxu0
    %v4159 = vadd.f32 0.0, %v4158
    %v4160 = vpop.f32.mrb[0].mxu0
    %v4161 = vadd.f32 0.0, %v4160
    %4162 = vmatprep.mubr.f32.mxu0 0.0
    %4163 = vmatmul.mubr.f32.gmra.mrb[0].mxu0 %v3719
    %v4164 = vpop.f32.mrb[0].mxu0
    %v4165 = vadd.f32 0.0, %v4164
    %v4166 = vpop.f32.mrb[0].mxu0
    %v4167 = vadd.f32 0.0, %v4166
    %4168 = vmatprep.mubr.f32.mxu0 0.0
    %4169 = vmatmul.mubr.f32.gmra.mrb[0].mxu0 %v3722
    %v4170 = vpop.f32.mrb[0].mxu0
    %v4171 = vadd.f32 0.0, %v4170
    %v4172 = vpop.f32.mrb[0].mxu0
    %v4173 = vadd.f32 0.0, %v4172
    %4174 = vmatprep.mubr.f32.mxu0 0.0
    %4175 = vmatmul.mubr.f32.gmra.mrb[0].mxu0 %v3725
    %v4176 = vpop.f32.mrb[0].mxu0
    %v4177 = vadd.f32 0.0, %v4176
    %v4178 = vpop.f32.mrb[0].mxu0
    %v4179 = vadd.f32 0.0, %v4178
    %4180 = vmatprep.mubr.f32.mxu0 0.0
    %4181 = vmatmul.mubr.f32.gmra.mrb[0].mxu0 %v3728
    %v4182 = vpop.f32.mrb[0].mxu0
    %v4183 = vadd.f32 0.0, %v4182
    %v4184 = vpop.f32.mrb[0].mxu0
    %v4185 = vadd.f32 0.0, %v4184
    %4186 = vmatprep.mubr.f32.mxu0 0.0
    %4187 = vmatmul.mubr.f32.gmra.mrb[0].mxu0 %v3731
    %v4188 = vpop.f32.mrb[0].mxu0
    %v4189 = vadd.f32 0.0, %v4188
    %v4190 = vpop.f32.mrb[0].mxu0
    %v4191 = vadd.f32 0.0, %v4190
    %4192 = vmatprep.mubr.f32.mxu0 0.0
    %4193 = vmatmul.mubr.f32.gmra.mrb[0].mxu0 %v3734
    %v4194 = vpop.f32.mrb[0].mxu0
    %v4195 = vadd.f32 0.0, %v4194
    %v4196 = vpop.f32.mrb[0].mxu0
    %v4197 = vadd.f32 0.0, %v4196
    %4198 = vmatprep.mubr.f32.mxu0 0.0
    %4199 = vmatmul.mubr.f32.gmra.mrb[0].mxu0 %v3737
    %v4200 = vpop.f32.mrb[0].mxu0
    %v4201 = vadd.f32 0.0, %v4200
    %v4202 = vpop.f32.mrb[0].mxu0
    %v4203 = vadd.f32 0.0, %v4202
    %4204 = vdwg.mxu0
    %v4205 = vld [vmem:[#allocation2] sm:$0xff]
    %v4206 = vld [vmem:[#allocation2 + $0x8] sm:$0xff]
    %v4207 = vld [vmem:[#allocation2 + $0x10] sm:$0xff]
    %v4208 = vld [vmem:[#allocation2 + $0x18] sm:$0xff]
    %v4209 = vld [vmem:[#allocation2 + $0x20] sm:$0xff]
    %v4210 = vld [vmem:[#allocation2 + $0x28] sm:$0xff]
    %v4211 = vld [vmem:[#allocation2 + $0x30] sm:$0xff]
    %v4212 = vld [vmem:[#allocation2 + $0x38] sm:$0xff]
    %v4213 = vld [vmem:[#allocation2 + $0x40] sm:$0xff]
    %v4214 = vld [vmem:[#allocation2 + $0x48] sm:$0xff]
    %v4215 = vld [vmem:[#allocation2 + $0x50] sm:$0xff]
    %v4216 = vld [vmem:[#allocation2 + $0x58] sm:$0xff]
    %v4217 = vld [vmem:[#allocation2 + $0x60] sm:$0xff]
    %v4218 = vld [vmem:[#allocation2 + $0x68] sm:$0xff]
    %v4219 = vld [vmem:[#allocation2 + $0x70] sm:$0xff]
    %v4220 = vld [vmem:[#allocation2 + $0x78] sm:$0xff]
    %v4221 = vld [vmem:[#allocation2 + $0x80] sm:$0xff]
    %v4222 = vld [vmem:[#allocation2 + $0x88] sm:$0xff]
    %v4223 = vld [vmem:[#allocation2 + $0x90] sm:$0xff]
    %v4224 = vld [vmem:[#allocation2 + $0x98] sm:$0xff]
    %v4225 = vld [vmem:[#allocation2 + $0xa0] sm:$0xff]
    %v4226 = vld [vmem:[#allocation2 + $0xa8] sm:$0xff]
    %v4227 = vld [vmem:[#allocation2 + $0xb0] sm:$0xff]
    %v4228 = vld [vmem:[#allocation2 + $0xb8] sm:$0xff]
    %v4229 = vld [vmem:[#allocation2 + $0xc0] sm:$0xff]
    %v4230 = vld [vmem:[#allocation2 + $0xc8] sm:$0xff]
    %v4231 = vld [vmem:[#allocation2 + $0xd0] sm:$0xff]
    %v4232 = vld [vmem:[#allocation2 + $0xd8] sm:$0xff]
    %v4233 = vld [vmem:[#allocation2 + $0xe0] sm:$0xff]
    %v4234 = vld [vmem:[#allocation2 + $0xe8] sm:$0xff]
    %v4235 = vld [vmem:[#allocation2 + $0xf0] sm:$0xff]
    %v4236 = vld [vmem:[#allocation2 + $0xf8] sm:$0xff]
    %v4237 = vld [vmem:[#allocation2 + $0x100] sm:$0xff]
    %v4238 = vld [vmem:[#allocation2 + $0x108] sm:$0xff]
    %v4239 = vld [vmem:[#allocation2 + $0x110] sm:$0xff]
    %v4240 = vld [vmem:[#allocation2 + $0x118] sm:$0xff]
    %v4241 = vld [vmem:[#allocation2 + $0x120] sm:$0xff]
    %v4242 = vld [vmem:[#allocation2 + $0x128] sm:$0xff]
    %v4243 = vld [vmem:[#allocation2 + $0x130] sm:$0xff]
    %v4244 = vld [vmem:[#allocation2 + $0x138] sm:$0xff]
    %v4245 = vld [vmem:[#allocation2 + $0x140] sm:$0xff]
    %v4246 = vld [vmem:[#allocation2 + $0x148] sm:$0xff]
    %v4247 = vld [vmem:[#allocation2 + $0x150] sm:$0xff]
    %v4248 = vld [vmem:[#allocation2 + $0x158] sm:$0xff]
    %v4249 = vld [vmem:[#allocation2 + $0x160] sm:$0xff]
    %v4250 = vld [vmem:[#allocation2 + $0x168] sm:$0xff]
    %v4251 = vld [vmem:[#allocation2 + $0x170] sm:$0xff]
    %v4252 = vld [vmem:[#allocation2 + $0x178] sm:$0xff]
    %v4253 = vld [vmem:[#allocation2 + $0x180] sm:$0xff]
    %v4254 = vld [vmem:[#allocation2 + $0x188] sm:$0xff]
    %v4255 = vld [vmem:[#allocation2 + $0x190] sm:$0xff]
    %v4256 = vld [vmem:[#allocation2 + $0x198] sm:$0xff]
    %v4257 = vld [vmem:[#allocation2 + $0x1a0] sm:$0xff]
    %v4258 = vld [vmem:[#allocation2 + $0x1a8] sm:$0xff]
    %v4259 = vld [vmem:[#allocation2 + $0x1b0] sm:$0xff]
    %v4260 = vld [vmem:[#allocation2 + $0x1b8] sm:$0xff]
    %v4261 = vld [vmem:[#allocation2 + $0x1c0] sm:$0xff]
    %v4262 = vld [vmem:[#allocation2 + $0x1c8] sm:$0xff]
    %v4263 = vld [vmem:[#allocation2 + $0x1d0] sm:$0xff]
    %v4264 = vld [vmem:[#allocation2 + $0x1d8] sm:$0xff]
    %v4265 = vld [vmem:[#allocation2 + $0x1e0] sm:$0xff]
    %v4266 = vld [vmem:[#allocation2 + $0x1e8] sm:$0xff]
    %v4267 = vld [vmem:[#allocation2 + $0x1f0] sm:$0xff]
    %v4268 = vld [vmem:[#allocation2 + $0x1f8] sm:$0xff]
    %v4269 = vld [vmem:[#allocation2 + $0x200] sm:$0xff]
    %v4270 = vld [vmem:[#allocation2 + $0x208] sm:$0xff]
    %v4271 = vld [vmem:[#allocation2 + $0x210] sm:$0xff]
    %v4272 = vld [vmem:[#allocation2 + $0x218] sm:$0xff]
    %v4273 = vld [vmem:[#allocation2 + $0x220] sm:$0xff]
    %v4274 = vld [vmem:[#allocation2 + $0x228] sm:$0xff]
    %v4275 = vld [vmem:[#allocation2 + $0x230] sm:$0xff]
    %v4276 = vld [vmem:[#allocation2 + $0x238] sm:$0xff]
    %v4277 = vld [vmem:[#allocation2 + $0x240] sm:$0xff]
    %v4278 = vld [vmem:[#allocation2 + $0x248] sm:$0xff]
    %v4279 = vld [vmem:[#allocation2 + $0x250] sm:$0xff]
    %v4280 = vld [vmem:[#allocation2 + $0x258] sm:$0xff]
    %v4281 = vld [vmem:[#allocation2 + $0x260] sm:$0xff]
    %v4282 = vld [vmem:[#allocation2 + $0x268] sm:$0xff]
    %v4283 = vld [vmem:[#allocation2 + $0x270] sm:$0xff]
    %v4284 = vld [vmem:[#allocation2 + $0x278] sm:$0xff]
    %v4285 = vld [vmem:[#allocation2 + $0x280] sm:$0xff]
    %v4286 = vld [vmem:[#allocation2 + $0x288] sm:$0xff]
    %v4287 = vld [vmem:[#allocation2 + $0x290] sm:$0xff]
    %v4288 = vld [vmem:[#allocation2 + $0x298] sm:$0xff]
    %v4289 = vld [vmem:[#allocation2 + $0x2a0] sm:$0xff]
    %v4290 = vld [vmem:[#allocation2 + $0x2a8] sm:$0xff]
    %v4291 = vld [vmem:[#allocation2 + $0x2b0] sm:$0xff]
    %v4292 = vld [vmem:[#allocation2 + $0x2b8] sm:$0xff]
    %v4293 = vld [vmem:[#allocation2 + $0x2c0] sm:$0xff]
    %v4294 = vld [vmem:[#allocation2 + $0x2c8] sm:$0xff]
    %v4295 = vld [vmem:[#allocation2 + $0x2d0] sm:$0xff]
    %v4296 = vld [vmem:[#allocation2 + $0x2d8] sm:$0xff]
    %v4297 = vld [vmem:[#allocation2 + $0x2e0] sm:$0xff]
    %v4298 = vld [vmem:[#allocation2 + $0x2e8] sm:$0xff]
    %v4299 = vld [vmem:[#allocation2 + $0x2f0] sm:$0xff]
    %v4300 = vld [vmem:[#allocation2 + $0x2f8] sm:$0xff]
    %v4301 = vld [vmem:[#allocation2 + $0x300] sm:$0xff]
    %v4302 = vld [vmem:[#allocation2 + $0x308] sm:$0xff]
    %v4303 = vld [vmem:[#allocation2 + $0x310] sm:$0xff]
    %v4304 = vld [vmem:[#allocation2 + $0x318] sm:$0xff]
    %v4305 = vld [vmem:[#allocation2 + $0x320] sm:$0xff]
    %v4306 = vld [vmem:[#allocation2 + $0x328] sm:$0xff]
    %v4307 = vld [vmem:[#allocation2 + $0x330] sm:$0xff]
    %v4308 = vld [vmem:[#allocation2 + $0x338] sm:$0xff]
    %v4309 = vld [vmem:[#allocation2 + $0x340] sm:$0xff]
    %v4310 = vld [vmem:[#allocation2 + $0x348] sm:$0xff]
    %v4311 = vld [vmem:[#allocation2 + $0x350] sm:$0xff]
    %v4312 = vld [vmem:[#allocation2 + $0x358] sm:$0xff]
    %v4313 = vld [vmem:[#allocation2 + $0x360] sm:$0xff]
    %v4314 = vld [vmem:[#allocation2 + $0x368] sm:$0xff]
    %v4315 = vld [vmem:[#allocation2 + $0x370] sm:$0xff]
    %v4316 = vld [vmem:[#allocation2 + $0x378] sm:$0xff]
    %v4317 = vadd.f32 %v4205, %v3806
    %v4318 = vadd.f32 %v4206, %v3808
    %v4319 = vadd.f32 %v4207, %v4039
    %v4320 = vadd.f32 %v4208, %v4041
    %v4321 = vadd.f32 %v4209, %v3812
    %v4322 = vadd.f32 %v4210, %v3814
    %v4323 = vadd.f32 %v4211, %v4045
    %v4324 = vadd.f32 %v4212, %v4047
    %v4325 = vadd.f32 %v4213, %v3818
    %v4326 = vadd.f32 %v4214, %v3820
    %v4327 = vadd.f32 %v4215, %v4051
    %v4328 = vadd.f32 %v4216, %v4053
    %v4329 = vadd.f32 %v4217, %v3824
    %v4330 = vadd.f32 %v4218, %v3826
    %v4331 = vadd.f32 %v4219, %v4057
    %v4332 = vadd.f32 %v4220, %v4059
    %v4333 = vadd.f32 %v4221, %v3830
    %v4334 = vadd.f32 %v4222, %v3832
    %v4335 = vadd.f32 %v4223, %v4063
    %v4336 = vadd.f32 %v4224, %v4065
    %v4337 = vadd.f32 %v4225, %v3836
    %v4338 = vadd.f32 %v4226, %v3838
    %v4339 = vadd.f32 %v4227, %v4069
    %v4340 = vadd.f32 %v4228, %v4071
    %v4341 = vadd.f32 %v4229, %v3842
    %v4342 = vadd.f32 %v4230, %v3844
    %v4343 = vadd.f32 %v4231, %v4075
    %v4344 = vadd.f32 %v4232, %v4077
    %v4345 = vadd.f32 %v4233, %v3848
    %v4346 = vadd.f32 %v4234, %v3850
    %v4347 = vadd.f32 %v4235, %v4081
    %v4348 = vadd.f32 %v4236, %v4083
    %v4349 = vadd.f32 %v4237, %v3854
    %v4350 = vadd.f32 %v4238, %v3856
    %v4351 = vadd.f32 %v4239, %v4087
    %v4352 = vadd.f32 %v4240, %v4089
    %v4353 = vadd.f32 %v4241, %v3860
    %v4354 = vadd.f32 %v4242, %v3862
    %v4355 = vadd.f32 %v4243, %v4093
    %v4356 = vadd.f32 %v4244, %v4095
    %v4357 = vadd.f32 %v4245, %v3866
    %v4358 = vadd.f32 %v4246, %v3868
    %v4359 = vadd.f32 %v4247, %v4099
    %v4360 = vadd.f32 %v4248, %v4101
    %v4361 = vadd.f32 %v4249, %v3872
    %v4362 = vadd.f32 %v4250, %v3874
    %v4363 = vadd.f32 %v4251, %v4105
    %v4364 = vadd.f32 %v4252, %v4107
    %v4365 = vadd.f32 %v4253, %v3878
    %v4366 = vadd.f32 %v4254, %v3880
    %v4367 = vadd.f32 %v4255, %v4111
    %v4368 = vadd.f32 %v4256, %v4113
    %v4369 = vadd.f32 %v4257, %v3884
    %v4370 = vadd.f32 %v4258, %v3886
    %v4371 = vadd.f32 %v4259, %v4117
    %v4372 = vadd.f32 %v4260, %v4119
    %v4373 = vadd.f32 %v4261, %v3890
    %v4374 = vadd.f32 %v4262, %v3892
    %v4375 = vadd.f32 %v4263, %v4123
    %v4376 = vadd.f32 %v4264, %v4125
    %v4377 = vadd.f32 %v4265, %v3896
    %v4378 = vadd.f32 %v4266, %v3898
    %v4379 = vadd.f32 %v4267, %v4129
    %v4380 = vadd.f32 %v4268, %v4131
    %v4381 = vadd.f32 %v4269, %v3902
    %v4382 = vadd.f32 %v4270, %v3904
    %v4383 = vadd.f32 %v4271, %v4135
    %v4384 = vadd.f32 %v4272, %v4137
    %v4385 = vadd.f32 %v4273, %v3908
    %v4386 = vadd.f32 %v4274, %v3910
    %v4387 = vadd.f32 %v4275, %v4141
    %v4388 = vadd.f32 %v4276, %v4143
    %v4389 = vadd.f32 %v4277, %v3914
    %v4390 = vadd.f32 %v4278, %v3916
    %v4391 = vadd.f32 %v4279, %v4147
    %v4392 = vadd.f32 %v4280, %v4149
    %v4393 = vadd.f32 %v4281, %v3920
    %v4394 = vadd.f32 %v4282, %v3922
    %v4395 = vadd.f32 %v4283, %v4153
    %v4396 = vadd.f32 %v4284, %v4155
    %v4397 = vadd.f32 %v4285, %v3926
    %v4398 = vadd.f32 %v4286, %v3928
    %v4399 = vadd.f32 %v4287, %v4159
    %v4400 = vadd.f32 %v4288, %v4161
    %v4401 = vadd.f32 %v4289, %v3932
    %v4402 = vadd.f32 %v4290, %v3934
    %v4403 = vadd.f32 %v4291, %v4165
    %v4404 = vadd.f32 %v4292, %v4167
    %v4405 = vadd.f32 %v4293, %v3938
    %v4406 = vadd.f32 %v4294, %v3940
    %v4407 = vadd.f32 %v4295, %v4171
    %v4408 = vadd.f32 %v4296, %v4173
    %v4409 = vadd.f32 %v4297, %v3944
    %v4410 = vadd.f32 %v4298, %v3946
    %v4411 = vadd.f32 %v4299, %v4177
    %v4412 = vadd.f32 %v4300, %v4179
    %v4413 = vadd.f32 %v4301, %v3950
    %v4414 = vadd.f32 %v4302, %v3952
    %v4415 = vadd.f32 %v4303, %v4183
    %v4416 = vadd.f32 %v4304, %v4185
    %v4417 = vadd.f32 %v4305, %v3956
    %v4418 = vadd.f32 %v4306, %v3958
    %v4419 = vadd.f32 %v4307, %v4189
    %v4420 = vadd.f32 %v4308, %v4191
    %v4421 = vadd.f32 %v4309, %v3962
    %v4422 = vadd.f32 %v4310, %v3964
    %v4423 = vadd.f32 %v4311, %v4195
    %v4424 = vadd.f32 %v4312, %v4197
    %v4425 = vadd.f32 %v4313, %v3968
    %v4426 = vadd.f32 %v4314, %v3970
    %v4427 = vadd.f32 %v4315, %v4201
    %v4428 = vadd.f32 %v4316, %v4203
    %4429 = vst [vmem:[#allocation2] sm:$0xff] %v4317
    %4430 = vst [vmem:[#allocation2 + $0x8] sm:$0xff] %v4318
    %4431 = vst [vmem:[#allocation2 + $0x10] sm:$0xff] %v4319
    %4432 = vst [vmem:[#allocation2 + $0x18] sm:$0xff] %v4320
    %4433 = vst [vmem:[#allocation2 + $0x20] sm:$0xff] %v4321
    %4434 = vst [vmem:[#allocation2 + $0x28] sm:$0xff] %v4322
    %4435 = vst [vmem:[#allocation2 + $0x30] sm:$0xff] %v4323
    %4436 = vst [vmem:[#allocation2 + $0x38] sm:$0xff] %v4324
    %4437 = vst [vmem:[#allocation2 + $0x40] sm:$0xff] %v4325
    %4438 = vst [vmem:[#allocation2 + $0x48] sm:$0xff] %v4326
    %4439 = vst [vmem:[#allocation2 + $0x50] sm:$0xff] %v4327
    %4440 = vst [vmem:[#allocation2 + $0x58] sm:$0xff] %v4328
    %4441 = vst [vmem:[#allocation2 + $0x60] sm:$0xff] %v4329
    %4442 = vst [vmem:[#allocation2 + $0x68] sm:$0xff] %v4330
    %4443 = vst [vmem:[#allocation2 + $0x70] sm:$0xff] %v4331
    %4444 = vst [vmem:[#allocation2 + $0x78] sm:$0xff] %v4332
    %4445 = vst [vmem:[#allocation2 + $0x80] sm:$0xff] %v4333
    %4446 = vst [vmem:[#allocation2 + $0x88] sm:$0xff] %v4334
    %4447 = vst [vmem:[#allocation2 + $0x90] sm:$0xff] %v4335
    %4448 = vst [vmem:[#allocation2 + $0x98] sm:$0xff] %v4336
    %4449 = vst [vmem:[#allocation2 + $0xa0] sm:$0xff] %v4337
    %4450 = vst [vmem:[#allocation2 + $0xa8] sm:$0xff] %v4338
    %4451 = vst [vmem:[#allocation2 + $0xb0] sm:$0xff] %v4339
    %4452 = vst [vmem:[#allocation2 + $0xb8] sm:$0xff] %v4340
    %4453 = vst [vmem:[#allocation2 + $0xc0] sm:$0xff] %v4341
    %4454 = vst [vmem:[#allocation2 + $0xc8] sm:$0xff] %v4342
    %4455 = vst [vmem:[#allocation2 + $0xd0] sm:$0xff] %v4343
    %4456 = vst [vmem:[#allocation2 + $0xd8] sm:$0xff] %v4344
    %4457 = vst [vmem:[#allocation2 + $0xe0] sm:$0xff] %v4345
    %4458 = vst [vmem:[#allocation2 + $0xe8] sm:$0xff] %v4346
    %4459 = vst [vmem:[#allocation2 + $0xf0] sm:$0xff] %v4347
    %4460 = vst [vmem:[#allocation2 + $0xf8] sm:$0xff] %v4348
    %4461 = vst [vmem:[#allocation2 + $0x100] sm:$0xff] %v4349
    %4462 = vst [vmem:[#allocation2 + $0x108] sm:$0xff] %v4350
    %4463 = vst [vmem:[#allocation2 + $0x110] sm:$0xff] %v4351
    %4464 = vst [vmem:[#allocation2 + $0x118] sm:$0xff] %v4352
    %4465 = vst [vmem:[#allocation2 + $0x120] sm:$0xff] %v4353
    %4466 = vst [vmem:[#allocation2 + $0x128] sm:$0xff] %v4354
    %4467 = vst [vmem:[#allocation2 + $0x130] sm:$0xff] %v4355
    %4468 = vst [vmem:[#allocation2 + $0x138] sm:$0xff] %v4356
    %4469 = vst [vmem:[#allocation2 + $0x140] sm:$0xff] %v4357
    %4470 = vst [vmem:[#allocation2 + $0x148] sm:$0xff] %v4358
    %4471 = vst [vmem:[#allocation2 + $0x150] sm:$0xff] %v4359
    %4472 = vst [vmem:[#allocation2 + $0x158] sm:$0xff] %v4360
    %4473 = vst [vmem:[#allocation2 + $0x160] sm:$0xff] %v4361
    %4474 = vst [vmem:[#allocation2 + $0x168] sm:$0xff] %v4362
    %4475 = vst [vmem:[#allocation2 + $0x170] sm:$0xff] %v4363
    %4476 = vst [vmem:[#allocation2 + $0x178] sm:$0xff] %v4364
    %4477 = vst [vmem:[#allocation2 + $0x180] sm:$0xff] %v4365
    %4478 = vst [vmem:[#allocation2 + $0x188] sm:$0xff] %v4366
    %4479 = vst [vmem:[#allocation2 + $0x190] sm:$0xff] %v4367
    %4480 = vst [vmem:[#allocation2 + $0x198] sm:$0xff] %v4368
    %4481 = vst [vmem:[#allocation2 + $0x1a0] sm:$0xff] %v4369
    %4482 = vst [vmem:[#allocation2 + $0x1a8] sm:$0xff] %v4370
    %4483 = vst [vmem:[#allocation2 + $0x1b0] sm:$0xff] %v4371
    %4484 = vst [vmem:[#allocation2 + $0x1b8] sm:$0xff] %v4372
    %4485 = vst [vmem:[#allocation2 + $0x1c0] sm:$0xff] %v4373
    %4486 = vst [vmem:[#allocation2 + $0x1c8] sm:$0xff] %v4374
    %4487 = vst [vmem:[#allocation2 + $0x1d0] sm:$0xff] %v4375
    %4488 = vst [vmem:[#allocation2 + $0x1d8] sm:$0xff] %v4376
    %4489 = vst [vmem:[#allocation2 + $0x1e0] sm:$0xff] %v4377
    %4490 = vst [vmem:[#allocation2 + $0x1e8] sm:$0xff] %v4378
    %4491 = vst [vmem:[#allocation2 + $0x1f0] sm:$0xff] %v4379
    %4492 = vst [vmem:[#allocation2 + $0x1f8] sm:$0xff] %v4380
    %4493 = vst [vmem:[#allocation2 + $0x200] sm:$0xff] %v4381
    %4494 = vst [vmem:[#allocation2 + $0x208] sm:$0xff] %v4382
    %4495 = vst [vmem:[#allocation2 + $0x210] sm:$0xff] %v4383
    %4496 = vst [vmem:[#allocation2 + $0x218] sm:$0xff] %v4384
    %4497 = vst [vmem:[#allocation2 + $0x220] sm:$0xff] %v4385
    %4498 = vst [vmem:[#allocation2 + $0x228] sm:$0xff] %v4386
    %4499 = vst [vmem:[#allocation2 + $0x230] sm:$0xff] %v4387
    %4500 = vst [vmem:[#allocation2 + $0x238] sm:$0xff] %v4388
    %4501 = vst [vmem:[#allocation2 + $0x240] sm:$0xff] %v4389
    %4502 = vst [vmem:[#allocation2 + $0x248] sm:$0xff] %v4390
    %4503 = vst [vmem:[#allocation2 + $0x250] sm:$0xff] %v4391
    %4504 = vst [vmem:[#allocation2 + $0x258] sm:$0xff] %v4392
    %4505 = vst [vmem:[#allocation2 + $0x260] sm:$0xff] %v4393
    %4506 = vst [vmem:[#allocation2 + $0x268] sm:$0xff] %v4394
    %4507 = vst [vmem:[#allocation2 + $0x270] sm:$0xff] %v4395
    %4508 = vst [vmem:[#allocation2 + $0x278] sm:$0xff] %v4396
    %4509 = vst [vmem:[#allocation2 + $0x280] sm:$0xff] %v4397
    %4510 = vst [vmem:[#allocation2 + $0x288] sm:$0xff] %v4398
    %4511 = vst [vmem:[#allocation2 + $0x290] sm:$0xff] %v4399
    %4512 = vst [vmem:[#allocation2 + $0x298] sm:$0xff] %v4400
    %4513 = vst [vmem:[#allocation2 + $0x2a0] sm:$0xff] %v4401
    %4514 = vst [vmem:[#allocation2 + $0x2a8] sm:$0xff] %v4402
    %4515 = vst [vmem:[#allocation2 + $0x2b0] sm:$0xff] %v4403
    %4516 = vst [vmem:[#allocation2 + $0x2b8] sm:$0xff] %v4404
    %4517 = vst [vmem:[#allocation2 + $0x2c0] sm:$0xff] %v4405
    %4518 = vst [vmem:[#allocation2 + $0x2c8] sm:$0xff] %v4406
    %4519 = vst [vmem:[#allocation2 + $0x2d0] sm:$0xff] %v4407
    %4520 = vst [vmem:[#allocation2 + $0x2d8] sm:$0xff] %v4408
    %4521 = vst [vmem:[#allocation2 + $0x2e0] sm:$0xff] %v4409
    %4522 = vst [vmem:[#allocation2 + $0x2e8] sm:$0xff] %v4410
    %4523 = vst [vmem:[#allocation2 + $0x2f0] sm:$0xff] %v4411
    %4524 = vst [vmem:[#allocation2 + $0x2f8] sm:$0xff] %v4412
    %4525 = vst [vmem:[#allocation2 + $0x300] sm:$0xff] %v4413
    %4526 = vst [vmem:[#allocation2 + $0x308] sm:$0xff] %v4414
    %4527 = vst [vmem:[#allocation2 + $0x310] sm:$0xff] %v4415
    %4528 = vst [vmem:[#allocation2 + $0x318] sm:$0xff] %v4416
    %4529 = vst [vmem:[#allocation2 + $0x320] sm:$0xff] %v4417
    %4530 = vst [vmem:[#allocation2 + $0x328] sm:$0xff] %v4418
    %4531 = vst [vmem:[#allocation2 + $0x330] sm:$0xff] %v4419
    %4532 = vst [vmem:[#allocation2 + $0x338] sm:$0xff] %v4420
    %4533 = vst [vmem:[#allocation2 + $0x340] sm:$0xff] %v4421
    %4534 = vst [vmem:[#allocation2 + $0x348] sm:$0xff] %v4422
    %4535 = vst [vmem:[#allocation2 + $0x350] sm:$0xff] %v4423
    %4536 = vst [vmem:[#allocation2 + $0x358] sm:$0xff] %v4424
    %4537 = vst [vmem:[#allocation2 + $0x360] sm:$0xff] %v4425
    %4538 = vst [vmem:[#allocation2 + $0x368] sm:$0xff] %v4426
    %4539 = vst [vmem:[#allocation2 + $0x370] sm:$0xff] %v4427
    %4540 = vst [vmem:[#allocation2 + $0x378] sm:$0xff] %v4428
    %v4541 = vld [vmem:[#allocation8] sm:$0x3]
    %v4542 = vld [vmem:[#allocation2] sm:$0xff]
    %v4543 = vld [vmem:[#allocation2 + $0x8] sm:$0xff]
    %v4544 = vld [vmem:[#allocation2 + $0x10] sm:$0xff]
    %v4545 = vld [vmem:[#allocation2 + $0x18] sm:$0xff]
    %v4546 = vld [vmem:[#allocation2 + $0x20] sm:$0xff]
    %v4547 = vld [vmem:[#allocation2 + $0x28] sm:$0xff]
    %v4548 = vld [vmem:[#allocation2 + $0x30] sm:$0xff]
    %v4549 = vld [vmem:[#allocation2 + $0x38] sm:$0xff]
    %v4550 = vmax.f32 %v4542, %v4546
    %v4551 = vmax.f32 %v4543, %v4547
    %v4552 = vmax.f32 %v4544, %v4548
    %v4553 = vmax.f32 %v4545, %v4549
    %v4554 = vmax.f32 %v4550, %v4552
    %v4555 = vmax.f32 %v4551, %v4553
    %v4557 = vlaneseq
    %v4558 = vshrl.u32 %v4557, 7
    %v4559 = vsub.s32 0, %v4558
    %v4560 = vrot.slane %v4541, %v4559
    %v4561 = vlaneseq
    %v4562 = vshrl.u32 %v4561, 7
    %v4563 = vsub.s32 1, %v4562
    %v4564 = vrot.slane %v4541, %v4563
    %v4567 = vadd.f32 %v4554, %v4560
    %v4568 = vadd.f32 %v4555, %v4564
    %v4569 = vmax.f32 %v4567, 0.0
    %v4570 = vmax.f32 %v4568, 0.0
    %4571 = vst [vmem:[#allocation3 + $0x20] sm:$0xff] %v4569
    %4572 = vst [vmem:[#allocation3 + $0x28] sm:$0xff] %v4570
    %v4573 = vld [vmem:[#allocation2 + $0x40] sm:$0xff]
    %v4574 = vld [vmem:[#allocation2 + $0x48] sm:$0xff]
    %v4575 = vld [vmem:[#allocation2 + $0x50] sm:$0xff]
    %v4576 = vld [vmem:[#allocation2 + $0x58] sm:$0xff]
    %v4577 = vld [vmem:[#allocation2 + $0x60] sm:$0xff]
    %v4578 = vld [vmem:[#allocation2 + $0x68] sm:$0xff]
    %v4579 = vld [vmem:[#allocation2 + $0x70] sm:$0xff]
    %v4580 = vld [vmem:[#allocation2 + $0x78] sm:$0xff]
    %v4581 = vmax.f32 %v4573, %v4577
    %v4582 = vmax.f32 %v4574, %v4578
    %v4583 = vmax.f32 %v4575, %v4579
    %v4584 = vmax.f32 %v4576, %v4580
    %v4585 = vmax.f32 %v4581, %v4583
    %v4586 = vmax.f32 %v4582, %v4584
    %v4587 = vadd.f32 %v4585, %v4560
    %v4588 = vadd.f32 %v4586, %v4564
    %v4589 = vmax.f32 %v4587, 0.0
    %v4590 = vmax.f32 %v4588, 0.0
    %4591 = vst [vmem:[#allocation3 + $0x30] sm:$0xff] %v4589
    %4592 = vst [vmem:[#allocation3 + $0x38] sm:$0xff] %v4590
    %v4593 = vld [vmem:[#allocation2 + $0x80] sm:$0xff]
    %v4594 = vld [vmem:[#allocation2 + $0x88] sm:$0xff]
    %v4595 = vld [vmem:[#allocation2 + $0x90] sm:$0xff]
    %v4596 = vld [vmem:[#allocation2 + $0x98] sm:$0xff]
    %v4597 = vld [vmem:[#allocation2 + $0xa0] sm:$0xff]
    %v4598 = vld [vmem:[#allocation2 + $0xa8] sm:$0xff]
    %v4599 = vld [vmem:[#allocation2 + $0xb0] sm:$0xff]
    %v4600 = vld [vmem:[#allocation2 + $0xb8] sm:$0xff]
    %v4601 = vmax.f32 %v4593, %v4597
    %v4602 = vmax.f32 %v4594, %v4598
    %v4603 = vmax.f32 %v4595, %v4599
    %v4604 = vmax.f32 %v4596, %v4600
    %v4605 = vmax.f32 %v4601, %v4603
    %v4606 = vmax.f32 %v4602, %v4604
    %v4607 = vadd.f32 %v4605, %v4560
    %v4608 = vadd.f32 %v4606, %v4564
    %v4609 = vmax.f32 %v4607, 0.0
    %v4610 = vmax.f32 %v4608, 0.0
    %4611 = vst [vmem:[#allocation3 + $0x40] sm:$0xff] %v4609
    %4612 = vst [vmem:[#allocation3 + $0x48] sm:$0xff] %v4610
    %v4613 = vld [vmem:[#allocation2 + $0xc0] sm:$0xff]
    %v4614 = vld [vmem:[#allocation2 + $0xc8] sm:$0xff]
    %v4615 = vld [vmem:[#allocation2 + $0xd0] sm:$0xff]
    %v4616 = vld [vmem:[#allocation2 + $0xd8] sm:$0xff]
    %v4617 = vld [vmem:[#allocation2 + $0xe0] sm:$0xff]
    %v4618 = vld [vmem:[#allocation2 + $0xe8] sm:$0xff]
    %v4619 = vld [vmem:[#allocation2 + $0xf0] sm:$0xff]
    %v4620 = vld [vmem:[#allocation2 + $0xf8] sm:$0xff]
    %v4621 = vmax.f32 %v4613, %v4617
    %v4622 = vmax.f32 %v4614, %v4618
    %v4623 = vmax.f32 %v4615, %v4619
    %v4624 = vmax.f32 %v4616, %v4620
    %v4625 = vmax.f32 %v4621, %v4623
    %v4626 = vmax.f32 %v4622, %v4624
    %v4627 = vadd.f32 %v4625, %v4560
    %v4628 = vadd.f32 %v4626, %v4564
    %v4629 = vmax.f32 %v4627, 0.0
    %v4630 = vmax.f32 %v4628, 0.0
    %4631 = vst [vmem:[#allocation3 + $0x50] sm:$0xff] %v4629
    %4632 = vst [vmem:[#allocation3 + $0x58] sm:$0xff] %v4630
    %v4633 = vld [vmem:[#allocation2 + $0x100] sm:$0xff]
    %v4634 = vld [vmem:[#allocation2 + $0x108] sm:$0xff]
    %v4635 = vld [vmem:[#allocation2 + $0x110] sm:$0xff]
    %v4636 = vld [vmem:[#allocation2 + $0x118] sm:$0xff]
    %v4637 = vld [vmem:[#allocation2 + $0x120] sm:$0xff]
    %v4638 = vld [vmem:[#allocation2 + $0x128] sm:$0xff]
    %v4639 = vld [vmem:[#allocation2 + $0x130] sm:$0xff]
    %v4640 = vld [vmem:[#allocation2 + $0x138] sm:$0xff]
    %v4641 = vmax.f32 %v4633, %v4637
    %v4642 = vmax.f32 %v4634, %v4638
    %v4643 = vmax.f32 %v4635, %v4639
    %v4644 = vmax.f32 %v4636, %v4640
    %v4645 = vmax.f32 %v4641, %v4643
    %v4646 = vmax.f32 %v4642, %v4644
    %v4647 = vadd.f32 %v4645, %v4560
    %v4648 = vadd.f32 %v4646, %v4564
    %v4649 = vmax.f32 %v4647, 0.0
    %v4650 = vmax.f32 %v4648, 0.0
    %4651 = vst [vmem:[#allocation3 + $0x60] sm:$0xff] %v4649
    %4652 = vst [vmem:[#allocation3 + $0x68] sm:$0xff] %v4650
    %v4653 = vld [vmem:[#allocation2 + $0x140] sm:$0xff]
    %v4654 = vld [vmem:[#allocation2 + $0x148] sm:$0xff]
    %v4655 = vld [vmem:[#allocation2 + $0x150] sm:$0xff]
    %v4656 = vld [vmem:[#allocation2 + $0x158] sm:$0xff]
    %v4657 = vld [vmem:[#allocation2 + $0x160] sm:$0xff]
    %v4658 = vld [vmem:[#allocation2 + $0x168] sm:$0xff]
    %v4659 = vld [vmem:[#allocation2 + $0x170] sm:$0xff]
    %v4660 = vld [vmem:[#allocation2 + $0x178] sm:$0xff]
    %v4661 = vmax.f32 %v4653, %v4657
    %v4662 = vmax.f32 %v4654, %v4658
    %v4663 = vmax.f32 %v4655, %v4659
    %v4664 = vmax.f32 %v4656, %v4660
    %v4665 = vmax.f32 %v4661, %v4663
    %v4666 = vmax.f32 %v4662, %v4664
    %v4667 = vadd.f32 %v4665, %v4560
    %v4668 = vadd.f32 %v4666, %v4564
    %v4669 = vmax.f32 %v4667, 0.0
    %v4670 = vmax.f32 %v4668, 0.0
    %4671 = vst [vmem:[#allocation3 + $0x70] sm:$0xff] %v4669
    %4672 = vst [vmem:[#allocation3 + $0x78] sm:$0xff] %v4670
    %v4673 = vld [vmem:[#allocation2 + $0x180] sm:$0xff]
    %v4674 = vld [vmem:[#allocation2 + $0x188] sm:$0xff]
    %v4675 = vld [vmem:[#allocation2 + $0x190] sm:$0xff]
    %v4676 = vld [vmem:[#allocation2 + $0x198] sm:$0xff]
    %v4677 = vld [vmem:[#allocation2 + $0x1a0] sm:$0xff]
    %v4678 = vld [vmem:[#allocation2 + $0x1a8] sm:$0xff]
    %v4679 = vld [vmem:[#allocation2 + $0x1b0] sm:$0xff]
    %v4680 = vld [vmem:[#allocation2 + $0x1b8] sm:$0xff]
    %v4681 = vmax.f32 %v4673, %v4677
    %v4682 = vmax.f32 %v4674, %v4678
    %v4683 = vmax.f32 %v4675, %v4679
    %v4684 = vmax.f32 %v4676, %v4680
    %v4685 = vmax.f32 %v4681, %v4683
    %v4686 = vmax.f32 %v4682, %v4684
    %v4687 = vadd.f32 %v4685, %v4560
    %v4688 = vadd.f32 %v4686, %v4564
    %v4689 = vmax.f32 %v4687, 0.0
    %v4690 = vmax.f32 %v4688, 0.0
    %4691 = vst [vmem:[#allocation3 + $0x80] sm:$0xff] %v4689
    %4692 = vst [vmem:[#allocation3 + $0x88] sm:$0xff] %v4690
    %v4693 = vld [vmem:[#allocation2 + $0x1c0] sm:$0xff]
    %v4694 = vld [vmem:[#allocation2 + $0x1c8] sm:$0xff]
    %v4695 = vld [vmem:[#allocation2 + $0x1d0] sm:$0xff]
    %v4696 = vld [vmem:[#allocation2 + $0x1d8] sm:$0xff]
    %v4697 = vld [vmem:[#allocation2 + $0x1e0] sm:$0xff]
    %v4698 = vld [vmem:[#allocation2 + $0x1e8] sm:$0xff]
    %v4699 = vld [vmem:[#allocation2 + $0x1f0] sm:$0xff]
    %v4700 = vld [vmem:[#allocation2 + $0x1f8] sm:$0xff]
    %v4701 = vmax.f32 %v4693, %v4697
    %v4702 = vmax.f32 %v4694, %v4698
    %v4703 = vmax.f32 %v4695, %v4699
    %v4704 = vmax.f32 %v4696, %v4700
    %v4705 = vmax.f32 %v4701, %v4703
    %v4706 = vmax.f32 %v4702, %v4704
    %v4707 = vadd.f32 %v4705, %v4560
    %v4708 = vadd.f32 %v4706, %v4564
    %v4709 = vmax.f32 %v4707, 0.0
    %v4710 = vmax.f32 %v4708, 0.0
    %4711 = vst [vmem:[#allocation3 + $0x90] sm:$0xff] %v4709
    %4712 = vst [vmem:[#allocation3 + $0x98] sm:$0xff] %v4710
    %v4713 = vld [vmem:[#allocation2 + $0x200] sm:$0xff]
    %v4714 = vld [vmem:[#allocation2 + $0x208] sm:$0xff]
    %v4715 = vld [vmem:[#allocation2 + $0x210] sm:$0xff]
    %v4716 = vld [vmem:[#allocation2 + $0x218] sm:$0xff]
    %v4717 = vld [vmem:[#allocation2 + $0x220] sm:$0xff]
    %v4718 = vld [vmem:[#allocation2 + $0x228] sm:$0xff]
    %v4719 = vld [vmem:[#allocation2 + $0x230] sm:$0xff]
    %v4720 = vld [vmem:[#allocation2 + $0x238] sm:$0xff]
    %v4721 = vmax.f32 %v4713, %v4717
    %v4722 = vmax.f32 %v4714, %v4718
    %v4723 = vmax.f32 %v4715, %v4719
    %v4724 = vmax.f32 %v4716, %v4720
    %v4725 = vmax.f32 %v4721, %v4723
    %v4726 = vmax.f32 %v4722, %v4724
    %v4727 = vadd.f32 %v4725, %v4560
    %v4728 = vadd.f32 %v4726, %v4564
    %v4729 = vmax.f32 %v4727, 0.0
    %v4730 = vmax.f32 %v4728, 0.0
    %4731 = vst [vmem:[#allocation3 + $0xa0] sm:$0xff] %v4729
    %4732 = vst [vmem:[#allocation3 + $0xa8] sm:$0xff] %v4730
    %v4733 = vld [vmem:[#allocation2 + $0x240] sm:$0xff]
    %v4734 = vld [vmem:[#allocation2 + $0x248] sm:$0xff]
    %v4735 = vld [vmem:[#allocation2 + $0x250] sm:$0xff]
    %v4736 = vld [vmem:[#allocation2 + $0x258] sm:$0xff]
    %v4737 = vld [vmem:[#allocation2 + $0x260] sm:$0xff]
    %v4738 = vld [vmem:[#allocation2 + $0x268] sm:$0xff]
    %v4739 = vld [vmem:[#allocation2 + $0x270] sm:$0xff]
    %v4740 = vld [vmem:[#allocation2 + $0x278] sm:$0xff]
    %v4741 = vmax.f32 %v4733, %v4737
    %v4742 = vmax.f32 %v4734, %v4738
    %v4743 = vmax.f32 %v4735, %v4739
    %v4744 = vmax.f32 %v4736, %v4740
    %v4745 = vmax.f32 %v4741, %v4743
    %v4746 = vmax.f32 %v4742, %v4744
    %v4747 = vadd.f32 %v4745, %v4560
    %v4748 = vadd.f32 %v4746, %v4564
    %v4749 = vmax.f32 %v4747, 0.0
    %v4750 = vmax.f32 %v4748, 0.0
    %4751 = vst [vmem:[#allocation3 + $0xb0] sm:$0xff] %v4749
    %4752 = vst [vmem:[#allocation3 + $0xb8] sm:$0xff] %v4750
    %v4753 = vld [vmem:[#allocation2 + $0x280] sm:$0xff]
    %v4754 = vld [vmem:[#allocation2 + $0x288] sm:$0xff]
    %v4755 = vld [vmem:[#allocation2 + $0x290] sm:$0xff]
    %v4756 = vld [vmem:[#allocation2 + $0x298] sm:$0xff]
    %v4757 = vld [vmem:[#allocation2 + $0x2a0] sm:$0xff]
    %v4758 = vld [vmem:[#allocation2 + $0x2a8] sm:$0xff]
    %v4759 = vld [vmem:[#allocation2 + $0x2b0] sm:$0xff]
    %v4760 = vld [vmem:[#allocation2 + $0x2b8] sm:$0xff]
    %v4761 = vmax.f32 %v4753, %v4757
    %v4762 = vmax.f32 %v4754, %v4758
    %v4763 = vmax.f32 %v4755, %v4759
    %v4764 = vmax.f32 %v4756, %v4760
    %v4765 = vmax.f32 %v4761, %v4763
    %v4766 = vmax.f32 %v4762, %v4764
    %v4767 = vadd.f32 %v4765, %v4560
    %v4768 = vadd.f32 %v4766, %v4564
    %v4769 = vmax.f32 %v4767, 0.0
    %v4770 = vmax.f32 %v4768, 0.0
    %4771 = vst [vmem:[#allocation3 + $0xc0] sm:$0xff] %v4769
    %4772 = vst [vmem:[#allocation3 + $0xc8] sm:$0xff] %v4770
    %v4773 = vld [vmem:[#allocation2 + $0x2c0] sm:$0xff]
    %v4774 = vld [vmem:[#allocation2 + $0x2c8] sm:$0xff]
    %v4775 = vld [vmem:[#allocation2 + $0x2d0] sm:$0xff]
    %v4776 = vld [vmem:[#allocation2 + $0x2d8] sm:$0xff]
    %v4777 = vld [vmem:[#allocation2 + $0x2e0] sm:$0xff]
    %v4778 = vld [vmem:[#allocation2 + $0x2e8] sm:$0xff]
    %v4779 = vld [vmem:[#allocation2 + $0x2f0] sm:$0xff]
    %v4780 = vld [vmem:[#allocation2 + $0x2f8] sm:$0xff]
    %v4781 = vmax.f32 %v4773, %v4777
    %v4782 = vmax.f32 %v4774, %v4778
    %v4783 = vmax.f32 %v4775, %v4779
    %v4784 = vmax.f32 %v4776, %v4780
    %v4785 = vmax.f32 %v4781, %v4783
    %v4786 = vmax.f32 %v4782, %v4784
    %v4787 = vadd.f32 %v4785, %v4560
    %v4788 = vadd.f32 %v4786, %v4564
    %v4789 = vmax.f32 %v4787, 0.0
    %v4790 = vmax.f32 %v4788, 0.0
    %4791 = vst [vmem:[#allocation3 + $0xd0] sm:$0xff] %v4789
    %4792 = vst [vmem:[#allocation3 + $0xd8] sm:$0xff] %v4790
    %v4793 = vld [vmem:[#allocation2 + $0x300] sm:$0xff]
    %v4794 = vld [vmem:[#allocation2 + $0x308] sm:$0xff]
    %v4795 = vld [vmem:[#allocation2 + $0x310] sm:$0xff]
    %v4796 = vld [vmem:[#allocation2 + $0x318] sm:$0xff]
    %v4797 = vld [vmem:[#allocation2 + $0x320] sm:$0xff]
    %v4798 = vld [vmem:[#allocation2 + $0x328] sm:$0xff]
    %v4799 = vld [vmem:[#allocation2 + $0x330] sm:$0xff]
    %v4800 = vld [vmem:[#allocation2 + $0x338] sm:$0xff]
    %v4801 = vmax.f32 %v4793, %v4797
    %v4802 = vmax.f32 %v4794, %v4798
    %v4803 = vmax.f32 %v4795, %v4799
    %v4804 = vmax.f32 %v4796, %v4800
    %v4805 = vmax.f32 %v4801, %v4803
    %v4806 = vmax.f32 %v4802, %v4804
    %v4807 = vadd.f32 %v4805, %v4560
    %v4808 = vadd.f32 %v4806, %v4564
    %v4809 = vmax.f32 %v4807, 0.0
    %v4810 = vmax.f32 %v4808, 0.0
    %4811 = vst [vmem:[#allocation3 + $0xe0] sm:$0xff] %v4809
    %4812 = vst [vmem:[#allocation3 + $0xe8] sm:$0xff] %v4810
    %v4813 = vld [vmem:[#allocation2 + $0x340] sm:$0xff]
    %v4814 = vld [vmem:[#allocation2 + $0x348] sm:$0xff]
    %v4815 = vld [vmem:[#allocation2 + $0x350] sm:$0xff]
    %v4816 = vld [vmem:[#allocation2 + $0x358] sm:$0xff]
    %v4817 = vld [vmem:[#allocation2 + $0x360] sm:$0xff]
    %v4818 = vld [vmem:[#allocation2 + $0x368] sm:$0xff]
    %v4819 = vld [vmem:[#allocation2 + $0x370] sm:$0xff]
    %v4820 = vld [vmem:[#allocation2 + $0x378] sm:$0xff]
    %v4821 = vmax.f32 %v4813, %v4817
    %v4822 = vmax.f32 %v4814, %v4818
    %v4823 = vmax.f32 %v4815, %v4819
    %v4824 = vmax.f32 %v4816, %v4820
    %v4825 = vmax.f32 %v4821, %v4823
    %v4826 = vmax.f32 %v4822, %v4824
    %v4827 = vadd.f32 %v4825, %v4560
    %v4828 = vadd.f32 %v4826, %v4564
    %v4829 = vmax.f32 %v4827, 0.0
    %v4830 = vmax.f32 %v4828, 0.0
    %4831 = vst [vmem:[#allocation3 + $0xf0] sm:$0xff] %v4829
    %4832 = vst [vmem:[#allocation3 + $0xf8] sm:$0xff] %v4830
    %v4833 = vld [vmem:[#allocation3] sm:$0xff]
    %v4834 = vld [vmem:[#allocation3 + $0x8] sm:$0xff]
    %v4835 = vld [vmem:[#allocation3 + $0x10] sm:$0xff]
    %v4836 = vld [vmem:[#allocation3 + $0x18] sm:$0xff]
    %v4837 = vld [vmem:[#allocation3 + $0x20] sm:$0xff]
    %v4838 = vld [vmem:[#allocation3 + $0x28] sm:$0xff]
    %v4839 = vld [vmem:[#allocation3 + $0x30] sm:$0xff]
    %v4840 = vld [vmem:[#allocation3 + $0x38] sm:$0xff]
    %v4841 = vld [vmem:[#allocation3 + $0x40] sm:$0xff]
    %v4842 = vld [vmem:[#allocation3 + $0x48] sm:$0xff]
    %v4843 = vld [vmem:[#allocation3 + $0x50] sm:$0xff]
    %v4844 = vld [vmem:[#allocation3 + $0x58] sm:$0xff]
    %v4845 = vld [vmem:[#allocation3 + $0x60] sm:$0xff]
    %v4846 = vld [vmem:[#allocation3 + $0x68] sm:$0xff]
    %v4847 = vld [vmem:[#allocation3 + $0x70] sm:$0xff]
    %v4848 = vld [vmem:[#allocation3 + $0x78] sm:$0xff]
    %v4849 = vld [vmem:[#allocation3 + $0x80] sm:$0xff]
    %v4850 = vld [vmem:[#allocation3 + $0x88] sm:$0xff]
    %v4851 = vld [vmem:[#allocation3 + $0x90] sm:$0xff]
    %v4852 = vld [vmem:[#allocation3 + $0x98] sm:$0xff]
    %v4853 = vld [vmem:[#allocation3 + $0xa0] sm:$0xff]
    %v4854 = vld [vmem:[#allocation3 + $0xa8] sm:$0xff]
    %v4855 = vld [vmem:[#allocation3 + $0xb0] sm:$0xff]
    %v4856 = vld [vmem:[#allocation3 + $0xb8] sm:$0xff]
    %v4857 = vld [vmem:[#allocation3 + $0xc0] sm:$0xff]
    %v4858 = vld [vmem:[#allocation3 + $0xc8] sm:$0xff]
    %v4859 = vld [vmem:[#allocation3 + $0xd0] sm:$0xff]
    %v4860 = vld [vmem:[#allocation3 + $0xd8] sm:$0xff]
    %v4861 = vld [vmem:[#allocation10] sm:$0xff]
    %v4862 = vld [vmem:[#allocation10 + $0x8] sm:$0xff]
    %v4863 = vld [vmem:[#allocation10 + $0x10] sm:$0xff]
    %v4864 = vld [vmem:[#allocation10 + $0x18] sm:$0xff]
    %v4865 = vld [vmem:[#allocation10 + $0x20] sm:$0xff]
    %v4866 = vld [vmem:[#allocation10 + $0x28] sm:$0xff]
    %v4867 = vld [vmem:[#allocation10 + $0x30] sm:$0xff]
    %v4868 = vld [vmem:[#allocation10 + $0x38] sm:$0xff]
    %v4869 = vld [vmem:[#allocation10 + $0x40] sm:$0xff]
    %v4870 = vld [vmem:[#allocation10 + $0x48] sm:$0xff]
    %v4871 = vld [vmem:[#allocation10 + $0x50] sm:$0xff]
    %v4872 = vld [vmem:[#allocation10 + $0x58] sm:$0xff]
    %v4873 = vld [vmem:[#allocation10 + $0x60] sm:$0xff]
    %v4874 = vld [vmem:[#allocation10 + $0x68] sm:$0xff]
    %v4875 = vld [vmem:[#allocation10 + $0x70] sm:$0xff]
    %v4876 = vld [vmem:[#allocation10 + $0x78] sm:$0xff]
    %v4877 = vld [vmem:[#allocation10 + $0x80] sm:$0xff]
    %v4878 = vld [vmem:[#allocation10 + $0x88] sm:$0xff]
    %v4879 = vld [vmem:[#allocation10 + $0x90] sm:$0xff]
    %v4880 = vld [vmem:[#allocation10 + $0x98] sm:$0xff]
    %v4881 = vld [vmem:[#allocation10 + $0xa0] sm:$0xff]
    %v4882 = vld [vmem:[#allocation10 + $0xa8] sm:$0xff]
    %v4883 = vld [vmem:[#allocation10 + $0xb0] sm:$0xff]
    %v4884 = vld [vmem:[#allocation10 + $0xb8] sm:$0xff]
    %v4885 = vld [vmem:[#allocation10 + $0xc0] sm:$0xff]
    %v4886 = vld [vmem:[#allocation10 + $0xc8] sm:$0xff]
    %v4887 = vld [vmem:[#allocation10 + $0xd0] sm:$0xff]
    %v4888 = vld [vmem:[#allocation10 + $0xd8] sm:$0xff]
    %v4889 = vld [vmem:[#allocation10 + $0xe0] sm:$0xff]
    %v4890 = vld [vmem:[#allocation10 + $0xe8] sm:$0xff]
    %v4891 = vld [vmem:[#allocation10 + $0xf0] sm:$0xff]
    %v4892 = vld [vmem:[#allocation10 + $0xf8] sm:$0xff]
    %v4893 = vld [vmem:[#allocation10 + $0x100] sm:$0xff]
    %v4894 = vld [vmem:[#allocation10 + $0x108] sm:$0xff]
    %v4895 = vld [vmem:[#allocation10 + $0x110] sm:$0xff]
    %v4896 = vld [vmem:[#allocation10 + $0x118] sm:$0xff]
    %v4897 = vld [vmem:[#allocation10 + $0x120] sm:$0xff]
    %v4898 = vld [vmem:[#allocation10 + $0x128] sm:$0xff]
    %v4899 = vld [vmem:[#allocation10 + $0x130] sm:$0xff]
    %v4900 = vld [vmem:[#allocation10 + $0x138] sm:$0xff]
    %v4901 = vld [vmem:[#allocation10 + $0x140] sm:$0xff]
    %v4902 = vld [vmem:[#allocation10 + $0x148] sm:$0xff]
    %v4903 = vld [vmem:[#allocation10 + $0x150] sm:$0xff]
    %v4904 = vld [vmem:[#allocation10 + $0x158] sm:$0xff]
    %v4905 = vld [vmem:[#allocation10 + $0x160] sm:$0xff]
    %v4906 = vld [vmem:[#allocation10 + $0x168] sm:$0xff]
    %v4907 = vld [vmem:[#allocation10 + $0x170] sm:$0xff]
    %v4908 = vld [vmem:[#allocation10 + $0x178] sm:$0xff]
    %v4909 = vld [vmem:[#allocation10 + $0x180] sm:$0xff]
    %v4910 = vld [vmem:[#allocation10 + $0x188] sm:$0xff]
    %v4911 = vld [vmem:[#allocation10 + $0x190] sm:$0xff]
    %v4912 = vld [vmem:[#allocation10 + $0x198] sm:$0xff]
    %v4913 = vld [vmem:[#allocation10 + $0x1a0] sm:$0xff]
    %v4914 = vld [vmem:[#allocation10 + $0x1a8] sm:$0xff]
    %v4915 = vld [vmem:[#allocation10 + $0x1b0] sm:$0xff]
    %v4916 = vld [vmem:[#allocation10 + $0x1b8] sm:$0xff]
    %v4917 = vld [vmem:[#allocation10 + $0x1c0] sm:$0xff]
    %v4918 = vld [vmem:[#allocation10 + $0x1c8] sm:$0xff]
    %v4919 = vld [vmem:[#allocation10 + $0x1d0] sm:$0xff]
    %v4920 = vld [vmem:[#allocation10 + $0x1d8] sm:$0xff]
    %v4921 = vld [vmem:[#allocation10 + $0x1e0] sm:$0xff]
    %v4922 = vld [vmem:[#allocation10 + $0x1e8] sm:$0xff]
    %v4923 = vld [vmem:[#allocation10 + $0x1f0] sm:$0xff]
    %v4924 = vld [vmem:[#allocation10 + $0x1f8] sm:$0xff]
    %v4925 = vld [vmem:[#allocation10 + $0x200] sm:$0xff]
    %v4926 = vld [vmem:[#allocation10 + $0x208] sm:$0xff]
    %v4927 = vld [vmem:[#allocation10 + $0x210] sm:$0xff]
    %v4928 = vld [vmem:[#allocation10 + $0x218] sm:$0xff]
    %v4929 = vld [vmem:[#allocation10 + $0x220] sm:$0xff]
    %v4930 = vld [vmem:[#allocation10 + $0x228] sm:$0xff]
    %v4931 = vld [vmem:[#allocation10 + $0x230] sm:$0xff]
    %v4932 = vld [vmem:[#allocation10 + $0x238] sm:$0xff]
    %v4933 = vld [vmem:[#allocation10 + $0x240] sm:$0xff]
    %v4934 = vld [vmem:[#allocation10 + $0x248] sm:$0xff]
    %v4935 = vld [vmem:[#allocation10 + $0x250] sm:$0xff]
    %v4936 = vld [vmem:[#allocation10 + $0x258] sm:$0xff]
    %v4937 = vld [vmem:[#allocation10 + $0x260] sm:$0xff]
    %v4938 = vld [vmem:[#allocation10 + $0x268] sm:$0xff]
    %v4939 = vld [vmem:[#allocation10 + $0x270] sm:$0xff]
    %v4940 = vld [vmem:[#allocation10 + $0x278] sm:$0xff]
    %v4941 = vld [vmem:[#allocation10 + $0x280] sm:$0xff]
    %v4942 = vld [vmem:[#allocation10 + $0x288] sm:$0xff]
    %v4943 = vld [vmem:[#allocation10 + $0x290] sm:$0xff]
    %v4944 = vld [vmem:[#allocation10 + $0x298] sm:$0xff]
    %v4945 = vld [vmem:[#allocation10 + $0x2a0] sm:$0xff]
    %v4946 = vld [vmem:[#allocation10 + $0x2a8] sm:$0xff]
    %v4947 = vld [vmem:[#allocation10 + $0x2b0] sm:$0xff]
    %v4948 = vld [vmem:[#allocation10 + $0x2b8] sm:$0xff]
    %v4949 = vld [vmem:[#allocation10 + $0x2c0] sm:$0xff]
    %v4950 = vld [vmem:[#allocation10 + $0x2c8] sm:$0xff]
    %v4951 = vld [vmem:[#allocation10 + $0x2d0] sm:$0xff]
    %v4952 = vld [vmem:[#allocation10 + $0x2d8] sm:$0xff]
    %v4953 = vld [vmem:[#allocation10 + $0x2e0] sm:$0xff]
    %v4954 = vld [vmem:[#allocation10 + $0x2e8] sm:$0xff]
    %v4955 = vld [vmem:[#allocation10 + $0x2f0] sm:$0xff]
    %v4956 = vld [vmem:[#allocation10 + $0x2f8] sm:$0xff]
    %v4957 = vld [vmem:[#allocation10 + $0x300] sm:$0xff]
    %v4958 = vld [vmem:[#allocation10 + $0x308] sm:$0xff]
    %v4959 = vld [vmem:[#allocation10 + $0x310] sm:$0xff]
    %v4960 = vld [vmem:[#allocation10 + $0x318] sm:$0xff]
    %v4961 = vld [vmem:[#allocation10 + $0x320] sm:$0xff]
    %v4962 = vld [vmem:[#allocation10 + $0x328] sm:$0xff]
    %v4963 = vld [vmem:[#allocation10 + $0x330] sm:$0xff]
    %v4964 = vld [vmem:[#allocation10 + $0x338] sm:$0xff]
    %v4965 = vld [vmem:[#allocation10 + $0x340] sm:$0xff]
    %v4966 = vld [vmem:[#allocation10 + $0x348] sm:$0xff]
    %v4967 = vld [vmem:[#allocation10 + $0x350] sm:$0xff]
    %v4968 = vld [vmem:[#allocation10 + $0x358] sm:$0xff]
    %v4969 = vld [vmem:[#allocation10 + $0x360] sm:$0xff]
    %v4970 = vld [vmem:[#allocation10 + $0x368] sm:$0xff]
    %v4971 = vld [vmem:[#allocation10 + $0x370] sm:$0xff]
    %v4972 = vld [vmem:[#allocation10 + $0x378] sm:$0xff]
    %v4973 = vld [vmem:[#allocation10 + $0x380] sm:$0xff]
    %v4974 = vld [vmem:[#allocation10 + $0x388] sm:$0xff]
    %v4975 = vld [vmem:[#allocation10 + $0x390] sm:$0xff]
    %v4976 = vld [vmem:[#allocation10 + $0x398] sm:$0xff]
    %v4977 = vld [vmem:[#allocation10 + $0x3a0] sm:$0xff]
    %v4978 = vld [vmem:[#allocation10 + $0x3a8] sm:$0xff]
    %v4979 = vld [vmem:[#allocation10 + $0x3b0] sm:$0xff]
    %v4980 = vld [vmem:[#allocation10 + $0x3b8] sm:$0xff]
    %v4981 = vld [vmem:[#allocation10 + $0x3c0] sm:$0xff]
    %v4982 = vld [vmem:[#allocation10 + $0x3c8] sm:$0xff]
    %v4983 = vld [vmem:[#allocation10 + $0x3d0] sm:$0xff]
    %v4984 = vld [vmem:[#allocation10 + $0x3d8] sm:$0xff]
    %v4985 = vld [vmem:[#allocation10 + $0x3e0] sm:$0xff]
    %v4986 = vld [vmem:[#allocation10 + $0x3e8] sm:$0xff]
    %v4987 = vld [vmem:[#allocation10 + $0x3f0] sm:$0xff]
    %v4988 = vld [vmem:[#allocation10 + $0x3f8] sm:$0xff]
    %4989 = vmatprep.subr.mxu0 %v4862
    %4990 = vmatpush1.msra.mxu0 %v4861
    %4991 = vmatprep.subr.mxu0 %v4866
    %4992 = vmatpush1.msra.mxu0 %v4865
    %4993 = vmatprep.subr.mxu0 %v4870
    %4994 = vmatpush1.msra.mxu0 %v4869
    %4995 = vmatprep.subr.mxu0 %v4874
    %4996 = vmatpush1.msra.mxu0 %v4873
    %4997 = vmatprep.subr.mxu0 %v4878
    %4998 = vmatpush1.msra.mxu0 %v4877
    %4999 = vmatprep.subr.mxu0 %v4882
    %5000 = vmatpush1.msra.mxu0 %v4881
    %5001 = vmatprep.subr.mxu0 %v4886
    %5002 = vmatpush1.msra.mxu0 %v4885
    %5003 = vmatprep.subr.mxu0 %v4890
    %5004 = vmatpush1.msra.mxu0 %v4889
    %5005 = vmatprep.subr.mxu0 %v4894
    %5006 = vmatpush1.msra.mxu0 %v4893
    %5007 = vmatprep.subr.mxu0 %v4898
    %5008 = vmatpush1.msra.mxu0 %v4897
    %5009 = vmatprep.subr.mxu0 %v4902
    %5010 = vmatpush1.msra.mxu0 %v4901
    %5011 = vmatprep.subr.mxu0 %v4906
    %5012 = vmatpush1.msra.mxu0 %v4905
    %5013 = vmatprep.subr.mxu0 %v4910
    %5014 = vmatpush1.msra.mxu0 %v4909
    %5015 = vmatprep.subr.mxu0 %v4914
    %5016 = vmatpush1.msra.mxu0 %v4913
    %5017 = vmatprep.subr.mxu0 %v4918
    %5018 = vmatpush1.msra.mxu0 %v4917
    %5019 = vmatprep.subr.mxu0 %v4922
    %5020 = vmatpush1.msra.mxu0 %v4921
    %5021 = vmatprep.subr.mxu0 %v4926
    %5022 = vmatpush1.msra.mxu0 %v4925
    %5023 = vmatprep.subr.mxu0 %v4930
    %5024 = vmatpush1.msra.mxu0 %v4929
    %5025 = vmatprep.subr.mxu0 %v4934
    %5026 = vmatpush1.msra.mxu0 %v4933
    %5027 = vmatprep.subr.mxu0 %v4938
    %5028 = vmatpush1.msra.mxu0 %v4937
    %5029 = vmatprep.subr.mxu0 %v4942
    %5030 = vmatpush1.msra.mxu0 %v4941
    %5031 = vmatprep.subr.mxu0 %v4946
    %5032 = vmatpush1.msra.mxu0 %v4945
    %5033 = vmatprep.subr.mxu0 %v4950
    %5034 = vmatpush1.msra.mxu0 %v4949
    %5035 = vmatprep.subr.mxu0 %v4954
    %5036 = vmatpush1.msra.mxu0 %v4953
    %5037 = vmatprep.subr.mxu0 %v4958
    %5038 = vmatpush1.msra.mxu0 %v4957
    %5039 = vmatprep.subr.mxu0 %v4962
    %5040 = vmatpush1.msra.mxu0 %v4961
    %5041 = vmatprep.subr.mxu0 %v4966
    %5042 = vmatpush1.msra.mxu0 %v4965
    %5043 = vmatprep.subr.mxu0 %v4970
    %5044 = vmatpush1.msra.mxu0 %v4969
    %5045 = vmatprep.subr.mxu0 %v4974
    %5046 = vmatpush1.msra.mxu0 %v4973
    %5047 = vmatprep.subr.mxu0 %v4978
    %5048 = vmatpush1.msra.mxu0 %v4977
    %5049 = vmatprep.subr.mxu0 %v4982
    %5050 = vmatpush1.msra.mxu0 %v4981
    %5051 = vmatprep.subr.mxu0 %v4986
    %5052 = vmatpush1.msra.mxu0 %v4985
    %5053 = vmatprep.mubr.f32.mxu0 %v4834
    %5054 = vmatmul.mubr.f32.gmra.mrb[0].mxu0 %v4833
    %v5055 = vpop.f32.mrb[0].mxu0
    %v5056 = vadd.f32 0.0, %v5055
    %v5057 = vpop.f32.mrb[0].mxu0
    %v5058 = vadd.f32 0.0, %v5057
    %5059 = vmatprep.mubr.f32.mxu0 %v4836
    %5060 = vmatmul.mubr.f32.gmra.mrb[0].mxu0 %v4835
    %v5061 = vpop.f32.mrb[0].mxu0
    %v5062 = vadd.f32 0.0, %v5061
    %v5063 = vpop.f32.mrb[0].mxu0
    %v5064 = vadd.f32 0.0, %v5063
    %5065 = vmatprep.mubr.f32.mxu0 %v4838
    %5066 = vmatmul.mubr.f32.gmra.mrb[0].mxu0 %v4837
    %v5067 = vpop.f32.mrb[0].mxu0
    %v5068 = vadd.f32 0.0, %v5067
    %v5069 = vpop.f32.mrb[0].mxu0
    %v5070 = vadd.f32 0.0, %v5069
    %5071 = vmatprep.mubr.f32.mxu0 %v4840
    %5072 = vmatmul.mubr.f32.gmra.mrb[0].mxu0 %v4839
    %v5073 = vpop.f32.mrb[0].mxu0
    %v5074 = vadd.f32 0.0, %v5073
    %v5075 = vpop.f32.mrb[0].mxu0
    %v5076 = vadd.f32 0.0, %v5075
    %5077 = vmatprep.mubr.f32.mxu0 %v4842
    %5078 = vmatmul.mubr.f32.gmra.mrb[0].mxu0 %v4841
    %v5079 = vpop.f32.mrb[0].mxu0
    %v5080 = vadd.f32 0.0, %v5079
    %v5081 = vpop.f32.mrb[0].mxu0
    %v5082 = vadd.f32 0.0, %v5081
    %5083 = vmatprep.mubr.f32.mxu0 %v4844
    %5084 = vmatmul.mubr.f32.gmra.mrb[0].mxu0 %v4843
    %v5085 = vpop.f32.mrb[0].mxu0
    %v5086 = vadd.f32 0.0, %v5085
    %v5087 = vpop.f32.mrb[0].mxu0
    %v5088 = vadd.f32 0.0, %v5087
    %5089 = vmatprep.mubr.f32.mxu0 %v4846
    %5090 = vmatmul.mubr.f32.gmra.mrb[0].mxu0 %v4845
    %v5091 = vpop.f32.mrb[0].mxu0
    %v5092 = vadd.f32 0.0, %v5091
    %v5093 = vpop.f32.mrb[0].mxu0
    %v5094 = vadd.f32 0.0, %v5093
    %5095 = vmatprep.mubr.f32.mxu0 %v4848
    %5096 = vmatmul.mubr.f32.gmra.mrb[0].mxu0 %v4847
    %v5097 = vpop.f32.mrb[0].mxu0
    %v5098 = vadd.f32 0.0, %v5097
    %v5099 = vpop.f32.mrb[0].mxu0
    %v5100 = vadd.f32 0.0, %v5099
    %5101 = vmatprep.mubr.f32.mxu0 %v4850
    %5102 = vmatmul.mubr.f32.gmra.mrb[0].mxu0 %v4849
    %v5103 = vpop.f32.mrb[0].mxu0
    %v5104 = vadd.f32 0.0, %v5103
    %v5105 = vpop.f32.mrb[0].mxu0
    %v5106 = vadd.f32 0.0, %v5105
    %5107 = vmatprep.mubr.f32.mxu0 %v4852
    %5108 = vmatmul.mubr.f32.gmra.mrb[0].mxu0 %v4851
    %v5109 = vpop.f32.mrb[0].mxu0
    %v5110 = vadd.f32 0.0, %v5109
    %v5111 = vpop.f32.mrb[0].mxu0
    %v5112 = vadd.f32 0.0, %v5111
    %5113 = vmatprep.mubr.f32.mxu0 %v4854
    %5114 = vmatmul.mubr.f32.gmra.mrb[0].mxu0 %v4853
    %v5115 = vpop.f32.mrb[0].mxu0
    %v5116 = vadd.f32 0.0, %v5115
    %v5117 = vpop.f32.mrb[0].mxu0
    %v5118 = vadd.f32 0.0, %v5117
    %5119 = vmatprep.mubr.f32.mxu0 %v4856
    %5120 = vmatmul.mubr.f32.gmra.mrb[0].mxu0 %v4855
    %v5121 = vpop.f32.mrb[0].mxu0
    %v5122 = vadd.f32 0.0, %v5121
    %v5123 = vpop.f32.mrb[0].mxu0
    %v5124 = vadd.f32 0.0, %v5123
    %5125 = vmatprep.mubr.f32.mxu0 %v4858
    %5126 = vmatmul.mubr.f32.gmra.mrb[0].mxu0 %v4857
    %v5127 = vpop.f32.mrb[0].mxu0
    %v5128 = vadd.f32 0.0, %v5127
    %v5129 = vpop.f32.mrb[0].mxu0
    %v5130 = vadd.f32 0.0, %v5129
    %5131 = vmatprep.mubr.f32.mxu0 %v4860
    %5132 = vmatmul.mubr.f32.gmra.mrb[0].mxu0 %v4859
    %v5133 = vpop.f32.mrb[0].mxu0
    %v5134 = vadd.f32 0.0, %v5133
    %v5135 = vpop.f32.mrb[0].mxu0
    %v5136 = vadd.f32 0.0, %v5135
    %5137 = vdwg.mxu0
    %5138 = vmatprep.subr.mxu0 %v4864
    %5139 = vmatpush1.msra.mxu0 %v4863
    %5140 = vmatprep.subr.mxu0 %v4868
    %5141 = vmatpush1.msra.mxu0 %v4867
    %5142 = vmatprep.subr.mxu0 %v4872
    %5143 = vmatpush1.msra.mxu0 %v4871
    %5144 = vmatprep.subr.mxu0 %v4876
    %5145 = vmatpush1.msra.mxu0 %v4875
    %5146 = vmatprep.subr.mxu0 %v4880
    %5147 = vmatpush1.msra.mxu0 %v4879
    %5148 = vmatprep.subr.mxu0 %v4884
    %5149 = vmatpush1.msra.mxu0 %v4883
    %5150 = vmatprep.subr.mxu0 %v4888
    %5151 = vmatpush1.msra.mxu0 %v4887
    %5152 = vmatprep.subr.mxu0 %v4892
    %5153 = vmatpush1.msra.mxu0 %v4891
    %5154 = vmatprep.subr.mxu0 %v4896
    %5155 = vmatpush1.msra.mxu0 %v4895
    %5156 = vmatprep.subr.mxu0 %v4900
    %5157 = vmatpush1.msra.mxu0 %v4899
    %5158 = vmatprep.subr.mxu0 %v4904
    %5159 = vmatpush1.msra.mxu0 %v4903
    %5160 = vmatprep.subr.mxu0 %v4908
    %5161 = vmatpush1.msra.mxu0 %v4907
    %5162 = vmatprep.subr.mxu0 %v4912
    %5163 = vmatpush1.msra.mxu0 %v4911
    %5164 = vmatprep.subr.mxu0 %v4916
    %5165 = vmatpush1.msra.mxu0 %v4915
    %5166 = vmatprep.subr.mxu0 %v4920
    %5167 = vmatpush1.msra.mxu0 %v4919
    %5168 = vmatprep.subr.mxu0 %v4924
    %5169 = vmatpush1.msra.mxu0 %v4923
    %5170 = vmatprep.subr.mxu0 %v4928
    %5171 = vmatpush1.msra.mxu0 %v4927
    %5172 = vmatprep.subr.mxu0 %v4932
    %5173 = vmatpush1.msra.mxu0 %v4931
    %5174 = vmatprep.subr.mxu0 %v4936
    %5175 = vmatpush1.msra.mxu0 %v4935
    %5176 = vmatprep.subr.mxu0 %v4940
    %5177 = vmatpush1.msra.mxu0 %v4939
    %5178 = vmatprep.subr.mxu0 %v4944
    %5179 = vmatpush1.msra.mxu0 %v4943
    %5180 = vmatprep.subr.mxu0 %v4948
    %5181 = vmatpush1.msra.mxu0 %v4947
    %5182 = vmatprep.subr.mxu0 %v4952
    %5183 = vmatpush1.msra.mxu0 %v4951
    %5184 = vmatprep.subr.mxu0 %v4956
    %5185 = vmatpush1.msra.mxu0 %v4955
    %5186 = vmatprep.subr.mxu0 %v4960
    %5187 = vmatpush1.msra.mxu0 %v4959
    %5188 = vmatprep.subr.mxu0 %v4964
    %5189 = vmatpush1.msra.mxu0 %v4963
    %5190 = vmatprep.subr.mxu0 %v4968
    %5191 = vmatpush1.msra.mxu0 %v4967
    %5192 = vmatprep.subr.mxu0 %v4972
    %5193 = vmatpush1.msra.mxu0 %v4971
    %5194 = vmatprep.subr.mxu0 %v4976
    %5195 = vmatpush1.msra.mxu0 %v4975
    %5196 = vmatprep.subr.mxu0 %v4980
    %5197 = vmatpush1.msra.mxu0 %v4979
    %5198 = vmatprep.subr.mxu0 %v4984
    %5199 = vmatpush1.msra.mxu0 %v4983
    %5200 = vmatprep.subr.mxu0 %v4988
    %5201 = vmatpush1.msra.mxu0 %v4987
    %5202 = vmatprep.mubr.f32.mxu0 %v4834
    %5203 = vmatmul.mubr.f32.gmra.mrb[0].mxu0 %v4833
    %v5204 = vpop.f32.mrb[0].mxu0
    %v5205 = vadd.f32 0.0, %v5204
    %v5206 = vpop.f32.mrb[0].mxu0
    %v5207 = vadd.f32 0.0, %v5206
    %5208 = vmatprep.mubr.f32.mxu0 %v4836
    %5209 = vmatmul.mubr.f32.gmra.mrb[0].mxu0 %v4835
    %v5210 = vpop.f32.mrb[0].mxu0
    %v5211 = vadd.f32 0.0, %v5210
    %v5212 = vpop.f32.mrb[0].mxu0
    %v5213 = vadd.f32 0.0, %v5212
    %5214 = vmatprep.mubr.f32.mxu0 %v4838
    %5215 = vmatmul.mubr.f32.gmra.mrb[0].mxu0 %v4837
    %v5216 = vpop.f32.mrb[0].mxu0
    %v5217 = vadd.f32 0.0, %v5216
    %v5218 = vpop.f32.mrb[0].mxu0
    %v5219 = vadd.f32 0.0, %v5218
    %5220 = vmatprep.mubr.f32.mxu0 %v4840
    %5221 = vmatmul.mubr.f32.gmra.mrb[0].mxu0 %v4839
    %v5222 = vpop.f32.mrb[0].mxu0
    %v5223 = vadd.f32 0.0, %v5222
    %v5224 = vpop.f32.mrb[0].mxu0
    %v5225 = vadd.f32 0.0, %v5224
    %5226 = vmatprep.mubr.f32.mxu0 %v4842
    %5227 = vmatmul.mubr.f32.gmra.mrb[0].mxu0 %v4841
    %v5228 = vpop.f32.mrb[0].mxu0
    %v5229 = vadd.f32 0.0, %v5228
    %v5230 = vpop.f32.mrb[0].mxu0
    %v5231 = vadd.f32 0.0, %v5230
    %5232 = vmatprep.mubr.f32.mxu0 %v4844
    %5233 = vmatmul.mubr.f32.gmra.mrb[0].mxu0 %v4843
    %v5234 = vpop.f32.mrb[0].mxu0
    %v5235 = vadd.f32 0.0, %v5234
    %v5236 = vpop.f32.mrb[0].mxu0
    %v5237 = vadd.f32 0.0, %v5236
    %5238 = vmatprep.mubr.f32.mxu0 %v4846
    %5239 = vmatmul.mubr.f32.gmra.mrb[0].mxu0 %v4845
    %v5240 = vpop.f32.mrb[0].mxu0
    %v5241 = vadd.f32 0.0, %v5240
    %v5242 = vpop.f32.mrb[0].mxu0
    %v5243 = vadd.f32 0.0, %v5242
    %5244 = vmatprep.mubr.f32.mxu0 %v4848
    %5245 = vmatmul.mubr.f32.gmra.mrb[0].mxu0 %v4847
    %v5246 = vpop.f32.mrb[0].mxu0
    %v5247 = vadd.f32 0.0, %v5246
    %v5248 = vpop.f32.mrb[0].mxu0
    %v5249 = vadd.f32 0.0, %v5248
    %5250 = vmatprep.mubr.f32.mxu0 %v4850
    %5251 = vmatmul.mubr.f32.gmra.mrb[0].mxu0 %v4849
    %v5252 = vpop.f32.mrb[0].mxu0
    %v5253 = vadd.f32 0.0, %v5252
    %v5254 = vpop.f32.mrb[0].mxu0
    %v5255 = vadd.f32 0.0, %v5254
    %5256 = vmatprep.mubr.f32.mxu0 %v4852
    %5257 = vmatmul.mubr.f32.gmra.mrb[0].mxu0 %v4851
    %v5258 = vpop.f32.mrb[0].mxu0
    %v5259 = vadd.f32 0.0, %v5258
    %v5260 = vpop.f32.mrb[0].mxu0
    %v5261 = vadd.f32 0.0, %v5260
    %5262 = vmatprep.mubr.f32.mxu0 %v4854
    %5263 = vmatmul.mubr.f32.gmra.mrb[0].mxu0 %v4853
    %v5264 = vpop.f32.mrb[0].mxu0
    %v5265 = vadd.f32 0.0, %v5264
    %v5266 = vpop.f32.mrb[0].mxu0
    %v5267 = vadd.f32 0.0, %v5266
    %5268 = vmatprep.mubr.f32.mxu0 %v4856
    %5269 = vmatmul.mubr.f32.gmra.mrb[0].mxu0 %v4855
    %v5270 = vpop.f32.mrb[0].mxu0
    %v5271 = vadd.f32 0.0, %v5270
    %v5272 = vpop.f32.mrb[0].mxu0
    %v5273 = vadd.f32 0.0, %v5272
    %5274 = vmatprep.mubr.f32.mxu0 %v4858
    %5275 = vmatmul.mubr.f32.gmra.mrb[0].mxu0 %v4857
    %v5276 = vpop.f32.mrb[0].mxu0
    %v5277 = vadd.f32 0.0, %v5276
    %v5278 = vpop.f32.mrb[0].mxu0
    %v5279 = vadd.f32 0.0, %v5278
    %5280 = vmatprep.mubr.f32.mxu0 %v4860
    %5281 = vmatmul.mubr.f32.gmra.mrb[0].mxu0 %v4859
    %v5282 = vpop.f32.mrb[0].mxu0
    %v5283 = vadd.f32 0.0, %v5282
    %v5284 = vpop.f32.mrb[0].mxu0
    %v5285 = vadd.f32 0.0, %v5284
    %5286 = vdwg.mxu0
    %5287 = vst [vmem:[#allocation4] sm:$0xff] %v5056
    %5288 = vst [vmem:[#allocation4 + $0x8] sm:$0xff] %v5058
    %5289 = vst [vmem:[#allocation4 + $0x10] sm:$0xff] %v5205
    %5290 = vst [vmem:[#allocation4 + $0x18] sm:$0xff] %v5207
    %5291 = vst [vmem:[#allocation4 + $0x20] sm:$0xff] %v5062
    %5292 = vst [vmem:[#allocation4 + $0x28] sm:$0xff] %v5064
    %5293 = vst [vmem:[#allocation4 + $0x30] sm:$0xff] %v5211
    %5294 = vst [vmem:[#allocation4 + $0x38] sm:$0xff] %v5213
    %5295 = vst [vmem:[#allocation4 + $0x40] sm:$0xff] %v5068
    %5296 = vst [vmem:[#allocation4 + $0x48] sm:$0xff] %v5070
    %5297 = vst [vmem:[#allocation4 + $0x50] sm:$0xff] %v5217
    %5298 = vst [vmem:[#allocation4 + $0x58] sm:$0xff] %v5219
    %5299 = vst [vmem:[#allocation4 + $0x60] sm:$0xff] %v5074
    %5300 = vst [vmem:[#allocation4 + $0x68] sm:$0xff] %v5076
    %5301 = vst [vmem:[#allocation4 + $0x70] sm:$0xff] %v5223
    %5302 = vst [vmem:[#allocation4 + $0x78] sm:$0xff] %v5225
    %5303 = vst [vmem:[#allocation4 + $0x80] sm:$0xff] %v5080
    %5304 = vst [vmem:[#allocation4 + $0x88] sm:$0xff] %v5082
    %5305 = vst [vmem:[#allocation4 + $0x90] sm:$0xff] %v5229
    %5306 = vst [vmem:[#allocation4 + $0x98] sm:$0xff] %v5231
    %5307 = vst [vmem:[#allocation4 + $0xa0] sm:$0xff] %v5086
    %5308 = vst [vmem:[#allocation4 + $0xa8] sm:$0xff] %v5088
    %5309 = vst [vmem:[#allocation4 + $0xb0] sm:$0xff] %v5235
    %5310 = vst [vmem:[#allocation4 + $0xb8] sm:$0xff] %v5237
    %5311 = vst [vmem:[#allocation4 + $0xc0] sm:$0xff] %v5092
    %5312 = vst [vmem:[#allocation4 + $0xc8] sm:$0xff] %v5094
    %5313 = vst [vmem:[#allocation4 + $0xd0] sm:$0xff] %v5241
    %5314 = vst [vmem:[#allocation4 + $0xd8] sm:$0xff] %v5243
    %5315 = vst [vmem:[#allocation4 + $0xe0] sm:$0xff] %v5098
    %5316 = vst [vmem:[#allocation4 + $0xe8] sm:$0xff] %v5100
    %5317 = vst [vmem:[#allocation4 + $0xf0] sm:$0xff] %v5247
    %5318 = vst [vmem:[#allocation4 + $0xf8] sm:$0xff] %v5249
    %5319 = vst [vmem:[#allocation4 + $0x100] sm:$0xff] %v5104
    %5320 = vst [vmem:[#allocation4 + $0x108] sm:$0xff] %v5106
    %5321 = vst [vmem:[#allocation4 + $0x110] sm:$0xff] %v5253
    %5322 = vst [vmem:[#allocation4 + $0x118] sm:$0xff] %v5255
    %5323 = vst [vmem:[#allocation4 + $0x120] sm:$0xff] %v5110
    %5324 = vst [vmem:[#allocation4 + $0x128] sm:$0xff] %v5112
    %5325 = vst [vmem:[#allocation4 + $0x130] sm:$0xff] %v5259
    %5326 = vst [vmem:[#allocation4 + $0x138] sm:$0xff] %v5261
    %5327 = vst [vmem:[#allocation4 + $0x140] sm:$0xff] %v5116
    %5328 = vst [vmem:[#allocation4 + $0x148] sm:$0xff] %v5118
    %5329 = vst [vmem:[#allocation4 + $0x150] sm:$0xff] %v5265
    %5330 = vst [vmem:[#allocation4 + $0x158] sm:$0xff] %v5267
    %5331 = vst [vmem:[#allocation4 + $0x160] sm:$0xff] %v5122
    %5332 = vst [vmem:[#allocation4 + $0x168] sm:$0xff] %v5124
    %5333 = vst [vmem:[#allocation4 + $0x170] sm:$0xff] %v5271
    %5334 = vst [vmem:[#allocation4 + $0x178] sm:$0xff] %v5273
    %5335 = vst [vmem:[#allocation4 + $0x180] sm:$0xff] %v5128
    %5336 = vst [vmem:[#allocation4 + $0x188] sm:$0xff] %v5130
    %5337 = vst [vmem:[#allocation4 + $0x190] sm:$0xff] %v5277
    %5338 = vst [vmem:[#allocation4 + $0x198] sm:$0xff] %v5279
    %5339 = vst [vmem:[#allocation4 + $0x1a0] sm:$0xff] %v5134
    %5340 = vst [vmem:[#allocation4 + $0x1a8] sm:$0xff] %v5136
    %5341 = vst [vmem:[#allocation4 + $0x1b0] sm:$0xff] %v5283
    %5342 = vst [vmem:[#allocation4 + $0x1b8] sm:$0xff] %v5285
    %v5343 = vld [vmem:[#allocation3 + $0x10] sm:$0xff]
    %v5344 = vld [vmem:[#allocation3 + $0x18] sm:$0xff]
    %v5345 = vld [vmem:[#allocation3 + $0x20] sm:$0xff]
    %v5346 = vld [vmem:[#allocation3 + $0x28] sm:$0xff]
    %v5347 = vld [vmem:[#allocation3 + $0x30] sm:$0xff]
    %v5348 = vld [vmem:[#allocation3 + $0x38] sm:$0xff]
    %v5349 = vld [vmem:[#allocation3 + $0x40] sm:$0xff]
    %v5350 = vld [vmem:[#allocation3 + $0x48] sm:$0xff]
    %v5351 = vld [vmem:[#allocation3 + $0x50] sm:$0xff]
    %v5352 = vld [vmem:[#allocation3 + $0x58] sm:$0xff]
    %v5353 = vld [vmem:[#allocation3 + $0x60] sm:$0xff]
    %v5354 = vld [vmem:[#allocation3 + $0x68] sm:$0xff]
    %v5355 = vld [vmem:[#allocation3 + $0x70] sm:$0xff]
    %v5356 = vld [vmem:[#allocation3 + $0x78] sm:$0xff]
    %v5357 = vld [vmem:[#allocation3 + $0x80] sm:$0xff]
    %v5358 = vld [vmem:[#allocation3 + $0x88] sm:$0xff]
    %v5359 = vld [vmem:[#allocation3 + $0x90] sm:$0xff]
    %v5360 = vld [vmem:[#allocation3 + $0x98] sm:$0xff]
    %v5361 = vld [vmem:[#allocation3 + $0xa0] sm:$0xff]
    %v5362 = vld [vmem:[#allocation3 + $0xa8] sm:$0xff]
    %v5363 = vld [vmem:[#allocation3 + $0xb0] sm:$0xff]
    %v5364 = vld [vmem:[#allocation3 + $0xb8] sm:$0xff]
    %v5365 = vld [vmem:[#allocation3 + $0xc0] sm:$0xff]
    %v5366 = vld [vmem:[#allocation3 + $0xc8] sm:$0xff]
    %v5367 = vld [vmem:[#allocation3 + $0xd0] sm:$0xff]
    %v5368 = vld [vmem:[#allocation3 + $0xd8] sm:$0xff]
    %v5369 = vld [vmem:[#allocation3 + $0xe0] sm:$0xff]
    %v5370 = vld [vmem:[#allocation3 + $0xe8] sm:$0xff]
    %s5371 = scalar_lea.vmem [#allocation10], 1024
    %v5372 = vld [vmem:[%s5371] sm:$0xff]
    %v5373 = vld [vmem:[%s5371 + $0x8] sm:$0xff]
    %v5374 = vld [vmem:[%s5371 + $0x10] sm:$0xff]
    %v5375 = vld [vmem:[%s5371 + $0x18] sm:$0xff]
    %v5376 = vld [vmem:[%s5371 + $0x20] sm:$0xff]
    %v5377 = vld [vmem:[%s5371 + $0x28] sm:$0xff]
    %v5378 = vld [vmem:[%s5371 + $0x30] sm:$0xff]
    %v5379 = vld [vmem:[%s5371 + $0x38] sm:$0xff]
    %v5380 = vld [vmem:[%s5371 + $0x40] sm:$0xff]
    %v5381 = vld [vmem:[%s5371 + $0x48] sm:$0xff]
    %v5382 = vld [vmem:[%s5371 + $0x50] sm:$0xff]
    %v5383 = vld [vmem:[%s5371 + $0x58] sm:$0xff]
    %v5384 = vld [vmem:[%s5371 + $0x60] sm:$0xff]
    %v5385 = vld [vmem:[%s5371 + $0x68] sm:$0xff]
    %v5386 = vld [vmem:[%s5371 + $0x70] sm:$0xff]
    %v5387 = vld [vmem:[%s5371 + $0x78] sm:$0xff]
    %v5388 = vld [vmem:[%s5371 + $0x80] sm:$0xff]
    %v5389 = vld [vmem:[%s5371 + $0x88] sm:$0xff]
    %v5390 = vld [vmem:[%s5371 + $0x90] sm:$0xff]
    %v5391 = vld [vmem:[%s5371 + $0x98] sm:$0xff]
    %v5392 = vld [vmem:[%s5371 + $0xa0] sm:$0xff]
    %v5393 = vld [vmem:[%s5371 + $0xa8] sm:$0xff]
    %v5394 = vld [vmem:[%s5371 + $0xb0] sm:$0xff]
    %v5395 = vld [vmem:[%s5371 + $0xb8] sm:$0xff]
    %v5396 = vld [vmem:[%s5371 + $0xc0] sm:$0xff]
    %v5397 = vld [vmem:[%s5371 + $0xc8] sm:$0xff]
    %v5398 = vld [vmem:[%s5371 + $0xd0] sm:$0xff]
    %v5399 = vld [vmem:[%s5371 + $0xd8] sm:$0xff]
    %v5400 = vld [vmem:[%s5371 + $0xe0] sm:$0xff]
    %v5401 = vld [vmem:[%s5371 + $0xe8] sm:$0xff]
    %v5402 = vld [vmem:[%s5371 + $0xf0] sm:$0xff]
    %v5403 = vld [vmem:[%s5371 + $0xf8] sm:$0xff]
    %v5404 = vld [vmem:[%s5371 + $0x100] sm:$0xff]
    %v5405 = vld [vmem:[%s5371 + $0x108] sm:$0xff]
    %v5406 = vld [vmem:[%s5371 + $0x110] sm:$0xff]
    %v5407 = vld [vmem:[%s5371 + $0x118] sm:$0xff]
    %v5408 = vld [vmem:[%s5371 + $0x120] sm:$0xff]
    %v5409 = vld [vmem:[%s5371 + $0x128] sm:$0xff]
    %v5410 = vld [vmem:[%s5371 + $0x130] sm:$0xff]
    %v5411 = vld [vmem:[%s5371 + $0x138] sm:$0xff]
    %v5412 = vld [vmem:[%s5371 + $0x140] sm:$0xff]
    %v5413 = vld [vmem:[%s5371 + $0x148] sm:$0xff]
    %v5414 = vld [vmem:[%s5371 + $0x150] sm:$0xff]
    %v5415 = vld [vmem:[%s5371 + $0x158] sm:$0xff]
    %v5416 = vld [vmem:[%s5371 + $0x160] sm:$0xff]
    %v5417 = vld [vmem:[%s5371 + $0x168] sm:$0xff]
    %v5418 = vld [vmem:[%s5371 + $0x170] sm:$0xff]
    %v5419 = vld [vmem:[%s5371 + $0x178] sm:$0xff]
    %v5420 = vld [vmem:[%s5371 + $0x180] sm:$0xff]
    %v5421 = vld [vmem:[%s5371 + $0x188] sm:$0xff]
    %v5422 = vld [vmem:[%s5371 + $0x190] sm:$0xff]
    %v5423 = vld [vmem:[%s5371 + $0x198] sm:$0xff]
    %v5424 = vld [vmem:[%s5371 + $0x1a0] sm:$0xff]
    %v5425 = vld [vmem:[%s5371 + $0x1a8] sm:$0xff]
    %v5426 = vld [vmem:[%s5371 + $0x1b0] sm:$0xff]
    %v5427 = vld [vmem:[%s5371 + $0x1b8] sm:$0xff]
    %v5428 = vld [vmem:[%s5371 + $0x1c0] sm:$0xff]
    %v5429 = vld [vmem:[%s5371 + $0x1c8] sm:$0xff]
    %v5430 = vld [vmem:[%s5371 + $0x1d0] sm:$0xff]
    %v5431 = vld [vmem:[%s5371 + $0x1d8] sm:$0xff]
    %v5432 = vld [vmem:[%s5371 + $0x1e0] sm:$0xff]
    %v5433 = vld [vmem:[%s5371 + $0x1e8] sm:$0xff]
    %v5434 = vld [vmem:[%s5371 + $0x1f0] sm:$0xff]
    %v5435 = vld [vmem:[%s5371 + $0x1f8] sm:$0xff]
    %v5436 = vld [vmem:[%s5371 + $0x200] sm:$0xff]
    %v5437 = vld [vmem:[%s5371 + $0x208] sm:$0xff]
    %v5438 = vld [vmem:[%s5371 + $0x210] sm:$0xff]
    %v5439 = vld [vmem:[%s5371 + $0x218] sm:$0xff]
    %v5440 = vld [vmem:[%s5371 + $0x220] sm:$0xff]
    %v5441 = vld [vmem:[%s5371 + $0x228] sm:$0xff]
    %v5442 = vld [vmem:[%s5371 + $0x230] sm:$0xff]
    %v5443 = vld [vmem:[%s5371 + $0x238] sm:$0xff]
    %v5444 = vld [vmem:[%s5371 + $0x240] sm:$0xff]
    %v5445 = vld [vmem:[%s5371 + $0x248] sm:$0xff]
    %v5446 = vld [vmem:[%s5371 + $0x250] sm:$0xff]
    %v5447 = vld [vmem:[%s5371 + $0x258] sm:$0xff]
    %v5448 = vld [vmem:[%s5371 + $0x260] sm:$0xff]
    %v5449 = vld [vmem:[%s5371 + $0x268] sm:$0xff]
    %v5450 = vld [vmem:[%s5371 + $0x270] sm:$0xff]
    %v5451 = vld [vmem:[%s5371 + $0x278] sm:$0xff]
    %v5452 = vld [vmem:[%s5371 + $0x280] sm:$0xff]
    %v5453 = vld [vmem:[%s5371 + $0x288] sm:$0xff]
    %v5454 = vld [vmem:[%s5371 + $0x290] sm:$0xff]
    %v5455 = vld [vmem:[%s5371 + $0x298] sm:$0xff]
    %v5456 = vld [vmem:[%s5371 + $0x2a0] sm:$0xff]
    %v5457 = vld [vmem:[%s5371 + $0x2a8] sm:$0xff]
    %v5458 = vld [vmem:[%s5371 + $0x2b0] sm:$0xff]
    %v5459 = vld [vmem:[%s5371 + $0x2b8] sm:$0xff]
    %v5460 = vld [vmem:[%s5371 + $0x2c0] sm:$0xff]
    %v5461 = vld [vmem:[%s5371 + $0x2c8] sm:$0xff]
    %v5462 = vld [vmem:[%s5371 + $0x2d0] sm:$0xff]
    %v5463 = vld [vmem:[%s5371 + $0x2d8] sm:$0xff]
    %v5464 = vld [vmem:[%s5371 + $0x2e0] sm:$0xff]
    %v5465 = vld [vmem:[%s5371 + $0x2e8] sm:$0xff]
    %v5466 = vld [vmem:[%s5371 + $0x2f0] sm:$0xff]
    %v5467 = vld [vmem:[%s5371 + $0x2f8] sm:$0xff]
    %v5468 = vld [vmem:[%s5371 + $0x300] sm:$0xff]
    %v5469 = vld [vmem:[%s5371 + $0x308] sm:$0xff]
    %v5470 = vld [vmem:[%s5371 + $0x310] sm:$0xff]
    %v5471 = vld [vmem:[%s5371 + $0x318] sm:$0xff]
    %v5472 = vld [vmem:[%s5371 + $0x320] sm:$0xff]
    %v5473 = vld [vmem:[%s5371 + $0x328] sm:$0xff]
    %v5474 = vld [vmem:[%s5371 + $0x330] sm:$0xff]
    %v5475 = vld [vmem:[%s5371 + $0x338] sm:$0xff]
    %v5476 = vld [vmem:[%s5371 + $0x340] sm:$0xff]
    %v5477 = vld [vmem:[%s5371 + $0x348] sm:$0xff]
    %v5478 = vld [vmem:[%s5371 + $0x350] sm:$0xff]
    %v5479 = vld [vmem:[%s5371 + $0x358] sm:$0xff]
    %v5480 = vld [vmem:[%s5371 + $0x360] sm:$0xff]
    %v5481 = vld [vmem:[%s5371 + $0x368] sm:$0xff]
    %v5482 = vld [vmem:[%s5371 + $0x370] sm:$0xff]
    %v5483 = vld [vmem:[%s5371 + $0x378] sm:$0xff]
    %v5484 = vld [vmem:[%s5371 + $0x380] sm:$0xff]
    %v5485 = vld [vmem:[%s5371 + $0x388] sm:$0xff]
    %v5486 = vld [vmem:[%s5371 + $0x390] sm:$0xff]
    %v5487 = vld [vmem:[%s5371 + $0x398] sm:$0xff]
    %v5488 = vld [vmem:[%s5371 + $0x3a0] sm:$0xff]
    %v5489 = vld [vmem:[%s5371 + $0x3a8] sm:$0xff]
    %v5490 = vld [vmem:[%s5371 + $0x3b0] sm:$0xff]
    %v5491 = vld [vmem:[%s5371 + $0x3b8] sm:$0xff]
    %v5492 = vld [vmem:[%s5371 + $0x3c0] sm:$0xff]
    %v5493 = vld [vmem:[%s5371 + $0x3c8] sm:$0xff]
    %v5494 = vld [vmem:[%s5371 + $0x3d0] sm:$0xff]
    %v5495 = vld [vmem:[%s5371 + $0x3d8] sm:$0xff]
    %v5496 = vld [vmem:[%s5371 + $0x3e0] sm:$0xff]
    %v5497 = vld [vmem:[%s5371 + $0x3e8] sm:$0xff]
    %v5498 = vld [vmem:[%s5371 + $0x3f0] sm:$0xff]
    %v5499 = vld [vmem:[%s5371 + $0x3f8] sm:$0xff]
    %5500 = vmatprep.subr.mxu0 %v5373
    %5501 = vmatpush1.msra.mxu0 %v5372
    %5502 = vmatprep.subr.mxu0 %v5377
    %5503 = vmatpush1.msra.mxu0 %v5376
    %5504 = vmatprep.subr.mxu0 %v5381
    %5505 = vmatpush1.msra.mxu0 %v5380
    %5506 = vmatprep.subr.mxu0 %v5385
    %5507 = vmatpush1.msra.mxu0 %v5384
    %5508 = vmatprep.subr.mxu0 %v5389
    %5509 = vmatpush1.msra.mxu0 %v5388
    %5510 = vmatprep.subr.mxu0 %v5393
    %5511 = vmatpush1.msra.mxu0 %v5392
    %5512 = vmatprep.subr.mxu0 %v5397
    %5513 = vmatpush1.msra.mxu0 %v5396
    %5514 = vmatprep.subr.mxu0 %v5401
    %5515 = vmatpush1.msra.mxu0 %v5400
    %5516 = vmatprep.subr.mxu0 %v5405
    %5517 = vmatpush1.msra.mxu0 %v5404
    %5518 = vmatprep.subr.mxu0 %v5409
    %5519 = vmatpush1.msra.mxu0 %v5408
    %5520 = vmatprep.subr.mxu0 %v5413
    %5521 = vmatpush1.msra.mxu0 %v5412
    %5522 = vmatprep.subr.mxu0 %v5417
    %5523 = vmatpush1.msra.mxu0 %v5416
    %5524 = vmatprep.subr.mxu0 %v5421
    %5525 = vmatpush1.msra.mxu0 %v5420
    %5526 = vmatprep.subr.mxu0 %v5425
    %5527 = vmatpush1.msra.mxu0 %v5424
    %5528 = vmatprep.subr.mxu0 %v5429
    %5529 = vmatpush1.msra.mxu0 %v5428
    %5530 = vmatprep.subr.mxu0 %v5433
    %5531 = vmatpush1.msra.mxu0 %v5432
    %5532 = vmatprep.subr.mxu0 %v5437
    %5533 = vmatpush1.msra.mxu0 %v5436
    %5534 = vmatprep.subr.mxu0 %v5441
    %5535 = vmatpush1.msra.mxu0 %v5440
    %5536 = vmatprep.subr.mxu0 %v5445
    %5537 = vmatpush1.msra.mxu0 %v5444
    %5538 = vmatprep.subr.mxu0 %v5449
    %5539 = vmatpush1.msra.mxu0 %v5448
    %5540 = vmatprep.subr.mxu0 %v5453
    %5541 = vmatpush1.msra.mxu0 %v5452
    %5542 = vmatprep.subr.mxu0 %v5457
    %5543 = vmatpush1.msra.mxu0 %v5456
    %5544 = vmatprep.subr.mxu0 %v5461
    %5545 = vmatpush1.msra.mxu0 %v5460
    %5546 = vmatprep.subr.mxu0 %v5465
    %5547 = vmatpush1.msra.mxu0 %v5464
    %5548 = vmatprep.subr.mxu0 %v5469
    %5549 = vmatpush1.msra.mxu0 %v5468
    %5550 = vmatprep.subr.mxu0 %v5473
    %5551 = vmatpush1.msra.mxu0 %v5472
    %5552 = vmatprep.subr.mxu0 %v5477
    %5553 = vmatpush1.msra.mxu0 %v5476
    %5554 = vmatprep.subr.mxu0 %v5481
    %5555 = vmatpush1.msra.mxu0 %v5480
    %5556 = vmatprep.subr.mxu0 %v5485
    %5557 = vmatpush1.msra.mxu0 %v5484
    %5558 = vmatprep.subr.mxu0 %v5489
    %5559 = vmatpush1.msra.mxu0 %v5488
    %5560 = vmatprep.subr.mxu0 %v5493
    %5561 = vmatpush1.msra.mxu0 %v5492
    %5562 = vmatprep.subr.mxu0 %v5497
    %5563 = vmatpush1.msra.mxu0 %v5496
    %5564 = vmatprep.mubr.f32.mxu0 %v5344
    %5565 = vmatmul.mubr.f32.gmra.mrb[0].mxu0 %v5343
    %v5566 = vpop.f32.mrb[0].mxu0
    %v5567 = vadd.f32 0.0, %v5566
    %v5568 = vpop.f32.mrb[0].mxu0
    %v5569 = vadd.f32 0.0, %v5568
    %5570 = vmatprep.mubr.f32.mxu0 %v5346
    %5571 = vmatmul.mubr.f32.gmra.mrb[0].mxu0 %v5345
    %v5572 = vpop.f32.mrb[0].mxu0
    %v5573 = vadd.f32 0.0, %v5572
    %v5574 = vpop.f32.mrb[0].mxu0
    %v5575 = vadd.f32 0.0, %v5574
    %5576 = vmatprep.mubr.f32.mxu0 %v5348
    %5577 = vmatmul.mubr.f32.gmra.mrb[0].mxu0 %v5347
    %v5578 = vpop.f32.mrb[0].mxu0
    %v5579 = vadd.f32 0.0, %v5578
    %v5580 = vpop.f32.mrb[0].mxu0
    %v5581 = vadd.f32 0.0, %v5580
    %5582 = vmatprep.mubr.f32.mxu0 %v5350
    %5583 = vmatmul.mubr.f32.gmra.mrb[0].mxu0 %v5349
    %v5584 = vpop.f32.mrb[0].mxu0
    %v5585 = vadd.f32 0.0, %v5584
    %v5586 = vpop.f32.mrb[0].mxu0
    %v5587 = vadd.f32 0.0, %v5586
    %5588 = vmatprep.mubr.f32.mxu0 %v5352
    %5589 = vmatmul.mubr.f32.gmra.mrb[0].mxu0 %v5351
    %v5590 = vpop.f32.mrb[0].mxu0
    %v5591 = vadd.f32 0.0, %v5590
    %v5592 = vpop.f32.mrb[0].mxu0
    %v5593 = vadd.f32 0.0, %v5592
    %5594 = vmatprep.mubr.f32.mxu0 %v5354
    %5595 = vmatmul.mubr.f32.gmra.mrb[0].mxu0 %v5353
    %v5596 = vpop.f32.mrb[0].mxu0
    %v5597 = vadd.f32 0.0, %v5596
    %v5598 = vpop.f32.mrb[0].mxu0
    %v5599 = vadd.f32 0.0, %v5598
    %5600 = vmatprep.mubr.f32.mxu0 %v5356
    %5601 = vmatmul.mubr.f32.gmra.mrb[0].mxu0 %v5355
    %v5602 = vpop.f32.mrb[0].mxu0
    %v5603 = vadd.f32 0.0, %v5602
    %v5604 = vpop.f32.mrb[0].mxu0
    %v5605 = vadd.f32 0.0, %v5604
    %5606 = vmatprep.mubr.f32.mxu0 %v5358
    %5607 = vmatmul.mubr.f32.gmra.mrb[0].mxu0 %v5357
    %v5608 = vpop.f32.mrb[0].mxu0
    %v5609 = vadd.f32 0.0, %v5608
    %v5610 = vpop.f32.mrb[0].mxu0
    %v5611 = vadd.f32 0.0, %v5610
    %5612 = vmatprep.mubr.f32.mxu0 %v5360
    %5613 = vmatmul.mubr.f32.gmra.mrb[0].mxu0 %v5359
    %v5614 = vpop.f32.mrb[0].mxu0
    %v5615 = vadd.f32 0.0, %v5614
    %v5616 = vpop.f32.mrb[0].mxu0
    %v5617 = vadd.f32 0.0, %v5616
    %5618 = vmatprep.mubr.f32.mxu0 %v5362
    %5619 = vmatmul.mubr.f32.gmra.mrb[0].mxu0 %v5361
    %v5620 = vpop.f32.mrb[0].mxu0
    %v5621 = vadd.f32 0.0, %v5620
    %v5622 = vpop.f32.mrb[0].mxu0
    %v5623 = vadd.f32 0.0, %v5622
    %5624 = vmatprep.mubr.f32.mxu0 %v5364
    %5625 = vmatmul.mubr.f32.gmra.mrb[0].mxu0 %v5363
    %v5626 = vpop.f32.mrb[0].mxu0
    %v5627 = vadd.f32 0.0, %v5626
    %v5628 = vpop.f32.mrb[0].mxu0
    %v5629 = vadd.f32 0.0, %v5628
    %5630 = vmatprep.mubr.f32.mxu0 %v5366
    %5631 = vmatmul.mubr.f32.gmra.mrb[0].mxu0 %v5365
    %v5632 = vpop.f32.mrb[0].mxu0
    %v5633 = vadd.f32 0.0, %v5632
    %v5634 = vpop.f32.mrb[0].mxu0
    %v5635 = vadd.f32 0.0, %v5634
    %5636 = vmatprep.mubr.f32.mxu0 %v5368
    %5637 = vmatmul.mubr.f32.gmra.mrb[0].mxu0 %v5367
    %v5638 = vpop.f32.mrb[0].mxu0
    %v5639 = vadd.f32 0.0, %v5638
    %v5640 = vpop.f32.mrb[0].mxu0
    %v5641 = vadd.f32 0.0, %v5640
    %5642 = vmatprep.mubr.f32.mxu0 %v5370
    %5643 = vmatmul.mubr.f32.gmra.mrb[0].mxu0 %v5369
    %v5644 = vpop.f32.mrb[0].mxu0
    %v5645 = vadd.f32 0.0, %v5644
    %v5646 = vpop.f32.mrb[0].mxu0
    %v5647 = vadd.f32 0.0, %v5646
    %5648 = vdwg.mxu0
    %5649 = vmatprep.subr.mxu0 %v5375
    %5650 = vmatpush1.msra.mxu0 %v5374
    %5651 = vmatprep.subr.mxu0 %v5379
    %5652 = vmatpush1.msra.mxu0 %v5378
    %5653 = vmatprep.subr.mxu0 %v5383
    %5654 = vmatpush1.msra.mxu0 %v5382
    %5655 = vmatprep.subr.mxu0 %v5387
    %5656 = vmatpush1.msra.mxu0 %v5386
    %5657 = vmatprep.subr.mxu0 %v5391
    %5658 = vmatpush1.msra.mxu0 %v5390
    %5659 = vmatprep.subr.mxu0 %v5395
    %5660 = vmatpush1.msra.mxu0 %v5394
    %5661 = vmatprep.subr.mxu0 %v5399
    %5662 = vmatpush1.msra.mxu0 %v5398
    %5663 = vmatprep.subr.mxu0 %v5403
    %5664 = vmatpush1.msra.mxu0 %v5402
    %5665 = vmatprep.subr.mxu0 %v5407
    %5666 = vmatpush1.msra.mxu0 %v5406
    %5667 = vmatprep.subr.mxu0 %v5411
    %5668 = vmatpush1.msra.mxu0 %v5410
    %5669 = vmatprep.subr.mxu0 %v5415
    %5670 = vmatpush1.msra.mxu0 %v5414
    %5671 = vmatprep.subr.mxu0 %v5419
    %5672 = vmatpush1.msra.mxu0 %v5418
    %5673 = vmatprep.subr.mxu0 %v5423
    %5674 = vmatpush1.msra.mxu0 %v5422
    %5675 = vmatprep.subr.mxu0 %v5427
    %5676 = vmatpush1.msra.mxu0 %v5426
    %5677 = vmatprep.subr.mxu0 %v5431
    %5678 = vmatpush1.msra.mxu0 %v5430
    %5679 = vmatprep.subr.mxu0 %v5435
    %5680 = vmatpush1.msra.mxu0 %v5434
    %5681 = vmatprep.subr.mxu0 %v5439
    %5682 = vmatpush1.msra.mxu0 %v5438
    %5683 = vmatprep.subr.mxu0 %v5443
    %5684 = vmatpush1.msra.mxu0 %v5442
    %5685 = vmatprep.subr.mxu0 %v5447
    %5686 = vmatpush1.msra.mxu0 %v5446
    %5687 = vmatprep.subr.mxu0 %v5451
    %5688 = vmatpush1.msra.mxu0 %v5450
    %5689 = vmatprep.subr.mxu0 %v5455
    %5690 = vmatpush1.msra.mxu0 %v5454
    %5691 = vmatprep.subr.mxu0 %v5459
    %5692 = vmatpush1.msra.mxu0 %v5458
    %5693 = vmatprep.subr.mxu0 %v5463
    %5694 = vmatpush1.msra.mxu0 %v5462
    %5695 = vmatprep.subr.mxu0 %v5467
    %5696 = vmatpush1.msra.mxu0 %v5466
    %5697 = vmatprep.subr.mxu0 %v5471
    %5698 = vmatpush1.msra.mxu0 %v5470
    %5699 = vmatprep.subr.mxu0 %v5475
    %5700 = vmatpush1.msra.mxu0 %v5474
    %5701 = vmatprep.subr.mxu0 %v5479
    %5702 = vmatpush1.msra.mxu0 %v5478
    %5703 = vmatprep.subr.mxu0 %v5483
    %5704 = vmatpush1.msra.mxu0 %v5482
    %5705 = vmatprep.subr.mxu0 %v5487
    %5706 = vmatpush1.msra.mxu0 %v5486
    %5707 = vmatprep.subr.mxu0 %v5491
    %5708 = vmatpush1.msra.mxu0 %v5490
    %5709 = vmatprep.subr.mxu0 %v5495
    %5710 = vmatpush1.msra.mxu0 %v5494
    %5711 = vmatprep.subr.mxu0 %v5499
    %5712 = vmatpush1.msra.mxu0 %v5498
    %5713 = vmatprep.mubr.f32.mxu0 %v5344
    %5714 = vmatmul.mubr.f32.gmra.mrb[0].mxu0 %v5343
    %v5715 = vpop.f32.mrb[0].mxu0
    %v5716 = vadd.f32 0.0, %v5715
    %v5717 = vpop.f32.mrb[0].mxu0
    %v5718 = vadd.f32 0.0, %v5717
    %5719 = vmatprep.mubr.f32.mxu0 %v5346
    %5720 = vmatmul.mubr.f32.gmra.mrb[0].mxu0 %v5345
    %v5721 = vpop.f32.mrb[0].mxu0
    %v5722 = vadd.f32 0.0, %v5721
    %v5723 = vpop.f32.mrb[0].mxu0
    %v5724 = vadd.f32 0.0, %v5723
    %5725 = vmatprep.mubr.f32.mxu0 %v5348
    %5726 = vmatmul.mubr.f32.gmra.mrb[0].mxu0 %v5347
    %v5727 = vpop.f32.mrb[0].mxu0
    %v5728 = vadd.f32 0.0, %v5727
    %v5729 = vpop.f32.mrb[0].mxu0
    %v5730 = vadd.f32 0.0, %v5729
    %5731 = vmatprep.mubr.f32.mxu0 %v5350
    %5732 = vmatmul.mubr.f32.gmra.mrb[0].mxu0 %v5349
    %v5733 = vpop.f32.mrb[0].mxu0
    %v5734 = vadd.f32 0.0, %v5733
    %v5735 = vpop.f32.mrb[0].mxu0
    %v5736 = vadd.f32 0.0, %v5735
    %5737 = vmatprep.mubr.f32.mxu0 %v5352
    %5738 = vmatmul.mubr.f32.gmra.mrb[0].mxu0 %v5351
    %v5739 = vpop.f32.mrb[0].mxu0
    %v5740 = vadd.f32 0.0, %v5739
    %v5741 = vpop.f32.mrb[0].mxu0
    %v5742 = vadd.f32 0.0, %v5741
    %5743 = vmatprep.mubr.f32.mxu0 %v5354
    %5744 = vmatmul.mubr.f32.gmra.mrb[0].mxu0 %v5353
    %v5745 = vpop.f32.mrb[0].mxu0
    %v5746 = vadd.f32 0.0, %v5745
    %v5747 = vpop.f32.mrb[0].mxu0
    %v5748 = vadd.f32 0.0, %v5747
    %5749 = vmatprep.mubr.f32.mxu0 %v5356
    %5750 = vmatmul.mubr.f32.gmra.mrb[0].mxu0 %v5355
    %v5751 = vpop.f32.mrb[0].mxu0
    %v5752 = vadd.f32 0.0, %v5751
    %v5753 = vpop.f32.mrb[0].mxu0
    %v5754 = vadd.f32 0.0, %v5753
    %5755 = vmatprep.mubr.f32.mxu0 %v5358
    %5756 = vmatmul.mubr.f32.gmra.mrb[0].mxu0 %v5357
    %v5757 = vpop.f32.mrb[0].mxu0
    %v5758 = vadd.f32 0.0, %v5757
    %v5759 = vpop.f32.mrb[0].mxu0
    %v5760 = vadd.f32 0.0, %v5759
    %5761 = vmatprep.mubr.f32.mxu0 %v5360
    %5762 = vmatmul.mubr.f32.gmra.mrb[0].mxu0 %v5359
    %v5763 = vpop.f32.mrb[0].mxu0
    %v5764 = vadd.f32 0.0, %v5763
    %v5765 = vpop.f32.mrb[0].mxu0
    %v5766 = vadd.f32 0.0, %v5765
    %5767 = vmatprep.mubr.f32.mxu0 %v5362
    %5768 = vmatmul.mubr.f32.gmra.mrb[0].mxu0 %v5361
    %v5769 = vpop.f32.mrb[0].mxu0
    %v5770 = vadd.f32 0.0, %v5769
    %v5771 = vpop.f32.mrb[0].mxu0
    %v5772 = vadd.f32 0.0, %v5771
    %5773 = vmatprep.mubr.f32.mxu0 %v5364
    %5774 = vmatmul.mubr.f32.gmra.mrb[0].mxu0 %v5363
    %v5775 = vpop.f32.mrb[0].mxu0
    %v5776 = vadd.f32 0.0, %v5775
    %v5777 = vpop.f32.mrb[0].mxu0
    %v5778 = vadd.f32 0.0, %v5777
    %5779 = vmatprep.mubr.f32.mxu0 %v5366
    %5780 = vmatmul.mubr.f32.gmra.mrb[0].mxu0 %v5365
    %v5781 = vpop.f32.mrb[0].mxu0
    %v5782 = vadd.f32 0.0, %v5781
    %v5783 = vpop.f32.mrb[0].mxu0
    %v5784 = vadd.f32 0.0, %v5783
    %5785 = vmatprep.mubr.f32.mxu0 %v5368
    %5786 = vmatmul.mubr.f32.gmra.mrb[0].mxu0 %v5367
    %v5787 = vpop.f32.mrb[0].mxu0
    %v5788 = vadd.f32 0.0, %v5787
    %v5789 = vpop.f32.mrb[0].mxu0
    %v5790 = vadd.f32 0.0, %v5789
    %5791 = vmatprep.mubr.f32.mxu0 %v5370
    %5792 = vmatmul.mubr.f32.gmra.mrb[0].mxu0 %v5369
    %v5793 = vpop.f32.mrb[0].mxu0
    %v5794 = vadd.f32 0.0, %v5793
    %v5795 = vpop.f32.mrb[0].mxu0
    %v5796 = vadd.f32 0.0, %v5795
    %5797 = vdwg.mxu0
    %v5798 = vld [vmem:[#allocation4] sm:$0xff]
    %v5799 = vld [vmem:[#allocation4 + $0x8] sm:$0xff]
    %v5800 = vld [vmem:[#allocation4 + $0x10] sm:$0xff]
    %v5801 = vld [vmem:[#allocation4 + $0x18] sm:$0xff]
    %v5802 = vld [vmem:[#allocation4 + $0x20] sm:$0xff]
    %v5803 = vld [vmem:[#allocation4 + $0x28] sm:$0xff]
    %v5804 = vld [vmem:[#allocation4 + $0x30] sm:$0xff]
    %v5805 = vld [vmem:[#allocation4 + $0x38] sm:$0xff]
    %v5806 = vld [vmem:[#allocation4 + $0x40] sm:$0xff]
    %v5807 = vld [vmem:[#allocation4 + $0x48] sm:$0xff]
    %v5808 = vld [vmem:[#allocation4 + $0x50] sm:$0xff]
    %v5809 = vld [vmem:[#allocation4 + $0x58] sm:$0xff]
    %v5810 = vld [vmem:[#allocation4 + $0x60] sm:$0xff]
    %v5811 = vld [vmem:[#allocation4 + $0x68] sm:$0xff]
    %v5812 = vld [vmem:[#allocation4 + $0x70] sm:$0xff]
    %v5813 = vld [vmem:[#allocation4 + $0x78] sm:$0xff]
    %v5814 = vld [vmem:[#allocation4 + $0x80] sm:$0xff]
    %v5815 = vld [vmem:[#allocation4 + $0x88] sm:$0xff]
    %v5816 = vld [vmem:[#allocation4 + $0x90] sm:$0xff]
    %v5817 = vld [vmem:[#allocation4 + $0x98] sm:$0xff]
    %v5818 = vld [vmem:[#allocation4 + $0xa0] sm:$0xff]
    %v5819 = vld [vmem:[#allocation4 + $0xa8] sm:$0xff]
    %v5820 = vld [vmem:[#allocation4 + $0xb0] sm:$0xff]
    %v5821 = vld [vmem:[#allocation4 + $0xb8] sm:$0xff]
    %v5822 = vld [vmem:[#allocation4 + $0xc0] sm:$0xff]
    %v5823 = vld [vmem:[#allocation4 + $0xc8] sm:$0xff]
    %v5824 = vld [vmem:[#allocation4 + $0xd0] sm:$0xff]
    %v5825 = vld [vmem:[#allocation4 + $0xd8] sm:$0xff]
    %v5826 = vld [vmem:[#allocation4 + $0xe0] sm:$0xff]
    %v5827 = vld [vmem:[#allocation4 + $0xe8] sm:$0xff]
    %v5828 = vld [vmem:[#allocation4 + $0xf0] sm:$0xff]
    %v5829 = vld [vmem:[#allocation4 + $0xf8] sm:$0xff]
    %v5830 = vld [vmem:[#allocation4 + $0x100] sm:$0xff]
    %v5831 = vld [vmem:[#allocation4 + $0x108] sm:$0xff]
    %v5832 = vld [vmem:[#allocation4 + $0x110] sm:$0xff]
    %v5833 = vld [vmem:[#allocation4 + $0x118] sm:$0xff]
    %v5834 = vld [vmem:[#allocation4 + $0x120] sm:$0xff]
    %v5835 = vld [vmem:[#allocation4 + $0x128] sm:$0xff]
    %v5836 = vld [vmem:[#allocation4 + $0x130] sm:$0xff]
    %v5837 = vld [vmem:[#allocation4 + $0x138] sm:$0xff]
    %v5838 = vld [vmem:[#allocation4 + $0x140] sm:$0xff]
    %v5839 = vld [vmem:[#allocation4 + $0x148] sm:$0xff]
    %v5840 = vld [vmem:[#allocation4 + $0x150] sm:$0xff]
    %v5841 = vld [vmem:[#allocation4 + $0x158] sm:$0xff]
    %v5842 = vld [vmem:[#allocation4 + $0x160] sm:$0xff]
    %v5843 = vld [vmem:[#allocation4 + $0x168] sm:$0xff]
    %v5844 = vld [vmem:[#allocation4 + $0x170] sm:$0xff]
    %v5845 = vld [vmem:[#allocation4 + $0x178] sm:$0xff]
    %v5846 = vld [vmem:[#allocation4 + $0x180] sm:$0xff]
    %v5847 = vld [vmem:[#allocation4 + $0x188] sm:$0xff]
    %v5848 = vld [vmem:[#allocation4 + $0x190] sm:$0xff]
    %v5849 = vld [vmem:[#allocation4 + $0x198] sm:$0xff]
    %v5850 = vld [vmem:[#allocation4 + $0x1a0] sm:$0xff]
    %v5851 = vld [vmem:[#allocation4 + $0x1a8] sm:$0xff]
    %v5852 = vld [vmem:[#allocation4 + $0x1b0] sm:$0xff]
    %v5853 = vld [vmem:[#allocation4 + $0x1b8] sm:$0xff]
    %v5854 = vadd.f32 %v5798, %v5567
    %v5855 = vadd.f32 %v5799, %v5569
    %v5856 = vadd.f32 %v5800, %v5716
    %v5857 = vadd.f32 %v5801, %v5718
    %v5858 = vadd.f32 %v5802, %v5573
    %v5859 = vadd.f32 %v5803, %v5575
    %v5860 = vadd.f32 %v5804, %v5722
    %v5861 = vadd.f32 %v5805, %v5724
    %v5862 = vadd.f32 %v5806, %v5579
    %v5863 = vadd.f32 %v5807, %v5581
    %v5864 = vadd.f32 %v5808, %v5728
    %v5865 = vadd.f32 %v5809, %v5730
    %v5866 = vadd.f32 %v5810, %v5585
    %v5867 = vadd.f32 %v5811, %v5587
    %v5868 = vadd.f32 %v5812, %v5734
    %v5869 = vadd.f32 %v5813, %v5736
    %v5870 = vadd.f32 %v5814, %v5591
    %v5871 = vadd.f32 %v5815, %v5593
    %v5872 = vadd.f32 %v5816, %v5740
    %v5873 = vadd.f32 %v5817, %v5742
    %v5874 = vadd.f32 %v5818, %v5597
    %v5875 = vadd.f32 %v5819, %v5599
    %v5876 = vadd.f32 %v5820, %v5746
    %v5877 = vadd.f32 %v5821, %v5748
    %v5878 = vadd.f32 %v5822, %v5603
    %v5879 = vadd.f32 %v5823, %v5605
    %v5880 = vadd.f32 %v5824, %v5752
    %v5881 = vadd.f32 %v5825, %v5754
    %v5882 = vadd.f32 %v5826, %v5609
    %v5883 = vadd.f32 %v5827, %v5611
    %v5884 = vadd.f32 %v5828, %v5758
    %v5885 = vadd.f32 %v5829, %v5760
    %v5886 = vadd.f32 %v5830, %v5615
    %v5887 = vadd.f32 %v5831, %v5617
    %v5888 = vadd.f32 %v5832, %v5764
    %v5889 = vadd.f32 %v5833, %v5766
    %v5890 = vadd.f32 %v5834, %v5621
    %v5891 = vadd.f32 %v5835, %v5623
    %v5892 = vadd.f32 %v5836, %v5770
    %v5893 = vadd.f32 %v5837, %v5772
    %v5894 = vadd.f32 %v5838, %v5627
    %v5895 = vadd.f32 %v5839, %v5629
    %v5896 = vadd.f32 %v5840, %v5776
    %v5897 = vadd.f32 %v5841, %v5778
    %v5898 = vadd.f32 %v5842, %v5633
    %v5899 = vadd.f32 %v5843, %v5635
    %v5900 = vadd.f32 %v5844, %v5782
    %v5901 = vadd.f32 %v5845, %v5784
    %v5902 = vadd.f32 %v5846, %v5639
    %v5903 = vadd.f32 %v5847, %v5641
    %v5904 = vadd.f32 %v5848, %v5788
    %v5905 = vadd.f32 %v5849, %v5790
    %v5906 = vadd.f32 %v5850, %v5645
    %v5907 = vadd.f32 %v5851, %v5647
    %v5908 = vadd.f32 %v5852, %v5794
    %v5909 = vadd.f32 %v5853, %v5796
    %5910 = vst [vmem:[#allocation4] sm:$0xff] %v5854
    %5911 = vst [vmem:[#allocation4 + $0x8] sm:$0xff] %v5855
    %5912 = vst [vmem:[#allocation4 + $0x10] sm:$0xff] %v5856
    %5913 = vst [vmem:[#allocation4 + $0x18] sm:$0xff] %v5857
    %5914 = vst [vmem:[#allocation4 + $0x20] sm:$0xff] %v5858
    %5915 = vst [vmem:[#allocation4 + $0x28] sm:$0xff] %v5859
    %5916 = vst [vmem:[#allocation4 + $0x30] sm:$0xff] %v5860
    %5917 = vst [vmem:[#allocation4 + $0x38] sm:$0xff] %v5861
    %5918 = vst [vmem:[#allocation4 + $0x40] sm:$0xff] %v5862
    %5919 = vst [vmem:[#allocation4 + $0x48] sm:$0xff] %v5863
    %5920 = vst [vmem:[#allocation4 + $0x50] sm:$0xff] %v5864
    %5921 = vst [vmem:[#allocation4 + $0x58] sm:$0xff] %v5865
    %5922 = vst [vmem:[#allocation4 + $0x60] sm:$0xff] %v5866
    %5923 = vst [vmem:[#allocation4 + $0x68] sm:$0xff] %v5867
    %5924 = vst [vmem:[#allocation4 + $0x70] sm:$0xff] %v5868
    %5925 = vst [vmem:[#allocation4 + $0x78] sm:$0xff] %v5869
    %5926 = vst [vmem:[#allocation4 + $0x80] sm:$0xff] %v5870
    %5927 = vst [vmem:[#allocation4 + $0x88] sm:$0xff] %v5871
    %5928 = vst [vmem:[#allocation4 + $0x90] sm:$0xff] %v5872
    %5929 = vst [vmem:[#allocation4 + $0x98] sm:$0xff] %v5873
    %5930 = vst [vmem:[#allocation4 + $0xa0] sm:$0xff] %v5874
    %5931 = vst [vmem:[#allocation4 + $0xa8] sm:$0xff] %v5875
    %5932 = vst [vmem:[#allocation4 + $0xb0] sm:$0xff] %v5876
    %5933 = vst [vmem:[#allocation4 + $0xb8] sm:$0xff] %v5877
    %5934 = vst [vmem:[#allocation4 + $0xc0] sm:$0xff] %v5878
    %5935 = vst [vmem:[#allocation4 + $0xc8] sm:$0xff] %v5879
    %5936 = vst [vmem:[#allocation4 + $0xd0] sm:$0xff] %v5880
    %5937 = vst [vmem:[#allocation4 + $0xd8] sm:$0xff] %v5881
    %5938 = vst [vmem:[#allocation4 + $0xe0] sm:$0xff] %v5882
    %5939 = vst [vmem:[#allocation4 + $0xe8] sm:$0xff] %v5883
    %5940 = vst [vmem:[#allocation4 + $0xf0] sm:$0xff] %v5884
    %5941 = vst [vmem:[#allocation4 + $0xf8] sm:$0xff] %v5885
    %5942 = vst [vmem:[#allocation4 + $0x100] sm:$0xff] %v5886
    %5943 = vst [vmem:[#allocation4 + $0x108] sm:$0xff] %v5887
    %5944 = vst [vmem:[#allocation4 + $0x110] sm:$0xff] %v5888
    %5945 = vst [vmem:[#allocation4 + $0x118] sm:$0xff] %v5889
    %5946 = vst [vmem:[#allocation4 + $0x120] sm:$0xff] %v5890
    %5947 = vst [vmem:[#allocation4 + $0x128] sm:$0xff] %v5891
    %5948 = vst [vmem:[#allocation4 + $0x130] sm:$0xff] %v5892
    %5949 = vst [vmem:[#allocation4 + $0x138] sm:$0xff] %v5893
    %5950 = vst [vmem:[#allocation4 + $0x140] sm:$0xff] %v5894
    %5951 = vst [vmem:[#allocation4 + $0x148] sm:$0xff] %v5895
    %5952 = vst [vmem:[#allocation4 + $0x150] sm:$0xff] %v5896
    %5953 = vst [vmem:[#allocation4 + $0x158] sm:$0xff] %v5897
    %5954 = vst [vmem:[#allocation4 + $0x160] sm:$0xff] %v5898
    %5955 = vst [vmem:[#allocation4 + $0x168] sm:$0xff] %v5899
    %5956 = vst [vmem:[#allocation4 + $0x170] sm:$0xff] %v5900
    %5957 = vst [vmem:[#allocation4 + $0x178] sm:$0xff] %v5901
    %5958 = vst [vmem:[#allocation4 + $0x180] sm:$0xff] %v5902
    %5959 = vst [vmem:[#allocation4 + $0x188] sm:$0xff] %v5903
    %5960 = vst [vmem:[#allocation4 + $0x190] sm:$0xff] %v5904
    %5961 = vst [vmem:[#allocation4 + $0x198] sm:$0xff] %v5905
    %5962 = vst [vmem:[#allocation4 + $0x1a0] sm:$0xff] %v5906
    %5963 = vst [vmem:[#allocation4 + $0x1a8] sm:$0xff] %v5907
    %5964 = vst [vmem:[#allocation4 + $0x1b0] sm:$0xff] %v5908
    %5965 = vst [vmem:[#allocation4 + $0x1b8] sm:$0xff] %v5909
    %v5966 = vld [vmem:[#allocation3 + $0x20] sm:$0xff]
    %v5967 = vld [vmem:[#allocation3 + $0x28] sm:$0xff]
    %v5968 = vld [vmem:[#allocation3 + $0x30] sm:$0xff]
    %v5969 = vld [vmem:[#allocation3 + $0x38] sm:$0xff]
    %v5970 = vld [vmem:[#allocation3 + $0x40] sm:$0xff]
    %v5971 = vld [vmem:[#allocation3 + $0x48] sm:$0xff]
    %v5972 = vld [vmem:[#allocation3 + $0x50] sm:$0xff]
    %v5973 = vld [vmem:[#allocation3 + $0x58] sm:$0xff]
    %v5974 = vld [vmem:[#allocation3 + $0x60] sm:$0xff]
    %v5975 = vld [vmem:[#allocation3 + $0x68] sm:$0xff]
    %v5976 = vld [vmem:[#allocation3 + $0x70] sm:$0xff]
    %v5977 = vld [vmem:[#allocation3 + $0x78] sm:$0xff]
    %v5978 = vld [vmem:[#allocation3 + $0x80] sm:$0xff]
    %v5979 = vld [vmem:[#allocation3 + $0x88] sm:$0xff]
    %v5980 = vld [vmem:[#allocation3 + $0x90] sm:$0xff]
    %v5981 = vld [vmem:[#allocation3 + $0x98] sm:$0xff]
    %v5982 = vld [vmem:[#allocation3 + $0xa0] sm:$0xff]
    %v5983 = vld [vmem:[#allocation3 + $0xa8] sm:$0xff]
    %v5984 = vld [vmem:[#allocation3 + $0xb0] sm:$0xff]
    %v5985 = vld [vmem:[#allocation3 + $0xb8] sm:$0xff]
    %v5986 = vld [vmem:[#allocation3 + $0xc0] sm:$0xff]
    %v5987 = vld [vmem:[#allocation3 + $0xc8] sm:$0xff]
    %v5988 = vld [vmem:[#allocation3 + $0xd0] sm:$0xff]
    %v5989 = vld [vmem:[#allocation3 + $0xd8] sm:$0xff]
    %v5990 = vld [vmem:[#allocation3 + $0xe0] sm:$0xff]
    %v5991 = vld [vmem:[#allocation3 + $0xe8] sm:$0xff]
    %v5992 = vld [vmem:[#allocation3 + $0xf0] sm:$0xff]
    %v5993 = vld [vmem:[#allocation3 + $0xf8] sm:$0xff]
    %s5994 = scalar_lea.vmem [#allocation10], 2048
    %v5995 = vld [vmem:[%s5994] sm:$0xff]
    %v5996 = vld [vmem:[%s5994 + $0x8] sm:$0xff]
    %v5997 = vld [vmem:[%s5994 + $0x10] sm:$0xff]
    %v5998 = vld [vmem:[%s5994 + $0x18] sm:$0xff]
    %v5999 = vld [vmem:[%s5994 + $0x20] sm:$0xff]
    %v6000 = vld [vmem:[%s5994 + $0x28] sm:$0xff]
    %v6001 = vld [vmem:[%s5994 + $0x30] sm:$0xff]
    %v6002 = vld [vmem:[%s5994 + $0x38] sm:$0xff]
    %v6003 = vld [vmem:[%s5994 + $0x40] sm:$0xff]
    %v6004 = vld [vmem:[%s5994 + $0x48] sm:$0xff]
    %v6005 = vld [vmem:[%s5994 + $0x50] sm:$0xff]
    %v6006 = vld [vmem:[%s5994 + $0x58] sm:$0xff]
    %v6007 = vld [vmem:[%s5994 + $0x60] sm:$0xff]
    %v6008 = vld [vmem:[%s5994 + $0x68] sm:$0xff]
    %v6009 = vld [vmem:[%s5994 + $0x70] sm:$0xff]
    %v6010 = vld [vmem:[%s5994 + $0x78] sm:$0xff]
    %v6011 = vld [vmem:[%s5994 + $0x80] sm:$0xff]
    %v6012 = vld [vmem:[%s5994 + $0x88] sm:$0xff]
    %v6013 = vld [vmem:[%s5994 + $0x90] sm:$0xff]
    %v6014 = vld [vmem:[%s5994 + $0x98] sm:$0xff]
    %v6015 = vld [vmem:[%s5994 + $0xa0] sm:$0xff]
    %v6016 = vld [vmem:[%s5994 + $0xa8] sm:$0xff]
    %v6017 = vld [vmem:[%s5994 + $0xb0] sm:$0xff]
    %v6018 = vld [vmem:[%s5994 + $0xb8] sm:$0xff]
    %v6019 = vld [vmem:[%s5994 + $0xc0] sm:$0xff]
    %v6020 = vld [vmem:[%s5994 + $0xc8] sm:$0xff]
    %v6021 = vld [vmem:[%s5994 + $0xd0] sm:$0xff]
    %v6022 = vld [vmem:[%s5994 + $0xd8] sm:$0xff]
    %v6023 = vld [vmem:[%s5994 + $0xe0] sm:$0xff]
    %v6024 = vld [vmem:[%s5994 + $0xe8] sm:$0xff]
    %v6025 = vld [vmem:[%s5994 + $0xf0] sm:$0xff]
    %v6026 = vld [vmem:[%s5994 + $0xf8] sm:$0xff]
    %v6027 = vld [vmem:[%s5994 + $0x100] sm:$0xff]
    %v6028 = vld [vmem:[%s5994 + $0x108] sm:$0xff]
    %v6029 = vld [vmem:[%s5994 + $0x110] sm:$0xff]
    %v6030 = vld [vmem:[%s5994 + $0x118] sm:$0xff]
    %v6031 = vld [vmem:[%s5994 + $0x120] sm:$0xff]
    %v6032 = vld [vmem:[%s5994 + $0x128] sm:$0xff]
    %v6033 = vld [vmem:[%s5994 + $0x130] sm:$0xff]
    %v6034 = vld [vmem:[%s5994 + $0x138] sm:$0xff]
    %v6035 = vld [vmem:[%s5994 + $0x140] sm:$0xff]
    %v6036 = vld [vmem:[%s5994 + $0x148] sm:$0xff]
    %v6037 = vld [vmem:[%s5994 + $0x150] sm:$0xff]
    %v6038 = vld [vmem:[%s5994 + $0x158] sm:$0xff]
    %v6039 = vld [vmem:[%s5994 + $0x160] sm:$0xff]
    %v6040 = vld [vmem:[%s5994 + $0x168] sm:$0xff]
    %v6041 = vld [vmem:[%s5994 + $0x170] sm:$0xff]
    %v6042 = vld [vmem:[%s5994 + $0x178] sm:$0xff]
    %v6043 = vld [vmem:[%s5994 + $0x180] sm:$0xff]
    %v6044 = vld [vmem:[%s5994 + $0x188] sm:$0xff]
    %v6045 = vld [vmem:[%s5994 + $0x190] sm:$0xff]
    %v6046 = vld [vmem:[%s5994 + $0x198] sm:$0xff]
    %v6047 = vld [vmem:[%s5994 + $0x1a0] sm:$0xff]
    %v6048 = vld [vmem:[%s5994 + $0x1a8] sm:$0xff]
    %v6049 = vld [vmem:[%s5994 + $0x1b0] sm:$0xff]
    %v6050 = vld [vmem:[%s5994 + $0x1b8] sm:$0xff]
    %v6051 = vld [vmem:[%s5994 + $0x1c0] sm:$0xff]
    %v6052 = vld [vmem:[%s5994 + $0x1c8] sm:$0xff]
    %v6053 = vld [vmem:[%s5994 + $0x1d0] sm:$0xff]
    %v6054 = vld [vmem:[%s5994 + $0x1d8] sm:$0xff]
    %v6055 = vld [vmem:[%s5994 + $0x1e0] sm:$0xff]
    %v6056 = vld [vmem:[%s5994 + $0x1e8] sm:$0xff]
    %v6057 = vld [vmem:[%s5994 + $0x1f0] sm:$0xff]
    %v6058 = vld [vmem:[%s5994 + $0x1f8] sm:$0xff]
    %v6059 = vld [vmem:[%s5994 + $0x200] sm:$0xff]
    %v6060 = vld [vmem:[%s5994 + $0x208] sm:$0xff]
    %v6061 = vld [vmem:[%s5994 + $0x210] sm:$0xff]
    %v6062 = vld [vmem:[%s5994 + $0x218] sm:$0xff]
    %v6063 = vld [vmem:[%s5994 + $0x220] sm:$0xff]
    %v6064 = vld [vmem:[%s5994 + $0x228] sm:$0xff]
    %v6065 = vld [vmem:[%s5994 + $0x230] sm:$0xff]
    %v6066 = vld [vmem:[%s5994 + $0x238] sm:$0xff]
    %v6067 = vld [vmem:[%s5994 + $0x240] sm:$0xff]
    %v6068 = vld [vmem:[%s5994 + $0x248] sm:$0xff]
    %v6069 = vld [vmem:[%s5994 + $0x250] sm:$0xff]
    %v6070 = vld [vmem:[%s5994 + $0x258] sm:$0xff]
    %v6071 = vld [vmem:[%s5994 + $0x260] sm:$0xff]
    %v6072 = vld [vmem:[%s5994 + $0x268] sm:$0xff]
    %v6073 = vld [vmem:[%s5994 + $0x270] sm:$0xff]
    %v6074 = vld [vmem:[%s5994 + $0x278] sm:$0xff]
    %v6075 = vld [vmem:[%s5994 + $0x280] sm:$0xff]
    %v6076 = vld [vmem:[%s5994 + $0x288] sm:$0xff]
    %v6077 = vld [vmem:[%s5994 + $0x290] sm:$0xff]
    %v6078 = vld [vmem:[%s5994 + $0x298] sm:$0xff]
    %v6079 = vld [vmem:[%s5994 + $0x2a0] sm:$0xff]
    %v6080 = vld [vmem:[%s5994 + $0x2a8] sm:$0xff]
    %v6081 = vld [vmem:[%s5994 + $0x2b0] sm:$0xff]
    %v6082 = vld [vmem:[%s5994 + $0x2b8] sm:$0xff]
    %v6083 = vld [vmem:[%s5994 + $0x2c0] sm:$0xff]
    %v6084 = vld [vmem:[%s5994 + $0x2c8] sm:$0xff]
    %v6085 = vld [vmem:[%s5994 + $0x2d0] sm:$0xff]
    %v6086 = vld [vmem:[%s5994 + $0x2d8] sm:$0xff]
    %v6087 = vld [vmem:[%s5994 + $0x2e0] sm:$0xff]
    %v6088 = vld [vmem:[%s5994 + $0x2e8] sm:$0xff]
    %v6089 = vld [vmem:[%s5994 + $0x2f0] sm:$0xff]
    %v6090 = vld [vmem:[%s5994 + $0x2f8] sm:$0xff]
    %v6091 = vld [vmem:[%s5994 + $0x300] sm:$0xff]
    %v6092 = vld [vmem:[%s5994 + $0x308] sm:$0xff]
    %v6093 = vld [vmem:[%s5994 + $0x310] sm:$0xff]
    %v6094 = vld [vmem:[%s5994 + $0x318] sm:$0xff]
    %v6095 = vld [vmem:[%s5994 + $0x320] sm:$0xff]
    %v6096 = vld [vmem:[%s5994 + $0x328] sm:$0xff]
    %v6097 = vld [vmem:[%s5994 + $0x330] sm:$0xff]
    %v6098 = vld [vmem:[%s5994 + $0x338] sm:$0xff]
    %v6099 = vld [vmem:[%s5994 + $0x340] sm:$0xff]
    %v6100 = vld [vmem:[%s5994 + $0x348] sm:$0xff]
    %v6101 = vld [vmem:[%s5994 + $0x350] sm:$0xff]
    %v6102 = vld [vmem:[%s5994 + $0x358] sm:$0xff]
    %v6103 = vld [vmem:[%s5994 + $0x360] sm:$0xff]
    %v6104 = vld [vmem:[%s5994 + $0x368] sm:$0xff]
    %v6105 = vld [vmem:[%s5994 + $0x370] sm:$0xff]
    %v6106 = vld [vmem:[%s5994 + $0x378] sm:$0xff]
    %v6107 = vld [vmem:[%s5994 + $0x380] sm:$0xff]
    %v6108 = vld [vmem:[%s5994 + $0x388] sm:$0xff]
    %v6109 = vld [vmem:[%s5994 + $0x390] sm:$0xff]
    %v6110 = vld [vmem:[%s5994 + $0x398] sm:$0xff]
    %v6111 = vld [vmem:[%s5994 + $0x3a0] sm:$0xff]
    %v6112 = vld [vmem:[%s5994 + $0x3a8] sm:$0xff]
    %v6113 = vld [vmem:[%s5994 + $0x3b0] sm:$0xff]
    %v6114 = vld [vmem:[%s5994 + $0x3b8] sm:$0xff]
    %v6115 = vld [vmem:[%s5994 + $0x3c0] sm:$0xff]
    %v6116 = vld [vmem:[%s5994 + $0x3c8] sm:$0xff]
    %v6117 = vld [vmem:[%s5994 + $0x3d0] sm:$0xff]
    %v6118 = vld [vmem:[%s5994 + $0x3d8] sm:$0xff]
    %v6119 = vld [vmem:[%s5994 + $0x3e0] sm:$0xff]
    %v6120 = vld [vmem:[%s5994 + $0x3e8] sm:$0xff]
    %v6121 = vld [vmem:[%s5994 + $0x3f0] sm:$0xff]
    %v6122 = vld [vmem:[%s5994 + $0x3f8] sm:$0xff]
    %6123 = vmatprep.subr.mxu0 %v5996
    %6124 = vmatpush1.msra.mxu0 %v5995
    %6125 = vmatprep.subr.mxu0 %v6000
    %6126 = vmatpush1.msra.mxu0 %v5999
    %6127 = vmatprep.subr.mxu0 %v6004
    %6128 = vmatpush1.msra.mxu0 %v6003
    %6129 = vmatprep.subr.mxu0 %v6008
    %6130 = vmatpush1.msra.mxu0 %v6007
    %6131 = vmatprep.subr.mxu0 %v6012
    %6132 = vmatpush1.msra.mxu0 %v6011
    %6133 = vmatprep.subr.mxu0 %v6016
    %6134 = vmatpush1.msra.mxu0 %v6015
    %6135 = vmatprep.subr.mxu0 %v6020
    %6136 = vmatpush1.msra.mxu0 %v6019
    %6137 = vmatprep.subr.mxu0 %v6024
    %6138 = vmatpush1.msra.mxu0 %v6023
    %6139 = vmatprep.subr.mxu0 %v6028
    %6140 = vmatpush1.msra.mxu0 %v6027
    %6141 = vmatprep.subr.mxu0 %v6032
    %6142 = vmatpush1.msra.mxu0 %v6031
    %6143 = vmatprep.subr.mxu0 %v6036
    %6144 = vmatpush1.msra.mxu0 %v6035
    %6145 = vmatprep.subr.mxu0 %v6040
    %6146 = vmatpush1.msra.mxu0 %v6039
    %6147 = vmatprep.subr.mxu0 %v6044
    %6148 = vmatpush1.msra.mxu0 %v6043
    %6149 = vmatprep.subr.mxu0 %v6048
    %6150 = vmatpush1.msra.mxu0 %v6047
    %6151 = vmatprep.subr.mxu0 %v6052
    %6152 = vmatpush1.msra.mxu0 %v6051
    %6153 = vmatprep.subr.mxu0 %v6056
    %6154 = vmatpush1.msra.mxu0 %v6055
    %6155 = vmatprep.subr.mxu0 %v6060
    %6156 = vmatpush1.msra.mxu0 %v6059
    %6157 = vmatprep.subr.mxu0 %v6064
    %6158 = vmatpush1.msra.mxu0 %v6063
    %6159 = vmatprep.subr.mxu0 %v6068
    %6160 = vmatpush1.msra.mxu0 %v6067
    %6161 = vmatprep.subr.mxu0 %v6072
    %6162 = vmatpush1.msra.mxu0 %v6071
    %6163 = vmatprep.subr.mxu0 %v6076
    %6164 = vmatpush1.msra.mxu0 %v6075
    %6165 = vmatprep.subr.mxu0 %v6080
    %6166 = vmatpush1.msra.mxu0 %v6079
    %6167 = vmatprep.subr.mxu0 %v6084
    %6168 = vmatpush1.msra.mxu0 %v6083
    %6169 = vmatprep.subr.mxu0 %v6088
    %6170 = vmatpush1.msra.mxu0 %v6087
    %6171 = vmatprep.subr.mxu0 %v6092
    %6172 = vmatpush1.msra.mxu0 %v6091
    %6173 = vmatprep.subr.mxu0 %v6096
    %6174 = vmatpush1.msra.mxu0 %v6095
    %6175 = vmatprep.subr.mxu0 %v6100
    %6176 = vmatpush1.msra.mxu0 %v6099
    %6177 = vmatprep.subr.mxu0 %v6104
    %6178 = vmatpush1.msra.mxu0 %v6103
    %6179 = vmatprep.subr.mxu0 %v6108
    %6180 = vmatpush1.msra.mxu0 %v6107
    %6181 = vmatprep.subr.mxu0 %v6112
    %6182 = vmatpush1.msra.mxu0 %v6111
    %6183 = vmatprep.subr.mxu0 %v6116
    %6184 = vmatpush1.msra.mxu0 %v6115
    %6185 = vmatprep.subr.mxu0 %v6120
    %6186 = vmatpush1.msra.mxu0 %v6119
    %6187 = vmatprep.mubr.f32.mxu0 %v5967
    %6188 = vmatmul.mubr.f32.gmra.mrb[0].mxu0 %v5966
    %v6189 = vpop.f32.mrb[0].mxu0
    %v6190 = vadd.f32 0.0, %v6189
    %v6191 = vpop.f32.mrb[0].mxu0
    %v6192 = vadd.f32 0.0, %v6191
    %6193 = vmatprep.mubr.f32.mxu0 %v5969
    %6194 = vmatmul.mubr.f32.gmra.mrb[0].mxu0 %v5968
    %v6195 = vpop.f32.mrb[0].mxu0
    %v6196 = vadd.f32 0.0, %v6195
    %v6197 = vpop.f32.mrb[0].mxu0
    %v6198 = vadd.f32 0.0, %v6197
    %6199 = vmatprep.mubr.f32.mxu0 %v5971
    %6200 = vmatmul.mubr.f32.gmra.mrb[0].mxu0 %v5970
    %v6201 = vpop.f32.mrb[0].mxu0
    %v6202 = vadd.f32 0.0, %v6201
    %v6203 = vpop.f32.mrb[0].mxu0
    %v6204 = vadd.f32 0.0, %v6203
    %6205 = vmatprep.mubr.f32.mxu0 %v5973
    %6206 = vmatmul.mubr.f32.gmra.mrb[0].mxu0 %v5972
    %v6207 = vpop.f32.mrb[0].mxu0
    %v6208 = vadd.f32 0.0, %v6207
    %v6209 = vpop.f32.mrb[0].mxu0
    %v6210 = vadd.f32 0.0, %v6209
    %6211 = vmatprep.mubr.f32.mxu0 %v5975
    %6212 = vmatmul.mubr.f32.gmra.mrb[0].mxu0 %v5974
    %v6213 = vpop.f32.mrb[0].mxu0
    %v6214 = vadd.f32 0.0, %v6213
    %v6215 = vpop.f32.mrb[0].mxu0
    %v6216 = vadd.f32 0.0, %v6215
    %6217 = vmatprep.mubr.f32.mxu0 %v5977
    %6218 = vmatmul.mubr.f32.gmra.mrb[0].mxu0 %v5976
    %v6219 = vpop.f32.mrb[0].mxu0
    %v6220 = vadd.f32 0.0, %v6219
    %v6221 = vpop.f32.mrb[0].mxu0
    %v6222 = vadd.f32 0.0, %v6221
    %6223 = vmatprep.mubr.f32.mxu0 %v5979
    %6224 = vmatmul.mubr.f32.gmra.mrb[0].mxu0 %v5978
    %v6225 = vpop.f32.mrb[0].mxu0
    %v6226 = vadd.f32 0.0, %v6225
    %v6227 = vpop.f32.mrb[0].mxu0
    %v6228 = vadd.f32 0.0, %v6227
    %6229 = vmatprep.mubr.f32.mxu0 %v5981
    %6230 = vmatmul.mubr.f32.gmra.mrb[0].mxu0 %v5980
    %v6231 = vpop.f32.mrb[0].mxu0
    %v6232 = vadd.f32 0.0, %v6231
    %v6233 = vpop.f32.mrb[0].mxu0
    %v6234 = vadd.f32 0.0, %v6233
    %6235 = vmatprep.mubr.f32.mxu0 %v5983
    %6236 = vmatmul.mubr.f32.gmra.mrb[0].mxu0 %v5982
    %v6237 = vpop.f32.mrb[0].mxu0
    %v6238 = vadd.f32 0.0, %v6237
    %v6239 = vpop.f32.mrb[0].mxu0
    %v6240 = vadd.f32 0.0, %v6239
    %6241 = vmatprep.mubr.f32.mxu0 %v5985
    %6242 = vmatmul.mubr.f32.gmra.mrb[0].mxu0 %v5984
    %v6243 = vpop.f32.mrb[0].mxu0
    %v6244 = vadd.f32 0.0, %v6243
    %v6245 = vpop.f32.mrb[0].mxu0
    %v6246 = vadd.f32 0.0, %v6245
    %6247 = vmatprep.mubr.f32.mxu0 %v5987
    %6248 = vmatmul.mubr.f32.gmra.mrb[0].mxu0 %v5986
    %v6249 = vpop.f32.mrb[0].mxu0
    %v6250 = vadd.f32 0.0, %v6249
    %v6251 = vpop.f32.mrb[0].mxu0
    %v6252 = vadd.f32 0.0, %v6251
    %6253 = vmatprep.mubr.f32.mxu0 %v5989
    %6254 = vmatmul.mubr.f32.gmra.mrb[0].mxu0 %v5988
    %v6255 = vpop.f32.mrb[0].mxu0
    %v6256 = vadd.f32 0.0, %v6255
    %v6257 = vpop.f32.mrb[0].mxu0
    %v6258 = vadd.f32 0.0, %v6257
    %6259 = vmatprep.mubr.f32.mxu0 %v5991
    %6260 = vmatmul.mubr.f32.gmra.mrb[0].mxu0 %v5990
    %v6261 = vpop.f32.mrb[0].mxu0
    %v6262 = vadd.f32 0.0, %v6261
    %v6263 = vpop.f32.mrb[0].mxu0
    %v6264 = vadd.f32 0.0, %v6263
    %6265 = vmatprep.mubr.f32.mxu0 %v5993
    %6266 = vmatmul.mubr.f32.gmra.mrb[0].mxu0 %v5992
    %v6267 = vpop.f32.mrb[0].mxu0
    %v6268 = vadd.f32 0.0, %v6267
    %v6269 = vpop.f32.mrb[0].mxu0
    %v6270 = vadd.f32 0.0, %v6269
    %6271 = vdwg.mxu0
    %6272 = vmatprep.subr.mxu0 %v5998
    %6273 = vmatpush1.msra.mxu0 %v5997
    %6274 = vmatprep.subr.mxu0 %v6002
    %6275 = vmatpush1.msra.mxu0 %v6001
    %6276 = vmatprep.subr.mxu0 %v6006
    %6277 = vmatpush1.msra.mxu0 %v6005
    %6278 = vmatprep.subr.mxu0 %v6010
    %6279 = vmatpush1.msra.mxu0 %v6009
    %6280 = vmatprep.subr.mxu0 %v6014
    %6281 = vmatpush1.msra.mxu0 %v6013
    %6282 = vmatprep.subr.mxu0 %v6018
    %6283 = vmatpush1.msra.mxu0 %v6017
    %6284 = vmatprep.subr.mxu0 %v6022
    %6285 = vmatpush1.msra.mxu0 %v6021
    %6286 = vmatprep.subr.mxu0 %v6026
    %6287 = vmatpush1.msra.mxu0 %v6025
    %6288 = vmatprep.subr.mxu0 %v6030
    %6289 = vmatpush1.msra.mxu0 %v6029
    %6290 = vmatprep.subr.mxu0 %v6034
    %6291 = vmatpush1.msra.mxu0 %v6033
    %6292 = vmatprep.subr.mxu0 %v6038
    %6293 = vmatpush1.msra.mxu0 %v6037
    %6294 = vmatprep.subr.mxu0 %v6042
    %6295 = vmatpush1.msra.mxu0 %v6041
    %6296 = vmatprep.subr.mxu0 %v6046
    %6297 = vmatpush1.msra.mxu0 %v6045
    %6298 = vmatprep.subr.mxu0 %v6050
    %6299 = vmatpush1.msra.mxu0 %v6049
    %6300 = vmatprep.subr.mxu0 %v6054
    %6301 = vmatpush1.msra.mxu0 %v6053
    %6302 = vmatprep.subr.mxu0 %v6058
    %6303 = vmatpush1.msra.mxu0 %v6057
    %6304 = vmatprep.subr.mxu0 %v6062
    %6305 = vmatpush1.msra.mxu0 %v6061
    %6306 = vmatprep.subr.mxu0 %v6066
    %6307 = vmatpush1.msra.mxu0 %v6065
    %6308 = vmatprep.subr.mxu0 %v6070
    %6309 = vmatpush1.msra.mxu0 %v6069
    %6310 = vmatprep.subr.mxu0 %v6074
    %6311 = vmatpush1.msra.mxu0 %v6073
    %6312 = vmatprep.subr.mxu0 %v6078
    %6313 = vmatpush1.msra.mxu0 %v6077
    %6314 = vmatprep.subr.mxu0 %v6082
    %6315 = vmatpush1.msra.mxu0 %v6081
    %6316 = vmatprep.subr.mxu0 %v6086
    %6317 = vmatpush1.msra.mxu0 %v6085
    %6318 = vmatprep.subr.mxu0 %v6090
    %6319 = vmatpush1.msra.mxu0 %v6089
    %6320 = vmatprep.subr.mxu0 %v6094
    %6321 = vmatpush1.msra.mxu0 %v6093
    %6322 = vmatprep.subr.mxu0 %v6098
    %6323 = vmatpush1.msra.mxu0 %v6097
    %6324 = vmatprep.subr.mxu0 %v6102
    %6325 = vmatpush1.msra.mxu0 %v6101
    %6326 = vmatprep.subr.mxu0 %v6106
    %6327 = vmatpush1.msra.mxu0 %v6105
    %6328 = vmatprep.subr.mxu0 %v6110
    %6329 = vmatpush1.msra.mxu0 %v6109
    %6330 = vmatprep.subr.mxu0 %v6114
    %6331 = vmatpush1.msra.mxu0 %v6113
    %6332 = vmatprep.subr.mxu0 %v6118
    %6333 = vmatpush1.msra.mxu0 %v6117
    %6334 = vmatprep.subr.mxu0 %v6122
    %6335 = vmatpush1.msra.mxu0 %v6121
    %6336 = vmatprep.mubr.f32.mxu0 %v5967
    %6337 = vmatmul.mubr.f32.gmra.mrb[0].mxu0 %v5966
    %v6338 = vpop.f32.mrb[0].mxu0
    %v6339 = vadd.f32 0.0, %v6338
    %v6340 = vpop.f32.mrb[0].mxu0
    %v6341 = vadd.f32 0.0, %v6340
    %6342 = vmatprep.mubr.f32.mxu0 %v5969
    %6343 = vmatmul.mubr.f32.gmra.mrb[0].mxu0 %v5968
    %v6344 = vpop.f32.mrb[0].mxu0
    %v6345 = vadd.f32 0.0, %v6344
    %v6346 = vpop.f32.mrb[0].mxu0
    %v6347 = vadd.f32 0.0, %v6346
    %6348 = vmatprep.mubr.f32.mxu0 %v5971
    %6349 = vmatmul.mubr.f32.gmra.mrb[0].mxu0 %v5970
    %v6350 = vpop.f32.mrb[0].mxu0
    %v6351 = vadd.f32 0.0, %v6350
    %v6352 = vpop.f32.mrb[0].mxu0
    %v6353 = vadd.f32 0.0, %v6352
    %6354 = vmatprep.mubr.f32.mxu0 %v5973
    %6355 = vmatmul.mubr.f32.gmra.mrb[0].mxu0 %v5972
    %v6356 = vpop.f32.mrb[0].mxu0
    %v6357 = vadd.f32 0.0, %v6356
    %v6358 = vpop.f32.mrb[0].mxu0
    %v6359 = vadd.f32 0.0, %v6358
    %6360 = vmatprep.mubr.f32.mxu0 %v5975
    %6361 = vmatmul.mubr.f32.gmra.mrb[0].mxu0 %v5974
    %v6362 = vpop.f32.mrb[0].mxu0
    %v6363 = vadd.f32 0.0, %v6362
    %v6364 = vpop.f32.mrb[0].mxu0
    %v6365 = vadd.f32 0.0, %v6364
    %6366 = vmatprep.mubr.f32.mxu0 %v5977
    %6367 = vmatmul.mubr.f32.gmra.mrb[0].mxu0 %v5976
    %v6368 = vpop.f32.mrb[0].mxu0
    %v6369 = vadd.f32 0.0, %v6368
    %v6370 = vpop.f32.mrb[0].mxu0
    %v6371 = vadd.f32 0.0, %v6370
    %6372 = vmatprep.mubr.f32.mxu0 %v5979
    %6373 = vmatmul.mubr.f32.gmra.mrb[0].mxu0 %v5978
    %v6374 = vpop.f32.mrb[0].mxu0
    %v6375 = vadd.f32 0.0, %v6374
    %v6376 = vpop.f32.mrb[0].mxu0
    %v6377 = vadd.f32 0.0, %v6376
    %6378 = vmatprep.mubr.f32.mxu0 %v5981
    %6379 = vmatmul.mubr.f32.gmra.mrb[0].mxu0 %v5980
    %v6380 = vpop.f32.mrb[0].mxu0
    %v6381 = vadd.f32 0.0, %v6380
    %v6382 = vpop.f32.mrb[0].mxu0
    %v6383 = vadd.f32 0.0, %v6382
    %6384 = vmatprep.mubr.f32.mxu0 %v5983
    %6385 = vmatmul.mubr.f32.gmra.mrb[0].mxu0 %v5982
    %v6386 = vpop.f32.mrb[0].mxu0
    %v6387 = vadd.f32 0.0, %v6386
    %v6388 = vpop.f32.mrb[0].mxu0
    %v6389 = vadd.f32 0.0, %v6388
    %6390 = vmatprep.mubr.f32.mxu0 %v5985
    %6391 = vmatmul.mubr.f32.gmra.mrb[0].mxu0 %v5984
    %v6392 = vpop.f32.mrb[0].mxu0
    %v6393 = vadd.f32 0.0, %v6392
    %v6394 = vpop.f32.mrb[0].mxu0
    %v6395 = vadd.f32 0.0, %v6394
    %6396 = vmatprep.mubr.f32.mxu0 %v5987
    %6397 = vmatmul.mubr.f32.gmra.mrb[0].mxu0 %v5986
    %v6398 = vpop.f32.mrb[0].mxu0
    %v6399 = vadd.f32 0.0, %v6398
    %v6400 = vpop.f32.mrb[0].mxu0
    %v6401 = vadd.f32 0.0, %v6400
    %6402 = vmatprep.mubr.f32.mxu0 %v5989
    %6403 = vmatmul.mubr.f32.gmra.mrb[0].mxu0 %v5988
    %v6404 = vpop.f32.mrb[0].mxu0
    %v6405 = vadd.f32 0.0, %v6404
    %v6406 = vpop.f32.mrb[0].mxu0
    %v6407 = vadd.f32 0.0, %v6406
    %6408 = vmatprep.mubr.f32.mxu0 %v5991
    %6409 = vmatmul.mubr.f32.gmra.mrb[0].mxu0 %v5990
    %v6410 = vpop.f32.mrb[0].mxu0
    %v6411 = vadd.f32 0.0, %v6410
    %v6412 = vpop.f32.mrb[0].mxu0
    %v6413 = vadd.f32 0.0, %v6412
    %6414 = vmatprep.mubr.f32.mxu0 %v5993
    %6415 = vmatmul.mubr.f32.gmra.mrb[0].mxu0 %v5992
    %v6416 = vpop.f32.mrb[0].mxu0
    %v6417 = vadd.f32 0.0, %v6416
    %v6418 = vpop.f32.mrb[0].mxu0
    %v6419 = vadd.f32 0.0, %v6418
    %6420 = vdwg.mxu0
    %v6421 = vld [vmem:[#allocation4] sm:$0xff]
    %v6422 = vld [vmem:[#allocation4 + $0x8] sm:$0xff]
    %v6423 = vld [vmem:[#allocation4 + $0x10] sm:$0xff]
    %v6424 = vld [vmem:[#allocation4 + $0x18] sm:$0xff]
    %v6425 = vld [vmem:[#allocation4 + $0x20] sm:$0xff]
    %v6426 = vld [vmem:[#allocation4 + $0x28] sm:$0xff]
    %v6427 = vld [vmem:[#allocation4 + $0x30] sm:$0xff]
    %v6428 = vld [vmem:[#allocation4 + $0x38] sm:$0xff]
    %v6429 = vld [vmem:[#allocation4 + $0x40] sm:$0xff]
    %v6430 = vld [vmem:[#allocation4 + $0x48] sm:$0xff]
    %v6431 = vld [vmem:[#allocation4 + $0x50] sm:$0xff]
    %v6432 = vld [vmem:[#allocation4 + $0x58] sm:$0xff]
    %v6433 = vld [vmem:[#allocation4 + $0x60] sm:$0xff]
    %v6434 = vld [vmem:[#allocation4 + $0x68] sm:$0xff]
    %v6435 = vld [vmem:[#allocation4 + $0x70] sm:$0xff]
    %v6436 = vld [vmem:[#allocation4 + $0x78] sm:$0xff]
    %v6437 = vld [vmem:[#allocation4 + $0x80] sm:$0xff]
    %v6438 = vld [vmem:[#allocation4 + $0x88] sm:$0xff]
    %v6439 = vld [vmem:[#allocation4 + $0x90] sm:$0xff]
    %v6440 = vld [vmem:[#allocation4 + $0x98] sm:$0xff]
    %v6441 = vld [vmem:[#allocation4 + $0xa0] sm:$0xff]
    %v6442 = vld [vmem:[#allocation4 + $0xa8] sm:$0xff]
    %v6443 = vld [vmem:[#allocation4 + $0xb0] sm:$0xff]
    %v6444 = vld [vmem:[#allocation4 + $0xb8] sm:$0xff]
    %v6445 = vld [vmem:[#allocation4 + $0xc0] sm:$0xff]
    %v6446 = vld [vmem:[#allocation4 + $0xc8] sm:$0xff]
    %v6447 = vld [vmem:[#allocation4 + $0xd0] sm:$0xff]
    %v6448 = vld [vmem:[#allocation4 + $0xd8] sm:$0xff]
    %v6449 = vld [vmem:[#allocation4 + $0xe0] sm:$0xff]
    %v6450 = vld [vmem:[#allocation4 + $0xe8] sm:$0xff]
    %v6451 = vld [vmem:[#allocation4 + $0xf0] sm:$0xff]
    %v6452 = vld [vmem:[#allocation4 + $0xf8] sm:$0xff]
    %v6453 = vld [vmem:[#allocation4 + $0x100] sm:$0xff]
    %v6454 = vld [vmem:[#allocation4 + $0x108] sm:$0xff]
    %v6455 = vld [vmem:[#allocation4 + $0x110] sm:$0xff]
    %v6456 = vld [vmem:[#allocation4 + $0x118] sm:$0xff]
    %v6457 = vld [vmem:[#allocation4 + $0x120] sm:$0xff]
    %v6458 = vld [vmem:[#allocation4 + $0x128] sm:$0xff]
    %v6459 = vld [vmem:[#allocation4 + $0x130] sm:$0xff]
    %v6460 = vld [vmem:[#allocation4 + $0x138] sm:$0xff]
    %v6461 = vld [vmem:[#allocation4 + $0x140] sm:$0xff]
    %v6462 = vld [vmem:[#allocation4 + $0x148] sm:$0xff]
    %v6463 = vld [vmem:[#allocation4 + $0x150] sm:$0xff]
    %v6464 = vld [vmem:[#allocation4 + $0x158] sm:$0xff]
    %v6465 = vld [vmem:[#allocation4 + $0x160] sm:$0xff]
    %v6466 = vld [vmem:[#allocation4 + $0x168] sm:$0xff]
    %v6467 = vld [vmem:[#allocation4 + $0x170] sm:$0xff]
    %v6468 = vld [vmem:[#allocation4 + $0x178] sm:$0xff]
    %v6469 = vld [vmem:[#allocation4 + $0x180] sm:$0xff]
    %v6470 = vld [vmem:[#allocation4 + $0x188] sm:$0xff]
    %v6471 = vld [vmem:[#allocation4 + $0x190] sm:$0xff]
    %v6472 = vld [vmem:[#allocation4 + $0x198] sm:$0xff]
    %v6473 = vld [vmem:[#allocation4 + $0x1a0] sm:$0xff]
    %v6474 = vld [vmem:[#allocation4 + $0x1a8] sm:$0xff]
    %v6475 = vld [vmem:[#allocation4 + $0x1b0] sm:$0xff]
    %v6476 = vld [vmem:[#allocation4 + $0x1b8] sm:$0xff]
    %v6477 = vadd.f32 %v6421, %v6190
    %v6478 = vadd.f32 %v6422, %v6192
    %v6479 = vadd.f32 %v6423, %v6339
    %v6480 = vadd.f32 %v6424, %v6341
    %v6481 = vadd.f32 %v6425, %v6196
    %v6482 = vadd.f32 %v6426, %v6198
    %v6483 = vadd.f32 %v6427, %v6345
    %v6484 = vadd.f32 %v6428, %v6347
    %v6485 = vadd.f32 %v6429, %v6202
    %v6486 = vadd.f32 %v6430, %v6204
    %v6487 = vadd.f32 %v6431, %v6351
    %v6488 = vadd.f32 %v6432, %v6353
    %v6489 = vadd.f32 %v6433, %v6208
    %v6490 = vadd.f32 %v6434, %v6210
    %v6491 = vadd.f32 %v6435, %v6357
    %v6492 = vadd.f32 %v6436, %v6359
    %v6493 = vadd.f32 %v6437, %v6214
    %v6494 = vadd.f32 %v6438, %v6216
    %v6495 = vadd.f32 %v6439, %v6363
    %v6496 = vadd.f32 %v6440, %v6365
    %v6497 = vadd.f32 %v6441, %v6220
    %v6498 = vadd.f32 %v6442, %v6222
    %v6499 = vadd.f32 %v6443, %v6369
    %v6500 = vadd.f32 %v6444, %v6371
    %v6501 = vadd.f32 %v6445, %v6226
    %v6502 = vadd.f32 %v6446, %v6228
    %v6503 = vadd.f32 %v6447, %v6375
    %v6504 = vadd.f32 %v6448, %v6377
    %v6505 = vadd.f32 %v6449, %v6232
    %v6506 = vadd.f32 %v6450, %v6234
    %v6507 = vadd.f32 %v6451, %v6381
    %v6508 = vadd.f32 %v6452, %v6383
    %v6509 = vadd.f32 %v6453, %v6238
    %v6510 = vadd.f32 %v6454, %v6240
    %v6511 = vadd.f32 %v6455, %v6387
    %v6512 = vadd.f32 %v6456, %v6389
    %v6513 = vadd.f32 %v6457, %v6244
    %v6514 = vadd.f32 %v6458, %v6246
    %v6515 = vadd.f32 %v6459, %v6393
    %v6516 = vadd.f32 %v6460, %v6395
    %v6517 = vadd.f32 %v6461, %v6250
    %v6518 = vadd.f32 %v6462, %v6252
    %v6519 = vadd.f32 %v6463, %v6399
    %v6520 = vadd.f32 %v6464, %v6401
    %v6521 = vadd.f32 %v6465, %v6256
    %v6522 = vadd.f32 %v6466, %v6258
    %v6523 = vadd.f32 %v6467, %v6405
    %v6524 = vadd.f32 %v6468, %v6407
    %v6525 = vadd.f32 %v6469, %v6262
    %v6526 = vadd.f32 %v6470, %v6264
    %v6527 = vadd.f32 %v6471, %v6411
    %v6528 = vadd.f32 %v6472, %v6413
    %v6529 = vadd.f32 %v6473, %v6268
    %v6530 = vadd.f32 %v6474, %v6270
    %v6531 = vadd.f32 %v6475, %v6417
    %v6532 = vadd.f32 %v6476, %v6419
    %6533 = vst [vmem:[#allocation4] sm:$0xff] %v6477
    %6534 = vst [vmem:[#allocation4 + $0x8] sm:$0xff] %v6478
    %6535 = vst [vmem:[#allocation4 + $0x10] sm:$0xff] %v6479
    %6536 = vst [vmem:[#allocation4 + $0x18] sm:$0xff] %v6480
    %6537 = vst [vmem:[#allocation4 + $0x20] sm:$0xff] %v6481
    %6538 = vst [vmem:[#allocation4 + $0x28] sm:$0xff] %v6482
    %6539 = vst [vmem:[#allocation4 + $0x30] sm:$0xff] %v6483
    %6540 = vst [vmem:[#allocation4 + $0x38] sm:$0xff] %v6484
    %6541 = vst [vmem:[#allocation4 + $0x40] sm:$0xff] %v6485
    %6542 = vst [vmem:[#allocation4 + $0x48] sm:$0xff] %v6486
    %6543 = vst [vmem:[#allocation4 + $0x50] sm:$0xff] %v6487
    %6544 = vst [vmem:[#allocation4 + $0x58] sm:$0xff] %v6488
    %6545 = vst [vmem:[#allocation4 + $0x60] sm:$0xff] %v6489
    %6546 = vst [vmem:[#allocation4 + $0x68] sm:$0xff] %v6490
    %6547 = vst [vmem:[#allocation4 + $0x70] sm:$0xff] %v6491
    %6548 = vst [vmem:[#allocation4 + $0x78] sm:$0xff] %v6492
    %6549 = vst [vmem:[#allocation4 + $0x80] sm:$0xff] %v6493
    %6550 = vst [vmem:[#allocation4 + $0x88] sm:$0xff] %v6494
    %6551 = vst [vmem:[#allocation4 + $0x90] sm:$0xff] %v6495
    %6552 = vst [vmem:[#allocation4 + $0x98] sm:$0xff] %v6496
    %6553 = vst [vmem:[#allocation4 + $0xa0] sm:$0xff] %v6497
    %6554 = vst [vmem:[#allocation4 + $0xa8] sm:$0xff] %v6498
    %6555 = vst [vmem:[#allocation4 + $0xb0] sm:$0xff] %v6499
    %6556 = vst [vmem:[#allocation4 + $0xb8] sm:$0xff] %v6500
    %6557 = vst [vmem:[#allocation4 + $0xc0] sm:$0xff] %v6501
    %6558 = vst [vmem:[#allocation4 + $0xc8] sm:$0xff] %v6502
    %6559 = vst [vmem:[#allocation4 + $0xd0] sm:$0xff] %v6503
    %6560 = vst [vmem:[#allocation4 + $0xd8] sm:$0xff] %v6504
    %6561 = vst [vmem:[#allocation4 + $0xe0] sm:$0xff] %v6505
    %6562 = vst [vmem:[#allocation4 + $0xe8] sm:$0xff] %v6506
    %6563 = vst [vmem:[#allocation4 + $0xf0] sm:$0xff] %v6507
    %6564 = vst [vmem:[#allocation4 + $0xf8] sm:$0xff] %v6508
    %6565 = vst [vmem:[#allocation4 + $0x100] sm:$0xff] %v6509
    %6566 = vst [vmem:[#allocation4 + $0x108] sm:$0xff] %v6510
    %6567 = vst [vmem:[#allocation4 + $0x110] sm:$0xff] %v6511
    %6568 = vst [vmem:[#allocation4 + $0x118] sm:$0xff] %v6512
    %6569 = vst [vmem:[#allocation4 + $0x120] sm:$0xff] %v6513
    %6570 = vst [vmem:[#allocation4 + $0x128] sm:$0xff] %v6514
    %6571 = vst [vmem:[#allocation4 + $0x130] sm:$0xff] %v6515
    %6572 = vst [vmem:[#allocation4 + $0x138] sm:$0xff] %v6516
    %6573 = vst [vmem:[#allocation4 + $0x140] sm:$0xff] %v6517
    %6574 = vst [vmem:[#allocation4 + $0x148] sm:$0xff] %v6518
    %6575 = vst [vmem:[#allocation4 + $0x150] sm:$0xff] %v6519
    %6576 = vst [vmem:[#allocation4 + $0x158] sm:$0xff] %v6520
    %6577 = vst [vmem:[#allocation4 + $0x160] sm:$0xff] %v6521
    %6578 = vst [vmem:[#allocation4 + $0x168] sm:$0xff] %v6522
    %6579 = vst [vmem:[#allocation4 + $0x170] sm:$0xff] %v6523
    %6580 = vst [vmem:[#allocation4 + $0x178] sm:$0xff] %v6524
    %6581 = vst [vmem:[#allocation4 + $0x180] sm:$0xff] %v6525
    %6582 = vst [vmem:[#allocation4 + $0x188] sm:$0xff] %v6526
    %6583 = vst [vmem:[#allocation4 + $0x190] sm:$0xff] %v6527
    %6584 = vst [vmem:[#allocation4 + $0x198] sm:$0xff] %v6528
    %6585 = vst [vmem:[#allocation4 + $0x1a0] sm:$0xff] %v6529
    %6586 = vst [vmem:[#allocation4 + $0x1a8] sm:$0xff] %v6530
    %6587 = vst [vmem:[#allocation4 + $0x1b0] sm:$0xff] %v6531
    %6588 = vst [vmem:[#allocation4 + $0x1b8] sm:$0xff] %v6532
    %v6589 = vld [vmem:[#allocation3 + $0x30] sm:$0xff]
    %v6590 = vld [vmem:[#allocation3 + $0x38] sm:$0xff]
    %v6591 = vld [vmem:[#allocation3 + $0x40] sm:$0xff]
    %v6592 = vld [vmem:[#allocation3 + $0x48] sm:$0xff]
    %v6593 = vld [vmem:[#allocation3 + $0x50] sm:$0xff]
    %v6594 = vld [vmem:[#allocation3 + $0x58] sm:$0xff]
    %v6595 = vld [vmem:[#allocation3 + $0x60] sm:$0xff]
    %v6596 = vld [vmem:[#allocation3 + $0x68] sm:$0xff]
    %v6597 = vld [vmem:[#allocation3 + $0x70] sm:$0xff]
    %v6598 = vld [vmem:[#allocation3 + $0x78] sm:$0xff]
    %v6599 = vld [vmem:[#allocation3 + $0x80] sm:$0xff]
    %v6600 = vld [vmem:[#allocation3 + $0x88] sm:$0xff]
    %v6601 = vld [vmem:[#allocation3 + $0x90] sm:$0xff]
    %v6602 = vld [vmem:[#allocation3 + $0x98] sm:$0xff]
    %v6603 = vld [vmem:[#allocation3 + $0xa0] sm:$0xff]
    %v6604 = vld [vmem:[#allocation3 + $0xa8] sm:$0xff]
    %v6605 = vld [vmem:[#allocation3 + $0xb0] sm:$0xff]
    %v6606 = vld [vmem:[#allocation3 + $0xb8] sm:$0xff]
    %v6607 = vld [vmem:[#allocation3 + $0xc0] sm:$0xff]
    %v6608 = vld [vmem:[#allocation3 + $0xc8] sm:$0xff]
    %v6609 = vld [vmem:[#allocation3 + $0xd0] sm:$0xff]
    %v6610 = vld [vmem:[#allocation3 + $0xd8] sm:$0xff]
    %v6611 = vld [vmem:[#allocation3 + $0xe0] sm:$0xff]
    %v6612 = vld [vmem:[#allocation3 + $0xe8] sm:$0xff]
    %v6613 = vld [vmem:[#allocation3 + $0xf0] sm:$0xff]
    %v6614 = vld [vmem:[#allocation3 + $0xf8] sm:$0xff]
    %v6615 = vld [vmem:[#allocation3 + $0x100] sm:$0xff]
    %v6616 = vld [vmem:[#allocation3 + $0x108] sm:$0xff]
    %s6617 = scalar_lea.vmem [#allocation10], 3072
    %v6618 = vld [vmem:[%s6617] sm:$0xff]
    %v6619 = vld [vmem:[%s6617 + $0x8] sm:$0xff]
    %v6620 = vld [vmem:[%s6617 + $0x10] sm:$0xff]
    %v6621 = vld [vmem:[%s6617 + $0x18] sm:$0xff]
    %v6622 = vld [vmem:[%s6617 + $0x20] sm:$0xff]
    %v6623 = vld [vmem:[%s6617 + $0x28] sm:$0xff]
    %v6624 = vld [vmem:[%s6617 + $0x30] sm:$0xff]
    %v6625 = vld [vmem:[%s6617 + $0x38] sm:$0xff]
    %v6626 = vld [vmem:[%s6617 + $0x40] sm:$0xff]
    %v6627 = vld [vmem:[%s6617 + $0x48] sm:$0xff]
    %v6628 = vld [vmem:[%s6617 + $0x50] sm:$0xff]
    %v6629 = vld [vmem:[%s6617 + $0x58] sm:$0xff]
    %v6630 = vld [vmem:[%s6617 + $0x60] sm:$0xff]
    %v6631 = vld [vmem:[%s6617 + $0x68] sm:$0xff]
    %v6632 = vld [vmem:[%s6617 + $0x70] sm:$0xff]
    %v6633 = vld [vmem:[%s6617 + $0x78] sm:$0xff]
    %v6634 = vld [vmem:[%s6617 + $0x80] sm:$0xff]
    %v6635 = vld [vmem:[%s6617 + $0x88] sm:$0xff]
    %v6636 = vld [vmem:[%s6617 + $0x90] sm:$0xff]
    %v6637 = vld [vmem:[%s6617 + $0x98] sm:$0xff]
    %v6638 = vld [vmem:[%s6617 + $0xa0] sm:$0xff]
    %v6639 = vld [vmem:[%s6617 + $0xa8] sm:$0xff]
    %v6640 = vld [vmem:[%s6617 + $0xb0] sm:$0xff]
    %v6641 = vld [vmem:[%s6617 + $0xb8] sm:$0xff]
    %v6642 = vld [vmem:[%s6617 + $0xc0] sm:$0xff]
    %v6643 = vld [vmem:[%s6617 + $0xc8] sm:$0xff]
    %v6644 = vld [vmem:[%s6617 + $0xd0] sm:$0xff]
    %v6645 = vld [vmem:[%s6617 + $0xd8] sm:$0xff]
    %v6646 = vld [vmem:[%s6617 + $0xe0] sm:$0xff]
    %v6647 = vld [vmem:[%s6617 + $0xe8] sm:$0xff]
    %v6648 = vld [vmem:[%s6617 + $0xf0] sm:$0xff]
    %v6649 = vld [vmem:[%s6617 + $0xf8] sm:$0xff]
    %v6650 = vld [vmem:[%s6617 + $0x100] sm:$0xff]
    %v6651 = vld [vmem:[%s6617 + $0x108] sm:$0xff]
    %v6652 = vld [vmem:[%s6617 + $0x110] sm:$0xff]
    %v6653 = vld [vmem:[%s6617 + $0x118] sm:$0xff]
    %v6654 = vld [vmem:[%s6617 + $0x120] sm:$0xff]
    %v6655 = vld [vmem:[%s6617 + $0x128] sm:$0xff]
    %v6656 = vld [vmem:[%s6617 + $0x130] sm:$0xff]
    %v6657 = vld [vmem:[%s6617 + $0x138] sm:$0xff]
    %v6658 = vld [vmem:[%s6617 + $0x140] sm:$0xff]
    %v6659 = vld [vmem:[%s6617 + $0x148] sm:$0xff]
    %v6660 = vld [vmem:[%s6617 + $0x150] sm:$0xff]
    %v6661 = vld [vmem:[%s6617 + $0x158] sm:$0xff]
    %v6662 = vld [vmem:[%s6617 + $0x160] sm:$0xff]
    %v6663 = vld [vmem:[%s6617 + $0x168] sm:$0xff]
    %v6664 = vld [vmem:[%s6617 + $0x170] sm:$0xff]
    %v6665 = vld [vmem:[%s6617 + $0x178] sm:$0xff]
    %v6666 = vld [vmem:[%s6617 + $0x180] sm:$0xff]
    %v6667 = vld [vmem:[%s6617 + $0x188] sm:$0xff]
    %v6668 = vld [vmem:[%s6617 + $0x190] sm:$0xff]
    %v6669 = vld [vmem:[%s6617 + $0x198] sm:$0xff]
    %v6670 = vld [vmem:[%s6617 + $0x1a0] sm:$0xff]
    %v6671 = vld [vmem:[%s6617 + $0x1a8] sm:$0xff]
    %v6672 = vld [vmem:[%s6617 + $0x1b0] sm:$0xff]
    %v6673 = vld [vmem:[%s6617 + $0x1b8] sm:$0xff]
    %v6674 = vld [vmem:[%s6617 + $0x1c0] sm:$0xff]
    %v6675 = vld [vmem:[%s6617 + $0x1c8] sm:$0xff]
    %v6676 = vld [vmem:[%s6617 + $0x1d0] sm:$0xff]
    %v6677 = vld [vmem:[%s6617 + $0x1d8] sm:$0xff]
    %v6678 = vld [vmem:[%s6617 + $0x1e0] sm:$0xff]
    %v6679 = vld [vmem:[%s6617 + $0x1e8] sm:$0xff]
    %v6680 = vld [vmem:[%s6617 + $0x1f0] sm:$0xff]
    %v6681 = vld [vmem:[%s6617 + $0x1f8] sm:$0xff]
    %v6682 = vld [vmem:[%s6617 + $0x200] sm:$0xff]
    %v6683 = vld [vmem:[%s6617 + $0x208] sm:$0xff]
    %v6684 = vld [vmem:[%s6617 + $0x210] sm:$0xff]
    %v6685 = vld [vmem:[%s6617 + $0x218] sm:$0xff]
    %v6686 = vld [vmem:[%s6617 + $0x220] sm:$0xff]
    %v6687 = vld [vmem:[%s6617 + $0x228] sm:$0xff]
    %v6688 = vld [vmem:[%s6617 + $0x230] sm:$0xff]
    %v6689 = vld [vmem:[%s6617 + $0x238] sm:$0xff]
    %v6690 = vld [vmem:[%s6617 + $0x240] sm:$0xff]
    %v6691 = vld [vmem:[%s6617 + $0x248] sm:$0xff]
    %v6692 = vld [vmem:[%s6617 + $0x250] sm:$0xff]
    %v6693 = vld [vmem:[%s6617 + $0x258] sm:$0xff]
    %v6694 = vld [vmem:[%s6617 + $0x260] sm:$0xff]
    %v6695 = vld [vmem:[%s6617 + $0x268] sm:$0xff]
    %v6696 = vld [vmem:[%s6617 + $0x270] sm:$0xff]
    %v6697 = vld [vmem:[%s6617 + $0x278] sm:$0xff]
    %v6698 = vld [vmem:[%s6617 + $0x280] sm:$0xff]
    %v6699 = vld [vmem:[%s6617 + $0x288] sm:$0xff]
    %v6700 = vld [vmem:[%s6617 + $0x290] sm:$0xff]
    %v6701 = vld [vmem:[%s6617 + $0x298] sm:$0xff]
    %v6702 = vld [vmem:[%s6617 + $0x2a0] sm:$0xff]
    %v6703 = vld [vmem:[%s6617 + $0x2a8] sm:$0xff]
    %v6704 = vld [vmem:[%s6617 + $0x2b0] sm:$0xff]
    %v6705 = vld [vmem:[%s6617 + $0x2b8] sm:$0xff]
    %v6706 = vld [vmem:[%s6617 + $0x2c0] sm:$0xff]
    %v6707 = vld [vmem:[%s6617 + $0x2c8] sm:$0xff]
    %v6708 = vld [vmem:[%s6617 + $0x2d0] sm:$0xff]
    %v6709 = vld [vmem:[%s6617 + $0x2d8] sm:$0xff]
    %v6710 = vld [vmem:[%s6617 + $0x2e0] sm:$0xff]
    %v6711 = vld [vmem:[%s6617 + $0x2e8] sm:$0xff]
    %v6712 = vld [vmem:[%s6617 + $0x2f0] sm:$0xff]
    %v6713 = vld [vmem:[%s6617 + $0x2f8] sm:$0xff]
    %v6714 = vld [vmem:[%s6617 + $0x300] sm:$0xff]
    %v6715 = vld [vmem:[%s6617 + $0x308] sm:$0xff]
    %v6716 = vld [vmem:[%s6617 + $0x310] sm:$0xff]
    %v6717 = vld [vmem:[%s6617 + $0x318] sm:$0xff]
    %v6718 = vld [vmem:[%s6617 + $0x320] sm:$0xff]
    %v6719 = vld [vmem:[%s6617 + $0x328] sm:$0xff]
    %v6720 = vld [vmem:[%s6617 + $0x330] sm:$0xff]
    %v6721 = vld [vmem:[%s6617 + $0x338] sm:$0xff]
    %v6722 = vld [vmem:[%s6617 + $0x340] sm:$0xff]
    %v6723 = vld [vmem:[%s6617 + $0x348] sm:$0xff]
    %v6724 = vld [vmem:[%s6617 + $0x350] sm:$0xff]
    %v6725 = vld [vmem:[%s6617 + $0x358] sm:$0xff]
    %v6726 = vld [vmem:[%s6617 + $0x360] sm:$0xff]
    %v6727 = vld [vmem:[%s6617 + $0x368] sm:$0xff]
    %v6728 = vld [vmem:[%s6617 + $0x370] sm:$0xff]
    %v6729 = vld [vmem:[%s6617 + $0x378] sm:$0xff]
    %v6730 = vld [vmem:[%s6617 + $0x380] sm:$0xff]
    %v6731 = vld [vmem:[%s6617 + $0x388] sm:$0xff]
    %v6732 = vld [vmem:[%s6617 + $0x390] sm:$0xff]
    %v6733 = vld [vmem:[%s6617 + $0x398] sm:$0xff]
    %v6734 = vld [vmem:[%s6617 + $0x3a0] sm:$0xff]
    %v6735 = vld [vmem:[%s6617 + $0x3a8] sm:$0xff]
    %v6736 = vld [vmem:[%s6617 + $0x3b0] sm:$0xff]
    %v6737 = vld [vmem:[%s6617 + $0x3b8] sm:$0xff]
    %v6738 = vld [vmem:[%s6617 + $0x3c0] sm:$0xff]
    %v6739 = vld [vmem:[%s6617 + $0x3c8] sm:$0xff]
    %v6740 = vld [vmem:[%s6617 + $0x3d0] sm:$0xff]
    %v6741 = vld [vmem:[%s6617 + $0x3d8] sm:$0xff]
    %v6742 = vld [vmem:[%s6617 + $0x3e0] sm:$0xff]
    %v6743 = vld [vmem:[%s6617 + $0x3e8] sm:$0xff]
    %v6744 = vld [vmem:[%s6617 + $0x3f0] sm:$0xff]
    %v6745 = vld [vmem:[%s6617 + $0x3f8] sm:$0xff]
    %6746 = vmatprep.subr.mxu0 %v6619
    %6747 = vmatpush1.msra.mxu0 %v6618
    %6748 = vmatprep.subr.mxu0 %v6623
    %6749 = vmatpush1.msra.mxu0 %v6622
    %6750 = vmatprep.subr.mxu0 %v6627
    %6751 = vmatpush1.msra.mxu0 %v6626
    %6752 = vmatprep.subr.mxu0 %v6631
    %6753 = vmatpush1.msra.mxu0 %v6630
    %6754 = vmatprep.subr.mxu0 %v6635
    %6755 = vmatpush1.msra.mxu0 %v6634
    %6756 = vmatprep.subr.mxu0 %v6639
    %6757 = vmatpush1.msra.mxu0 %v6638
    %6758 = vmatprep.subr.mxu0 %v6643
    %6759 = vmatpush1.msra.mxu0 %v6642
    %6760 = vmatprep.subr.mxu0 %v6647
    %6761 = vmatpush1.msra.mxu0 %v6646
    %6762 = vmatprep.subr.mxu0 %v6651
    %6763 = vmatpush1.msra.mxu0 %v6650
    %6764 = vmatprep.subr.mxu0 %v6655
    %6765 = vmatpush1.msra.mxu0 %v6654
    %6766 = vmatprep.subr.mxu0 %v6659
    %6767 = vmatpush1.msra.mxu0 %v6658
    %6768 = vmatprep.subr.mxu0 %v6663
    %6769 = vmatpush1.msra.mxu0 %v6662
    %6770 = vmatprep.subr.mxu0 %v6667
    %6771 = vmatpush1.msra.mxu0 %v6666
    %6772 = vmatprep.subr.mxu0 %v6671
    %6773 = vmatpush1.msra.mxu0 %v6670
    %6774 = vmatprep.subr.mxu0 %v6675
    %6775 = vmatpush1.msra.mxu0 %v6674
    %6776 = vmatprep.subr.mxu0 %v6679
    %6777 = vmatpush1.msra.mxu0 %v6678
    %6778 = vmatprep.subr.mxu0 %v6683
    %6779 = vmatpush1.msra.mxu0 %v6682
    %6780 = vmatprep.subr.mxu0 %v6687
    %6781 = vmatpush1.msra.mxu0 %v6686
    %6782 = vmatprep.subr.mxu0 %v6691
    %6783 = vmatpush1.msra.mxu0 %v6690
    %6784 = vmatprep.subr.mxu0 %v6695
    %6785 = vmatpush1.msra.mxu0 %v6694
    %6786 = vmatprep.subr.mxu0 %v6699
    %6787 = vmatpush1.msra.mxu0 %v6698
    %6788 = vmatprep.subr.mxu0 %v6703
    %6789 = vmatpush1.msra.mxu0 %v6702
    %6790 = vmatprep.subr.mxu0 %v6707
    %6791 = vmatpush1.msra.mxu0 %v6706
    %6792 = vmatprep.subr.mxu0 %v6711
    %6793 = vmatpush1.msra.mxu0 %v6710
    %6794 = vmatprep.subr.mxu0 %v6715
    %6795 = vmatpush1.msra.mxu0 %v6714
    %6796 = vmatprep.subr.mxu0 %v6719
    %6797 = vmatpush1.msra.mxu0 %v6718
    %6798 = vmatprep.subr.mxu0 %v6723
    %6799 = vmatpush1.msra.mxu0 %v6722
    %6800 = vmatprep.subr.mxu0 %v6727
    %6801 = vmatpush1.msra.mxu0 %v6726
    %6802 = vmatprep.subr.mxu0 %v6731
    %6803 = vmatpush1.msra.mxu0 %v6730
    %6804 = vmatprep.subr.mxu0 %v6735
    %6805 = vmatpush1.msra.mxu0 %v6734
    %6806 = vmatprep.subr.mxu0 %v6739
    %6807 = vmatpush1.msra.mxu0 %v6738
    %6808 = vmatprep.subr.mxu0 %v6743
    %6809 = vmatpush1.msra.mxu0 %v6742
    %6810 = vmatprep.mubr.f32.mxu0 %v6590
    %6811 = vmatmul.mubr.f32.gmra.mrb[0].mxu0 %v6589
    %v6812 = vpop.f32.mrb[0].mxu0
    %v6813 = vadd.f32 0.0, %v6812
    %v6814 = vpop.f32.mrb[0].mxu0
    %v6815 = vadd.f32 0.0, %v6814
    %6816 = vmatprep.mubr.f32.mxu0 %v6592
    %6817 = vmatmul.mubr.f32.gmra.mrb[0].mxu0 %v6591
    %v6818 = vpop.f32.mrb[0].mxu0
    %v6819 = vadd.f32 0.0, %v6818
    %v6820 = vpop.f32.mrb[0].mxu0
    %v6821 = vadd.f32 0.0, %v6820
    %6822 = vmatprep.mubr.f32.mxu0 %v6594
    %6823 = vmatmul.mubr.f32.gmra.mrb[0].mxu0 %v6593
    %v6824 = vpop.f32.mrb[0].mxu0
    %v6825 = vadd.f32 0.0, %v6824
    %v6826 = vpop.f32.mrb[0].mxu0
    %v6827 = vadd.f32 0.0, %v6826
    %6828 = vmatprep.mubr.f32.mxu0 %v6596
    %6829 = vmatmul.mubr.f32.gmra.mrb[0].mxu0 %v6595
    %v6830 = vpop.f32.mrb[0].mxu0
    %v6831 = vadd.f32 0.0, %v6830
    %v6832 = vpop.f32.mrb[0].mxu0
    %v6833 = vadd.f32 0.0, %v6832
    %6834 = vmatprep.mubr.f32.mxu0 %v6598
    %6835 = vmatmul.mubr.f32.gmra.mrb[0].mxu0 %v6597
    %v6836 = vpop.f32.mrb[0].mxu0
    %v6837 = vadd.f32 0.0, %v6836
    %v6838 = vpop.f32.mrb[0].mxu0
    %v6839 = vadd.f32 0.0, %v6838
    %6840 = vmatprep.mubr.f32.mxu0 %v6600
    %6841 = vmatmul.mubr.f32.gmra.mrb[0].mxu0 %v6599
    %v6842 = vpop.f32.mrb[0].mxu0
    %v6843 = vadd.f32 0.0, %v6842
    %v6844 = vpop.f32.mrb[0].mxu0
    %v6845 = vadd.f32 0.0, %v6844
    %6846 = vmatprep.mubr.f32.mxu0 %v6602
    %6847 = vmatmul.mubr.f32.gmra.mrb[0].mxu0 %v6601
    %v6848 = vpop.f32.mrb[0].mxu0
    %v6849 = vadd.f32 0.0, %v6848
    %v6850 = vpop.f32.mrb[0].mxu0
    %v6851 = vadd.f32 0.0, %v6850
    %6852 = vmatprep.mubr.f32.mxu0 %v6604
    %6853 = vmatmul.mubr.f32.gmra.mrb[0].mxu0 %v6603
    %v6854 = vpop.f32.mrb[0].mxu0
    %v6855 = vadd.f32 0.0, %v6854
    %v6856 = vpop.f32.mrb[0].mxu0
    %v6857 = vadd.f32 0.0, %v6856
    %6858 = vmatprep.mubr.f32.mxu0 %v6606
    %6859 = vmatmul.mubr.f32.gmra.mrb[0].mxu0 %v6605
    %v6860 = vpop.f32.mrb[0].mxu0
    %v6861 = vadd.f32 0.0, %v6860
    %v6862 = vpop.f32.mrb[0].mxu0
    %v6863 = vadd.f32 0.0, %v6862
    %6864 = vmatprep.mubr.f32.mxu0 %v6608
    %6865 = vmatmul.mubr.f32.gmra.mrb[0].mxu0 %v6607
    %v6866 = vpop.f32.mrb[0].mxu0
    %v6867 = vadd.f32 0.0, %v6866
    %v6868 = vpop.f32.mrb[0].mxu0
    %v6869 = vadd.f32 0.0, %v6868
    %6870 = vmatprep.mubr.f32.mxu0 %v6610
    %6871 = vmatmul.mubr.f32.gmra.mrb[0].mxu0 %v6609
    %v6872 = vpop.f32.mrb[0].mxu0
    %v6873 = vadd.f32 0.0, %v6872
    %v6874 = vpop.f32.mrb[0].mxu0
    %v6875 = vadd.f32 0.0, %v6874
    %6876 = vmatprep.mubr.f32.mxu0 %v6612
    %6877 = vmatmul.mubr.f32.gmra.mrb[0].mxu0 %v6611
    %v6878 = vpop.f32.mrb[0].mxu0
    %v6879 = vadd.f32 0.0, %v6878
    %v6880 = vpop.f32.mrb[0].mxu0
    %v6881 = vadd.f32 0.0, %v6880
    %6882 = vmatprep.mubr.f32.mxu0 %v6614
    %6883 = vmatmul.mubr.f32.gmra.mrb[0].mxu0 %v6613
    %v6884 = vpop.f32.mrb[0].mxu0
    %v6885 = vadd.f32 0.0, %v6884
    %v6886 = vpop.f32.mrb[0].mxu0
    %v6887 = vadd.f32 0.0, %v6886
    %6888 = vmatprep.mubr.f32.mxu0 %v6616
    %6889 = vmatmul.mubr.f32.gmra.mrb[0].mxu0 %v6615
    %v6890 = vpop.f32.mrb[0].mxu0
    %v6891 = vadd.f32 0.0, %v6890
    %v6892 = vpop.f32.mrb[0].mxu0
    %v6893 = vadd.f32 0.0, %v6892
    %6894 = vdwg.mxu0
    %6895 = vmatprep.subr.mxu0 %v6621
    %6896 = vmatpush1.msra.mxu0 %v6620
    %6897 = vmatprep.subr.mxu0 %v6625
    %6898 = vmatpush1.msra.mxu0 %v6624
    %6899 = vmatprep.subr.mxu0 %v6629
    %6900 = vmatpush1.msra.mxu0 %v6628
    %6901 = vmatprep.subr.mxu0 %v6633
    %6902 = vmatpush1.msra.mxu0 %v6632
    %6903 = vmatprep.subr.mxu0 %v6637
    %6904 = vmatpush1.msra.mxu0 %v6636
    %6905 = vmatprep.subr.mxu0 %v6641
    %6906 = vmatpush1.msra.mxu0 %v6640
    %6907 = vmatprep.subr.mxu0 %v6645
    %6908 = vmatpush1.msra.mxu0 %v6644
    %6909 = vmatprep.subr.mxu0 %v6649
    %6910 = vmatpush1.msra.mxu0 %v6648
    %6911 = vmatprep.subr.mxu0 %v6653
    %6912 = vmatpush1.msra.mxu0 %v6652
    %6913 = vmatprep.subr.mxu0 %v6657
    %6914 = vmatpush1.msra.mxu0 %v6656
    %6915 = vmatprep.subr.mxu0 %v6661
    %6916 = vmatpush1.msra.mxu0 %v6660
    %6917 = vmatprep.subr.mxu0 %v6665
    %6918 = vmatpush1.msra.mxu0 %v6664
    %6919 = vmatprep.subr.mxu0 %v6669
    %6920 = vmatpush1.msra.mxu0 %v6668
    %6921 = vmatprep.subr.mxu0 %v6673
    %6922 = vmatpush1.msra.mxu0 %v6672
    %6923 = vmatprep.subr.mxu0 %v6677
    %6924 = vmatpush1.msra.mxu0 %v6676
    %6925 = vmatprep.subr.mxu0 %v6681
    %6926 = vmatpush1.msra.mxu0 %v6680
    %6927 = vmatprep.subr.mxu0 %v6685
    %6928 = vmatpush1.msra.mxu0 %v6684
    %6929 = vmatprep.subr.mxu0 %v6689
    %6930 = vmatpush1.msra.mxu0 %v6688
    %6931 = vmatprep.subr.mxu0 %v6693
    %6932 = vmatpush1.msra.mxu0 %v6692
    %6933 = vmatprep.subr.mxu0 %v6697
    %6934 = vmatpush1.msra.mxu0 %v6696
    %6935 = vmatprep.subr.mxu0 %v6701
    %6936 = vmatpush1.msra.mxu0 %v6700
    %6937 = vmatprep.subr.mxu0 %v6705
    %6938 = vmatpush1.msra.mxu0 %v6704
    %6939 = vmatprep.subr.mxu0 %v6709
    %6940 = vmatpush1.msra.mxu0 %v6708
    %6941 = vmatprep.subr.mxu0 %v6713
    %6942 = vmatpush1.msra.mxu0 %v6712
    %6943 = vmatprep.subr.mxu0 %v6717
    %6944 = vmatpush1.msra.mxu0 %v6716
    %6945 = vmatprep.subr.mxu0 %v6721
    %6946 = vmatpush1.msra.mxu0 %v6720
    %6947 = vmatprep.subr.mxu0 %v6725
    %6948 = vmatpush1.msra.mxu0 %v6724
    %6949 = vmatprep.subr.mxu0 %v6729
    %6950 = vmatpush1.msra.mxu0 %v6728
    %6951 = vmatprep.subr.mxu0 %v6733
    %6952 = vmatpush1.msra.mxu0 %v6732
    %6953 = vmatprep.subr.mxu0 %v6737
    %6954 = vmatpush1.msra.mxu0 %v6736
    %6955 = vmatprep.subr.mxu0 %v6741
    %6956 = vmatpush1.msra.mxu0 %v6740
    %6957 = vmatprep.subr.mxu0 %v6745
    %6958 = vmatpush1.msra.mxu0 %v6744
    %6959 = vmatprep.mubr.f32.mxu0 %v6590
    %6960 = vmatmul.mubr.f32.gmra.mrb[0].mxu0 %v6589
    %v6961 = vpop.f32.mrb[0].mxu0
    %v6962 = vadd.f32 0.0, %v6961
    %v6963 = vpop.f32.mrb[0].mxu0
    %v6964 = vadd.f32 0.0, %v6963
    %6965 = vmatprep.mubr.f32.mxu0 %v6592
    %6966 = vmatmul.mubr.f32.gmra.mrb[0].mxu0 %v6591
    %v6967 = vpop.f32.mrb[0].mxu0
    %v6968 = vadd.f32 0.0, %v6967
    %v6969 = vpop.f32.mrb[0].mxu0
    %v6970 = vadd.f32 0.0, %v6969
    %6971 = vmatprep.mubr.f32.mxu0 %v6594
    %6972 = vmatmul.mubr.f32.gmra.mrb[0].mxu0 %v6593
    %v6973 = vpop.f32.mrb[0].mxu0
    %v6974 = vadd.f32 0.0, %v6973
    %v6975 = vpop.f32.mrb[0].mxu0
    %v6976 = vadd.f32 0.0, %v6975
    %6977 = vmatprep.mubr.f32.mxu0 %v6596
    %6978 = vmatmul.mubr.f32.gmra.mrb[0].mxu0 %v6595
    %v6979 = vpop.f32.mrb[0].mxu0
    %v6980 = vadd.f32 0.0, %v6979
    %v6981 = vpop.f32.mrb[0].mxu0
    %v6982 = vadd.f32 0.0, %v6981
    %6983 = vmatprep.mubr.f32.mxu0 %v6598
    %6984 = vmatmul.mubr.f32.gmra.mrb[0].mxu0 %v6597
    %v6985 = vpop.f32.mrb[0].mxu0
    %v6986 = vadd.f32 0.0, %v6985
    %v6987 = vpop.f32.mrb[0].mxu0
    %v6988 = vadd.f32 0.0, %v6987
    %6989 = vmatprep.mubr.f32.mxu0 %v6600
    %6990 = vmatmul.mubr.f32.gmra.mrb[0].mxu0 %v6599
    %v6991 = vpop.f32.mrb[0].mxu0
    %v6992 = vadd.f32 0.0, %v6991
    %v6993 = vpop.f32.mrb[0].mxu0
    %v6994 = vadd.f32 0.0, %v6993
    %6995 = vmatprep.mubr.f32.mxu0 %v6602
    %6996 = vmatmul.mubr.f32.gmra.mrb[0].mxu0 %v6601
    %v6997 = vpop.f32.mrb[0].mxu0
    %v6998 = vadd.f32 0.0, %v6997
    %v6999 = vpop.f32.mrb[0].mxu0
    %v7000 = vadd.f32 0.0, %v6999
    %7001 = vmatprep.mubr.f32.mxu0 %v6604
    %7002 = vmatmul.mubr.f32.gmra.mrb[0].mxu0 %v6603
    %v7003 = vpop.f32.mrb[0].mxu0
    %v7004 = vadd.f32 0.0, %v7003
    %v7005 = vpop.f32.mrb[0].mxu0
    %v7006 = vadd.f32 0.0, %v7005
    %7007 = vmatprep.mubr.f32.mxu0 %v6606
    %7008 = vmatmul.mubr.f32.gmra.mrb[0].mxu0 %v6605
    %v7009 = vpop.f32.mrb[0].mxu0
    %v7010 = vadd.f32 0.0, %v7009
    %v7011 = vpop.f32.mrb[0].mxu0
    %v7012 = vadd.f32 0.0, %v7011
    %7013 = vmatprep.mubr.f32.mxu0 %v6608
    %7014 = vmatmul.mubr.f32.gmra.mrb[0].mxu0 %v6607
    %v7015 = vpop.f32.mrb[0].mxu0
    %v7016 = vadd.f32 0.0, %v7015
    %v7017 = vpop.f32.mrb[0].mxu0
    %v7018 = vadd.f32 0.0, %v7017
    %7019 = vmatprep.mubr.f32.mxu0 %v6610
    %7020 = vmatmul.mubr.f32.gmra.mrb[0].mxu0 %v6609
    %v7021 = vpop.f32.mrb[0].mxu0
    %v7022 = vadd.f32 0.0, %v7021
    %v7023 = vpop.f32.mrb[0].mxu0
    %v7024 = vadd.f32 0.0, %v7023
    %7025 = vmatprep.mubr.f32.mxu0 %v6612
    %7026 = vmatmul.mubr.f32.gmra.mrb[0].mxu0 %v6611
    %v7027 = vpop.f32.mrb[0].mxu0
    %v7028 = vadd.f32 0.0, %v7027
    %v7029 = vpop.f32.mrb[0].mxu0
    %v7030 = vadd.f32 0.0, %v7029
    %7031 = vmatprep.mubr.f32.mxu0 %v6614
    %7032 = vmatmul.mubr.f32.gmra.mrb[0].mxu0 %v6613
    %v7033 = vpop.f32.mrb[0].mxu0
    %v7034 = vadd.f32 0.0, %v7033
    %v7035 = vpop.f32.mrb[0].mxu0
    %v7036 = vadd.f32 0.0, %v7035
    %7037 = vmatprep.mubr.f32.mxu0 %v6616
    %7038 = vmatmul.mubr.f32.gmra.mrb[0].mxu0 %v6615
    %v7039 = vpop.f32.mrb[0].mxu0
    %v7040 = vadd.f32 0.0, %v7039
    %v7041 = vpop.f32.mrb[0].mxu0
    %v7042 = vadd.f32 0.0, %v7041
    %7043 = vdwg.mxu0
    %v7044 = vld [vmem:[#allocation4] sm:$0xff]
    %v7045 = vld [vmem:[#allocation4 + $0x8] sm:$0xff]
    %v7046 = vld [vmem:[#allocation4 + $0x10] sm:$0xff]
    %v7047 = vld [vmem:[#allocation4 + $0x18] sm:$0xff]
    %v7048 = vld [vmem:[#allocation4 + $0x20] sm:$0xff]
    %v7049 = vld [vmem:[#allocation4 + $0x28] sm:$0xff]
    %v7050 = vld [vmem:[#allocation4 + $0x30] sm:$0xff]
    %v7051 = vld [vmem:[#allocation4 + $0x38] sm:$0xff]
    %v7052 = vld [vmem:[#allocation4 + $0x40] sm:$0xff]
    %v7053 = vld [vmem:[#allocation4 + $0x48] sm:$0xff]
    %v7054 = vld [vmem:[#allocation4 + $0x50] sm:$0xff]
    %v7055 = vld [vmem:[#allocation4 + $0x58] sm:$0xff]
    %v7056 = vld [vmem:[#allocation4 + $0x60] sm:$0xff]
    %v7057 = vld [vmem:[#allocation4 + $0x68] sm:$0xff]
    %v7058 = vld [vmem:[#allocation4 + $0x70] sm:$0xff]
    %v7059 = vld [vmem:[#allocation4 + $0x78] sm:$0xff]
    %v7060 = vld [vmem:[#allocation4 + $0x80] sm:$0xff]
    %v7061 = vld [vmem:[#allocation4 + $0x88] sm:$0xff]
    %v7062 = vld [vmem:[#allocation4 + $0x90] sm:$0xff]
    %v7063 = vld [vmem:[#allocation4 + $0x98] sm:$0xff]
    %v7064 = vld [vmem:[#allocation4 + $0xa0] sm:$0xff]
    %v7065 = vld [vmem:[#allocation4 + $0xa8] sm:$0xff]
    %v7066 = vld [vmem:[#allocation4 + $0xb0] sm:$0xff]
    %v7067 = vld [vmem:[#allocation4 + $0xb8] sm:$0xff]
    %v7068 = vld [vmem:[#allocation4 + $0xc0] sm:$0xff]
    %v7069 = vld [vmem:[#allocation4 + $0xc8] sm:$0xff]
    %v7070 = vld [vmem:[#allocation4 + $0xd0] sm:$0xff]
    %v7071 = vld [vmem:[#allocation4 + $0xd8] sm:$0xff]
    %v7072 = vld [vmem:[#allocation4 + $0xe0] sm:$0xff]
    %v7073 = vld [vmem:[#allocation4 + $0xe8] sm:$0xff]
    %v7074 = vld [vmem:[#allocation4 + $0xf0] sm:$0xff]
    %v7075 = vld [vmem:[#allocation4 + $0xf8] sm:$0xff]
    %v7076 = vld [vmem:[#allocation4 + $0x100] sm:$0xff]
    %v7077 = vld [vmem:[#allocation4 + $0x108] sm:$0xff]
    %v7078 = vld [vmem:[#allocation4 + $0x110] sm:$0xff]
    %v7079 = vld [vmem:[#allocation4 + $0x118] sm:$0xff]
    %v7080 = vld [vmem:[#allocation4 + $0x120] sm:$0xff]
    %v7081 = vld [vmem:[#allocation4 + $0x128] sm:$0xff]
    %v7082 = vld [vmem:[#allocation4 + $0x130] sm:$0xff]
    %v7083 = vld [vmem:[#allocation4 + $0x138] sm:$0xff]
    %v7084 = vld [vmem:[#allocation4 + $0x140] sm:$0xff]
    %v7085 = vld [vmem:[#allocation4 + $0x148] sm:$0xff]
    %v7086 = vld [vmem:[#allocation4 + $0x150] sm:$0xff]
    %v7087 = vld [vmem:[#allocation4 + $0x158] sm:$0xff]
    %v7088 = vld [vmem:[#allocation4 + $0x160] sm:$0xff]
    %v7089 = vld [vmem:[#allocation4 + $0x168] sm:$0xff]
    %v7090 = vld [vmem:[#allocation4 + $0x170] sm:$0xff]
    %v7091 = vld [vmem:[#allocation4 + $0x178] sm:$0xff]
    %v7092 = vld [vmem:[#allocation4 + $0x180] sm:$0xff]
    %v7093 = vld [vmem:[#allocation4 + $0x188] sm:$0xff]
    %v7094 = vld [vmem:[#allocation4 + $0x190] sm:$0xff]
    %v7095 = vld [vmem:[#allocation4 + $0x198] sm:$0xff]
    %v7096 = vld [vmem:[#allocation4 + $0x1a0] sm:$0xff]
    %v7097 = vld [vmem:[#allocation4 + $0x1a8] sm:$0xff]
    %v7098 = vld [vmem:[#allocation4 + $0x1b0] sm:$0xff]
    %v7099 = vld [vmem:[#allocation4 + $0x1b8] sm:$0xff]
    %v7100 = vadd.f32 %v7044, %v6813
    %v7101 = vadd.f32 %v7045, %v6815
    %v7102 = vadd.f32 %v7046, %v6962
    %v7103 = vadd.f32 %v7047, %v6964
    %v7104 = vadd.f32 %v7048, %v6819
    %v7105 = vadd.f32 %v7049, %v6821
    %v7106 = vadd.f32 %v7050, %v6968
    %v7107 = vadd.f32 %v7051, %v6970
    %v7108 = vadd.f32 %v7052, %v6825
    %v7109 = vadd.f32 %v7053, %v6827
    %v7110 = vadd.f32 %v7054, %v6974
    %v7111 = vadd.f32 %v7055, %v6976
    %v7112 = vadd.f32 %v7056, %v6831
    %v7113 = vadd.f32 %v7057, %v6833
    %v7114 = vadd.f32 %v7058, %v6980
    %v7115 = vadd.f32 %v7059, %v6982
    %v7116 = vadd.f32 %v7060, %v6837
    %v7117 = vadd.f32 %v7061, %v6839
    %v7118 = vadd.f32 %v7062, %v6986
    %v7119 = vadd.f32 %v7063, %v6988
    %v7120 = vadd.f32 %v7064, %v6843
    %v7121 = vadd.f32 %v7065, %v6845
    %v7122 = vadd.f32 %v7066, %v6992
    %v7123 = vadd.f32 %v7067, %v6994
    %v7124 = vadd.f32 %v7068, %v6849
    %v7125 = vadd.f32 %v7069, %v6851
    %v7126 = vadd.f32 %v7070, %v6998
    %v7127 = vadd.f32 %v7071, %v7000
    %v7128 = vadd.f32 %v7072, %v6855
    %v7129 = vadd.f32 %v7073, %v6857
    %v7130 = vadd.f32 %v7074, %v7004
    %v7131 = vadd.f32 %v7075, %v7006
    %v7132 = vadd.f32 %v7076, %v6861
    %v7133 = vadd.f32 %v7077, %v6863
    %v7134 = vadd.f32 %v7078, %v7010
    %v7135 = vadd.f32 %v7079, %v7012
    %v7136 = vadd.f32 %v7080, %v6867
    %v7137 = vadd.f32 %v7081, %v6869
    %v7138 = vadd.f32 %v7082, %v7016
    %v7139 = vadd.f32 %v7083, %v7018
    %v7140 = vadd.f32 %v7084, %v6873
    %v7141 = vadd.f32 %v7085, %v6875
    %v7142 = vadd.f32 %v7086, %v7022
    %v7143 = vadd.f32 %v7087, %v7024
    %v7144 = vadd.f32 %v7088, %v6879
    %v7145 = vadd.f32 %v7089, %v6881
    %v7146 = vadd.f32 %v7090, %v7028
    %v7147 = vadd.f32 %v7091, %v7030
    %v7148 = vadd.f32 %v7092, %v6885
    %v7149 = vadd.f32 %v7093, %v6887
    %v7150 = vadd.f32 %v7094, %v7034
    %v7151 = vadd.f32 %v7095, %v7036
    %v7152 = vadd.f32 %v7096, %v6891
    %v7153 = vadd.f32 %v7097, %v6893
    %v7154 = vadd.f32 %v7098, %v7040
    %v7155 = vadd.f32 %v7099, %v7042
    %7156 = vst [vmem:[#allocation4] sm:$0xff] %v7100
    %7157 = vst [vmem:[#allocation4 + $0x8] sm:$0xff] %v7101
    %7158 = vst [vmem:[#allocation4 + $0x10] sm:$0xff] %v7102
    %7159 = vst [vmem:[#allocation4 + $0x18] sm:$0xff] %v7103
    %7160 = vst [vmem:[#allocation4 + $0x20] sm:$0xff] %v7104
    %7161 = vst [vmem:[#allocation4 + $0x28] sm:$0xff] %v7105
    %7162 = vst [vmem:[#allocation4 + $0x30] sm:$0xff] %v7106
    %7163 = vst [vmem:[#allocation4 + $0x38] sm:$0xff] %v7107
    %7164 = vst [vmem:[#allocation4 + $0x40] sm:$0xff] %v7108
    %7165 = vst [vmem:[#allocation4 + $0x48] sm:$0xff] %v7109
    %7166 = vst [vmem:[#allocation4 + $0x50] sm:$0xff] %v7110
    %7167 = vst [vmem:[#allocation4 + $0x58] sm:$0xff] %v7111
    %7168 = vst [vmem:[#allocation4 + $0x60] sm:$0xff] %v7112
    %7169 = vst [vmem:[#allocation4 + $0x68] sm:$0xff] %v7113
    %7170 = vst [vmem:[#allocation4 + $0x70] sm:$0xff] %v7114
    %7171 = vst [vmem:[#allocation4 + $0x78] sm:$0xff] %v7115
    %7172 = vst [vmem:[#allocation4 + $0x80] sm:$0xff] %v7116
    %7173 = vst [vmem:[#allocation4 + $0x88] sm:$0xff] %v7117
    %7174 = vst [vmem:[#allocation4 + $0x90] sm:$0xff] %v7118
    %7175 = vst [vmem:[#allocation4 + $0x98] sm:$0xff] %v7119
    %7176 = vst [vmem:[#allocation4 + $0xa0] sm:$0xff] %v7120
    %7177 = vst [vmem:[#allocation4 + $0xa8] sm:$0xff] %v7121
    %7178 = vst [vmem:[#allocation4 + $0xb0] sm:$0xff] %v7122
    %7179 = vst [vmem:[#allocation4 + $0xb8] sm:$0xff] %v7123
    %7180 = vst [vmem:[#allocation4 + $0xc0] sm:$0xff] %v7124
    %7181 = vst [vmem:[#allocation4 + $0xc8] sm:$0xff] %v7125
    %7182 = vst [vmem:[#allocation4 + $0xd0] sm:$0xff] %v7126
    %7183 = vst [vmem:[#allocation4 + $0xd8] sm:$0xff] %v7127
    %7184 = vst [vmem:[#allocation4 + $0xe0] sm:$0xff] %v7128
    %7185 = vst [vmem:[#allocation4 + $0xe8] sm:$0xff] %v7129
    %7186 = vst [vmem:[#allocation4 + $0xf0] sm:$0xff] %v7130
    %7187 = vst [vmem:[#allocation4 + $0xf8] sm:$0xff] %v7131
    %7188 = vst [vmem:[#allocation4 + $0x100] sm:$0xff] %v7132
    %7189 = vst [vmem:[#allocation4 + $0x108] sm:$0xff] %v7133
    %7190 = vst [vmem:[#allocation4 + $0x110] sm:$0xff] %v7134
    %7191 = vst [vmem:[#allocation4 + $0x118] sm:$0xff] %v7135
    %7192 = vst [vmem:[#allocation4 + $0x120] sm:$0xff] %v7136
    %7193 = vst [vmem:[#allocation4 + $0x128] sm:$0xff] %v7137
    %7194 = vst [vmem:[#allocation4 + $0x130] sm:$0xff] %v7138
    %7195 = vst [vmem:[#allocation4 + $0x138] sm:$0xff] %v7139
    %7196 = vst [vmem:[#allocation4 + $0x140] sm:$0xff] %v7140
    %7197 = vst [vmem:[#allocation4 + $0x148] sm:$0xff] %v7141
    %7198 = vst [vmem:[#allocation4 + $0x150] sm:$0xff] %v7142
    %7199 = vst [vmem:[#allocation4 + $0x158] sm:$0xff] %v7143
    %7200 = vst [vmem:[#allocation4 + $0x160] sm:$0xff] %v7144
    %7201 = vst [vmem:[#allocation4 + $0x168] sm:$0xff] %v7145
    %7202 = vst [vmem:[#allocation4 + $0x170] sm:$0xff] %v7146
    %7203 = vst [vmem:[#allocation4 + $0x178] sm:$0xff] %v7147
    %7204 = vst [vmem:[#allocation4 + $0x180] sm:$0xff] %v7148
    %7205 = vst [vmem:[#allocation4 + $0x188] sm:$0xff] %v7149
    %7206 = vst [vmem:[#allocation4 + $0x190] sm:$0xff] %v7150
    %7207 = vst [vmem:[#allocation4 + $0x198] sm:$0xff] %v7151
    %7208 = vst [vmem:[#allocation4 + $0x1a0] sm:$0xff] %v7152
    %7209 = vst [vmem:[#allocation4 + $0x1a8] sm:$0xff] %v7153
    %7210 = vst [vmem:[#allocation4 + $0x1b0] sm:$0xff] %v7154
    %7211 = vst [vmem:[#allocation4 + $0x1b8] sm:$0xff] %v7155
    %v7212 = vld [vmem:[#allocation3 + $0x40] sm:$0xff]
    %v7213 = vld [vmem:[#allocation3 + $0x48] sm:$0xff]
    %v7214 = vld [vmem:[#allocation3 + $0x50] sm:$0xff]
    %v7215 = vld [vmem:[#allocation3 + $0x58] sm:$0xff]
    %v7216 = vld [vmem:[#allocation3 + $0x60] sm:$0xff]
    %v7217 = vld [vmem:[#allocation3 + $0x68] sm:$0xff]
    %v7218 = vld [vmem:[#allocation3 + $0x70] sm:$0xff]
    %v7219 = vld [vmem:[#allocation3 + $0x78] sm:$0xff]
    %v7220 = vld [vmem:[#allocation3 + $0x80] sm:$0xff]
    %v7221 = vld [vmem:[#allocation3 + $0x88] sm:$0xff]
    %v7222 = vld [vmem:[#allocation3 + $0x90] sm:$0xff]
    %v7223 = vld [vmem:[#allocation3 + $0x98] sm:$0xff]
    %v7224 = vld [vmem:[#allocation3 + $0xa0] sm:$0xff]
    %v7225 = vld [vmem:[#allocation3 + $0xa8] sm:$0xff]
    %v7226 = vld [vmem:[#allocation3 + $0xb0] sm:$0xff]
    %v7227 = vld [vmem:[#allocation3 + $0xb8] sm:$0xff]
    %v7228 = vld [vmem:[#allocation3 + $0xc0] sm:$0xff]
    %v7229 = vld [vmem:[#allocation3 + $0xc8] sm:$0xff]
    %v7230 = vld [vmem:[#allocation3 + $0xd0] sm:$0xff]
    %v7231 = vld [vmem:[#allocation3 + $0xd8] sm:$0xff]
    %v7232 = vld [vmem:[#allocation3 + $0xe0] sm:$0xff]
    %v7233 = vld [vmem:[#allocation3 + $0xe8] sm:$0xff]
    %v7234 = vld [vmem:[#allocation3 + $0xf0] sm:$0xff]
    %v7235 = vld [vmem:[#allocation3 + $0xf8] sm:$0xff]
    %v7236 = vld [vmem:[#allocation3 + $0x100] sm:$0xff]
    %v7237 = vld [vmem:[#allocation3 + $0x108] sm:$0xff]
    %v7238 = vld [vmem:[#allocation3 + $0x110] sm:$0xff]
    %v7239 = vld [vmem:[#allocation3 + $0x118] sm:$0xff]
    %s7240 = scalar_lea.vmem [#allocation10], 4096
    %v7241 = vld [vmem:[%s7240] sm:$0xff]
    %v7242 = vld [vmem:[%s7240 + $0x8] sm:$0xff]
    %v7243 = vld [vmem:[%s7240 + $0x10] sm:$0xff]
    %v7244 = vld [vmem:[%s7240 + $0x18] sm:$0xff]
    %v7245 = vld [vmem:[%s7240 + $0x20] sm:$0xff]
    %v7246 = vld [vmem:[%s7240 + $0x28] sm:$0xff]
    %v7247 = vld [vmem:[%s7240 + $0x30] sm:$0xff]
    %v7248 = vld [vmem:[%s7240 + $0x38] sm:$0xff]
    %v7249 = vld [vmem:[%s7240 + $0x40] sm:$0xff]
    %v7250 = vld [vmem:[%s7240 + $0x48] sm:$0xff]
    %v7251 = vld [vmem:[%s7240 + $0x50] sm:$0xff]
    %v7252 = vld [vmem:[%s7240 + $0x58] sm:$0xff]
    %v7253 = vld [vmem:[%s7240 + $0x60] sm:$0xff]
    %v7254 = vld [vmem:[%s7240 + $0x68] sm:$0xff]
    %v7255 = vld [vmem:[%s7240 + $0x70] sm:$0xff]
    %v7256 = vld [vmem:[%s7240 + $0x78] sm:$0xff]
    %v7257 = vld [vmem:[%s7240 + $0x80] sm:$0xff]
    %v7258 = vld [vmem:[%s7240 + $0x88] sm:$0xff]
    %v7259 = vld [vmem:[%s7240 + $0x90] sm:$0xff]
    %v7260 = vld [vmem:[%s7240 + $0x98] sm:$0xff]
    %v7261 = vld [vmem:[%s7240 + $0xa0] sm:$0xff]
    %v7262 = vld [vmem:[%s7240 + $0xa8] sm:$0xff]
    %v7263 = vld [vmem:[%s7240 + $0xb0] sm:$0xff]
    %v7264 = vld [vmem:[%s7240 + $0xb8] sm:$0xff]
    %v7265 = vld [vmem:[%s7240 + $0xc0] sm:$0xff]
    %v7266 = vld [vmem:[%s7240 + $0xc8] sm:$0xff]
    %v7267 = vld [vmem:[%s7240 + $0xd0] sm:$0xff]
    %v7268 = vld [vmem:[%s7240 + $0xd8] sm:$0xff]
    %v7269 = vld [vmem:[%s7240 + $0xe0] sm:$0xff]
    %v7270 = vld [vmem:[%s7240 + $0xe8] sm:$0xff]
    %v7271 = vld [vmem:[%s7240 + $0xf0] sm:$0xff]
    %v7272 = vld [vmem:[%s7240 + $0xf8] sm:$0xff]
    %v7273 = vld [vmem:[%s7240 + $0x100] sm:$0xff]
    %v7274 = vld [vmem:[%s7240 + $0x108] sm:$0xff]
    %v7275 = vld [vmem:[%s7240 + $0x110] sm:$0xff]
    %v7276 = vld [vmem:[%s7240 + $0x118] sm:$0xff]
    %v7277 = vld [vmem:[%s7240 + $0x120] sm:$0xff]
    %v7278 = vld [vmem:[%s7240 + $0x128] sm:$0xff]
    %v7279 = vld [vmem:[%s7240 + $0x130] sm:$0xff]
    %v7280 = vld [vmem:[%s7240 + $0x138] sm:$0xff]
    %v7281 = vld [vmem:[%s7240 + $0x140] sm:$0xff]
    %v7282 = vld [vmem:[%s7240 + $0x148] sm:$0xff]
    %v7283 = vld [vmem:[%s7240 + $0x150] sm:$0xff]
    %v7284 = vld [vmem:[%s7240 + $0x158] sm:$0xff]
    %v7285 = vld [vmem:[%s7240 + $0x160] sm:$0xff]
    %v7286 = vld [vmem:[%s7240 + $0x168] sm:$0xff]
    %v7287 = vld [vmem:[%s7240 + $0x170] sm:$0xff]
    %v7288 = vld [vmem:[%s7240 + $0x178] sm:$0xff]
    %v7289 = vld [vmem:[%s7240 + $0x180] sm:$0xff]
    %v7290 = vld [vmem:[%s7240 + $0x188] sm:$0xff]
    %v7291 = vld [vmem:[%s7240 + $0x190] sm:$0xff]
    %v7292 = vld [vmem:[%s7240 + $0x198] sm:$0xff]
    %v7293 = vld [vmem:[%s7240 + $0x1a0] sm:$0xff]
    %v7294 = vld [vmem:[%s7240 + $0x1a8] sm:$0xff]
    %v7295 = vld [vmem:[%s7240 + $0x1b0] sm:$0xff]
    %v7296 = vld [vmem:[%s7240 + $0x1b8] sm:$0xff]
    %v7297 = vld [vmem:[%s7240 + $0x1c0] sm:$0xff]
    %v7298 = vld [vmem:[%s7240 + $0x1c8] sm:$0xff]
    %v7299 = vld [vmem:[%s7240 + $0x1d0] sm:$0xff]
    %v7300 = vld [vmem:[%s7240 + $0x1d8] sm:$0xff]
    %v7301 = vld [vmem:[%s7240 + $0x1e0] sm:$0xff]
    %v7302 = vld [vmem:[%s7240 + $0x1e8] sm:$0xff]
    %v7303 = vld [vmem:[%s7240 + $0x1f0] sm:$0xff]
    %v7304 = vld [vmem:[%s7240 + $0x1f8] sm:$0xff]
    %v7305 = vld [vmem:[%s7240 + $0x200] sm:$0xff]
    %v7306 = vld [vmem:[%s7240 + $0x208] sm:$0xff]
    %v7307 = vld [vmem:[%s7240 + $0x210] sm:$0xff]
    %v7308 = vld [vmem:[%s7240 + $0x218] sm:$0xff]
    %v7309 = vld [vmem:[%s7240 + $0x220] sm:$0xff]
    %v7310 = vld [vmem:[%s7240 + $0x228] sm:$0xff]
    %v7311 = vld [vmem:[%s7240 + $0x230] sm:$0xff]
    %v7312 = vld [vmem:[%s7240 + $0x238] sm:$0xff]
    %v7313 = vld [vmem:[%s7240 + $0x240] sm:$0xff]
    %v7314 = vld [vmem:[%s7240 + $0x248] sm:$0xff]
    %v7315 = vld [vmem:[%s7240 + $0x250] sm:$0xff]
    %v7316 = vld [vmem:[%s7240 + $0x258] sm:$0xff]
    %v7317 = vld [vmem:[%s7240 + $0x260] sm:$0xff]
    %v7318 = vld [vmem:[%s7240 + $0x268] sm:$0xff]
    %v7319 = vld [vmem:[%s7240 + $0x270] sm:$0xff]
    %v7320 = vld [vmem:[%s7240 + $0x278] sm:$0xff]
    %v7321 = vld [vmem:[%s7240 + $0x280] sm:$0xff]
    %v7322 = vld [vmem:[%s7240 + $0x288] sm:$0xff]
    %v7323 = vld [vmem:[%s7240 + $0x290] sm:$0xff]
    %v7324 = vld [vmem:[%s7240 + $0x298] sm:$0xff]
    %v7325 = vld [vmem:[%s7240 + $0x2a0] sm:$0xff]
    %v7326 = vld [vmem:[%s7240 + $0x2a8] sm:$0xff]
    %v7327 = vld [vmem:[%s7240 + $0x2b0] sm:$0xff]
    %v7328 = vld [vmem:[%s7240 + $0x2b8] sm:$0xff]
    %v7329 = vld [vmem:[%s7240 + $0x2c0] sm:$0xff]
    %v7330 = vld [vmem:[%s7240 + $0x2c8] sm:$0xff]
    %v7331 = vld [vmem:[%s7240 + $0x2d0] sm:$0xff]
    %v7332 = vld [vmem:[%s7240 + $0x2d8] sm:$0xff]
    %v7333 = vld [vmem:[%s7240 + $0x2e0] sm:$0xff]
    %v7334 = vld [vmem:[%s7240 + $0x2e8] sm:$0xff]
    %v7335 = vld [vmem:[%s7240 + $0x2f0] sm:$0xff]
    %v7336 = vld [vmem:[%s7240 + $0x2f8] sm:$0xff]
    %v7337 = vld [vmem:[%s7240 + $0x300] sm:$0xff]
    %v7338 = vld [vmem:[%s7240 + $0x308] sm:$0xff]
    %v7339 = vld [vmem:[%s7240 + $0x310] sm:$0xff]
    %v7340 = vld [vmem:[%s7240 + $0x318] sm:$0xff]
    %v7341 = vld [vmem:[%s7240 + $0x320] sm:$0xff]
    %v7342 = vld [vmem:[%s7240 + $0x328] sm:$0xff]
    %v7343 = vld [vmem:[%s7240 + $0x330] sm:$0xff]
    %v7344 = vld [vmem:[%s7240 + $0x338] sm:$0xff]
    %v7345 = vld [vmem:[%s7240 + $0x340] sm:$0xff]
    %v7346 = vld [vmem:[%s7240 + $0x348] sm:$0xff]
    %v7347 = vld [vmem:[%s7240 + $0x350] sm:$0xff]
    %v7348 = vld [vmem:[%s7240 + $0x358] sm:$0xff]
    %v7349 = vld [vmem:[%s7240 + $0x360] sm:$0xff]
    %v7350 = vld [vmem:[%s7240 + $0x368] sm:$0xff]
    %v7351 = vld [vmem:[%s7240 + $0x370] sm:$0xff]
    %v7352 = vld [vmem:[%s7240 + $0x378] sm:$0xff]
    %v7353 = vld [vmem:[%s7240 + $0x380] sm:$0xff]
    %v7354 = vld [vmem:[%s7240 + $0x388] sm:$0xff]
    %v7355 = vld [vmem:[%s7240 + $0x390] sm:$0xff]
    %v7356 = vld [vmem:[%s7240 + $0x398] sm:$0xff]
    %v7357 = vld [vmem:[%s7240 + $0x3a0] sm:$0xff]
    %v7358 = vld [vmem:[%s7240 + $0x3a8] sm:$0xff]
    %v7359 = vld [vmem:[%s7240 + $0x3b0] sm:$0xff]
    %v7360 = vld [vmem:[%s7240 + $0x3b8] sm:$0xff]
    %v7361 = vld [vmem:[%s7240 + $0x3c0] sm:$0xff]
    %v7362 = vld [vmem:[%s7240 + $0x3c8] sm:$0xff]
    %v7363 = vld [vmem:[%s7240 + $0x3d0] sm:$0xff]
    %v7364 = vld [vmem:[%s7240 + $0x3d8] sm:$0xff]
    %v7365 = vld [vmem:[%s7240 + $0x3e0] sm:$0xff]
    %v7366 = vld [vmem:[%s7240 + $0x3e8] sm:$0xff]
    %v7367 = vld [vmem:[%s7240 + $0x3f0] sm:$0xff]
    %v7368 = vld [vmem:[%s7240 + $0x3f8] sm:$0xff]
    %7369 = vmatprep.subr.mxu0 %v7242
    %7370 = vmatpush1.msra.mxu0 %v7241
    %7371 = vmatprep.subr.mxu0 %v7246
    %7372 = vmatpush1.msra.mxu0 %v7245
    %7373 = vmatprep.subr.mxu0 %v7250
    %7374 = vmatpush1.msra.mxu0 %v7249
    %7375 = vmatprep.subr.mxu0 %v7254
    %7376 = vmatpush1.msra.mxu0 %v7253
    %7377 = vmatprep.subr.mxu0 %v7258
    %7378 = vmatpush1.msra.mxu0 %v7257
    %7379 = vmatprep.subr.mxu0 %v7262
    %7380 = vmatpush1.msra.mxu0 %v7261
    %7381 = vmatprep.subr.mxu0 %v7266
    %7382 = vmatpush1.msra.mxu0 %v7265
    %7383 = vmatprep.subr.mxu0 %v7270
    %7384 = vmatpush1.msra.mxu0 %v7269
    %7385 = vmatprep.subr.mxu0 %v7274
    %7386 = vmatpush1.msra.mxu0 %v7273
    %7387 = vmatprep.subr.mxu0 %v7278
    %7388 = vmatpush1.msra.mxu0 %v7277
    %7389 = vmatprep.subr.mxu0 %v7282
    %7390 = vmatpush1.msra.mxu0 %v7281
    %7391 = vmatprep.subr.mxu0 %v7286
    %7392 = vmatpush1.msra.mxu0 %v7285
    %7393 = vmatprep.subr.mxu0 %v7290
    %7394 = vmatpush1.msra.mxu0 %v7289
    %7395 = vmatprep.subr.mxu0 %v7294
    %7396 = vmatpush1.msra.mxu0 %v7293
    %7397 = vmatprep.subr.mxu0 %v7298
    %7398 = vmatpush1.msra.mxu0 %v7297
    %7399 = vmatprep.subr.mxu0 %v7302
    %7400 = vmatpush1.msra.mxu0 %v7301
    %7401 = vmatprep.subr.mxu0 %v7306
    %7402 = vmatpush1.msra.mxu0 %v7305
    %7403 = vmatprep.subr.mxu0 %v7310
    %7404 = vmatpush1.msra.mxu0 %v7309
    %7405 = vmatprep.subr.mxu0 %v7314
    %7406 = vmatpush1.msra.mxu0 %v7313
    %7407 = vmatprep.subr.mxu0 %v7318
    %7408 = vmatpush1.msra.mxu0 %v7317
    %7409 = vmatprep.subr.mxu0 %v7322
    %7410 = vmatpush1.msra.mxu0 %v7321
    %7411 = vmatprep.subr.mxu0 %v7326
    %7412 = vmatpush1.msra.mxu0 %v7325
    %7413 = vmatprep.subr.mxu0 %v7330
    %7414 = vmatpush1.msra.mxu0 %v7329
    %7415 = vmatprep.subr.mxu0 %v7334
    %7416 = vmatpush1.msra.mxu0 %v7333
    %7417 = vmatprep.subr.mxu0 %v7338
    %7418 = vmatpush1.msra.mxu0 %v7337
    %7419 = vmatprep.subr.mxu0 %v7342
    %7420 = vmatpush1.msra.mxu0 %v7341
    %7421 = vmatprep.subr.mxu0 %v7346
    %7422 = vmatpush1.msra.mxu0 %v7345
    %7423 = vmatprep.subr.mxu0 %v7350
    %7424 = vmatpush1.msra.mxu0 %v7349
    %7425 = vmatprep.subr.mxu0 %v7354
    %7426 = vmatpush1.msra.mxu0 %v7353
    %7427 = vmatprep.subr.mxu0 %v7358
    %7428 = vmatpush1.msra.mxu0 %v7357
    %7429 = vmatprep.subr.mxu0 %v7362
    %7430 = vmatpush1.msra.mxu0 %v7361
    %7431 = vmatprep.subr.mxu0 %v7366
    %7432 = vmatpush1.msra.mxu0 %v7365
    %7433 = vmatprep.mubr.f32.mxu0 %v7213
    %7434 = vmatmul.mubr.f32.gmra.mrb[0].mxu0 %v7212
    %v7435 = vpop.f32.mrb[0].mxu0
    %v7436 = vadd.f32 0.0, %v7435
    %v7437 = vpop.f32.mrb[0].mxu0
    %v7438 = vadd.f32 0.0, %v7437
    %7439 = vmatprep.mubr.f32.mxu0 %v7215
    %7440 = vmatmul.mubr.f32.gmra.mrb[0].mxu0 %v7214
    %v7441 = vpop.f32.mrb[0].mxu0
    %v7442 = vadd.f32 0.0, %v7441
    %v7443 = vpop.f32.mrb[0].mxu0
    %v7444 = vadd.f32 0.0, %v7443
    %7445 = vmatprep.mubr.f32.mxu0 %v7217
    %7446 = vmatmul.mubr.f32.gmra.mrb[0].mxu0 %v7216
    %v7447 = vpop.f32.mrb[0].mxu0
    %v7448 = vadd.f32 0.0, %v7447
    %v7449 = vpop.f32.mrb[0].mxu0
    %v7450 = vadd.f32 0.0, %v7449
    %7451 = vmatprep.mubr.f32.mxu0 %v7219
    %7452 = vmatmul.mubr.f32.gmra.mrb[0].mxu0 %v7218
    %v7453 = vpop.f32.mrb[0].mxu0
    %v7454 = vadd.f32 0.0, %v7453
    %v7455 = vpop.f32.mrb[0].mxu0
    %v7456 = vadd.f32 0.0, %v7455
    %7457 = vmatprep.mubr.f32.mxu0 %v7221
    %7458 = vmatmul.mubr.f32.gmra.mrb[0].mxu0 %v7220
    %v7459 = vpop.f32.mrb[0].mxu0
    %v7460 = vadd.f32 0.0, %v7459
    %v7461 = vpop.f32.mrb[0].mxu0
    %v7462 = vadd.f32 0.0, %v7461
    %7463 = vmatprep.mubr.f32.mxu0 %v7223
    %7464 = vmatmul.mubr.f32.gmra.mrb[0].mxu0 %v7222
    %v7465 = vpop.f32.mrb[0].mxu0
    %v7466 = vadd.f32 0.0, %v7465
    %v7467 = vpop.f32.mrb[0].mxu0
    %v7468 = vadd.f32 0.0, %v7467
    %7469 = vmatprep.mubr.f32.mxu0 %v7225
    %7470 = vmatmul.mubr.f32.gmra.mrb[0].mxu0 %v7224
    %v7471 = vpop.f32.mrb[0].mxu0
    %v7472 = vadd.f32 0.0, %v7471
    %v7473 = vpop.f32.mrb[0].mxu0
    %v7474 = vadd.f32 0.0, %v7473
    %7475 = vmatprep.mubr.f32.mxu0 %v7227
    %7476 = vmatmul.mubr.f32.gmra.mrb[0].mxu0 %v7226
    %v7477 = vpop.f32.mrb[0].mxu0
    %v7478 = vadd.f32 0.0, %v7477
    %v7479 = vpop.f32.mrb[0].mxu0
    %v7480 = vadd.f32 0.0, %v7479
    %7481 = vmatprep.mubr.f32.mxu0 %v7229
    %7482 = vmatmul.mubr.f32.gmra.mrb[0].mxu0 %v7228
    %v7483 = vpop.f32.mrb[0].mxu0
    %v7484 = vadd.f32 0.0, %v7483
    %v7485 = vpop.f32.mrb[0].mxu0
    %v7486 = vadd.f32 0.0, %v7485
    %7487 = vmatprep.mubr.f32.mxu0 %v7231
    %7488 = vmatmul.mubr.f32.gmra.mrb[0].mxu0 %v7230
    %v7489 = vpop.f32.mrb[0].mxu0
    %v7490 = vadd.f32 0.0, %v7489
    %v7491 = vpop.f32.mrb[0].mxu0
    %v7492 = vadd.f32 0.0, %v7491
    %7493 = vmatprep.mubr.f32.mxu0 %v7233
    %7494 = vmatmul.mubr.f32.gmra.mrb[0].mxu0 %v7232
    %v7495 = vpop.f32.mrb[0].mxu0
    %v7496 = vadd.f32 0.0, %v7495
    %v7497 = vpop.f32.mrb[0].mxu0
    %v7498 = vadd.f32 0.0, %v7497
    %7499 = vmatprep.mubr.f32.mxu0 %v7235
    %7500 = vmatmul.mubr.f32.gmra.mrb[0].mxu0 %v7234
    %v7501 = vpop.f32.mrb[0].mxu0
    %v7502 = vadd.f32 0.0, %v7501
    %v7503 = vpop.f32.mrb[0].mxu0
    %v7504 = vadd.f32 0.0, %v7503
    %7505 = vmatprep.mubr.f32.mxu0 %v7237
    %7506 = vmatmul.mubr.f32.gmra.mrb[0].mxu0 %v7236
    %v7507 = vpop.f32.mrb[0].mxu0
    %v7508 = vadd.f32 0.0, %v7507
    %v7509 = vpop.f32.mrb[0].mxu0
    %v7510 = vadd.f32 0.0, %v7509
    %7511 = vmatprep.mubr.f32.mxu0 %v7239
    %7512 = vmatmul.mubr.f32.gmra.mrb[0].mxu0 %v7238
    %v7513 = vpop.f32.mrb[0].mxu0
    %v7514 = vadd.f32 0.0, %v7513
    %v7515 = vpop.f32.mrb[0].mxu0
    %v7516 = vadd.f32 0.0, %v7515
    %7517 = vdwg.mxu0
    %7518 = vmatprep.subr.mxu0 %v7244
    %7519 = vmatpush1.msra.mxu0 %v7243
    %7520 = vmatprep.subr.mxu0 %v7248
    %7521 = vmatpush1.msra.mxu0 %v7247
    %7522 = vmatprep.subr.mxu0 %v7252
    %7523 = vmatpush1.msra.mxu0 %v7251
    %7524 = vmatprep.subr.mxu0 %v7256
    %7525 = vmatpush1.msra.mxu0 %v7255
    %7526 = vmatprep.subr.mxu0 %v7260
    %7527 = vmatpush1.msra.mxu0 %v7259
    %7528 = vmatprep.subr.mxu0 %v7264
    %7529 = vmatpush1.msra.mxu0 %v7263
    %7530 = vmatprep.subr.mxu0 %v7268
    %7531 = vmatpush1.msra.mxu0 %v7267
    %7532 = vmatprep.subr.mxu0 %v7272
    %7533 = vmatpush1.msra.mxu0 %v7271
    %7534 = vmatprep.subr.mxu0 %v7276
    %7535 = vmatpush1.msra.mxu0 %v7275
    %7536 = vmatprep.subr.mxu0 %v7280
    %7537 = vmatpush1.msra.mxu0 %v7279
    %7538 = vmatprep.subr.mxu0 %v7284
    %7539 = vmatpush1.msra.mxu0 %v7283
    %7540 = vmatprep.subr.mxu0 %v7288
    %7541 = vmatpush1.msra.mxu0 %v7287
    %7542 = vmatprep.subr.mxu0 %v7292
    %7543 = vmatpush1.msra.mxu0 %v7291
    %7544 = vmatprep.subr.mxu0 %v7296
    %7545 = vmatpush1.msra.mxu0 %v7295
    %7546 = vmatprep.subr.mxu0 %v7300
    %7547 = vmatpush1.msra.mxu0 %v7299
    %7548 = vmatprep.subr.mxu0 %v7304
    %7549 = vmatpush1.msra.mxu0 %v7303
    %7550 = vmatprep.subr.mxu0 %v7308
    %7551 = vmatpush1.msra.mxu0 %v7307
    %7552 = vmatprep.subr.mxu0 %v7312
    %7553 = vmatpush1.msra.mxu0 %v7311
    %7554 = vmatprep.subr.mxu0 %v7316
    %7555 = vmatpush1.msra.mxu0 %v7315
    %7556 = vmatprep.subr.mxu0 %v7320
    %7557 = vmatpush1.msra.mxu0 %v7319
    %7558 = vmatprep.subr.mxu0 %v7324
    %7559 = vmatpush1.msra.mxu0 %v7323
    %7560 = vmatprep.subr.mxu0 %v7328
    %7561 = vmatpush1.msra.mxu0 %v7327
    %7562 = vmatprep.subr.mxu0 %v7332
    %7563 = vmatpush1.msra.mxu0 %v7331
    %7564 = vmatprep.subr.mxu0 %v7336
    %7565 = vmatpush1.msra.mxu0 %v7335
    %7566 = vmatprep.subr.mxu0 %v7340
    %7567 = vmatpush1.msra.mxu0 %v7339
    %7568 = vmatprep.subr.mxu0 %v7344
    %7569 = vmatpush1.msra.mxu0 %v7343
    %7570 = vmatprep.subr.mxu0 %v7348
    %7571 = vmatpush1.msra.mxu0 %v7347
    %7572 = vmatprep.subr.mxu0 %v7352
    %7573 = vmatpush1.msra.mxu0 %v7351
    %7574 = vmatprep.subr.mxu0 %v7356
    %7575 = vmatpush1.msra.mxu0 %v7355
    %7576 = vmatprep.subr.mxu0 %v7360
    %7577 = vmatpush1.msra.mxu0 %v7359
    %7578 = vmatprep.subr.mxu0 %v7364
    %7579 = vmatpush1.msra.mxu0 %v7363
    %7580 = vmatprep.subr.mxu0 %v7368
    %7581 = vmatpush1.msra.mxu0 %v7367
    %7582 = vmatprep.mubr.f32.mxu0 %v7213
    %7583 = vmatmul.mubr.f32.gmra.mrb[0].mxu0 %v7212
    %v7584 = vpop.f32.mrb[0].mxu0
    %v7585 = vadd.f32 0.0, %v7584
    %v7586 = vpop.f32.mrb[0].mxu0
    %v7587 = vadd.f32 0.0, %v7586
    %7588 = vmatprep.mubr.f32.mxu0 %v7215
    %7589 = vmatmul.mubr.f32.gmra.mrb[0].mxu0 %v7214
    %v7590 = vpop.f32.mrb[0].mxu0
    %v7591 = vadd.f32 0.0, %v7590
    %v7592 = vpop.f32.mrb[0].mxu0
    %v7593 = vadd.f32 0.0, %v7592
    %7594 = vmatprep.mubr.f32.mxu0 %v7217
    %7595 = vmatmul.mubr.f32.gmra.mrb[0].mxu0 %v7216
    %v7596 = vpop.f32.mrb[0].mxu0
    %v7597 = vadd.f32 0.0, %v7596
    %v7598 = vpop.f32.mrb[0].mxu0
    %v7599 = vadd.f32 0.0, %v7598
    %7600 = vmatprep.mubr.f32.mxu0 %v7219
    %7601 = vmatmul.mubr.f32.gmra.mrb[0].mxu0 %v7218
    %v7602 = vpop.f32.mrb[0].mxu0
    %v7603 = vadd.f32 0.0, %v7602
    %v7604 = vpop.f32.mrb[0].mxu0
    %v7605 = vadd.f32 0.0, %v7604
    %7606 = vmatprep.mubr.f32.mxu0 %v7221
    %7607 = vmatmul.mubr.f32.gmra.mrb[0].mxu0 %v7220
    %v7608 = vpop.f32.mrb[0].mxu0
    %v7609 = vadd.f32 0.0, %v7608
    %v7610 = vpop.f32.mrb[0].mxu0
    %v7611 = vadd.f32 0.0, %v7610
    %7612 = vmatprep.mubr.f32.mxu0 %v7223
    %7613 = vmatmul.mubr.f32.gmra.mrb[0].mxu0 %v7222
    %v7614 = vpop.f32.mrb[0].mxu0
    %v7615 = vadd.f32 0.0, %v7614
    %v7616 = vpop.f32.mrb[0].mxu0
    %v7617 = vadd.f32 0.0, %v7616
    %7618 = vmatprep.mubr.f32.mxu0 %v7225
    %7619 = vmatmul.mubr.f32.gmra.mrb[0].mxu0 %v7224
    %v7620 = vpop.f32.mrb[0].mxu0
    %v7621 = vadd.f32 0.0, %v7620
    %v7622 = vpop.f32.mrb[0].mxu0
    %v7623 = vadd.f32 0.0, %v7622
    %7624 = vmatprep.mubr.f32.mxu0 %v7227
    %7625 = vmatmul.mubr.f32.gmra.mrb[0].mxu0 %v7226
    %v7626 = vpop.f32.mrb[0].mxu0
    %v7627 = vadd.f32 0.0, %v7626
    %v7628 = vpop.f32.mrb[0].mxu0
    %v7629 = vadd.f32 0.0, %v7628
    %7630 = vmatprep.mubr.f32.mxu0 %v7229
    %7631 = vmatmul.mubr.f32.gmra.mrb[0].mxu0 %v7228
    %v7632 = vpop.f32.mrb[0].mxu0
    %v7633 = vadd.f32 0.0, %v7632
    %v7634 = vpop.f32.mrb[0].mxu0
    %v7635 = vadd.f32 0.0, %v7634
    %7636 = vmatprep.mubr.f32.mxu0 %v7231
    %7637 = vmatmul.mubr.f32.gmra.mrb[0].mxu0 %v7230
    %v7638 = vpop.f32.mrb[0].mxu0
    %v7639 = vadd.f32 0.0, %v7638
    %v7640 = vpop.f32.mrb[0].mxu0
    %v7641 = vadd.f32 0.0, %v7640
    %7642 = vmatprep.mubr.f32.mxu0 %v7233
    %7643 = vmatmul.mubr.f32.gmra.mrb[0].mxu0 %v7232
    %v7644 = vpop.f32.mrb[0].mxu0
    %v7645 = vadd.f32 0.0, %v7644
    %v7646 = vpop.f32.mrb[0].mxu0
    %v7647 = vadd.f32 0.0, %v7646
    %7648 = vmatprep.mubr.f32.mxu0 %v7235
    %7649 = vmatmul.mubr.f32.gmra.mrb[0].mxu0 %v7234
    %v7650 = vpop.f32.mrb[0].mxu0
    %v7651 = vadd.f32 0.0, %v7650
    %v7652 = vpop.f32.mrb[0].mxu0
    %v7653 = vadd.f32 0.0, %v7652
    %7654 = vmatprep.mubr.f32.mxu0 %v7237
    %7655 = vmatmul.mubr.f32.gmra.mrb[0].mxu0 %v7236
    %v7656 = vpop.f32.mrb[0].mxu0
    %v7657 = vadd.f32 0.0, %v7656
    %v7658 = vpop.f32.mrb[0].mxu0
    %v7659 = vadd.f32 0.0, %v7658
    %7660 = vmatprep.mubr.f32.mxu0 %v7239
    %7661 = vmatmul.mubr.f32.gmra.mrb[0].mxu0 %v7238
    %v7662 = vpop.f32.mrb[0].mxu0
    %v7663 = vadd.f32 0.0, %v7662
    %v7664 = vpop.f32.mrb[0].mxu0
    %v7665 = vadd.f32 0.0, %v7664
    %7666 = vdwg.mxu0
    %v7667 = vld [vmem:[#allocation4] sm:$0xff]
    %v7668 = vld [vmem:[#allocation4 + $0x8] sm:$0xff]
    %v7669 = vld [vmem:[#allocation4 + $0x10] sm:$0xff]
    %v7670 = vld [vmem:[#allocation4 + $0x18] sm:$0xff]
    %v7671 = vld [vmem:[#allocation4 + $0x20] sm:$0xff]
    %v7672 = vld [vmem:[#allocation4 + $0x28] sm:$0xff]
    %v7673 = vld [vmem:[#allocation4 + $0x30] sm:$0xff]
    %v7674 = vld [vmem:[#allocation4 + $0x38] sm:$0xff]
    %v7675 = vld [vmem:[#allocation4 + $0x40] sm:$0xff]
    %v7676 = vld [vmem:[#allocation4 + $0x48] sm:$0xff]
    %v7677 = vld [vmem:[#allocation4 + $0x50] sm:$0xff]
    %v7678 = vld [vmem:[#allocation4 + $0x58] sm:$0xff]
    %v7679 = vld [vmem:[#allocation4 + $0x60] sm:$0xff]
    %v7680 = vld [vmem:[#allocation4 + $0x68] sm:$0xff]
    %v7681 = vld [vmem:[#allocation4 + $0x70] sm:$0xff]
    %v7682 = vld [vmem:[#allocation4 + $0x78] sm:$0xff]
    %v7683 = vld [vmem:[#allocation4 + $0x80] sm:$0xff]
    %v7684 = vld [vmem:[#allocation4 + $0x88] sm:$0xff]
    %v7685 = vld [vmem:[#allocation4 + $0x90] sm:$0xff]
    %v7686 = vld [vmem:[#allocation4 + $0x98] sm:$0xff]
    %v7687 = vld [vmem:[#allocation4 + $0xa0] sm:$0xff]
    %v7688 = vld [vmem:[#allocation4 + $0xa8] sm:$0xff]
    %v7689 = vld [vmem:[#allocation4 + $0xb0] sm:$0xff]
    %v7690 = vld [vmem:[#allocation4 + $0xb8] sm:$0xff]
    %v7691 = vld [vmem:[#allocation4 + $0xc0] sm:$0xff]
    %v7692 = vld [vmem:[#allocation4 + $0xc8] sm:$0xff]
    %v7693 = vld [vmem:[#allocation4 + $0xd0] sm:$0xff]
    %v7694 = vld [vmem:[#allocation4 + $0xd8] sm:$0xff]
    %v7695 = vld [vmem:[#allocation4 + $0xe0] sm:$0xff]
    %v7696 = vld [vmem:[#allocation4 + $0xe8] sm:$0xff]
    %v7697 = vld [vmem:[#allocation4 + $0xf0] sm:$0xff]
    %v7698 = vld [vmem:[#allocation4 + $0xf8] sm:$0xff]
    %v7699 = vld [vmem:[#allocation4 + $0x100] sm:$0xff]
    %v7700 = vld [vmem:[#allocation4 + $0x108] sm:$0xff]
    %v7701 = vld [vmem:[#allocation4 + $0x110] sm:$0xff]
    %v7702 = vld [vmem:[#allocation4 + $0x118] sm:$0xff]
    %v7703 = vld [vmem:[#allocation4 + $0x120] sm:$0xff]
    %v7704 = vld [vmem:[#allocation4 + $0x128] sm:$0xff]
    %v7705 = vld [vmem:[#allocation4 + $0x130] sm:$0xff]
    %v7706 = vld [vmem:[#allocation4 + $0x138] sm:$0xff]
    %v7707 = vld [vmem:[#allocation4 + $0x140] sm:$0xff]
    %v7708 = vld [vmem:[#allocation4 + $0x148] sm:$0xff]
    %v7709 = vld [vmem:[#allocation4 + $0x150] sm:$0xff]
    %v7710 = vld [vmem:[#allocation4 + $0x158] sm:$0xff]
    %v7711 = vld [vmem:[#allocation4 + $0x160] sm:$0xff]
    %v7712 = vld [vmem:[#allocation4 + $0x168] sm:$0xff]
    %v7713 = vld [vmem:[#allocation4 + $0x170] sm:$0xff]
    %v7714 = vld [vmem:[#allocation4 + $0x178] sm:$0xff]
    %v7715 = vld [vmem:[#allocation4 + $0x180] sm:$0xff]
    %v7716 = vld [vmem:[#allocation4 + $0x188] sm:$0xff]
    %v7717 = vld [vmem:[#allocation4 + $0x190] sm:$0xff]
    %v7718 = vld [vmem:[#allocation4 + $0x198] sm:$0xff]
    %v7719 = vld [vmem:[#allocation4 + $0x1a0] sm:$0xff]
    %v7720 = vld [vmem:[#allocation4 + $0x1a8] sm:$0xff]
    %v7721 = vld [vmem:[#allocation4 + $0x1b0] sm:$0xff]
    %v7722 = vld [vmem:[#allocation4 + $0x1b8] sm:$0xff]
    %v7723 = vadd.f32 %v7667, %v7436
    %v7724 = vadd.f32 %v7668, %v7438
    %v7725 = vadd.f32 %v7669, %v7585
    %v7726 = vadd.f32 %v7670, %v7587
    %v7727 = vadd.f32 %v7671, %v7442
    %v7728 = vadd.f32 %v7672, %v7444
    %v7729 = vadd.f32 %v7673, %v7591
    %v7730 = vadd.f32 %v7674, %v7593
    %v7731 = vadd.f32 %v7675, %v7448
    %v7732 = vadd.f32 %v7676, %v7450
    %v7733 = vadd.f32 %v7677, %v7597
    %v7734 = vadd.f32 %v7678, %v7599
    %v7735 = vadd.f32 %v7679, %v7454
    %v7736 = vadd.f32 %v7680, %v7456
    %v7737 = vadd.f32 %v7681, %v7603
    %v7738 = vadd.f32 %v7682, %v7605
    %v7739 = vadd.f32 %v7683, %v7460
    %v7740 = vadd.f32 %v7684, %v7462
    %v7741 = vadd.f32 %v7685, %v7609
    %v7742 = vadd.f32 %v7686, %v7611
    %v7743 = vadd.f32 %v7687, %v7466
    %v7744 = vadd.f32 %v7688, %v7468
    %v7745 = vadd.f32 %v7689, %v7615
    %v7746 = vadd.f32 %v7690, %v7617
    %v7747 = vadd.f32 %v7691, %v7472
    %v7748 = vadd.f32 %v7692, %v7474
    %v7749 = vadd.f32 %v7693, %v7621
    %v7750 = vadd.f32 %v7694, %v7623
    %v7751 = vadd.f32 %v7695, %v7478
    %v7752 = vadd.f32 %v7696, %v7480
    %v7753 = vadd.f32 %v7697, %v7627
    %v7754 = vadd.f32 %v7698, %v7629
    %v7755 = vadd.f32 %v7699, %v7484
    %v7756 = vadd.f32 %v7700, %v7486
    %v7757 = vadd.f32 %v7701, %v7633
    %v7758 = vadd.f32 %v7702, %v7635
    %v7759 = vadd.f32 %v7703, %v7490
    %v7760 = vadd.f32 %v7704, %v7492
    %v7761 = vadd.f32 %v7705, %v7639
    %v7762 = vadd.f32 %v7706, %v7641
    %v7763 = vadd.f32 %v7707, %v7496
    %v7764 = vadd.f32 %v7708, %v7498
    %v7765 = vadd.f32 %v7709, %v7645
    %v7766 = vadd.f32 %v7710, %v7647
    %v7767 = vadd.f32 %v7711, %v7502
    %v7768 = vadd.f32 %v7712, %v7504
    %v7769 = vadd.f32 %v7713, %v7651
    %v7770 = vadd.f32 %v7714, %v7653
    %v7771 = vadd.f32 %v7715, %v7508
    %v7772 = vadd.f32 %v7716, %v7510
    %v7773 = vadd.f32 %v7717, %v7657
    %v7774 = vadd.f32 %v7718, %v7659
    %v7775 = vadd.f32 %v7719, %v7514
    %v7776 = vadd.f32 %v7720, %v7516
    %v7777 = vadd.f32 %v7721, %v7663
    %v7778 = vadd.f32 %v7722, %v7665
    %7779 = vst [vmem:[#allocation4] sm:$0xff] %v7723
    %7780 = vst [vmem:[#allocation4 + $0x8] sm:$0xff] %v7724
    %7781 = vst [vmem:[#allocation4 + $0x10] sm:$0xff] %v7725
    %7782 = vst [vmem:[#allocation4 + $0x18] sm:$0xff] %v7726
    %7783 = vst [vmem:[#allocation4 + $0x20] sm:$0xff] %v7727
    %7784 = vst [vmem:[#allocation4 + $0x28] sm:$0xff] %v7728
    %7785 = vst [vmem:[#allocation4 + $0x30] sm:$0xff] %v7729
    %7786 = vst [vmem:[#allocation4 + $0x38] sm:$0xff] %v7730
    %7787 = vst [vmem:[#allocation4 + $0x40] sm:$0xff] %v7731
    %7788 = vst [vmem:[#allocation4 + $0x48] sm:$0xff] %v7732
    %7789 = vst [vmem:[#allocation4 + $0x50] sm:$0xff] %v7733
    %7790 = vst [vmem:[#allocation4 + $0x58] sm:$0xff] %v7734
    %7791 = vst [vmem:[#allocation4 + $0x60] sm:$0xff] %v7735
    %7792 = vst [vmem:[#allocation4 + $0x68] sm:$0xff] %v7736
    %7793 = vst [vmem:[#allocation4 + $0x70] sm:$0xff] %v7737
    %7794 = vst [vmem:[#allocation4 + $0x78] sm:$0xff] %v7738
    %7795 = vst [vmem:[#allocation4 + $0x80] sm:$0xff] %v7739
    %7796 = vst [vmem:[#allocation4 + $0x88] sm:$0xff] %v7740
    %7797 = vst [vmem:[#allocation4 + $0x90] sm:$0xff] %v7741
    %7798 = vst [vmem:[#allocation4 + $0x98] sm:$0xff] %v7742
    %7799 = vst [vmem:[#allocation4 + $0xa0] sm:$0xff] %v7743
    %7800 = vst [vmem:[#allocation4 + $0xa8] sm:$0xff] %v7744
    %7801 = vst [vmem:[#allocation4 + $0xb0] sm:$0xff] %v7745
    %7802 = vst [vmem:[#allocation4 + $0xb8] sm:$0xff] %v7746
    %7803 = vst [vmem:[#allocation4 + $0xc0] sm:$0xff] %v7747
    %7804 = vst [vmem:[#allocation4 + $0xc8] sm:$0xff] %v7748
    %7805 = vst [vmem:[#allocation4 + $0xd0] sm:$0xff] %v7749
    %7806 = vst [vmem:[#allocation4 + $0xd8] sm:$0xff] %v7750
    %7807 = vst [vmem:[#allocation4 + $0xe0] sm:$0xff] %v7751
    %7808 = vst [vmem:[#allocation4 + $0xe8] sm:$0xff] %v7752
    %7809 = vst [vmem:[#allocation4 + $0xf0] sm:$0xff] %v7753
    %7810 = vst [vmem:[#allocation4 + $0xf8] sm:$0xff] %v7754
    %7811 = vst [vmem:[#allocation4 + $0x100] sm:$0xff] %v7755
    %7812 = vst [vmem:[#allocation4 + $0x108] sm:$0xff] %v7756
    %7813 = vst [vmem:[#allocation4 + $0x110] sm:$0xff] %v7757
    %7814 = vst [vmem:[#allocation4 + $0x118] sm:$0xff] %v7758
    %7815 = vst [vmem:[#allocation4 + $0x120] sm:$0xff] %v7759
    %7816 = vst [vmem:[#allocation4 + $0x128] sm:$0xff] %v7760
    %7817 = vst [vmem:[#allocation4 + $0x130] sm:$0xff] %v7761
    %7818 = vst [vmem:[#allocation4 + $0x138] sm:$0xff] %v7762
    %7819 = vst [vmem:[#allocation4 + $0x140] sm:$0xff] %v7763
    %7820 = vst [vmem:[#allocation4 + $0x148] sm:$0xff] %v7764
    %7821 = vst [vmem:[#allocation4 + $0x150] sm:$0xff] %v7765
    %7822 = vst [vmem:[#allocation4 + $0x158] sm:$0xff] %v7766
    %7823 = vst [vmem:[#allocation4 + $0x160] sm:$0xff] %v7767
    %7824 = vst [vmem:[#allocation4 + $0x168] sm:$0xff] %v7768
    %7825 = vst [vmem:[#allocation4 + $0x170] sm:$0xff] %v7769
    %7826 = vst [vmem:[#allocation4 + $0x178] sm:$0xff] %v7770
    %7827 = vst [vmem:[#allocation4 + $0x180] sm:$0xff] %v7771
    %7828 = vst [vmem:[#allocation4 + $0x188] sm:$0xff] %v7772
    %7829 = vst [vmem:[#allocation4 + $0x190] sm:$0xff] %v7773
    %7830 = vst [vmem:[#allocation4 + $0x198] sm:$0xff] %v7774
    %7831 = vst [vmem:[#allocation4 + $0x1a0] sm:$0xff] %v7775
    %7832 = vst [vmem:[#allocation4 + $0x1a8] sm:$0xff] %v7776
    %7833 = vst [vmem:[#allocation4 + $0x1b0] sm:$0xff] %v7777
    %7834 = vst [vmem:[#allocation4 + $0x1b8] sm:$0xff] %v7778
    %v7835 = vld [vmem:[#allocation11] sm:$0x3]
    %v7836 = vld [vmem:[#allocation4] sm:$0xff]
    %v7837 = vld [vmem:[#allocation4 + $0x8] sm:$0xff]
    %v7838 = vld [vmem:[#allocation4 + $0x10] sm:$0xff]
    %v7839 = vld [vmem:[#allocation4 + $0x18] sm:$0xff]
    %v7840 = vld [vmem:[#allocation4 + $0x20] sm:$0xff]
    %v7841 = vld [vmem:[#allocation4 + $0x28] sm:$0xff]
    %v7842 = vld [vmem:[#allocation4 + $0x30] sm:$0xff]
    %v7843 = vld [vmem:[#allocation4 + $0x38] sm:$0xff]
    %v7844 = vmax.f32 %v7836, %v7840
    %v7845 = vmax.f32 %v7837, %v7841
    %v7846 = vmax.f32 %v7838, %v7842
    %v7847 = vmax.f32 %v7839, %v7843
    %v7848 = vmax.f32 %v7844, %v7846
    %v7849 = vmax.f32 %v7845, %v7847
    %v7851 = vlaneseq
    %v7852 = vshrl.u32 %v7851, 7
    %v7853 = vsub.s32 0, %v7852
    %v7854 = vrot.slane %v7835, %v7853
    %v7855 = vlaneseq
    %v7856 = vshrl.u32 %v7855, 7
    %v7857 = vsub.s32 1, %v7856
    %v7858 = vrot.slane %v7835, %v7857
    %v7861 = vadd.f32 %v7848, %v7854
    %v7862 = vadd.f32 %v7849, %v7858
    %v7863 = vmax.f32 %v7861, 0.0
    %v7864 = vmax.f32 %v7862, 0.0
    %7865 = vst [vmem:[#allocation5] sm:$0xff] %v7863
    %7866 = vst [vmem:[#allocation5 + $0x8] sm:$0xff] %v7864
    %v7867 = vld [vmem:[#allocation4 + $0x40] sm:$0xff]
    %v7868 = vld [vmem:[#allocation4 + $0x48] sm:$0xff]
    %v7869 = vld [vmem:[#allocation4 + $0x50] sm:$0xff]
    %v7870 = vld [vmem:[#allocation4 + $0x58] sm:$0xff]
    %v7871 = vld [vmem:[#allocation4 + $0x60] sm:$0xff]
    %v7872 = vld [vmem:[#allocation4 + $0x68] sm:$0xff]
    %v7873 = vld [vmem:[#allocation4 + $0x70] sm:$0xff]
    %v7874 = vld [vmem:[#allocation4 + $0x78] sm:$0xff]
    %v7875 = vmax.f32 %v7867, %v7871
    %v7876 = vmax.f32 %v7868, %v7872
    %v7877 = vmax.f32 %v7869, %v7873
    %v7878 = vmax.f32 %v7870, %v7874
    %v7879 = vmax.f32 %v7875, %v7877
    %v7880 = vmax.f32 %v7876, %v7878
    %v7881 = vadd.f32 %v7879, %v7854
    %v7882 = vadd.f32 %v7880, %v7858
    %v7883 = vmax.f32 %v7881, 0.0
    %v7884 = vmax.f32 %v7882, 0.0
    %7885 = vst [vmem:[#allocation5 + $0x10] sm:$0xff] %v7883
    %7886 = vst [vmem:[#allocation5 + $0x18] sm:$0xff] %v7884
    %v7887 = vld [vmem:[#allocation4 + $0x80] sm:$0xff]
    %v7888 = vld [vmem:[#allocation4 + $0x88] sm:$0xff]
    %v7889 = vld [vmem:[#allocation4 + $0x90] sm:$0xff]
    %v7890 = vld [vmem:[#allocation4 + $0x98] sm:$0xff]
    %v7891 = vld [vmem:[#allocation4 + $0xa0] sm:$0xff]
    %v7892 = vld [vmem:[#allocation4 + $0xa8] sm:$0xff]
    %v7893 = vld [vmem:[#allocation4 + $0xb0] sm:$0xff]
    %v7894 = vld [vmem:[#allocation4 + $0xb8] sm:$0xff]
    %v7895 = vmax.f32 %v7887, %v7891
    %v7896 = vmax.f32 %v7888, %v7892
    %v7897 = vmax.f32 %v7889, %v7893
    %v7898 = vmax.f32 %v7890, %v7894
    %v7899 = vmax.f32 %v7895, %v7897
    %v7900 = vmax.f32 %v7896, %v7898
    %v7901 = vadd.f32 %v7899, %v7854
    %v7902 = vadd.f32 %v7900, %v7858
    %v7903 = vmax.f32 %v7901, 0.0
    %v7904 = vmax.f32 %v7902, 0.0
    %7905 = vst [vmem:[#allocation5 + $0x20] sm:$0xff] %v7903
    %7906 = vst [vmem:[#allocation5 + $0x28] sm:$0xff] %v7904
    %v7907 = vld [vmem:[#allocation4 + $0xc0] sm:$0xff]
    %v7908 = vld [vmem:[#allocation4 + $0xc8] sm:$0xff]
    %v7909 = vld [vmem:[#allocation4 + $0xd0] sm:$0xff]
    %v7910 = vld [vmem:[#allocation4 + $0xd8] sm:$0xff]
    %v7911 = vld [vmem:[#allocation4 + $0xe0] sm:$0xff]
    %v7912 = vld [vmem:[#allocation4 + $0xe8] sm:$0xff]
    %v7913 = vld [vmem:[#allocation4 + $0xf0] sm:$0xff]
    %v7914 = vld [vmem:[#allocation4 + $0xf8] sm:$0xff]
    %v7915 = vmax.f32 %v7907, %v7911
    %v7916 = vmax.f32 %v7908, %v7912
    %v7917 = vmax.f32 %v7909, %v7913
    %v7918 = vmax.f32 %v7910, %v7914
    %v7919 = vmax.f32 %v7915, %v7917
    %v7920 = vmax.f32 %v7916, %v7918
    %v7921 = vadd.f32 %v7919, %v7854
    %v7922 = vadd.f32 %v7920, %v7858
    %v7923 = vmax.f32 %v7921, 0.0
    %v7924 = vmax.f32 %v7922, 0.0
    %7925 = vst [vmem:[#allocation5 + $0x30] sm:$0xff] %v7923
    %7926 = vst [vmem:[#allocation5 + $0x38] sm:$0xff] %v7924
    %v7927 = vld [vmem:[#allocation4 + $0x100] sm:$0xff]
    %v7928 = vld [vmem:[#allocation4 + $0x108] sm:$0xff]
    %v7929 = vld [vmem:[#allocation4 + $0x110] sm:$0xff]
    %v7930 = vld [vmem:[#allocation4 + $0x118] sm:$0xff]
    %v7931 = vld [vmem:[#allocation4 + $0x120] sm:$0xff]
    %v7932 = vld [vmem:[#allocation4 + $0x128] sm:$0xff]
    %v7933 = vld [vmem:[#allocation4 + $0x130] sm:$0xff]
    %v7934 = vld [vmem:[#allocation4 + $0x138] sm:$0xff]
    %v7935 = vmax.f32 %v7927, %v7931
    %v7936 = vmax.f32 %v7928, %v7932
    %v7937 = vmax.f32 %v7929, %v7933
    %v7938 = vmax.f32 %v7930, %v7934
    %v7939 = vmax.f32 %v7935, %v7937
    %v7940 = vmax.f32 %v7936, %v7938
    %v7941 = vadd.f32 %v7939, %v7854
    %v7942 = vadd.f32 %v7940, %v7858
    %v7943 = vmax.f32 %v7941, 0.0
    %v7944 = vmax.f32 %v7942, 0.0
    %7945 = vst [vmem:[#allocation5 + $0x40] sm:$0xff] %v7943
    %7946 = vst [vmem:[#allocation5 + $0x48] sm:$0xff] %v7944
    %v7947 = vld [vmem:[#allocation4 + $0x140] sm:$0xff]
    %v7948 = vld [vmem:[#allocation4 + $0x148] sm:$0xff]
    %v7949 = vld [vmem:[#allocation4 + $0x150] sm:$0xff]
    %v7950 = vld [vmem:[#allocation4 + $0x158] sm:$0xff]
    %v7951 = vld [vmem:[#allocation4 + $0x160] sm:$0xff]
    %v7952 = vld [vmem:[#allocation4 + $0x168] sm:$0xff]
    %v7953 = vld [vmem:[#allocation4 + $0x170] sm:$0xff]
    %v7954 = vld [vmem:[#allocation4 + $0x178] sm:$0xff]
    %v7955 = vmax.f32 %v7947, %v7951
    %v7956 = vmax.f32 %v7948, %v7952
    %v7957 = vmax.f32 %v7949, %v7953
    %v7958 = vmax.f32 %v7950, %v7954
    %v7959 = vmax.f32 %v7955, %v7957
    %v7960 = vmax.f32 %v7956, %v7958
    %v7961 = vadd.f32 %v7959, %v7854
    %v7962 = vadd.f32 %v7960, %v7858
    %v7963 = vmax.f32 %v7961, 0.0
    %v7964 = vmax.f32 %v7962, 0.0
    %7965 = vst [vmem:[#allocation5 + $0x50] sm:$0xff] %v7963
    %7966 = vst [vmem:[#allocation5 + $0x58] sm:$0xff] %v7964
    %v7967 = vld [vmem:[#allocation4 + $0x180] sm:$0xff]
    %v7968 = vld [vmem:[#allocation4 + $0x188] sm:$0xff]
    %v7969 = vld [vmem:[#allocation4 + $0x190] sm:$0xff]
    %v7970 = vld [vmem:[#allocation4 + $0x198] sm:$0xff]
    %v7971 = vld [vmem:[#allocation4 + $0x1a0] sm:$0xff]
    %v7972 = vld [vmem:[#allocation4 + $0x1a8] sm:$0xff]
    %v7973 = vld [vmem:[#allocation4 + $0x1b0] sm:$0xff]
    %v7974 = vld [vmem:[#allocation4 + $0x1b8] sm:$0xff]
    %v7975 = vmax.f32 %v7967, %v7971
    %v7976 = vmax.f32 %v7968, %v7972
    %v7977 = vmax.f32 %v7969, %v7973
    %v7978 = vmax.f32 %v7970, %v7974
    %v7979 = vmax.f32 %v7975, %v7977
    %v7980 = vmax.f32 %v7976, %v7978
    %v7981 = vadd.f32 %v7979, %v7854
    %v7982 = vadd.f32 %v7980, %v7858
    %v7983 = vmax.f32 %v7981, 0.0
    %v7984 = vmax.f32 %v7982, 0.0
    %7985 = vst [vmem:[#allocation5 + $0x60] sm:$0xff] %v7983
    %7986 = vst [vmem:[#allocation5 + $0x68] sm:$0xff] %v7984
    %v7987 = vld [vmem:[#allocation5] sm:$0xff]
    %v7988 = vld [vmem:[#allocation5 + $0x8] sm:$0xff]
    %v7989 = vld [vmem:[#allocation13] sm:$0xff]
    %v7990 = vld [vmem:[#allocation13 + $0x8] sm:$0xff]
    %v7991 = vld [vmem:[#allocation13 + $0x10] sm:$0xff]
    %v7992 = vld [vmem:[#allocation13 + $0x18] sm:$0xff]
    %v7993 = vld [vmem:[#allocation13 + $0x20] sm:$0xff]
    %v7994 = vld [vmem:[#allocation13 + $0x28] sm:$0xff]
    %v7995 = vld [vmem:[#allocation13 + $0x30] sm:$0xff]
    %v7996 = vld [vmem:[#allocation13 + $0x38] sm:$0xff]
    %v7997 = vld [vmem:[#allocation13 + $0x40] sm:$0xff]
    %v7998 = vld [vmem:[#allocation13 + $0x48] sm:$0xff]
    %v7999 = vld [vmem:[#allocation13 + $0x50] sm:$0xff]
    %v8000 = vld [vmem:[#allocation13 + $0x58] sm:$0xff]
    %v8001 = vld [vmem:[#allocation13 + $0x60] sm:$0xff]
    %v8002 = vld [vmem:[#allocation13 + $0x68] sm:$0xff]
    %v8003 = vld [vmem:[#allocation13 + $0x70] sm:$0xff]
    %v8004 = vld [vmem:[#allocation13 + $0x78] sm:$0xff]
    %v8005 = vld [vmem:[#allocation13 + $0x80] sm:$0xff]
    %v8006 = vld [vmem:[#allocation13 + $0x88] sm:$0xff]
    %v8007 = vld [vmem:[#allocation13 + $0x90] sm:$0xff]
    %v8008 = vld [vmem:[#allocation13 + $0x98] sm:$0xff]
    %v8009 = vld [vmem:[#allocation13 + $0xa0] sm:$0xff]
    %v8010 = vld [vmem:[#allocation13 + $0xa8] sm:$0xff]
    %v8011 = vld [vmem:[#allocation13 + $0xb0] sm:$0xff]
    %v8012 = vld [vmem:[#allocation13 + $0xb8] sm:$0xff]
    %v8013 = vld [vmem:[#allocation13 + $0xc0] sm:$0xff]
    %v8014 = vld [vmem:[#allocation13 + $0xc8] sm:$0xff]
    %v8015 = vld [vmem:[#allocation13 + $0xd0] sm:$0xff]
    %v8016 = vld [vmem:[#allocation13 + $0xd8] sm:$0xff]
    %v8017 = vld [vmem:[#allocation13 + $0xe0] sm:$0xff]
    %v8018 = vld [vmem:[#allocation13 + $0xe8] sm:$0xff]
    %v8019 = vld [vmem:[#allocation13 + $0xf0] sm:$0xff]
    %v8020 = vld [vmem:[#allocation13 + $0xf8] sm:$0xff]
    %v8021 = vld [vmem:[#allocation5 + $0x10] sm:$0xff]
    %v8022 = vld [vmem:[#allocation5 + $0x18] sm:$0xff]
    %s8023 = scalar_lea.vmem [#allocation13], 256
    %v8024 = vld [vmem:[%s8023] sm:$0xff]
    %v8025 = vld [vmem:[%s8023 + $0x8] sm:$0xff]
    %v8026 = vld [vmem:[%s8023 + $0x10] sm:$0xff]
    %v8027 = vld [vmem:[%s8023 + $0x18] sm:$0xff]
    %v8028 = vld [vmem:[%s8023 + $0x20] sm:$0xff]
    %v8029 = vld [vmem:[%s8023 + $0x28] sm:$0xff]
    %v8030 = vld [vmem:[%s8023 + $0x30] sm:$0xff]
    %v8031 = vld [vmem:[%s8023 + $0x38] sm:$0xff]
    %v8032 = vld [vmem:[%s8023 + $0x40] sm:$0xff]
    %v8033 = vld [vmem:[%s8023 + $0x48] sm:$0xff]
    %v8034 = vld [vmem:[%s8023 + $0x50] sm:$0xff]
    %v8035 = vld [vmem:[%s8023 + $0x58] sm:$0xff]
    %v8036 = vld [vmem:[%s8023 + $0x60] sm:$0xff]
    %v8037 = vld [vmem:[%s8023 + $0x68] sm:$0xff]
    %v8038 = vld [vmem:[%s8023 + $0x70] sm:$0xff]
    %v8039 = vld [vmem:[%s8023 + $0x78] sm:$0xff]
    %v8040 = vld [vmem:[%s8023 + $0x80] sm:$0xff]
    %v8041 = vld [vmem:[%s8023 + $0x88] sm:$0xff]
    %v8042 = vld [vmem:[%s8023 + $0x90] sm:$0xff]
    %v8043 = vld [vmem:[%s8023 + $0x98] sm:$0xff]
    %v8044 = vld [vmem:[%s8023 + $0xa0] sm:$0xff]
    %v8045 = vld [vmem:[%s8023 + $0xa8] sm:$0xff]
    %v8046 = vld [vmem:[%s8023 + $0xb0] sm:$0xff]
    %v8047 = vld [vmem:[%s8023 + $0xb8] sm:$0xff]
    %v8048 = vld [vmem:[%s8023 + $0xc0] sm:$0xff]
    %v8049 = vld [vmem:[%s8023 + $0xc8] sm:$0xff]
    %v8050 = vld [vmem:[%s8023 + $0xd0] sm:$0xff]
    %v8051 = vld [vmem:[%s8023 + $0xd8] sm:$0xff]
    %v8052 = vld [vmem:[%s8023 + $0xe0] sm:$0xff]
    %v8053 = vld [vmem:[%s8023 + $0xe8] sm:$0xff]
    %v8054 = vld [vmem:[%s8023 + $0xf0] sm:$0xff]
    %v8055 = vld [vmem:[%s8023 + $0xf8] sm:$0xff]
    %8056 = vmatprep.subr.mxu0 0.0
    %8057 = vmatpush1.msra.mxu0 %v8024
    %8058 = vmatprep.subr.mxu0 0.0
    %8059 = vmatpush1.msra.mxu0 %v8025
    %8060 = vmatprep.subr.mxu0 0.0
    %8061 = vmatpush1.msra.mxu0 %v8026
    %8062 = vmatprep.subr.mxu0 0.0
    %8063 = vmatpush1.msra.mxu0 %v8027
    %8064 = vmatprep.subr.mxu0 0.0
    %8065 = vmatpush1.msra.mxu0 %v8028
    %8066 = vmatprep.subr.mxu0 0.0
    %8067 = vmatpush1.msra.mxu0 %v8029
    %8068 = vmatprep.subr.mxu0 0.0
    %8069 = vmatpush1.msra.mxu0 %v8030
    %8070 = vmatprep.subr.mxu0 0.0
    %8071 = vmatpush1.msra.mxu0 %v8031
    %8072 = vmatprep.subr.mxu0 0.0
    %8073 = vmatpush1.msra.mxu0 %v8032
    %8074 = vmatprep.subr.mxu0 0.0
    %8075 = vmatpush1.msra.mxu0 %v8033
    %8076 = vmatprep.subr.mxu0 0.0
    %8077 = vmatpush1.msra.mxu0 %v8034
    %8078 = vmatprep.subr.mxu0 0.0
    %8079 = vmatpush1.msra.mxu0 %v8035
    %8080 = vmatprep.subr.mxu0 0.0
    %8081 = vmatpush1.msra.mxu0 %v8036
    %8082 = vmatprep.subr.mxu0 0.0
    %8083 = vmatpush1.msra.mxu0 %v8037
    %8084 = vmatprep.subr.mxu0 0.0
    %8085 = vmatpush1.msra.mxu0 %v8038
    %8086 = vmatprep.subr.mxu0 0.0
    %8087 = vmatpush1.msra.mxu0 %v8039
    %8088 = vmatprep.subr.mxu0 0.0
    %8089 = vmatpush1.msra.mxu0 %v8040
    %8090 = vmatprep.subr.mxu0 0.0
    %8091 = vmatpush1.msra.mxu0 %v8041
    %8092 = vmatprep.subr.mxu0 0.0
    %8093 = vmatpush1.msra.mxu0 %v8042
    %8094 = vmatprep.subr.mxu0 0.0
    %8095 = vmatpush1.msra.mxu0 %v8043
    %8096 = vmatprep.subr.mxu0 0.0
    %8097 = vmatpush1.msra.mxu0 %v8044
    %8098 = vmatprep.subr.mxu0 0.0
    %8099 = vmatpush1.msra.mxu0 %v8045
    %8100 = vmatprep.subr.mxu0 0.0
    %8101 = vmatpush1.msra.mxu0 %v8046
    %8102 = vmatprep.subr.mxu0 0.0
    %8103 = vmatpush1.msra.mxu0 %v8047
    %8104 = vmatprep.subr.mxu0 0.0
    %8105 = vmatpush1.msra.mxu0 %v8048
    %8106 = vmatprep.subr.mxu0 0.0
    %8107 = vmatpush1.msra.mxu0 %v8049
    %8108 = vmatprep.subr.mxu0 0.0
    %8109 = vmatpush1.msra.mxu0 %v8050
    %8110 = vmatprep.subr.mxu0 0.0
    %8111 = vmatpush1.msra.mxu0 %v8051
    %8112 = vmatprep.subr.mxu0 0.0
    %8113 = vmatpush1.msra.mxu0 %v8052
    %8114 = vmatprep.subr.mxu0 0.0
    %8115 = vmatpush1.msra.mxu0 %v8053
    %8116 = vmatprep.subr.mxu0 0.0
    %8117 = vmatpush1.msra.mxu0 %v8054
    %8118 = vmatprep.subr.mxu0 0.0
    %8119 = vmatpush1.msra.mxu0 %v8055
    %8120 = vmatprep.mubr.f32.mxu0 %v8022
    %8121 = vmatmul.mubr.f32.gmra.mrb[0].mxu0 %v8021
    %v8122 = vpop.f32.mrb[0].mxu0
    %v8123 = vadd.f32 0.0, %v8122
    %v8124 = vpop.f32.mrb[0].mxu0
    %8125 = vdwg.mxu0
    %8126 = vmatprep.subr.mxu0 0.0
    %8127 = vmatpush1.msra.mxu0 %v7989
    %8128 = vmatprep.subr.mxu0 0.0
    %8129 = vmatpush1.msra.mxu0 %v7990
    %8130 = vmatprep.subr.mxu0 0.0
    %8131 = vmatpush1.msra.mxu0 %v7991
    %8132 = vmatprep.subr.mxu0 0.0
    %8133 = vmatpush1.msra.mxu0 %v7992
    %8134 = vmatprep.subr.mxu0 0.0
    %8135 = vmatpush1.msra.mxu0 %v7993
    %8136 = vmatprep.subr.mxu0 0.0
    %8137 = vmatpush1.msra.mxu0 %v7994
    %8138 = vmatprep.subr.mxu0 0.0
    %8139 = vmatpush1.msra.mxu0 %v7995
    %8140 = vmatprep.subr.mxu0 0.0
    %8141 = vmatpush1.msra.mxu0 %v7996
    %8142 = vmatprep.subr.mxu0 0.0
    %8143 = vmatpush1.msra.mxu0 %v7997
    %8144 = vmatprep.subr.mxu0 0.0
    %8145 = vmatpush1.msra.mxu0 %v7998
    %8146 = vmatprep.subr.mxu0 0.0
    %8147 = vmatpush1.msra.mxu0 %v7999
    %8148 = vmatprep.subr.mxu0 0.0
    %8149 = vmatpush1.msra.mxu0 %v8000
    %8150 = vmatprep.subr.mxu0 0.0
    %8151 = vmatpush1.msra.mxu0 %v8001
    %8152 = vmatprep.subr.mxu0 0.0
    %8153 = vmatpush1.msra.mxu0 %v8002
    %8154 = vmatprep.subr.mxu0 0.0
    %8155 = vmatpush1.msra.mxu0 %v8003
    %8156 = vmatprep.subr.mxu0 0.0
    %8157 = vmatpush1.msra.mxu0 %v8004
    %8158 = vmatprep.subr.mxu0 0.0
    %8159 = vmatpush1.msra.mxu0 %v8005
    %8160 = vmatprep.subr.mxu0 0.0
    %8161 = vmatpush1.msra.mxu0 %v8006
    %8162 = vmatprep.subr.mxu0 0.0
    %8163 = vmatpush1.msra.mxu0 %v8007
    %8164 = vmatprep.subr.mxu0 0.0
    %8165 = vmatpush1.msra.mxu0 %v8008
    %8166 = vmatprep.subr.mxu0 0.0
    %8167 = vmatpush1.msra.mxu0 %v8009
    %8168 = vmatprep.subr.mxu0 0.0
    %8169 = vmatpush1.msra.mxu0 %v8010
    %8170 = vmatprep.subr.mxu0 0.0
    %8171 = vmatpush1.msra.mxu0 %v8011
    %8172 = vmatprep.subr.mxu0 0.0
    %8173 = vmatpush1.msra.mxu0 %v8012
    %8174 = vmatprep.subr.mxu0 0.0
    %8175 = vmatpush1.msra.mxu0 %v8013
    %8176 = vmatprep.subr.mxu0 0.0
    %8177 = vmatpush1.msra.mxu0 %v8014
    %8178 = vmatprep.subr.mxu0 0.0
    %8179 = vmatpush1.msra.mxu0 %v8015
    %8180 = vmatprep.subr.mxu0 0.0
    %8181 = vmatpush1.msra.mxu0 %v8016
    %8182 = vmatprep.subr.mxu0 0.0
    %8183 = vmatpush1.msra.mxu0 %v8017
    %8184 = vmatprep.subr.mxu0 0.0
    %8185 = vmatpush1.msra.mxu0 %v8018
    %8186 = vmatprep.subr.mxu0 0.0
    %8187 = vmatpush1.msra.mxu0 %v8019
    %8188 = vmatprep.subr.mxu0 0.0
    %8189 = vmatpush1.msra.mxu0 %v8020
    %8190 = vmatprep.mubr.f32.mxu0 %v7988
    %8191 = vmatmul.mubr.f32.gmra.mrb[0].mxu0 %v7987
    %v8192 = vpop.f32.mrb[0].mxu0
    %v8193 = vadd.f32 %v8123, %v8192
    %v8194 = vpop.f32.mrb[0].mxu0
    %8195 = vdwg.mxu0
    %v8196 = vld [vmem:[#allocation5 + $0x20] sm:$0xff]
    %v8197 = vld [vmem:[#allocation5 + $0x28] sm:$0xff]
    %s8198 = scalar_lea.vmem [#allocation13], 512
    %v8199 = vld [vmem:[%s8198] sm:$0xff]
    %v8200 = vld [vmem:[%s8198 + $0x8] sm:$0xff]
    %v8201 = vld [vmem:[%s8198 + $0x10] sm:$0xff]
    %v8202 = vld [vmem:[%s8198 + $0x18] sm:$0xff]
    %v8203 = vld [vmem:[%s8198 + $0x20] sm:$0xff]
    %v8204 = vld [vmem:[%s8198 + $0x28] sm:$0xff]
    %v8205 = vld [vmem:[%s8198 + $0x30] sm:$0xff]
    %v8206 = vld [vmem:[%s8198 + $0x38] sm:$0xff]
    %v8207 = vld [vmem:[%s8198 + $0x40] sm:$0xff]
    %v8208 = vld [vmem:[%s8198 + $0x48] sm:$0xff]
    %v8209 = vld [vmem:[%s8198 + $0x50] sm:$0xff]
    %v8210 = vld [vmem:[%s8198 + $0x58] sm:$0xff]
    %v8211 = vld [vmem:[%s8198 + $0x60] sm:$0xff]
    %v8212 = vld [vmem:[%s8198 + $0x68] sm:$0xff]
    %v8213 = vld [vmem:[%s8198 + $0x70] sm:$0xff]
    %v8214 = vld [vmem:[%s8198 + $0x78] sm:$0xff]
    %v8215 = vld [vmem:[%s8198 + $0x80] sm:$0xff]
    %v8216 = vld [vmem:[%s8198 + $0x88] sm:$0xff]
    %v8217 = vld [vmem:[%s8198 + $0x90] sm:$0xff]
    %v8218 = vld [vmem:[%s8198 + $0x98] sm:$0xff]
    %v8219 = vld [vmem:[%s8198 + $0xa0] sm:$0xff]
    %v8220 = vld [vmem:[%s8198 + $0xa8] sm:$0xff]
    %v8221 = vld [vmem:[%s8198 + $0xb0] sm:$0xff]
    %v8222 = vld [vmem:[%s8198 + $0xb8] sm:$0xff]
    %v8223 = vld [vmem:[%s8198 + $0xc0] sm:$0xff]
    %v8224 = vld [vmem:[%s8198 + $0xc8] sm:$0xff]
    %v8225 = vld [vmem:[%s8198 + $0xd0] sm:$0xff]
    %v8226 = vld [vmem:[%s8198 + $0xd8] sm:$0xff]
    %v8227 = vld [vmem:[%s8198 + $0xe0] sm:$0xff]
    %v8228 = vld [vmem:[%s8198 + $0xe8] sm:$0xff]
    %v8229 = vld [vmem:[%s8198 + $0xf0] sm:$0xff]
    %v8230 = vld [vmem:[%s8198 + $0xf8] sm:$0xff]
    %8231 = vmatprep.subr.mxu0 0.0
    %8232 = vmatpush1.msra.mxu0 %v8199
    %8233 = vmatprep.subr.mxu0 0.0
    %8234 = vmatpush1.msra.mxu0 %v8200
    %8235 = vmatprep.subr.mxu0 0.0
    %8236 = vmatpush1.msra.mxu0 %v8201
    %8237 = vmatprep.subr.mxu0 0.0
    %8238 = vmatpush1.msra.mxu0 %v8202
    %8239 = vmatprep.subr.mxu0 0.0
    %8240 = vmatpush1.msra.mxu0 %v8203
    %8241 = vmatprep.subr.mxu0 0.0
    %8242 = vmatpush1.msra.mxu0 %v8204
    %8243 = vmatprep.subr.mxu0 0.0
    %8244 = vmatpush1.msra.mxu0 %v8205
    %8245 = vmatprep.subr.mxu0 0.0
    %8246 = vmatpush1.msra.mxu0 %v8206
    %8247 = vmatprep.subr.mxu0 0.0
    %8248 = vmatpush1.msra.mxu0 %v8207
    %8249 = vmatprep.subr.mxu0 0.0
    %8250 = vmatpush1.msra.mxu0 %v8208
    %8251 = vmatprep.subr.mxu0 0.0
    %8252 = vmatpush1.msra.mxu0 %v8209
    %8253 = vmatprep.subr.mxu0 0.0
    %8254 = vmatpush1.msra.mxu0 %v8210
    %8255 = vmatprep.subr.mxu0 0.0
    %8256 = vmatpush1.msra.mxu0 %v8211
    %8257 = vmatprep.subr.mxu0 0.0
    %8258 = vmatpush1.msra.mxu0 %v8212
    %8259 = vmatprep.subr.mxu0 0.0
    %8260 = vmatpush1.msra.mxu0 %v8213
    %8261 = vmatprep.subr.mxu0 0.0
    %8262 = vmatpush1.msra.mxu0 %v8214
    %8263 = vmatprep.subr.mxu0 0.0
    %8264 = vmatpush1.msra.mxu0 %v8215
    %8265 = vmatprep.subr.mxu0 0.0
    %8266 = vmatpush1.msra.mxu0 %v8216
    %8267 = vmatprep.subr.mxu0 0.0
    %8268 = vmatpush1.msra.mxu0 %v8217
    %8269 = vmatprep.subr.mxu0 0.0
    %8270 = vmatpush1.msra.mxu0 %v8218
    %8271 = vmatprep.subr.mxu0 0.0
    %8272 = vmatpush1.msra.mxu0 %v8219
    %8273 = vmatprep.subr.mxu0 0.0
    %8274 = vmatpush1.msra.mxu0 %v8220
    %8275 = vmatprep.subr.mxu0 0.0
    %8276 = vmatpush1.msra.mxu0 %v8221
    %8277 = vmatprep.subr.mxu0 0.0
    %8278 = vmatpush1.msra.mxu0 %v8222
    %8279 = vmatprep.subr.mxu0 0.0
    %8280 = vmatpush1.msra.mxu0 %v8223
    %8281 = vmatprep.subr.mxu0 0.0
    %8282 = vmatpush1.msra.mxu0 %v8224
    %8283 = vmatprep.subr.mxu0 0.0
    %8284 = vmatpush1.msra.mxu0 %v8225
    %8285 = vmatprep.subr.mxu0 0.0
    %8286 = vmatpush1.msra.mxu0 %v8226
    %8287 = vmatprep.subr.mxu0 0.0
    %8288 = vmatpush1.msra.mxu0 %v8227
    %8289 = vmatprep.subr.mxu0 0.0
    %8290 = vmatpush1.msra.mxu0 %v8228
    %8291 = vmatprep.subr.mxu0 0.0
    %8292 = vmatpush1.msra.mxu0 %v8229
    %8293 = vmatprep.subr.mxu0 0.0
    %8294 = vmatpush1.msra.mxu0 %v8230
    %8295 = vmatprep.mubr.f32.mxu0 %v8197
    %8296 = vmatmul.mubr.f32.gmra.mrb[0].mxu0 %v8196
    %v8297 = vpop.f32.mrb[0].mxu0
    %v8298 = vadd.f32 0.0, %v8297
    %v8299 = vpop.f32.mrb[0].mxu0
    %8300 = vdwg.mxu0
    %v8301 = vadd.f32 %v8193, %v8298
    %v8302 = vld [vmem:[#allocation5 + $0x30] sm:$0xff]
    %v8303 = vld [vmem:[#allocation5 + $0x38] sm:$0xff]
    %s8304 = scalar_lea.vmem [#allocation13], 768
    %v8305 = vld [vmem:[%s8304] sm:$0xff]
    %v8306 = vld [vmem:[%s8304 + $0x8] sm:$0xff]
    %v8307 = vld [vmem:[%s8304 + $0x10] sm:$0xff]
    %v8308 = vld [vmem:[%s8304 + $0x18] sm:$0xff]
    %v8309 = vld [vmem:[%s8304 + $0x20] sm:$0xff]
    %v8310 = vld [vmem:[%s8304 + $0x28] sm:$0xff]
    %v8311 = vld [vmem:[%s8304 + $0x30] sm:$0xff]
    %v8312 = vld [vmem:[%s8304 + $0x38] sm:$0xff]
    %v8313 = vld [vmem:[%s8304 + $0x40] sm:$0xff]
    %v8314 = vld [vmem:[%s8304 + $0x48] sm:$0xff]
    %v8315 = vld [vmem:[%s8304 + $0x50] sm:$0xff]
    %v8316 = vld [vmem:[%s8304 + $0x58] sm:$0xff]
    %v8317 = vld [vmem:[%s8304 + $0x60] sm:$0xff]
    %v8318 = vld [vmem:[%s8304 + $0x68] sm:$0xff]
    %v8319 = vld [vmem:[%s8304 + $0x70] sm:$0xff]
    %v8320 = vld [vmem:[%s8304 + $0x78] sm:$0xff]
    %v8321 = vld [vmem:[%s8304 + $0x80] sm:$0xff]
    %v8322 = vld [vmem:[%s8304 + $0x88] sm:$0xff]
    %v8323 = vld [vmem:[%s8304 + $0x90] sm:$0xff]
    %v8324 = vld [vmem:[%s8304 + $0x98] sm:$0xff]
    %v8325 = vld [vmem:[%s8304 + $0xa0] sm:$0xff]
    %v8326 = vld [vmem:[%s8304 + $0xa8] sm:$0xff]
    %v8327 = vld [vmem:[%s8304 + $0xb0] sm:$0xff]
    %v8328 = vld [vmem:[%s8304 + $0xb8] sm:$0xff]
    %v8329 = vld [vmem:[%s8304 + $0xc0] sm:$0xff]
    %v8330 = vld [vmem:[%s8304 + $0xc8] sm:$0xff]
    %v8331 = vld [vmem:[%s8304 + $0xd0] sm:$0xff]
    %v8332 = vld [vmem:[%s8304 + $0xd8] sm:$0xff]
    %v8333 = vld [vmem:[%s8304 + $0xe0] sm:$0xff]
    %v8334 = vld [vmem:[%s8304 + $0xe8] sm:$0xff]
    %v8335 = vld [vmem:[%s8304 + $0xf0] sm:$0xff]
    %v8336 = vld [vmem:[%s8304 + $0xf8] sm:$0xff]
    %8337 = vmatprep.subr.mxu0 0.0
    %8338 = vmatpush1.msra.mxu0 %v8305
    %8339 = vmatprep.subr.mxu0 0.0
    %8340 = vmatpush1.msra.mxu0 %v8306
    %8341 = vmatprep.subr.mxu0 0.0
    %8342 = vmatpush1.msra.mxu0 %v8307
    %8343 = vmatprep.subr.mxu0 0.0
    %8344 = vmatpush1.msra.mxu0 %v8308
    %8345 = vmatprep.subr.mxu0 0.0
    %8346 = vmatpush1.msra.mxu0 %v8309
    %8347 = vmatprep.subr.mxu0 0.0
    %8348 = vmatpush1.msra.mxu0 %v8310
    %8349 = vmatprep.subr.mxu0 0.0
    %8350 = vmatpush1.msra.mxu0 %v8311
    %8351 = vmatprep.subr.mxu0 0.0
    %8352 = vmatpush1.msra.mxu0 %v8312
    %8353 = vmatprep.subr.mxu0 0.0
    %8354 = vmatpush1.msra.mxu0 %v8313
    %8355 = vmatprep.subr.mxu0 0.0
    %8356 = vmatpush1.msra.mxu0 %v8314
    %8357 = vmatprep.subr.mxu0 0.0
    %8358 = vmatpush1.msra.mxu0 %v8315
    %8359 = vmatprep.subr.mxu0 0.0
    %8360 = vmatpush1.msra.mxu0 %v8316
    %8361 = vmatprep.subr.mxu0 0.0
    %8362 = vmatpush1.msra.mxu0 %v8317
    %8363 = vmatprep.subr.mxu0 0.0
    %8364 = vmatpush1.msra.mxu0 %v8318
    %8365 = vmatprep.subr.mxu0 0.0
    %8366 = vmatpush1.msra.mxu0 %v8319
    %8367 = vmatprep.subr.mxu0 0.0
    %8368 = vmatpush1.msra.mxu0 %v8320
    %8369 = vmatprep.subr.mxu0 0.0
    %8370 = vmatpush1.msra.mxu0 %v8321
    %8371 = vmatprep.subr.mxu0 0.0
    %8372 = vmatpush1.msra.mxu0 %v8322
    %8373 = vmatprep.subr.mxu0 0.0
    %8374 = vmatpush1.msra.mxu0 %v8323
    %8375 = vmatprep.subr.mxu0 0.0
    %8376 = vmatpush1.msra.mxu0 %v8324
    %8377 = vmatprep.subr.mxu0 0.0
    %8378 = vmatpush1.msra.mxu0 %v8325
    %8379 = vmatprep.subr.mxu0 0.0
    %8380 = vmatpush1.msra.mxu0 %v8326
    %8381 = vmatprep.subr.mxu0 0.0
    %8382 = vmatpush1.msra.mxu0 %v8327
    %8383 = vmatprep.subr.mxu0 0.0
    %8384 = vmatpush1.msra.mxu0 %v8328
    %8385 = vmatprep.subr.mxu0 0.0
    %8386 = vmatpush1.msra.mxu0 %v8329
    %8387 = vmatprep.subr.mxu0 0.0
    %8388 = vmatpush1.msra.mxu0 %v8330
    %8389 = vmatprep.subr.mxu0 0.0
    %8390 = vmatpush1.msra.mxu0 %v8331
    %8391 = vmatprep.subr.mxu0 0.0
    %8392 = vmatpush1.msra.mxu0 %v8332
    %8393 = vmatprep.subr.mxu0 0.0
    %8394 = vmatpush1.msra.mxu0 %v8333
    %8395 = vmatprep.subr.mxu0 0.0
    %8396 = vmatpush1.msra.mxu0 %v8334
    %8397 = vmatprep.subr.mxu0 0.0
    %8398 = vmatpush1.msra.mxu0 %v8335
    %8399 = vmatprep.subr.mxu0 0.0
    %8400 = vmatpush1.msra.mxu0 %v8336
    %8401 = vmatprep.mubr.f32.mxu0 %v8303
    %8402 = vmatmul.mubr.f32.gmra.mrb[0].mxu0 %v8302
    %v8403 = vpop.f32.mrb[0].mxu0
    %v8404 = vadd.f32 0.0, %v8403
    %v8405 = vpop.f32.mrb[0].mxu0
    %8406 = vdwg.mxu0
    %v8407 = vadd.f32 %v8301, %v8404
    %v8408 = vld [vmem:[#allocation5 + $0x40] sm:$0xff]
    %v8409 = vld [vmem:[#allocation5 + $0x48] sm:$0xff]
    %s8410 = scalar_lea.vmem [#allocation13], 1024
    %v8411 = vld [vmem:[%s8410] sm:$0xff]
    %v8412 = vld [vmem:[%s8410 + $0x8] sm:$0xff]
    %v8413 = vld [vmem:[%s8410 + $0x10] sm:$0xff]
    %v8414 = vld [vmem:[%s8410 + $0x18] sm:$0xff]
    %v8415 = vld [vmem:[%s8410 + $0x20] sm:$0xff]
    %v8416 = vld [vmem:[%s8410 + $0x28] sm:$0xff]
    %v8417 = vld [vmem:[%s8410 + $0x30] sm:$0xff]
    %v8418 = vld [vmem:[%s8410 + $0x38] sm:$0xff]
    %v8419 = vld [vmem:[%s8410 + $0x40] sm:$0xff]
    %v8420 = vld [vmem:[%s8410 + $0x48] sm:$0xff]
    %v8421 = vld [vmem:[%s8410 + $0x50] sm:$0xff]
    %v8422 = vld [vmem:[%s8410 + $0x58] sm:$0xff]
    %v8423 = vld [vmem:[%s8410 + $0x60] sm:$0xff]
    %v8424 = vld [vmem:[%s8410 + $0x68] sm:$0xff]
    %v8425 = vld [vmem:[%s8410 + $0x70] sm:$0xff]
    %v8426 = vld [vmem:[%s8410 + $0x78] sm:$0xff]
    %v8427 = vld [vmem:[%s8410 + $0x80] sm:$0xff]
    %v8428 = vld [vmem:[%s8410 + $0x88] sm:$0xff]
    %v8429 = vld [vmem:[%s8410 + $0x90] sm:$0xff]
    %v8430 = vld [vmem:[%s8410 + $0x98] sm:$0xff]
    %v8431 = vld [vmem:[%s8410 + $0xa0] sm:$0xff]
    %v8432 = vld [vmem:[%s8410 + $0xa8] sm:$0xff]
    %v8433 = vld [vmem:[%s8410 + $0xb0] sm:$0xff]
    %v8434 = vld [vmem:[%s8410 + $0xb8] sm:$0xff]
    %v8435 = vld [vmem:[%s8410 + $0xc0] sm:$0xff]
    %v8436 = vld [vmem:[%s8410 + $0xc8] sm:$0xff]
    %v8437 = vld [vmem:[%s8410 + $0xd0] sm:$0xff]
    %v8438 = vld [vmem:[%s8410 + $0xd8] sm:$0xff]
    %v8439 = vld [vmem:[%s8410 + $0xe0] sm:$0xff]
    %v8440 = vld [vmem:[%s8410 + $0xe8] sm:$0xff]
    %v8441 = vld [vmem:[%s8410 + $0xf0] sm:$0xff]
    %v8442 = vld [vmem:[%s8410 + $0xf8] sm:$0xff]
    %8443 = vmatprep.subr.mxu0 0.0
    %8444 = vmatpush1.msra.mxu0 %v8411
    %8445 = vmatprep.subr.mxu0 0.0
    %8446 = vmatpush1.msra.mxu0 %v8412
    %8447 = vmatprep.subr.mxu0 0.0
    %8448 = vmatpush1.msra.mxu0 %v8413
    %8449 = vmatprep.subr.mxu0 0.0
    %8450 = vmatpush1.msra.mxu0 %v8414
    %8451 = vmatprep.subr.mxu0 0.0
    %8452 = vmatpush1.msra.mxu0 %v8415
    %8453 = vmatprep.subr.mxu0 0.0
    %8454 = vmatpush1.msra.mxu0 %v8416
    %8455 = vmatprep.subr.mxu0 0.0
    %8456 = vmatpush1.msra.mxu0 %v8417
    %8457 = vmatprep.subr.mxu0 0.0
    %8458 = vmatpush1.msra.mxu0 %v8418
    %8459 = vmatprep.subr.mxu0 0.0
    %8460 = vmatpush1.msra.mxu0 %v8419
    %8461 = vmatprep.subr.mxu0 0.0
    %8462 = vmatpush1.msra.mxu0 %v8420
    %8463 = vmatprep.subr.mxu0 0.0
    %8464 = vmatpush1.msra.mxu0 %v8421
    %8465 = vmatprep.subr.mxu0 0.0
    %8466 = vmatpush1.msra.mxu0 %v8422
    %8467 = vmatprep.subr.mxu0 0.0
    %8468 = vmatpush1.msra.mxu0 %v8423
    %8469 = vmatprep.subr.mxu0 0.0
    %8470 = vmatpush1.msra.mxu0 %v8424
    %8471 = vmatprep.subr.mxu0 0.0
    %8472 = vmatpush1.msra.mxu0 %v8425
    %8473 = vmatprep.subr.mxu0 0.0
    %8474 = vmatpush1.msra.mxu0 %v8426
    %8475 = vmatprep.subr.mxu0 0.0
    %8476 = vmatpush1.msra.mxu0 %v8427
    %8477 = vmatprep.subr.mxu0 0.0
    %8478 = vmatpush1.msra.mxu0 %v8428
    %8479 = vmatprep.subr.mxu0 0.0
    %8480 = vmatpush1.msra.mxu0 %v8429
    %8481 = vmatprep.subr.mxu0 0.0
    %8482 = vmatpush1.msra.mxu0 %v8430
    %8483 = vmatprep.subr.mxu0 0.0
    %8484 = vmatpush1.msra.mxu0 %v8431
    %8485 = vmatprep.subr.mxu0 0.0
    %8486 = vmatpush1.msra.mxu0 %v8432
    %8487 = vmatprep.subr.mxu0 0.0
    %8488 = vmatpush1.msra.mxu0 %v8433
    %8489 = vmatprep.subr.mxu0 0.0
    %8490 = vmatpush1.msra.mxu0 %v8434
    %8491 = vmatprep.subr.mxu0 0.0
    %8492 = vmatpush1.msra.mxu0 %v8435
    %8493 = vmatprep.subr.mxu0 0.0
    %8494 = vmatpush1.msra.mxu0 %v8436
    %8495 = vmatprep.subr.mxu0 0.0
    %8496 = vmatpush1.msra.mxu0 %v8437
    %8497 = vmatprep.subr.mxu0 0.0
    %8498 = vmatpush1.msra.mxu0 %v8438
    %8499 = vmatprep.subr.mxu0 0.0
    %8500 = vmatpush1.msra.mxu0 %v8439
    %8501 = vmatprep.subr.mxu0 0.0
    %8502 = vmatpush1.msra.mxu0 %v8440
    %8503 = vmatprep.subr.mxu0 0.0
    %8504 = vmatpush1.msra.mxu0 %v8441
    %8505 = vmatprep.subr.mxu0 0.0
    %8506 = vmatpush1.msra.mxu0 %v8442
    %8507 = vmatprep.mubr.f32.mxu0 %v8409
    %8508 = vmatmul.mubr.f32.gmra.mrb[0].mxu0 %v8408
    %v8509 = vpop.f32.mrb[0].mxu0
    %v8510 = vadd.f32 0.0, %v8509
    %v8511 = vpop.f32.mrb[0].mxu0
    %8512 = vdwg.mxu0
    %v8513 = vadd.f32 %v8407, %v8510
    %v8514 = vld [vmem:[#allocation5 + $0x50] sm:$0xff]
    %v8515 = vld [vmem:[#allocation5 + $0x58] sm:$0xff]
    %s8516 = scalar_lea.vmem [#allocation13], 1280
    %v8517 = vld [vmem:[%s8516] sm:$0xff]
    %v8518 = vld [vmem:[%s8516 + $0x8] sm:$0xff]
    %v8519 = vld [vmem:[%s8516 + $0x10] sm:$0xff]
    %v8520 = vld [vmem:[%s8516 + $0x18] sm:$0xff]
    %v8521 = vld [vmem:[%s8516 + $0x20] sm:$0xff]
    %v8522 = vld [vmem:[%s8516 + $0x28] sm:$0xff]
    %v8523 = vld [vmem:[%s8516 + $0x30] sm:$0xff]
    %v8524 = vld [vmem:[%s8516 + $0x38] sm:$0xff]
    %v8525 = vld [vmem:[%s8516 + $0x40] sm:$0xff]
    %v8526 = vld [vmem:[%s8516 + $0x48] sm:$0xff]
    %v8527 = vld [vmem:[%s8516 + $0x50] sm:$0xff]
    %v8528 = vld [vmem:[%s8516 + $0x58] sm:$0xff]
    %v8529 = vld [vmem:[%s8516 + $0x60] sm:$0xff]
    %v8530 = vld [vmem:[%s8516 + $0x68] sm:$0xff]
    %v8531 = vld [vmem:[%s8516 + $0x70] sm:$0xff]
    %v8532 = vld [vmem:[%s8516 + $0x78] sm:$0xff]
    %v8533 = vld [vmem:[%s8516 + $0x80] sm:$0xff]
    %v8534 = vld [vmem:[%s8516 + $0x88] sm:$0xff]
    %v8535 = vld [vmem:[%s8516 + $0x90] sm:$0xff]
    %v8536 = vld [vmem:[%s8516 + $0x98] sm:$0xff]
    %v8537 = vld [vmem:[%s8516 + $0xa0] sm:$0xff]
    %v8538 = vld [vmem:[%s8516 + $0xa8] sm:$0xff]
    %v8539 = vld [vmem:[%s8516 + $0xb0] sm:$0xff]
    %v8540 = vld [vmem:[%s8516 + $0xb8] sm:$0xff]
    %v8541 = vld [vmem:[%s8516 + $0xc0] sm:$0xff]
    %v8542 = vld [vmem:[%s8516 + $0xc8] sm:$0xff]
    %v8543 = vld [vmem:[%s8516 + $0xd0] sm:$0xff]
    %v8544 = vld [vmem:[%s8516 + $0xd8] sm:$0xff]
    %v8545 = vld [vmem:[%s8516 + $0xe0] sm:$0xff]
    %v8546 = vld [vmem:[%s8516 + $0xe8] sm:$0xff]
    %v8547 = vld [vmem:[%s8516 + $0xf0] sm:$0xff]
    %v8548 = vld [vmem:[%s8516 + $0xf8] sm:$0xff]
    %8549 = vmatprep.subr.mxu0 0.0
    %8550 = vmatpush1.msra.mxu0 %v8517
    %8551 = vmatprep.subr.mxu0 0.0
    %8552 = vmatpush1.msra.mxu0 %v8518
    %8553 = vmatprep.subr.mxu0 0.0
    %8554 = vmatpush1.msra.mxu0 %v8519
    %8555 = vmatprep.subr.mxu0 0.0
    %8556 = vmatpush1.msra.mxu0 %v8520
    %8557 = vmatprep.subr.mxu0 0.0
    %8558 = vmatpush1.msra.mxu0 %v8521
    %8559 = vmatprep.subr.mxu0 0.0
    %8560 = vmatpush1.msra.mxu0 %v8522
    %8561 = vmatprep.subr.mxu0 0.0
    %8562 = vmatpush1.msra.mxu0 %v8523
    %8563 = vmatprep.subr.mxu0 0.0
    %8564 = vmatpush1.msra.mxu0 %v8524
    %8565 = vmatprep.subr.mxu0 0.0
    %8566 = vmatpush1.msra.mxu0 %v8525
    %8567 = vmatprep.subr.mxu0 0.0
    %8568 = vmatpush1.msra.mxu0 %v8526
    %8569 = vmatprep.subr.mxu0 0.0
    %8570 = vmatpush1.msra.mxu0 %v8527
    %8571 = vmatprep.subr.mxu0 0.0
    %8572 = vmatpush1.msra.mxu0 %v8528
    %8573 = vmatprep.subr.mxu0 0.0
    %8574 = vmatpush1.msra.mxu0 %v8529
    %8575 = vmatprep.subr.mxu0 0.0
    %8576 = vmatpush1.msra.mxu0 %v8530
    %8577 = vmatprep.subr.mxu0 0.0
    %8578 = vmatpush1.msra.mxu0 %v8531
    %8579 = vmatprep.subr.mxu0 0.0
    %8580 = vmatpush1.msra.mxu0 %v8532
    %8581 = vmatprep.subr.mxu0 0.0
    %8582 = vmatpush1.msra.mxu0 %v8533
    %8583 = vmatprep.subr.mxu0 0.0
    %8584 = vmatpush1.msra.mxu0 %v8534
    %8585 = vmatprep.subr.mxu0 0.0
    %8586 = vmatpush1.msra.mxu0 %v8535
    %8587 = vmatprep.subr.mxu0 0.0
    %8588 = vmatpush1.msra.mxu0 %v8536
    %8589 = vmatprep.subr.mxu0 0.0
    %8590 = vmatpush1.msra.mxu0 %v8537
    %8591 = vmatprep.subr.mxu0 0.0
    %8592 = vmatpush1.msra.mxu0 %v8538
    %8593 = vmatprep.subr.mxu0 0.0
    %8594 = vmatpush1.msra.mxu0 %v8539
    %8595 = vmatprep.subr.mxu0 0.0
    %8596 = vmatpush1.msra.mxu0 %v8540
    %8597 = vmatprep.subr.mxu0 0.0
    %8598 = vmatpush1.msra.mxu0 %v8541
    %8599 = vmatprep.subr.mxu0 0.0
    %8600 = vmatpush1.msra.mxu0 %v8542
    %8601 = vmatprep.subr.mxu0 0.0
    %8602 = vmatpush1.msra.mxu0 %v8543
    %8603 = vmatprep.subr.mxu0 0.0
    %8604 = vmatpush1.msra.mxu0 %v8544
    %8605 = vmatprep.subr.mxu0 0.0
    %8606 = vmatpush1.msra.mxu0 %v8545
    %8607 = vmatprep.subr.mxu0 0.0
    %8608 = vmatpush1.msra.mxu0 %v8546
    %8609 = vmatprep.subr.mxu0 0.0
    %8610 = vmatpush1.msra.mxu0 %v8547
    %8611 = vmatprep.subr.mxu0 0.0
    %8612 = vmatpush1.msra.mxu0 %v8548
    %8613 = vmatprep.mubr.f32.mxu0 %v8515
    %8614 = vmatmul.mubr.f32.gmra.mrb[0].mxu0 %v8514
    %v8615 = vpop.f32.mrb[0].mxu0
    %v8616 = vadd.f32 0.0, %v8615
    %v8617 = vpop.f32.mrb[0].mxu0
    %8618 = vdwg.mxu0
    %v8619 = vadd.f32 %v8513, %v8616
    %v8620 = vld [vmem:[#allocation5 + $0x60] sm:$0xff]
    %v8621 = vld [vmem:[#allocation5 + $0x68] sm:$0xff]
    %s8622 = scalar_lea.vmem [#allocation13], 1536
    %v8623 = vld [vmem:[%s8622] sm:$0xff]
    %v8624 = vld [vmem:[%s8622 + $0x8] sm:$0xff]
    %v8625 = vld [vmem:[%s8622 + $0x10] sm:$0xff]
    %v8626 = vld [vmem:[%s8622 + $0x18] sm:$0xff]
    %v8627 = vld [vmem:[%s8622 + $0x20] sm:$0xff]
    %v8628 = vld [vmem:[%s8622 + $0x28] sm:$0xff]
    %v8629 = vld [vmem:[%s8622 + $0x30] sm:$0xff]
    %v8630 = vld [vmem:[%s8622 + $0x38] sm:$0xff]
    %v8631 = vld [vmem:[%s8622 + $0x40] sm:$0xff]
    %v8632 = vld [vmem:[%s8622 + $0x48] sm:$0xff]
    %v8633 = vld [vmem:[%s8622 + $0x50] sm:$0xff]
    %v8634 = vld [vmem:[%s8622 + $0x58] sm:$0xff]
    %v8635 = vld [vmem:[%s8622 + $0x60] sm:$0xff]
    %v8636 = vld [vmem:[%s8622 + $0x68] sm:$0xff]
    %v8637 = vld [vmem:[%s8622 + $0x70] sm:$0xff]
    %v8638 = vld [vmem:[%s8622 + $0x78] sm:$0xff]
    %v8639 = vld [vmem:[%s8622 + $0x80] sm:$0xff]
    %v8640 = vld [vmem:[%s8622 + $0x88] sm:$0xff]
    %v8641 = vld [vmem:[%s8622 + $0x90] sm:$0xff]
    %v8642 = vld [vmem:[%s8622 + $0x98] sm:$0xff]
    %v8643 = vld [vmem:[%s8622 + $0xa0] sm:$0xff]
    %v8644 = vld [vmem:[%s8622 + $0xa8] sm:$0xff]
    %v8645 = vld [vmem:[%s8622 + $0xb0] sm:$0xff]
    %v8646 = vld [vmem:[%s8622 + $0xb8] sm:$0xff]
    %v8647 = vld [vmem:[%s8622 + $0xc0] sm:$0xff]
    %v8648 = vld [vmem:[%s8622 + $0xc8] sm:$0xff]
    %v8649 = vld [vmem:[%s8622 + $0xd0] sm:$0xff]
    %v8650 = vld [vmem:[%s8622 + $0xd8] sm:$0xff]
    %v8651 = vld [vmem:[%s8622 + $0xe0] sm:$0xff]
    %v8652 = vld [vmem:[%s8622 + $0xe8] sm:$0xff]
    %v8653 = vld [vmem:[%s8622 + $0xf0] sm:$0xff]
    %v8654 = vld [vmem:[%s8622 + $0xf8] sm:$0xff]
    %8655 = vmatprep.subr.mxu0 0.0
    %8656 = vmatpush1.msra.mxu0 %v8623
    %8657 = vmatprep.subr.mxu0 0.0
    %8658 = vmatpush1.msra.mxu0 %v8624
    %8659 = vmatprep.subr.mxu0 0.0
    %8660 = vmatpush1.msra.mxu0 %v8625
    %8661 = vmatprep.subr.mxu0 0.0
    %8662 = vmatpush1.msra.mxu0 %v8626
    %8663 = vmatprep.subr.mxu0 0.0
    %8664 = vmatpush1.msra.mxu0 %v8627
    %8665 = vmatprep.subr.mxu0 0.0
    %8666 = vmatpush1.msra.mxu0 %v8628
    %8667 = vmatprep.subr.mxu0 0.0
    %8668 = vmatpush1.msra.mxu0 %v8629
    %8669 = vmatprep.subr.mxu0 0.0
    %8670 = vmatpush1.msra.mxu0 %v8630
    %8671 = vmatprep.subr.mxu0 0.0
    %8672 = vmatpush1.msra.mxu0 %v8631
    %8673 = vmatprep.subr.mxu0 0.0
    %8674 = vmatpush1.msra.mxu0 %v8632
    %8675 = vmatprep.subr.mxu0 0.0
    %8676 = vmatpush1.msra.mxu0 %v8633
    %8677 = vmatprep.subr.mxu0 0.0
    %8678 = vmatpush1.msra.mxu0 %v8634
    %8679 = vmatprep.subr.mxu0 0.0
    %8680 = vmatpush1.msra.mxu0 %v8635
    %8681 = vmatprep.subr.mxu0 0.0
    %8682 = vmatpush1.msra.mxu0 %v8636
    %8683 = vmatprep.subr.mxu0 0.0
    %8684 = vmatpush1.msra.mxu0 %v8637
    %8685 = vmatprep.subr.mxu0 0.0
    %8686 = vmatpush1.msra.mxu0 %v8638
    %8687 = vmatprep.subr.mxu0 0.0
    %8688 = vmatpush1.msra.mxu0 %v8639
    %8689 = vmatprep.subr.mxu0 0.0
    %8690 = vmatpush1.msra.mxu0 %v8640
    %8691 = vmatprep.subr.mxu0 0.0
    %8692 = vmatpush1.msra.mxu0 %v8641
    %8693 = vmatprep.subr.mxu0 0.0
    %8694 = vmatpush1.msra.mxu0 %v8642
    %8695 = vmatprep.subr.mxu0 0.0
    %8696 = vmatpush1.msra.mxu0 %v8643
    %8697 = vmatprep.subr.mxu0 0.0
    %8698 = vmatpush1.msra.mxu0 %v8644
    %8699 = vmatprep.subr.mxu0 0.0
    %8700 = vmatpush1.msra.mxu0 %v8645
    %8701 = vmatprep.subr.mxu0 0.0
    %8702 = vmatpush1.msra.mxu0 %v8646
    %8703 = vmatprep.subr.mxu0 0.0
    %8704 = vmatpush1.msra.mxu0 %v8647
    %8705 = vmatprep.subr.mxu0 0.0
    %8706 = vmatpush1.msra.mxu0 %v8648
    %8707 = vmatprep.subr.mxu0 0.0
    %8708 = vmatpush1.msra.mxu0 %v8649
    %8709 = vmatprep.subr.mxu0 0.0
    %8710 = vmatpush1.msra.mxu0 %v8650
    %8711 = vmatprep.subr.mxu0 0.0
    %8712 = vmatpush1.msra.mxu0 %v8651
    %8713 = vmatprep.subr.mxu0 0.0
    %8714 = vmatpush1.msra.mxu0 %v8652
    %8715 = vmatprep.subr.mxu0 0.0
    %8716 = vmatpush1.msra.mxu0 %v8653
    %8717 = vmatprep.subr.mxu0 0.0
    %8718 = vmatpush1.msra.mxu0 %v8654
    %8719 = vmatprep.mubr.f32.mxu0 %v8621
    %8720 = vmatmul.mubr.f32.gmra.mrb[0].mxu0 %v8620
    %v8721 = vpop.f32.mrb[0].mxu0
    %v8722 = vadd.f32 0.0, %v8721
    %v8723 = vpop.f32.mrb[0].mxu0
    %8724 = vdwg.mxu0
    %v8725 = vadd.f32 %v8619, %v8722
    %v8726 = vld [vmem:[#allocation14] sm:$0x1]
    %v8728 = vlaneseq
    %v8729 = vshrl.u32 %v8728, 7
    %v8730 = vsub.s32 0, %v8729
    %v8731 = vrot.slane %v8726, %v8730
    %v8733 = vadd.f32 %v8725, %v8731
    %8734 = vst [vmem:[%s7] sm:$0xff] %v8733
    // Predicated region
    $region54: #{cnn_forward.1} parent=1 // pred_check
      _
    $region55: #{cnn_forward.1} parent=1 // pred_check_branch
      %8736 = sbr.rel (0) target = $region57
    $region56: #{cnn_forward.1} parent=1 // pred_region
      _
    $region57: #{cnn_forward.1} parent=1 // pred_fallthru
      _
    // Predicated region
    $region58: #{cnn_forward.1} parent=1 // pred_check
      _
    $region59: #{cnn_forward.1} parent=1 // pred_check_branch
      %8738 = sbr.rel (0) target = $region61
    $region60: #{cnn_forward.1} parent=1 // pred_region
      _
    $region61: #{cnn_forward.1} parent=1 // pred_fallthru
      _
    %8739 = vsyncpa [#allocation7], 1
    %8740 = vsyncpa [#allocation9], 1
    %8741 = vsyncpa [#allocation12], 1
    %8742 = vsyncpa [#allocation15], 1

</llo_original>
